<compile_context>
chip_gen: v5e
topology: v5e:2x2
jax: 0.10.0
libtpu: 0.0.40
codegen_flags: <defaults>
</compile_context>

<pallas_src>
import functools
import math

import jax
import jax.numpy as jnp
from jax import lax
from jax.experimental import pallas as pl
from jax.experimental.pallas import tpu as pltpu

# ---- model hyper-parameters --------------------------------------------------
FEAT_DIM = 256          # == PositionalEncoding features_dim
D_K = 64
D_V = 64
D_FF = 512
N_HEADS = 4
N_LANG = 3
MAX_SEQ_LEN = 140
BN_EPS = 1e-5
LN_EPS = 1e-5

BN_SCALE = 1.0 / math.sqrt(1.0 + BN_EPS)     # eval BN with mean=0, var=1
FC1_PAD = 3072                               # 3000 rounded up to 128 lanes
LANG_PAD = 128                               # 3 rounded up to 128 lanes
QKV_DIM = N_HEADS * (D_K + D_K + D_V)        # 768
VMEM_LIMIT = 32 * 1024 * 1024


def _tile(dim, preferred, quantum):
    """Largest tile <= preferred that divides dim and is a multiple of quantum
    (falls back to the full dim, which is always a legal block size)."""
    if dim <= preferred:
        return dim
    t = (preferred // quantum) * quantum
    while t >= quantum:
        if dim % t == 0:
            return t
        t -= quantum
    return dim


# =============================================================================
# Fused linear kernel: y = epilogue( in_act(x) @ W + b )
# =============================================================================
def _linear_kernel(*refs, nk, epilogue, in_act):
    if epilogue == "residual_ln":
        x_ref, w_ref, b_ref, r_ref, g_ref, be_ref = refs[:6]
        rest = refs[6:]
    else:
        x_ref, w_ref, b_ref = refs[:3]
        r_ref = g_ref = be_ref = None
        rest = refs[3:]
    if nk > 1:
        o_ref, acc_ref = rest
    else:
        (o_ref,) = rest
        acc_ref = None

    x = x_ref[...]
    if in_act == "relu_bn":
        x = (jnp.maximum(x.astype(jnp.float32), 0.0) * BN_SCALE).astype(jnp.bfloat16)
    partial = jnp.dot(x, w_ref[...], preferred_element_type=jnp.float32)

    def _epilogue_store(y):
        y = y + b_ref[...]
        if epilogue == "relu":
            y = jnp.maximum(y, 0.0)
        elif epilogue == "relu_bn":
            y = jnp.maximum(y, 0.0) * BN_SCALE
        elif epilogue == "sigmoid":
            y = jax.nn.sigmoid(y)
        elif epilogue == "residual_ln":
            y = y + r_ref[...].astype(jnp.float32)
            m = jnp.mean(y, axis=-1, keepdims=True)
            c = y - m
            var = jnp.mean(c * c, axis=-1, keepdims=True)
            y = c * lax.rsqrt(var + LN_EPS) * g_ref[...] + be_ref[...]
        o_ref[...] = y.astype(o_ref.dtype)

    if nk == 1:
        # No K tiling: skip the accumulator scratch and init/finalize phases.
        _epilogue_store(partial)
    else:
        k = pl.program_id(2)

        @pl.when(k == 0)
        def _():
            acc_ref[...] = jnp.zeros_like(acc_ref)

        acc_ref[...] += partial

        @pl.when(k == nk - 1)
        def _():
            _epilogue_store(acc_ref[...])


def linear(x, w, b, *, epilogue="none", in_act="none",
           residual=None, gamma=None, beta=None, out_dtype=jnp.bfloat16):
    """y = epilogue(in_act(x) @ w + b), bf16 MXU operands, f32 accumulate."""
    M, K = x.shape
    K2, N = w.shape
    assert K == K2
    tm = _tile(M, 256, 8)
    tn = _tile(N, 1024, 128)
    tk = _tile(K, 512, 128)
    nm, nn, nk = M // tm, N // tn, K // tk
    if epilogue == "residual_ln":
        assert nn == 1, "residual_ln epilogue needs the full feature width in one tile"

    in_specs = [
        pl.BlockSpec((tm, tk), lambda i, j, k: (i, k)),
        pl.BlockSpec((tk, tn), lambda i, j, k: (k, j)),
        pl.BlockSpec((1, tn), lambda i, j, k: (0, j)),
    ]
    args = [x, w, b]
    if epilogue == "residual_ln":
        in_specs += [
            pl.BlockSpec((tm, tn), lambda i, j, k: (i, j)),
            pl.BlockSpec((1, tn), lambda i, j, k: (0, j)),
            pl.BlockSpec((1, tn), lambda i, j, k: (0, j)),
        ]
        args += [residual, gamma, beta]

    scratch = [pltpu.VMEM((tm, tn), jnp.float32)] if nk > 1 else []

    return pl.pallas_call(
        functools.partial(_linear_kernel, nk=nk, epilogue=epilogue, in_act=in_act),
        out_shape=jax.ShapeDtypeStruct((M, N), out_dtype),
        grid_spec=pltpu.PrefetchScalarGridSpec(
            num_scalar_prefetch=0,
            grid=(nm, nn, nk),
            in_specs=in_specs,
            out_specs=pl.BlockSpec((tm, tn), lambda i, j, k: (i, j)),
            scratch_shapes=scratch,
        ),
        compiler_params=pltpu.CompilerParams(
            dimension_semantics=("parallel", "parallel", "arbitrary"),
            vmem_limit_bytes=VMEM_LIMIT,
        ),
    )(*args)


# =============================================================================
# Frame statistics pooling: windows of 10 frames -> concat(mean, std)
# =============================================================================
def _frame_stats_kernel(x_ref, o_ref):
    x = x_ref[...].astype(jnp.float32)          # (tr, 10, f)
    w = x.shape[1]
    mean = jnp.mean(x, axis=1)                  # (tr, f)
    c = x - mean[:, None, :]
    var = jnp.sum(c * c, axis=1) / (w - 1)      # unbiased, like torch.std
    std = jnp.sqrt(var)
    o_ref[...] = jnp.concatenate([mean, std], axis=-1).astype(o_ref.dtype)


def frame_stats(x):
    R, W, f = x.shape
    tr = _tile(R, 128, 8)
    return pl.pallas_call(
        _frame_stats_kernel,
        out_shape=jax.ShapeDtypeStruct((R, 2 * f), jnp.bfloat16),
        grid_spec=pltpu.PrefetchScalarGridSpec(
            num_scalar_prefetch=0,
            grid=(R // tr,),
            in_specs=[pl.BlockSpec((tr, W, f), lambda i: (i, 0, 0))],
            out_specs=pl.BlockSpec((tr, 2 * f), lambda i: (i, 0)),
        ),
        compiler_params=pltpu.CompilerParams(
            dimension_semantics=("parallel",),
            vmem_limit_bytes=VMEM_LIMIT,
        ),
    )(x)


# =============================================================================
# Fused LayerNorm1 -> +PositionalEncoding -> LayerNorm2
# =============================================================================
def _ln_pe_ln_kernel(x_ref, pe_ref, g1_ref, b1_ref, g2_ref, b2_ref, o_ref):
    x = x_ref[0].astype(jnp.float32)            # (tt, F)

    def ln(v, g, b):
        m = jnp.mean(v, axis=-1, keepdims=True)
        c = v - m
        var = jnp.mean(c * c, axis=-1, keepdims=True)
        return c * lax.rsqrt(var + LN_EPS) * g + b

    y = ln(x, g1_ref[...], b1_ref[...]) + pe_ref[...]
    y = ln(y, g2_ref[...], b2_ref[...])
    o_ref[0] = y.astype(o_ref.dtype)


def ln_pe_ln(x, pe, g1, b1, g2, b2):
    B, T, F = x.shape
    tt = _tile(T, 128, 8)
    return pl.pallas_call(
        _ln_pe_ln_kernel,
        out_shape=jax.ShapeDtypeStruct((B, T, F), jnp.bfloat16),
        grid_spec=pltpu.PrefetchScalarGridSpec(
            num_scalar_prefetch=0,
            grid=(B, T // tt),
            in_specs=[
                pl.BlockSpec((1, tt, F), lambda b, t: (b, t, 0)),
                pl.BlockSpec((tt, F), lambda b, t: (t, 0)),
                pl.BlockSpec((1, F), lambda b, t: (0, 0)),
                pl.BlockSpec((1, F), lambda b, t: (0, 0)),
                pl.BlockSpec((1, F), lambda b, t: (0, 0)),
                pl.BlockSpec((1, F), lambda b, t: (0, 0)),
            ],
            out_specs=pl.BlockSpec((1, tt, F), lambda b, t: (b, t, 0)),
        ),
        compiler_params=pltpu.CompilerParams(
            dimension_semantics=("parallel", "parallel"),
            vmem_limit_bytes=VMEM_LIMIT,
        ),
    )(x, pe, g1, b1, g2, b2)


# =============================================================================
# Multi-head self-attention: all heads per batch element per grid step,
# reading q/k/v straight from the fused (T, 3*H*d) projection layout.
# =============================================================================
def _attention_kernel(qkv_ref, m_ref, o_ref, *, n_heads, d_k, d_v, scale):
    qkv = qkv_ref[0]                              # (T, H*dk + H*dk + H*dv) bf16
    mask = m_ref[0].astype(jnp.float32)           # (T, T) additive mask
    k_off = n_heads * d_k
    v_off = 2 * n_heads * d_k
    outs = []
    for h in range(n_heads):
        q = qkv[:, h * d_k:(h + 1) * d_k]
        k = qkv[:, k_off + h * d_k:k_off + (h + 1) * d_k]
        v = qkv[:, v_off + h * d_v:v_off + (h + 1) * d_v]
        # contract on the last axes -> no materialized k.T
        s = lax.dot_general(q, k, (((1,), (1,)), ((), ())),
                            preferred_element_type=jnp.float32)
        s = s * scale + mask
        s = s - jnp.max(s, axis=-1, keepdims=True)
        p = jnp.exp(s)
        p = p * pl.reciprocal(jnp.sum(p, axis=-1, keepdims=True), approx=True)
        outs.append(jnp.dot(p.astype(v.dtype), v,
                            preferred_element_type=jnp.float32))
    o_ref[0] = jnp.concatenate(outs, axis=-1).astype(o_ref.dtype)


def mha_attention(qkv, mask, n_heads, d_k, d_v):
    B, T, W = qkv.shape
    scale = 1.0 / math.sqrt(d_k)
    return pl.pallas_call(
        functools.partial(_attention_kernel, n_heads=n_heads, d_k=d_k,
                          d_v=d_v, scale=scale),
        out_shape=jax.ShapeDtypeStruct((B, T, n_heads * d_v), jnp.bfloat16),
        grid_spec=pltpu.PrefetchScalarGridSpec(
            num_scalar_prefetch=0,
            grid=(B,),
            in_specs=[
                pl.BlockSpec((1, T, W), lambda b: (b, 0, 0)),
                pl.BlockSpec((1, T, T), lambda b: (b, 0, 0)),
            ],
            out_specs=pl.BlockSpec((1, T, n_heads * d_v), lambda b: (b, 0, 0)),
        ),
        compiler_params=pltpu.CompilerParams(
            dimension_semantics=("parallel",),
            vmem_limit_bytes=VMEM_LIMIT,
        ),
    )(qkv, mask)


# =============================================================================
# Parameter initialisation (deterministic, PyTorch-Linear-style uniform)
# =============================================================================
def init_linear(key, fan_in, fan_out, pad_in=None, pad_out=None):
    kw, kb = jax.random.split(key)
    bound = 1.0 / math.sqrt(fan_in)
    w = jax.random.uniform(kw, (fan_in, fan_out), jnp.float32, -bound, bound)
    b = jax.random.uniform(kb, (fan_out,), jnp.float32, -bound, bound)
    if pad_out is not None and pad_out > fan_out:
        w = jnp.pad(w, ((0, 0), (0, pad_out - fan_out)))
        b = jnp.pad(b, (0, pad_out - fan_out))
    if pad_in is not None and pad_in > fan_in:
        w = jnp.pad(w, ((0, pad_in - fan_in), (0, 0)))
    return {"w": w.astype(jnp.bfloat16), "b": b.reshape(1, -1).astype(jnp.float32)}


def init_qkv(key):
    kq, kk, kv = jax.random.split(key, 3)
    q = init_linear(kq, FEAT_DIM, N_HEADS * D_K)
    k = init_linear(kk, FEAT_DIM, N_HEADS * D_K)
    v = init_linear(kv, FEAT_DIM, N_HEADS * D_V)
    return {"w": jnp.concatenate([q["w"], k["w"], v["w"]], axis=1),
            "b": jnp.concatenate([q["b"], k["b"], v["b"]], axis=1)}


def sinusoid_pe(max_len, d):
    pos = jnp.arange(max_len, dtype=jnp.float32)[:, None]
    i = jnp.arange(d)[None, :]
    angle = pos / jnp.power(10000.0, (2 * (i // 2)) / d)
    return jnp.where(i % 2 == 0, jnp.sin(angle), jnp.cos(angle)).astype(jnp.float32)


def init_encoder_block(key):
    ks = jax.random.split(key, 4)
    return {
        "wqkv": init_qkv(ks[0]),
        "wo": init_linear(ks[1], N_HEADS * D_V, FEAT_DIM),
        "ln1_g": jnp.ones((1, FEAT_DIM), jnp.float32),
        "ln1_b": jnp.zeros((1, FEAT_DIM), jnp.float32),
        "ff1": init_linear(ks[2], FEAT_DIM, D_FF),
        "ff2": init_linear(ks[3], D_FF, FEAT_DIM),
        "ln2_g": jnp.ones((1, FEAT_DIM), jnp.float32),
        "ln2_b": jnp.zeros((1, FEAT_DIM), jnp.float32),
    }


def init_params(key):
    ks = jax.random.split(key, 6)
    return {
        # fc1 padded to 3072 output lanes (zeros beyond 3000); fc2's K padded
        # with zero rows to match -> mathematically identical to 3000 wide.
        "fc1": init_linear(ks[0], 1536, 3000, pad_out=FC1_PAD),
        "fc2": init_linear(ks[1], 3000, FEAT_DIM, pad_in=FC1_PAD),
        "fc3": init_linear(ks[2], FEAT_DIM, FEAT_DIM),
        "fc4": init_linear(ks[3], FEAT_DIM, N_LANG, pad_out=LANG_PAD),
        "out_fc": init_linear(ks[4], FEAT_DIM, N_LANG, pad_out=LANG_PAD),
        "ln1_g": jnp.ones((1, FEAT_DIM), jnp.float32),
        "ln1_b": jnp.zeros((1, FEAT_DIM), jnp.float32),
        "ln2_g": jnp.ones((1, FEAT_DIM), jnp.float32),
        "ln2_b": jnp.zeros((1, FEAT_DIM), jnp.float32),
        "pe": sinusoid_pe(MAX_SEQ_LEN, FEAT_DIM),
        "blocks": [init_encoder_block(k) for k in jax.random.split(ks[5], 4)],
    }


# =============================================================================
# Forward pass
# =============================================================================
def encoder_block_fwd(p, x3, mask, b, T):
    x2d = x3.reshape(b * T, FEAT_DIM)

    # --- multi-head self-attention (fused QKV projection, fused residual+LN) -
    qkv = linear(x2d, p["wqkv"]["w"], p["wqkv"]["b"])             # (bT, 768)
    attn = mha_attention(qkv.reshape(b, T, QKV_DIM), mask,
                         N_HEADS, D_K, D_V)                       # (b, T, 256)
    x2d = linear(attn.reshape(b * T, N_HEADS * D_V),
                 p["wo"]["w"], p["wo"]["b"],
                 epilogue="residual_ln", residual=x2d,
                 gamma=p["ln1_g"], beta=p["ln1_b"])               # (bT, 256)

    # --- position-wise feed-forward (fused relu / residual+LN) ---------------
    h = linear(x2d, p["ff1"]["w"], p["ff1"]["b"], epilogue="relu")  # (bT, 512)
    x2d = linear(h, p["ff2"]["w"], p["ff2"]["b"],
                 epilogue="residual_ln", residual=x2d,
                 gamma=p["ln2_g"], beta=p["ln2_b"])               # (bT, 256)
    return x2d.reshape(b, T, FEAT_DIM)


def forward(params, x, seq_len, atten_mask):
    b, s, f = x.shape
    T = s // 10

    # frame-level statistics pooling over windows of 10 frames
    stats = frame_stats(x.reshape(b * T, 10, f))                  # (bT, 1536) bf16

    h = linear(stats, params["fc1"]["w"], params["fc1"]["b"],
               epilogue="relu_bn")                                # bn1(relu(fc1))
    embedding = linear(h, params["fc2"]["w"], params["fc2"]["b"])  # (bT, 256)
    # bn2(relu(embedding)) fused as a prologue; bn3(relu(fc3)) fused as epilogue.
    h = linear(embedding, params["fc3"]["w"], params["fc3"]["b"],
               in_act="relu_bn", epilogue="relu_bn")
    cnn_output = linear(h, params["fc4"]["w"], params["fc4"]["b"],
                        out_dtype=jnp.float32)[:, :N_LANG]        # (bT, 3)

    # TODO(synk): per-sample seq_len truncation/masking of the positional
    # encoding is not applied (PositionalEncoding source not provided); the
    # sinusoidal encoding is added for all T positions.
    out = ln_pe_ln(embedding.reshape(b, T, FEAT_DIM), params["pe"][:T],
                   params["ln1_g"], params["ln1_b"],
                   params["ln2_g"], params["ln2_b"])              # (b, T, 256)

    for blk in params["blocks"]:
        out = encoder_block_fwd(blk, out, atten_mask, b, T)

    out2d = linear(out.reshape(b * T, FEAT_DIM),
                   params["out_fc"]["w"], params["out_fc"]["b"],
                   epilogue="sigmoid", out_dtype=jnp.float32)     # (bT, 128)
    output = out2d[:, :N_LANG].reshape(b, T, N_LANG)
    return output, cnn_output


# =============================================================================
if __name__ == "__main__":
    key = jax.random.PRNGKey(0)
    k_x, k_p = jax.random.split(key)

    b, s, f = 2, 20, 768            # 2*f = 1536 (fc1 input); s multiple of 10
    T = s // 10

    x = jax.random.normal(k_x, (b, s, f), jnp.float32)
    seq_len = jnp.full((b,), T, dtype=jnp.int32)
    atten_mask = jnp.zeros((b, T, T), jnp.float32)   # additive mask: 0 = attend

    params = init_params(k_p)

    output, cnn_output = jax.jit(forward)(params, x, seq_len, atten_mask)
    jax.block_until_ready((output, cnn_output))

    assert output.shape == (b, T, N_LANG)
    assert cnn_output.shape == (b * T, N_LANG)
    assert bool(jnp.all(jnp.isfinite(output))) and bool(jnp.all(jnp.isfinite(cnn_output)))
    print("KERNEL_OK")
</pallas_src>

<mosaic_0001>
module attributes {stable_mosaic.version = 11 : i64} {
  func.func @_frame_stats_kernel(%arg0: i32, %arg1: memref<4x10x768xf32, #tpu.memory_space<vmem>>, %arg2: memref<4x1536xbf16, #tpu.memory_space<vmem>>) attributes {dimension_semantics = [#tpu.dimension_semantics<parallel>], iteration_bounds = array<i64: 1>, scalar_prefetch = 0 : i64, scratch_operands = 0 : i64, tpu.core_type = #tpu.core_type<tc>, window_params = [{transform_indices = @transform_0, window_bounds = array<i64: 4, 10, 768>}, {transform_indices = @transform_1, window_bounds = array<i64: 4, 1536>}]} {
    %c0 = arith.constant 0 : index
    %c0_0 = arith.constant 0 : index
    %c0_1 = arith.constant 0 : index
    %0 = vector.load %arg1[%c0, %c0_0, %c0_1] : memref<4x10x768xf32, #tpu.memory_space<vmem>>, vector<4x10x768xf32>
    %cst = arith.constant dense<0.000000e+00> : vector<4x768xf32>
    %1 = vector.multi_reduction <add>, %0, %cst [1] : vector<4x10x768xf32> to vector<4x768xf32>
    %cst_2 = arith.constant 1.000000e+01 : f32
    %2 = vector.broadcast %cst_2 : f32 to vector<4x768xf32>
    %3 = arith.divf %1, %2 : vector<4x768xf32>
    %4 = vector.shape_cast %3 : vector<4x768xf32> to vector<4x1x768xf32>
    %5 = vector.broadcast %4 : vector<4x1x768xf32> to vector<4x10x768xf32>
    %6 = arith.subf %0, %5 : vector<4x10x768xf32>
    %7 = arith.mulf %6, %6 : vector<4x10x768xf32>
    %cst_3 = arith.constant dense<0.000000e+00> : vector<4x768xf32>
    %8 = vector.multi_reduction <add>, %7, %cst_3 [1] : vector<4x10x768xf32> to vector<4x768xf32>
    %cst_4 = arith.constant 9.000000e+00 : f32
    %9 = vector.broadcast %cst_4 : f32 to vector<4x768xf32>
    %10 = arith.divf %8, %9 : vector<4x768xf32>
    %11 = math.sqrt %10 : vector<4x768xf32>
    %12 = tpu.concatenate %3, %11 in 1 : vector<4x768xf32>, vector<4x768xf32> -> vector<4x1536xf32>
    %13 = arith.truncf %12 : vector<4x1536xf32> to vector<4x1536xbf16>
    %c0_5 = arith.constant 0 : index
    %c0_6 = arith.constant 0 : index
    %14 = vector.load %arg2[%c0_5, %c0_6] : memref<4x1536xbf16, #tpu.memory_space<vmem>>, vector<4x1536xbf16>
    tpu.vector_store %arg2[%c0_5, %c0_6], %13 {strides = array<i32>} : memref<4x1536xbf16, #tpu.memory_space<vmem>>, vector<4x1536xbf16>,
    return
  }
  func.func @transform_0(%arg0: i32) -> (i32, i32, i32) {
    %c0_i32 = arith.constant 0 : i32
    %c0_i32_0 = arith.constant 0 : i32
    %c0_i32_1 = arith.constant 0 : i32
    return %arg0, %c0_i32, %c0_i32_0 : i32, i32, i32
  }
  func.func @transform_1(%arg0: i32) -> (i32, i32) {
    %c0_i32 = arith.constant 0 : i32
    %c0_i32_0 = arith.constant 0 : i32
    return %arg0, %c0_i32 : i32, i32
  }
}

module attributes {stable_mosaic.version = 11 : i64} {
  func.func @_linear_kernel(%arg0: i32, %arg1: i32, %arg2: i32, %arg3: memref<4x512xbf16, #tpu.memory_space<vmem>>, %arg4: memref<512x1024xbf16, #tpu.memory_space<vmem>>, %arg5: memref<1x1024xf32, #tpu.memory_space<vmem>>, %arg6: memref<4x1024xbf16, #tpu.memory_space<vmem>>, %arg7: memref<4x1024xf32, #tpu.memory_space<vmem>>) attributes {dimension_semantics = [#tpu.dimension_semantics<parallel>, #tpu.dimension_semantics<parallel>, #tpu.dimension_semantics<arbitrary>], iteration_bounds = array<i64: 1, 3, 3>, scalar_prefetch = 0 : i64, scratch_operands = 1 : i64, tpu.core_type = #tpu.core_type<tc>, window_params = [{transform_indices = @transform_0, window_bounds = array<i64: 4, 512>}, {transform_indices = @transform_1, window_bounds = array<i64: 512, 1024>}, {transform_indices = @transform_2, window_bounds = array<i64: 1, 1024>}, {transform_indices = @transform_3, window_bounds = array<i64: 4, 1024>}]} {
    %c0 = arith.constant 0 : index
    %c0_0 = arith.constant 0 : index
    %0 = vector.load %arg3[%c0, %c0_0] : memref<4x512xbf16, #tpu.memory_space<vmem>>, vector<4x512xbf16>
    %c0_1 = arith.constant 0 : index
    %c0_2 = arith.constant 0 : index
    %1 = vector.load %arg4[%c0_1, %c0_2] : memref<512x1024xbf16, #tpu.memory_space<vmem>>, vector<512x1024xbf16>
    %cst = arith.constant dense<0.000000e+00> : vector<4x1024xf32>
    %2 = tpu.matmul %0, %1, %cst {dimension_numbers = #tpu.dot_dimension_numbers<[1], [0], [0], [1], [0, 0, 1, 1], [], []>} : vector<4x512xbf16>, vector<512x1024xbf16>, vector<4x1024xf32> -> vector<4x1024xf32>
    %c0_i32 = arith.constant 0 : i32
    %3 = arith.cmpi eq, %arg2, %c0_i32 : i32
    %4 = arith.extui %3 : i1 to i32
    %c0_i32_3 = arith.constant 0 : i32
    %5 = arith.cmpi ne, %4, %c0_i32_3 : i32
    scf.if %5 {
      %cst_9 = arith.constant 0.000000e+00 : f32
      %12 = vector.broadcast %cst_9 : f32 to vector<4x1024xf32>
      %c0_10 = arith.constant 0 : index
      %c0_11 = arith.constant 0 : index
      %13 = vector.load %arg7[%c0_10, %c0_11] : memref<4x1024xf32, #tpu.memory_space<vmem>>, vector<4x1024xf32>
      tpu.vector_store %arg7[%c0_10, %c0_11], %12 {strides = array<i32>} : memref<4x1024xf32, #tpu.memory_space<vmem>>, vector<4x1024xf32>,
    } else {
    }
    %c0_4 = arith.constant 0 : index
    %c0_5 = arith.constant 0 : index
    %6 = vector.load %arg7[%c0_4, %c0_5] : memref<4x1024xf32, #tpu.memory_space<vmem>>, vector<4x1024xf32>
    %7 = arith.addf %6, %2 : vector<4x1024xf32>
    %c0_6 = arith.constant 0 : index
    %c0_7 = arith.constant 0 : index
    %8 = vector.load %arg7[%c0_6, %c0_7] : memref<4x1024xf32, #tpu.memory_space<vmem>>, vector<4x1024xf32>
    tpu.vector_store %arg7[%c0_6, %c0_7], %7 {strides = array<i32>} : memref<4x1024xf32, #tpu.memory_space<vmem>>, vector<4x1024xf32>,
    %c2_i32 = arith.constant 2 : i32
    %9 = arith.cmpi eq, %arg2, %c2_i32 : i32
    %10 = arith.extui %9 : i1 to i32
    %c0_i32_8 = arith.constant 0 : i32
    %11 = arith.cmpi ne, %10, %c0_i32_8 : i32
    scf.if %11 {
      %c0_9 = arith.constant 0 : index
      %c0_10 = arith.constant 0 : index
      %12 = vector.load %arg7[%c0_9, %c0_10] : memref<4x1024xf32, #tpu.memory_space<vmem>>, vector<4x1024xf32>
      %c0_11 = arith.constant 0 : index
      %c0_12 = arith.constant 0 : index
      %13 = vector.load %arg5[%c0_11, %c0_12] : memref<1x1024xf32, #tpu.memory_space<vmem>>, vector<1x1024xf32>
      %14 = vector.broadcast %13 : vector<1x1024xf32> to vector<4x1024xf32>
      %15 = arith.addf %12, %14 : vector<4x1024xf32>
      %cst_13 = arith.constant 0.000000e+00 : f32
      %16 = vector.broadcast %cst_13 : f32 to vector<4x1024xf32>
      %17 = arith.maximumf %15, %16 : vector<4x1024xf32>
      %cst_14 = arith.constant 0.999994993 : f32
      %18 = vector.broadcast %cst_14 : f32 to vector<4x1024xf32>
      %19 = arith.mulf %17, %18 : vector<4x1024xf32>
      %20 = arith.truncf %19 : vector<4x1024xf32> to vector<4x1024xbf16>
      %c0_15 = arith.constant 0 : index
      %c0_16 = arith.constant 0 : index
      %21 = vector.load %arg6[%c0_15, %c0_16] : memref<4x1024xbf16, #tpu.memory_space<vmem>>, vector<4x1024xbf16>
      tpu.vector_store %arg6[%c0_15, %c0_16], %20 {strides = array<i32>} : memref<4x1024xbf16, #tpu.memory_space<vmem>>, vector<4x1024xbf16>,
    } else {
    }
    return
  }
  func.func @transform_0(%arg0: i32, %arg1: i32, %arg2: i32) -> (i32, i32) {
    %c0_i32 = arith.constant 0 : i32
    return %arg0, %arg2 : i32, i32
  }
  func.func @transform_1(%arg0: i32, %arg1: i32, %arg2: i32) -> (i32, i32) {
    %c0_i32 = arith.constant 0 : i32
    return %arg2, %arg1 : i32, i32
  }
  func.func @transform_2(%arg0: i32, %arg1: i32, %arg2: i32) -> (i32, i32) {
    %c0_i32 = arith.constant 0 : i32
    %c0_i32_0 = arith.constant 0 : i32
    return %c0_i32, %arg1 : i32, i32
  }
  func.func @transform_3(%arg0: i32, %arg1: i32, %arg2: i32) -> (i32, i32) {
    %c0_i32 = arith.constant 0 : i32
    return %arg0, %arg1 : i32, i32
  }
}

module attributes {stable_mosaic.version = 11 : i64} {
  func.func @_ln_pe_ln_kernel(%arg0: i32, %arg1: i32, %arg2: memref<1x2x256xbf16, #tpu.memory_space<vmem>>, %arg3: memref<2x256xf32, #tpu.memory_space<vmem>>, %arg4: memref<1x256xf32, #tpu.memory_space<vmem>>, %arg5: memref<1x256xf32, #tpu.memory_space<vmem>>, %arg6: memref<1x256xf32, #tpu.memory_space<vmem>>, %arg7: memref<1x256xf32, #tpu.memory_space<vmem>>, %arg8: memref<1x2x256xbf16, #tpu.memory_space<vmem>>) attributes {dimension_semantics = [#tpu.dimension_semantics<parallel>, #tpu.dimension_semantics<parallel>], iteration_bounds = array<i64: 2, 1>, scalar_prefetch = 0 : i64, scratch_operands = 0 : i64, tpu.core_type = #tpu.core_type<tc>, window_params = [{transform_indices = @transform_0, window_bounds = array<i64: 1, 2, 256>}, {transform_indices = @transform_1, window_bounds = array<i64: 2, 256>}, {pipeline_mode = #tpu.pipeline_mode<synchronous>, transform_indices = @transform_2, window_bounds = array<i64: 1, 256>}, {pipeline_mode = #tpu.pipeline_mode<synchronous>, transform_indices = @transform_3, window_bounds = array<i64: 1, 256>}, {pipeline_mode = #tpu.pipeline_mode<synchronous>, transform_indices = @transform_4, window_bounds = array<i64: 1, 256>}, {pipeline_mode = #tpu.pipeline_mode<synchronous>, transform_indices = @transform_5, window_bounds = array<i64: 1, 256>}, {transform_indices = @transform_6, window_bounds = array<i64: 1, 2, 256>}]} {
    %c0 = arith.constant 0 : index
    %c0_0 = arith.constant 0 : index
    %c0_1 = arith.constant 0 : index
    %0 = vector.load %arg2[%c0, %c0_0, %c0_1] : memref<1x2x256xbf16, #tpu.memory_space<vmem>>, vector<1x2x256xbf16>
    %1 = vector.shape_cast %0 : vector<1x2x256xbf16> to vector<2x256xbf16>
    %2 = arith.extf %1 : vector<2x256xbf16> to vector<2x256xf32>
    %c0_2 = arith.constant 0 : index
    %c0_3 = arith.constant 0 : index
    %3 = vector.load %arg4[%c0_2, %c0_3] : memref<1x256xf32, #tpu.memory_space<vmem>>, vector<1x256xf32>
    %c0_4 = arith.constant 0 : index
    %c0_5 = arith.constant 0 : index
    %4 = vector.load %arg5[%c0_4, %c0_5] : memref<1x256xf32, #tpu.memory_space<vmem>>, vector<1x256xf32>
    %cst = arith.constant dense<0.000000e+00> : vector<2xf32>
    %5 = vector.multi_reduction <add>, %2, %cst [1] : vector<2x256xf32> to vector<2xf32>
    %6 = vector.shape_cast %5 : vector<2xf32> to vector<2x1xf32>
    %cst_6 = arith.constant 2.560000e+02 : f32
    %7 = vector.broadcast %cst_6 : f32 to vector<2x1xf32>
    %8 = arith.divf %6, %7 : vector<2x1xf32>
    %9 = vector.broadcast %8 : vector<2x1xf32> to vector<2x256xf32>
    %10 = arith.subf %2, %9 : vector<2x256xf32>
    %11 = arith.mulf %10, %10 : vector<2x256xf32>
    %cst_7 = arith.constant dense<0.000000e+00> : vector<2xf32>
    %12 = vector.multi_reduction <add>, %11, %cst_7 [1] : vector<2x256xf32> to vector<2xf32>
    %13 = vector.shape_cast %12 : vector<2xf32> to vector<2x1xf32>
    %cst_8 = arith.constant 2.560000e+02 : f32
    %14 = vector.broadcast %cst_8 : f32 to vector<2x1xf32>
    %15 = arith.divf %13, %14 : vector<2x1xf32>
    %cst_9 = arith.constant 9.99999974E-6 : f32
    %16 = vector.broadcast %cst_9 : f32 to vector<2x1xf32>
    %17 = arith.addf %15, %16 : vector<2x1xf32>
    %18 = math.rsqrt %17 : vector<2x1xf32>
    %19 = vector.broadcast %18 : vector<2x1xf32> to vector<2x256xf32>
    %20 = arith.mulf %10, %19 : vector<2x256xf32>
    %21 = vector.broadcast %3 : vector<1x256xf32> to vector<2x256xf32>
    %22 = arith.mulf %20, %21 : vector<2x256xf32>
    %23 = vector.broadcast %4 : vector<1x256xf32> to vector<2x256xf32>
    %24 = arith.addf %22, %23 : vector<2x256xf32>
    %c0_10 = arith.constant 0 : index
    %c0_11 = arith.constant 0 : index
    %25 = vector.load %arg3[%c0_10, %c0_11] : memref<2x256xf32, #tpu.memory_space<vmem>>, vector<2x256xf32>
    %26 = arith.addf %24, %25 : vector<2x256xf32>
    %c0_12 = arith.constant 0 : index
    %c0_13 = arith.constant 0 : index
    %27 = vector.load %arg6[%c0_12, %c0_13] : memref<1x256xf32, #tpu.memory_space<vmem>>, vector<1x256xf32>
    %c0_14 = arith.constant 0 : index
    %c0_15 = arith.constant 0 : index
    %28 = vector.load %arg7[%c0_14, %c0_15] : memref<1x256xf32, #tpu.memory_space<vmem>>, vector<1x256xf32>
    %cst_16 = arith.constant dense<0.000000e+00> : vector<2xf32>
    %29 = vector.multi_reduction <add>, %26, %cst_16 [1] : vector<2x256xf32> to vector<2xf32>
    %30 = vector.shape_cast %29 : vector<2xf32> to vector<2x1xf32>
    %cst_17 = arith.constant 2.560000e+02 : f32
    %31 = vector.broadcast %cst_17 : f32 to vector<2x1xf32>
    %32 = arith.divf %30, %31 : vector<2x1xf32>
    %33 = vector.broadcast %32 : vector<2x1xf32> to vector<2x256xf32>
    %34 = arith.subf %26, %33 : vector<2x256xf32>
    %35 = arith.mulf %34, %34 : vector<2x256xf32>
    %cst_18 = arith.constant dense<0.000000e+00> : vector<2xf32>
    %36 = vector.multi_reduction <add>, %35, %cst_18 [1] : vector<2x256xf32> to vector<2xf32>
    %37 = vector.shape_cast %36 : vector<2xf32> to vector<2x1xf32>
    %cst_19 = arith.constant 2.560000e+02 : f32
    %38 = vector.broadcast %cst_19 : f32 to vector<2x1xf32>
    %39 = arith.divf %37, %38 : vector<2x1xf32>
    %cst_20 = arith.constant 9.99999974E-6 : f32
    %40 = vector.broadcast %cst_20 : f32 to vector<2x1xf32>
    %41 = arith.addf %39, %40 : vector<2x1xf32>
    %42 = math.rsqrt %41 : vector<2x1xf32>
    %43 = vector.broadcast %42 : vector<2x1xf32> to vector<2x256xf32>
    %44 = arith.mulf %34, %43 : vector<2x256xf32>
    %45 = vector.broadcast %27 : vector<1x256xf32> to vector<2x256xf32>
    %46 = arith.mulf %44, %45 : vector<2x256xf32>
    %47 = vector.broadcast %28 : vector<1x256xf32> to vector<2x256xf32>
    %48 = arith.addf %46, %47 : vector<2x256xf32>
    %49 = arith.truncf %48 : vector<2x256xf32> to vector<2x256xbf16>
    %c0_21 = arith.constant 0 : index
    %c0_22 = arith.constant 0 : index
    %c0_23 = arith.constant 0 : index
    %50 = vector.load %arg8[%c0_21, %c0_22, %c0_23] : memref<1x2x256xbf16, #tpu.memory_space<vmem>>, vector<1x2x256xbf16>
    %51 = vector.shape_cast %50 : vector<1x2x256xbf16> to vector<2x256xbf16>
    %52 = vector.shape_cast %49 : vector<2x256xbf16> to vector<1x2x256xbf16>
    tpu.vector_store %arg8[%c0_21, %c0_22, %c0_23], %52 {strides = array<i32>} : memref<1x2x256xbf16, #tpu.memory_space<vmem>>, vector<1x2x256xbf16>,
    return
  }
  func.func @transform_0(%arg0: i32, %arg1: i32) -> (i32, i32, i32) {
    %c0_i32 = arith.constant 0 : i32
    %c0_i32_0 = arith.constant 0 : i32
    return %arg0, %arg1, %c0_i32 : i32, i32, i32
  }
  func.func @transform_1(%arg0: i32, %arg1: i32) -> (i32, i32) {
    %c0_i32 = arith.constant 0 : i32
    %c0_i32_0 = arith.constant 0 : i32
    return %arg1, %c0_i32 : i32, i32
  }
  func.func @transform_2(%arg0: i32, %arg1: i32) -> (i32, i32) {
    %c0_i32 = arith.constant 0 : i32
    %c0_i32_0 = arith.constant 0 : i32
    %c0_i32_1 = arith.constant 0 : i32
    return %c0_i32, %c0_i32_0 : i32, i32
  }
  func.func @transform_3(%arg0: i32, %arg1: i32) -> (i32, i32) {
    %c0_i32 = arith.constant 0 : i32
    %c0_i32_0 = arith.constant 0 : i32
    %c0_i32_1 = arith.constant 0 : i32
    return %c0_i32, %c0_i32_0 : i32, i32
  }
  func.func @transform_4(%arg0: i32, %arg1: i32) -> (i32, i32) {
    %c0_i32 = arith.constant 0 : i32
    %c0_i32_0 = arith.constant 0 : i32
    %c0_i32_1 = arith.constant 0 : i32
    return %c0_i32, %c0_i32_0 : i32, i32
  }
  func.func @transform_5(%arg0: i32, %arg1: i32) -> (i32, i32) {
    %c0_i32 = arith.constant 0 : i32
    %c0_i32_0 = arith.constant 0 : i32
    %c0_i32_1 = arith.constant 0 : i32
    return %c0_i32, %c0_i32_0 : i32, i32
  }
  func.func @transform_6(%arg0: i32, %arg1: i32) -> (i32, i32, i32) {
    %c0_i32 = arith.constant 0 : i32
    %c0_i32_0 = arith.constant 0 : i32
    return %arg0, %arg1, %c0_i32 : i32, i32, i32
  }
}

module attributes {stable_mosaic.version = 11 : i64} {
  func.func @_linear_kernel(%arg0: i32, %arg1: i32, %arg2: i32, %arg3: memref<4x512xbf16, #tpu.memory_space<vmem>>, %arg4: memref<512x256xbf16, #tpu.memory_space<vmem>>, %arg5: memref<1x256xf32, #tpu.memory_space<vmem>>, %arg6: memref<4x256xbf16, #tpu.memory_space<vmem>>, %arg7: memref<4x256xf32, #tpu.memory_space<vmem>>) attributes {dimension_semantics = [#tpu.dimension_semantics<parallel>, #tpu.dimension_semantics<parallel>, #tpu.dimension_semantics<arbitrary>], iteration_bounds = array<i64: 1, 1, 6>, scalar_prefetch = 0 : i64, scratch_operands = 1 : i64, tpu.core_type = #tpu.core_type<tc>, window_params = [{transform_indices = @transform_0, window_bounds = array<i64: 4, 512>}, {transform_indices = @transform_1, window_bounds = array<i64: 512, 256>}, {transform_indices = @transform_2, window_bounds = array<i64: 1, 256>}, {transform_indices = @transform_3, window_bounds = array<i64: 4, 256>}]} {
    %c0 = arith.constant 0 : index
    %c0_0 = arith.constant 0 : index
    %0 = vector.load %arg3[%c0, %c0_0] : memref<4x512xbf16, #tpu.memory_space<vmem>>, vector<4x512xbf16>
    %c0_1 = arith.constant 0 : index
    %c0_2 = arith.constant 0 : index
    %1 = vector.load %arg4[%c0_1, %c0_2] : memref<512x256xbf16, #tpu.memory_space<vmem>>, vector<512x256xbf16>
    %cst = arith.constant dense<0.000000e+00> : vector<4x256xf32>
    %2 = tpu.matmul %0, %1, %cst {dimension_numbers = #tpu.dot_dimension_numbers<[1], [0], [0], [1], [0, 0, 1, 1], [], []>} : vector<4x512xbf16>, vector<512x256xbf16>, vector<4x256xf32> -> vector<4x256xf32>
    %c0_i32 = arith.constant 0 : i32
    %3 = arith.cmpi eq, %arg2, %c0_i32 : i32
    %4 = arith.extui %3 : i1 to i32
    %c0_i32_3 = arith.constant 0 : i32
    %5 = arith.cmpi ne, %4, %c0_i32_3 : i32
    scf.if %5 {
      %cst_9 = arith.constant 0.000000e+00 : f32
      %12 = vector.broadcast %cst_9 : f32 to vector<4x256xf32>
      %c0_10 = arith.constant 0 : index
      %c0_11 = arith.constant 0 : index
      %13 = vector.load %arg7[%c0_10, %c0_11] : memref<4x256xf32, #tpu.memory_space<vmem>>, vector<4x256xf32>
      tpu.vector_store %arg7[%c0_10, %c0_11], %12 {strides = array<i32>} : memref<4x256xf32, #tpu.memory_space<vmem>>, vector<4x256xf32>,
    } else {
    }
    %c0_4 = arith.constant 0 : index
    %c0_5 = arith.constant 0 : index
    %6 = vector.load %arg7[%c0_4, %c0_5] : memref<4x256xf32, #tpu.memory_space<vmem>>, vector<4x256xf32>
    %7 = arith.addf %6, %2 : vector<4x256xf32>
    %c0_6 = arith.constant 0 : index
    %c0_7 = arith.constant 0 : index
    %8 = vector.load %arg7[%c0_6, %c0_7] : memref<4x256xf32, #tpu.memory_space<vmem>>, vector<4x256xf32>
    tpu.vector_store %arg7[%c0_6, %c0_7], %7 {strides = array<i32>} : memref<4x256xf32, #tpu.memory_space<vmem>>, vector<4x256xf32>,
    %c5_i32 = arith.constant 5 : i32
    %9 = arith.cmpi eq, %arg2, %c5_i32 : i32
    %10 = arith.extui %9 : i1 to i32
    %c0_i32_8 = arith.constant 0 : i32
    %11 = arith.cmpi ne, %10, %c0_i32_8 : i32
    scf.if %11 {
      %c0_9 = arith.constant 0 : index
      %c0_10 = arith.constant 0 : index
      %12 = vector.load %arg7[%c0_9, %c0_10] : memref<4x256xf32, #tpu.memory_space<vmem>>, vector<4x256xf32>
      %c0_11 = arith.constant 0 : index
      %c0_12 = arith.constant 0 : index
      %13 = vector.load %arg5[%c0_11, %c0_12] : memref<1x256xf32, #tpu.memory_space<vmem>>, vector<1x256xf32>
      %14 = vector.broadcast %13 : vector<1x256xf32> to vector<4x256xf32>
      %15 = arith.addf %12, %14 : vector<4x256xf32>
      %16 = arith.truncf %15 : vector<4x256xf32> to vector<4x256xbf16>
      %c0_13 = arith.constant 0 : index
      %c0_14 = arith.constant 0 : index
      %17 = vector.load %arg6[%c0_13, %c0_14] : memref<4x256xbf16, #tpu.memory_space<vmem>>, vector<4x256xbf16>
      tpu.vector_store %arg6[%c0_13, %c0_14], %16 {strides = array<i32>} : memref<4x256xbf16, #tpu.memory_space<vmem>>, vector<4x256xbf16>,
    } else {
    }
    return
  }
  func.func @transform_0(%arg0: i32, %arg1: i32, %arg2: i32) -> (i32, i32) {
    %c0_i32 = arith.constant 0 : i32
    return %arg0, %arg2 : i32, i32
  }
  func.func @transform_1(%arg0: i32, %arg1: i32, %arg2: i32) -> (i32, i32) {
    %c0_i32 = arith.constant 0 : i32
    return %arg2, %arg1 : i32, i32
  }
  func.func @transform_2(%arg0: i32, %arg1: i32, %arg2: i32) -> (i32, i32) {
    %c0_i32 = arith.constant 0 : i32
    %c0_i32_0 = arith.constant 0 : i32
    return %c0_i32, %arg1 : i32, i32
  }
  func.func @transform_3(%arg0: i32, %arg1: i32, %arg2: i32) -> (i32, i32) {
    %c0_i32 = arith.constant 0 : i32
    return %arg0, %arg1 : i32, i32
  }
}

module attributes {stable_mosaic.version = 11 : i64} {
  func.func @_linear_kernel(%arg0: i32, %arg1: i32, %arg2: i32, %arg3: memref<4x256xbf16, #tpu.memory_space<vmem>>, %arg4: memref<256x768xbf16, #tpu.memory_space<vmem>>, %arg5: memref<1x768xf32, #tpu.memory_space<vmem>>, %arg6: memref<4x768xbf16, #tpu.memory_space<vmem>>) attributes {dimension_semantics = [#tpu.dimension_semantics<parallel>, #tpu.dimension_semantics<parallel>, #tpu.dimension_semantics<arbitrary>], iteration_bounds = array<i64: 1, 1, 1>, scalar_prefetch = 0 : i64, scratch_operands = 0 : i64, tpu.core_type = #tpu.core_type<tc>, window_params = [{transform_indices = @transform_0, window_bounds = array<i64: 4, 256>}, {transform_indices = @transform_1, window_bounds = array<i64: 256, 768>}, {transform_indices = @transform_2, window_bounds = array<i64: 1, 768>}, {transform_indices = @transform_3, window_bounds = array<i64: 4, 768>}]} {
    %c0 = arith.constant 0 : index
    %c0_0 = arith.constant 0 : index
    %0 = vector.load %arg3[%c0, %c0_0] : memref<4x256xbf16, #tpu.memory_space<vmem>>, vector<4x256xbf16>
    %c0_1 = arith.constant 0 : index
    %c0_2 = arith.constant 0 : index
    %1 = vector.load %arg4[%c0_1, %c0_2] : memref<256x768xbf16, #tpu.memory_space<vmem>>, vector<256x768xbf16>
    %cst = arith.constant dense<0.000000e+00> : vector<4x768xf32>
    %2 = tpu.matmul %0, %1, %cst {dimension_numbers = #tpu.dot_dimension_numbers<[1], [0], [0], [1], [0, 0, 1, 1], [], []>} : vector<4x256xbf16>, vector<256x768xbf16>, vector<4x768xf32> -> vector<4x768xf32>
    %c0_3 = arith.constant 0 : index
    %c0_4 = arith.constant 0 : index
    %3 = vector.load %arg5[%c0_3, %c0_4] : memref<1x768xf32, #tpu.memory_space<vmem>>, vector<1x768xf32>
    %4 = vector.broadcast %3 : vector<1x768xf32> to vector<4x768xf32>
    %5 = arith.addf %2, %4 : vector<4x768xf32>
    %6 = arith.truncf %5 : vector<4x768xf32> to vector<4x768xbf16>
    %c0_5 = arith.constant 0 : index
    %c0_6 = arith.constant 0 : index
    %7 = vector.load %arg6[%c0_5, %c0_6] : memref<4x768xbf16, #tpu.memory_space<vmem>>, vector<4x768xbf16>
    tpu.vector_store %arg6[%c0_5, %c0_6], %6 {strides = array<i32>} : memref<4x768xbf16, #tpu.memory_space<vmem>>, vector<4x768xbf16>,
    return
  }
  func.func @transform_0(%arg0: i32, %arg1: i32, %arg2: i32) -> (i32, i32) {
    %c0_i32 = arith.constant 0 : i32
    return %arg0, %arg2 : i32, i32
  }
  func.func @transform_1(%arg0: i32, %arg1: i32, %arg2: i32) -> (i32, i32) {
    %c0_i32 = arith.constant 0 : i32
    return %arg2, %arg1 : i32, i32
  }
  func.func @transform_2(%arg0: i32, %arg1: i32, %arg2: i32) -> (i32, i32) {
    %c0_i32 = arith.constant 0 : i32
    %c0_i32_0 = arith.constant 0 : i32
    return %c0_i32, %arg1 : i32, i32
  }
  func.func @transform_3(%arg0: i32, %arg1: i32, %arg2: i32) -> (i32, i32) {
    %c0_i32 = arith.constant 0 : i32
    return %arg0, %arg1 : i32, i32
  }
}

module attributes {stable_mosaic.version = 11 : i64} {
  func.func @_attention_kernel(%arg0: i32, %arg1: memref<1x2x768xbf16, #tpu.memory_space<vmem>>, %arg2: memref<1x2x2xf32, #tpu.memory_space<vmem>>, %arg3: memref<1x2x256xbf16, #tpu.memory_space<vmem>>) attributes {dimension_semantics = [#tpu.dimension_semantics<parallel>], iteration_bounds = array<i64: 2>, scalar_prefetch = 0 : i64, scratch_operands = 0 : i64, tpu.core_type = #tpu.core_type<tc>, window_params = [{transform_indices = @transform_0, window_bounds = array<i64: 1, 2, 768>}, {transform_indices = @transform_1, window_bounds = array<i64: 1, 2, 2>}, {transform_indices = @transform_2, window_bounds = array<i64: 1, 2, 256>}]} {
    %c0 = arith.constant 0 : index
    %c0_0 = arith.constant 0 : index
    %c0_1 = arith.constant 0 : index
    %0 = vector.load %arg1[%c0, %c0_0, %c0_1] : memref<1x2x768xbf16, #tpu.memory_space<vmem>>, vector<1x2x768xbf16>
    %1 = vector.shape_cast %0 : vector<1x2x768xbf16> to vector<2x768xbf16>
    %c0_2 = arith.constant 0 : index
    %c0_3 = arith.constant 0 : index
    %c0_4 = arith.constant 0 : index
    %2 = vector.load %arg2[%c0_2, %c0_3, %c0_4] : memref<1x2x2xf32, #tpu.memory_space<vmem>>, vector<1x2x2xf32>
    %3 = vector.shape_cast %2 : vector<1x2x2xf32> to vector<2x2xf32>
    %4 = vector.extract_strided_slice %1 {offsets = [0, 0], sizes = [2, 64], strides = [1, 1]} : vector<2x768xbf16> to vector<2x64xbf16>
    %5 = vector.extract_strided_slice %1 {offsets = [0, 256], sizes = [2, 64], strides = [1, 1]} : vector<2x768xbf16> to vector<2x64xbf16>
    %6 = vector.extract_strided_slice %1 {offsets = [0, 512], sizes = [2, 64], strides = [1, 1]} : vector<2x768xbf16> to vector<2x64xbf16>
    %cst = arith.constant dense<0.000000e+00> : vector<2x2xf32>
    %7 = tpu.matmul %4, %5, %cst {dimension_numbers = #tpu.dot_dimension_numbers<[1], [1], [0], [0], [0, 0, 1, 0], [], []>} : vector<2x64xbf16>, vector<2x64xbf16>, vector<2x2xf32> -> vector<2x2xf32>
    %cst_5 = arith.constant 1.250000e-01 : f32
    %8 = vector.broadcast %cst_5 : f32 to vector<2x2xf32>
    %9 = arith.mulf %7, %8 : vector<2x2xf32>
    %10 = arith.addf %9, %3 : vector<2x2xf32>
    %cst_6 = arith.constant dense<0xFF800000> : vector<2xf32>
    %11 = vector.multi_reduction <maximumf>, %10, %cst_6 [1] : vector<2x2xf32> to vector<2xf32>
    %12 = vector.shape_cast %11 : vector<2xf32> to vector<2x1xf32>
    %13 = vector.broadcast %12 : vector<2x1xf32> to vector<2x2xf32>
    %14 = arith.subf %10, %13 : vector<2x2xf32>
    %15 = math.exp %14 : vector<2x2xf32>
    %cst_7 = arith.constant dense<0.000000e+00> : vector<2xf32>
    %16 = vector.multi_reduction <add>, %15, %cst_7 [1] : vector<2x2xf32> to vector<2xf32>
    %17 = vector.shape_cast %16 : vector<2xf32> to vector<2x1xf32>
    %18 = tpu.reciprocal %17 {approx = true} : vector<2x1xf32> -> vector<2x1xf32>
    %19 = vector.broadcast %18 : vector<2x1xf32> to vector<2x2xf32>
    %20 = arith.mulf %15, %19 : vector<2x2xf32>
    %21 = arith.truncf %20 : vector<2x2xf32> to vector<2x2xbf16>
    %cst_8 = arith.constant dense<0.000000e+00> : vector<2x64xf32>
    %22 = tpu.matmul %21, %6, %cst_8 {dimension_numbers = #tpu.dot_dimension_numbers<[1], [0], [0], [1], [0, 0, 1, 1], [], []>} : vector<2x2xbf16>, vector<2x64xbf16>, vector<2x64xf32> -> vector<2x64xf32>
    %23 = vector.extract_strided_slice %1 {offsets = [0, 64], sizes = [2, 64], strides = [1, 1]} : vector<2x768xbf16> to vector<2x64xbf16>
    %24 = vector.extract_strided_slice %1 {offsets = [0, 320], sizes = [2, 64], strides = [1, 1]} : vector<2x768xbf16> to vector<2x64xbf16>
    %25 = vector.extract_strided_slice %1 {offsets = [0, 576], sizes = [2, 64], strides = [1, 1]} : vector<2x768xbf16> to vector<2x64xbf16>
    %cst_9 = arith.constant dense<0.000000e+00> : vector<2x2xf32>
    %26 = tpu.matmul %23, %24, %cst_9 {dimension_numbers = #tpu.dot_dimension_numbers<[1], [1], [0], [0], [0, 0, 1, 0], [], []>} : vector<2x64xbf16>, vector<2x64xbf16>, vector<2x2xf32> -> vector<2x2xf32>
    %cst_10 = arith.constant 1.250000e-01 : f32
    %27 = vector.broadcast %cst_10 : f32 to vector<2x2xf32>
    %28 = arith.mulf %26, %27 : vector<2x2xf32>
    %29 = arith.addf %28, %3 : vector<2x2xf32>
    %cst_11 = arith.constant dense<0xFF800000> : vector<2xf32>
    %30 = vector.multi_reduction <maximumf>, %29, %cst_11 [1] : vector<2x2xf32> to vector<2xf32>
    %31 = vector.shape_cast %30 : vector<2xf32> to vector<2x1xf32>
    %32 = vector.broadcast %31 : vector<2x1xf32> to vector<2x2xf32>
    %33 = arith.subf %29, %32 : vector<2x2xf32>
    %34 = math.exp %33 : vector<2x2xf32>
    %cst_12 = arith.constant dense<0.000000e+00> : vector<2xf32>
    %35 = vector.multi_reduction <add>, %34, %cst_12 [1] : vector<2x2xf32> to vector<2xf32>
    %36 = vector.shape_cast %35 : vector<2xf32> to vector<2x1xf32>
    %37 = tpu.reciprocal %36 {approx = true} : vector<2x1xf32> -> vector<2x1xf32>
    %38 = vector.broadcast %37 : vector<2x1xf32> to vector<2x2xf32>
    %39 = arith.mulf %34, %38 : vector<2x2xf32>
    %40 = arith.truncf %39 : vector<2x2xf32> to vector<2x2xbf16>
    %cst_13 = arith.constant dense<0.000000e+00> : vector<2x64xf32>
    %41 = tpu.matmul %40, %25, %cst_13 {dimension_numbers = #tpu.dot_dimension_numbers<[1], [0], [0], [1], [0, 0, 1, 1], [], []>} : vector<2x2xbf16>, vector<2x64xbf16>, vector<2x64xf32> -> vector<2x64xf32>
    %42 = vector.extract_strided_slice %1 {offsets = [0, 128], sizes = [2, 64], strides = [1, 1]} : vector<2x768xbf16> to vector<2x64xbf16>
    %43 = vector.extract_strided_slice %1 {offsets = [0, 384], sizes = [2, 64], strides = [1, 1]} : vector<2x768xbf16> to vector<2x64xbf16>
    %44 = vector.extract_strided_slice %1 {offsets = [0, 640], sizes = [2, 64], strides = [1, 1]} : vector<2x768xbf16> to vector<2x64xbf16>
    %cst_14 = arith.constant dense<0.000000e+00> : vector<2x2xf32>
    %45 = tpu.matmul %42, %43, %cst_14 {dimension_numbers = #tpu.dot_dimension_numbers<[1], [1], [0], [0], [0, 0, 1, 0], [], []>} : vector<2x64xbf16>, vector<2x64xbf16>, vector<2x2xf32> -> vector<2x2xf32>
    %cst_15 = arith.constant 1.250000e-01 : f32
    %46 = vector.broadcast %cst_15 : f32 to vector<2x2xf32>
    %47 = arith.mulf %45, %46 : vector<2x2xf32>
    %48 = arith.addf %47, %3 : vector<2x2xf32>
    %cst_16 = arith.constant dense<0xFF800000> : vector<2xf32>
    %49 = vector.multi_reduction <maximumf>, %48, %cst_16 [1] : vector<2x2xf32> to vector<2xf32>
    %50 = vector.shape_cast %49 : vector<2xf32> to vector<2x1xf32>
    %51 = vector.broadcast %50 : vector<2x1xf32> to vector<2x2xf32>
    %52 = arith.subf %48, %51 : vector<2x2xf32>
    %53 = math.exp %52 : vector<2x2xf32>
    %cst_17 = arith.constant dense<0.000000e+00> : vector<2xf32>
    %54 = vector.multi_reduction <add>, %53, %cst_17 [1] : vector<2x2xf32> to vector<2xf32>
    %55 = vector.shape_cast %54 : vector<2xf32> to vector<2x1xf32>
    %56 = tpu.reciprocal %55 {approx = true} : vector<2x1xf32> -> vector<2x1xf32>
    %57 = vector.broadcast %56 : vector<2x1xf32> to vector<2x2xf32>
    %58 = arith.mulf %53, %57 : vector<2x2xf32>
    %59 = arith.truncf %58 : vector<2x2xf32> to vector<2x2xbf16>
    %cst_18 = arith.constant dense<0.000000e+00> : vector<2x64xf32>
    %60 = tpu.matmul %59, %44, %cst_18 {dimension_numbers = #tpu.dot_dimension_numbers<[1], [0], [0], [1], [0, 0, 1, 1], [], []>} : vector<2x2xbf16>, vector<2x64xbf16>, vector<2x64xf32> -> vector<2x64xf32>
    %61 = vector.extract_strided_slice %1 {offsets = [0, 192], sizes = [2, 64], strides = [1, 1]} : vector<2x768xbf16> to vector<2x64xbf16>
    %62 = vector.extract_strided_slice %1 {offsets = [0, 448], sizes = [2, 64], strides = [1, 1]} : vector<2x768xbf16> to vector<2x64xbf16>
    %63 = vector.extract_strided_slice %1 {offsets = [0, 704], sizes = [2, 64], strides = [1, 1]} : vector<2x768xbf16> to vector<2x64xbf16>
    %cst_19 = arith.constant dense<0.000000e+00> : vector<2x2xf32>
    %64 = tpu.matmul %61, %62, %cst_19 {dimension_numbers = #tpu.dot_dimension_numbers<[1], [1], [0], [0], [0, 0, 1, 0], [], []>} : vector<2x64xbf16>, vector<2x64xbf16>, vector<2x2xf32> -> vector<2x2xf32>
    %cst_20 = arith.constant 1.250000e-01 : f32
    %65 = vector.broadcast %cst_20 : f32 to vector<2x2xf32>
    %66 = arith.mulf %64, %65 : vector<2x2xf32>
    %67 = arith.addf %66, %3 : vector<2x2xf32>
    %cst_21 = arith.constant dense<0xFF800000> : vector<2xf32>
    %68 = vector.multi_reduction <maximumf>, %67, %cst_21 [1] : vector<2x2xf32> to vector<2xf32>
    %69 = vector.shape_cast %68 : vector<2xf32> to vector<2x1xf32>
    %70 = vector.broadcast %69 : vector<2x1xf32> to vector<2x2xf32>
    %71 = arith.subf %67, %70 : vector<2x2xf32>
    %72 = math.exp %71 : vector<2x2xf32>
    %cst_22 = arith.constant dense<0.000000e+00> : vector<2xf32>
    %73 = vector.multi_reduction <add>, %72, %cst_22 [1] : vector<2x2xf32> to vector<2xf32>
    %74 = vector.shape_cast %73 : vector<2xf32> to vector<2x1xf32>
    %75 = tpu.reciprocal %74 {approx = true} : vector<2x1xf32> -> vector<2x1xf32>
    %76 = vector.broadcast %75 : vector<2x1xf32> to vector<2x2xf32>
    %77 = arith.mulf %72, %76 : vector<2x2xf32>
    %78 = arith.truncf %77 : vector<2x2xf32> to vector<2x2xbf16>
    %cst_23 = arith.constant dense<0.000000e+00> : vector<2x64xf32>
    %79 = tpu.matmul %78, %63, %cst_23 {dimension_numbers = #tpu.dot_dimension_numbers<[1], [0], [0], [1], [0, 0, 1, 1], [], []>} : vector<2x2xbf16>, vector<2x64xbf16>, vector<2x64xf32> -> vector<2x64xf32>
    %80 = tpu.concatenate %22, %41, %60, %79 in 1 : vector<2x64xf32>, vector<2x64xf32>, vector<2x64xf32>, vector<2x64xf32> -> vector<2x256xf32>
    %81 = arith.truncf %80 : vector<2x256xf32> to vector<2x256xbf16>
    %c0_24 = arith.constant 0 : index
    %c0_25 = arith.constant 0 : index
    %c0_26 = arith.constant 0 : index
    %82 = vector.load %arg3[%c0_24, %c0_25, %c0_26] : memref<1x2x256xbf16, #tpu.memory_space<vmem>>, vector<1x2x256xbf16>
    %83 = vector.shape_cast %82 : vector<1x2x256xbf16> to vector<2x256xbf16>
    %84 = vector.shape_cast %81 : vector<2x256xbf16> to vector<1x2x256xbf16>
    tpu.vector_store %arg3[%c0_24, %c0_25, %c0_26], %84 {strides = array<i32>} : memref<1x2x256xbf16, #tpu.memory_space<vmem>>, vector<1x2x256xbf16>,
    return
  }
  func.func @transform_0(%arg0: i32) -> (i32, i32, i32) {
    %c0_i32 = arith.constant 0 : i32
    %c0_i32_0 = arith.constant 0 : i32
    %c0_i32_1 = arith.constant 0 : i32
    return %arg0, %c0_i32, %c0_i32_0 : i32, i32, i32
  }
  func.func @transform_1(%arg0: i32) -> (i32, i32, i32) {
    %c0_i32 = arith.constant 0 : i32
    %c0_i32_0 = arith.constant 0 : i32
    %c0_i32_1 = arith.constant 0 : i32
    return %arg0, %c0_i32, %c0_i32_0 : i32, i32, i32
  }
  func.func @transform_2(%arg0: i32) -> (i32, i32, i32) {
    %c0_i32 = arith.constant 0 : i32
    %c0_i32_0 = arith.constant 0 : i32
    %c0_i32_1 = arith.constant 0 : i32
    return %arg0, %c0_i32, %c0_i32_0 : i32, i32, i32
  }
}

module attributes {stable_mosaic.version = 11 : i64} {
  func.func @_linear_kernel(%arg0: i32, %arg1: i32, %arg2: i32, %arg3: memref<4x256xbf16, #tpu.memory_space<vmem>>, %arg4: memref<256x256xbf16, #tpu.memory_space<vmem>>, %arg5: memref<1x256xf32, #tpu.memory_space<vmem>>, %arg6: memref<4x256xbf16, #tpu.memory_space<vmem>>, %arg7: memref<1x256xf32, #tpu.memory_space<vmem>>, %arg8: memref<1x256xf32, #tpu.memory_space<vmem>>, %arg9: memref<4x256xbf16, #tpu.memory_space<vmem>>) attributes {dimension_semantics = [#tpu.dimension_semantics<parallel>, #tpu.dimension_semantics<parallel>, #tpu.dimension_semantics<arbitrary>], iteration_bounds = array<i64: 1, 1, 1>, scalar_prefetch = 0 : i64, scratch_operands = 0 : i64, tpu.core_type = #tpu.core_type<tc>, window_params = [{transform_indices = @transform_0, window_bounds = array<i64: 4, 256>}, {transform_indices = @transform_1, window_bounds = array<i64: 256, 256>}, {transform_indices = @transform_2, window_bounds = array<i64: 1, 256>}, {transform_indices = @transform_3, window_bounds = array<i64: 4, 256>}, {transform_indices = @transform_4, window_bounds = array<i64: 1, 256>}, {transform_indices = @transform_5, window_bounds = array<i64: 1, 256>}, {transform_indices = @transform_6, window_bounds = array<i64: 4, 256>}]} {
    %c0 = arith.constant 0 : index
    %c0_0 = arith.constant 0 : index
    %0 = vector.load %arg3[%c0, %c0_0] : memref<4x256xbf16, #tpu.memory_space<vmem>>, vector<4x256xbf16>
    %c0_1 = arith.constant 0 : index
    %c0_2 = arith.constant 0 : index
    %1 = vector.load %arg4[%c0_1, %c0_2] : memref<256x256xbf16, #tpu.memory_space<vmem>>, vector<256x256xbf16>
    %cst = arith.constant dense<0.000000e+00> : vector<4x256xf32>
    %2 = tpu.matmul %0, %1, %cst {dimension_numbers = #tpu.dot_dimension_numbers<[1], [0], [0], [1], [0, 0, 1, 1], [], []>} : vector<4x256xbf16>, vector<256x256xbf16>, vector<4x256xf32> -> vector<4x256xf32>
    %c0_3 = arith.constant 0 : index
    %c0_4 = arith.constant 0 : index
    %3 = vector.load %arg5[%c0_3, %c0_4] : memref<1x256xf32, #tpu.memory_space<vmem>>, vector<1x256xf32>
    %4 = vector.broadcast %3 : vector<1x256xf32> to vector<4x256xf32>
    %5 = arith.addf %2, %4 : vector<4x256xf32>
    %c0_5 = arith.constant 0 : index
    %c0_6 = arith.constant 0 : index
    %6 = vector.load %arg6[%c0_5, %c0_6] : memref<4x256xbf16, #tpu.memory_space<vmem>>, vector<4x256xbf16>
    %7 = arith.extf %6 : vector<4x256xbf16> to vector<4x256xf32>
    %8 = arith.addf %5, %7 : vector<4x256xf32>
    %cst_7 = arith.constant dense<0.000000e+00> : vector<4xf32>
    %9 = vector.multi_reduction <add>, %8, %cst_7 [1] : vector<4x256xf32> to vector<4xf32>
    %10 = vector.shape_cast %9 : vector<4xf32> to vector<4x1xf32>
    %cst_8 = arith.constant 2.560000e+02 : f32
    %11 = vector.broadcast %cst_8 : f32 to vector<4x1xf32>
    %12 = arith.divf %10, %11 : vector<4x1xf32>
    %13 = vector.broadcast %12 : vector<4x1xf32> to vector<4x256xf32>
    %14 = arith.subf %8, %13 : vector<4x256xf32>
    %15 = arith.mulf %14, %14 : vector<4x256xf32>
    %cst_9 = arith.constant dense<0.000000e+00> : vector<4xf32>
    %16 = vector.multi_reduction <add>, %15, %cst_9 [1] : vector<4x256xf32> to vector<4xf32>
    %17 = vector.shape_cast %16 : vector<4xf32> to vector<4x1xf32>
    %cst_10 = arith.constant 2.560000e+02 : f32
    %18 = vector.broadcast %cst_10 : f32 to vector<4x1xf32>
    %19 = arith.divf %17, %18 : vector<4x1xf32>
    %cst_11 = arith.constant 9.99999974E-6 : f32
    %20 = vector.broadcast %cst_11 : f32 to vector<4x1xf32>
    %21 = arith.addf %19, %20 : vector<4x1xf32>
    %22 = math.rsqrt %21 : vector<4x1xf32>
    %23 = vector.broadcast %22 : vector<4x1xf32> to vector<4x256xf32>
    %24 = arith.mulf %14, %23 : vector<4x256xf32>
    %c0_12 = arith.constant 0 : index
    %c0_13 = arith.constant 0 : index
    %25 = vector.load %arg7[%c0_12, %c0_13] : memref<1x256xf32, #tpu.memory_space<vmem>>, vector<1x256xf32>
    %26 = vector.broadcast %25 : vector<1x256xf32> to vector<4x256xf32>
    %27 = arith.mulf %24, %26 : vector<4x256xf32>
    %c0_14 = arith.constant 0 : index
    %c0_15 = arith.constant 0 : index
    %28 = vector.load %arg8[%c0_14, %c0_15] : memref<1x256xf32, #tpu.memory_space<vmem>>, vector<1x256xf32>
    %29 = vector.broadcast %28 : vector<1x256xf32> to vector<4x256xf32>
    %30 = arith.addf %27, %29 : vector<4x256xf32>
    %31 = arith.truncf %30 : vector<4x256xf32> to vector<4x256xbf16>
    %c0_16 = arith.constant 0 : index
    %c0_17 = arith.constant 0 : index
    %32 = vector.load %arg9[%c0_16, %c0_17] : memref<4x256xbf16, #tpu.memory_space<vmem>>, vector<4x256xbf16>
    tpu.vector_store %arg9[%c0_16, %c0_17], %31 {strides = array<i32>} : memref<4x256xbf16, #tpu.memory_space<vmem>>, vector<4x256xbf16>,
    return
  }
  func.func @transform_0(%arg0: i32, %arg1: i32, %arg2: i32) -> (i32, i32) {
    %c0_i32 = arith.constant 0 : i32
    return %arg0, %arg2 : i32, i32
  }
  func.func @transform_1(%arg0: i32, %arg1: i32, %arg2: i32) -> (i32, i32) {
    %c0_i32 = arith.constant 0 : i32
    return %arg2, %arg1 : i32, i32
  }
  func.func @transform_2(%arg0: i32, %arg1: i32, %arg2: i32) -> (i32, i32) {
    %c0_i32 = arith.constant 0 : i32
    %c0_i32_0 = arith.constant 0 : i32
    return %c0_i32, %arg1 : i32, i32
  }
  func.func @transform_3(%arg0: i32, %arg1: i32, %arg2: i32) -> (i32, i32) {
    %c0_i32 = arith.constant 0 : i32
    return %arg0, %arg1 : i32, i32
  }
  func.func @transform_4(%arg0: i32, %arg1: i32, %arg2: i32) -> (i32, i32) {
    %c0_i32 = arith.constant 0 : i32
    %c0_i32_0 = arith.constant 0 : i32
    return %c0_i32, %arg1 : i32, i32
  }
  func.func @transform_5(%arg0: i32, %arg1: i32, %arg2: i32) -> (i32, i32) {
    %c0_i32 = arith.constant 0 : i32
    %c0_i32_0 = arith.constant 0 : i32
    return %c0_i32, %arg1 : i32, i32
  }
  func.func @transform_6(%arg0: i32, %arg1: i32, %arg2: i32) -> (i32, i32) {
    %c0_i32 = arith.constant 0 : i32
    return %arg0, %arg1 : i32, i32
  }
}

module attributes {stable_mosaic.version = 11 : i64} {
  func.func @_linear_kernel(%arg0: i32, %arg1: i32, %arg2: i32, %arg3: memref<4x256xbf16, #tpu.memory_space<vmem>>, %arg4: memref<256x512xbf16, #tpu.memory_space<vmem>>, %arg5: memref<1x512xf32, #tpu.memory_space<vmem>>, %arg6: memref<4x512xbf16, #tpu.memory_space<vmem>>) attributes {dimension_semantics = [#tpu.dimension_semantics<parallel>, #tpu.dimension_semantics<parallel>, #tpu.dimension_semantics<arbitrary>], iteration_bounds = array<i64: 1, 1, 1>, scalar_prefetch = 0 : i64, scratch_operands = 0 : i64, tpu.core_type = #tpu.core_type<tc>, window_params = [{transform_indices = @transform_0, window_bounds = array<i64: 4, 256>}, {transform_indices = @transform_1, window_bounds = array<i64: 256, 512>}, {transform_indices = @transform_2, window_bounds = array<i64: 1, 512>}, {transform_indices = @transform_3, window_bounds = array<i64: 4, 512>}]} {
    %c0 = arith.constant 0 : index
    %c0_0 = arith.constant 0 : index
    %0 = vector.load %arg3[%c0, %c0_0] : memref<4x256xbf16, #tpu.memory_space<vmem>>, vector<4x256xbf16>
    %c0_1 = arith.constant 0 : index
    %c0_2 = arith.constant 0 : index
    %1 = vector.load %arg4[%c0_1, %c0_2] : memref<256x512xbf16, #tpu.memory_space<vmem>>, vector<256x512xbf16>
    %cst = arith.constant dense<0.000000e+00> : vector<4x512xf32>
    %2 = tpu.matmul %0, %1, %cst {dimension_numbers = #tpu.dot_dimension_numbers<[1], [0], [0], [1], [0, 0, 1, 1], [], []>} : vector<4x256xbf16>, vector<256x512xbf16>, vector<4x512xf32> -> vector<4x512xf32>
    %c0_3 = arith.constant 0 : index
    %c0_4 = arith.constant 0 : index
    %3 = vector.load %arg5[%c0_3, %c0_4] : memref<1x512xf32, #tpu.memory_space<vmem>>, vector<1x512xf32>
    %4 = vector.broadcast %3 : vector<1x512xf32> to vector<4x512xf32>
    %5 = arith.addf %2, %4 : vector<4x512xf32>
    %cst_5 = arith.constant 0.000000e+00 : f32
    %6 = vector.broadcast %cst_5 : f32 to vector<4x512xf32>
    %7 = arith.maximumf %5, %6 : vector<4x512xf32>
    %8 = arith.truncf %7 : vector<4x512xf32> to vector<4x512xbf16>
    %c0_6 = arith.constant 0 : index
    %c0_7 = arith.constant 0 : index
    %9 = vector.load %arg6[%c0_6, %c0_7] : memref<4x512xbf16, #tpu.memory_space<vmem>>, vector<4x512xbf16>
    tpu.vector_store %arg6[%c0_6, %c0_7], %8 {strides = array<i32>} : memref<4x512xbf16, #tpu.memory_space<vmem>>, vector<4x512xbf16>,
    return
  }
  func.func @transform_0(%arg0: i32, %arg1: i32, %arg2: i32) -> (i32, i32) {
    %c0_i32 = arith.constant 0 : i32
    return %arg0, %arg2 : i32, i32
  }
  func.func @transform_1(%arg0: i32, %arg1: i32, %arg2: i32) -> (i32, i32) {
    %c0_i32 = arith.constant 0 : i32
    return %arg2, %arg1 : i32, i32
  }
  func.func @transform_2(%arg0: i32, %arg1: i32, %arg2: i32) -> (i32, i32) {
    %c0_i32 = arith.constant 0 : i32
    %c0_i32_0 = arith.constant 0 : i32
    return %c0_i32, %arg1 : i32, i32
  }
  func.func @transform_3(%arg0: i32, %arg1: i32, %arg2: i32) -> (i32, i32) {
    %c0_i32 = arith.constant 0 : i32
    return %arg0, %arg1 : i32, i32
  }
}

module attributes {stable_mosaic.version = 11 : i64} {
  func.func @_linear_kernel(%arg0: i32, %arg1: i32, %arg2: i32, %arg3: memref<4x256xbf16, #tpu.memory_space<vmem>>, %arg4: memref<256x128xbf16, #tpu.memory_space<vmem>>, %arg5: memref<1x128xf32, #tpu.memory_space<vmem>>, %arg6: memref<4x128xf32, #tpu.memory_space<vmem>>) attributes {dimension_semantics = [#tpu.dimension_semantics<parallel>, #tpu.dimension_semantics<parallel>, #tpu.dimension_semantics<arbitrary>], iteration_bounds = array<i64: 1, 1, 1>, scalar_prefetch = 0 : i64, scratch_operands = 0 : i64, tpu.core_type = #tpu.core_type<tc>, window_params = [{transform_indices = @transform_0, window_bounds = array<i64: 4, 256>}, {transform_indices = @transform_1, window_bounds = array<i64: 256, 128>}, {transform_indices = @transform_2, window_bounds = array<i64: 1, 128>}, {transform_indices = @transform_3, window_bounds = array<i64: 4, 128>}]} {
    %c0 = arith.constant 0 : index
    %c0_0 = arith.constant 0 : index
    %0 = vector.load %arg3[%c0, %c0_0] : memref<4x256xbf16, #tpu.memory_space<vmem>>, vector<4x256xbf16>
    %c0_1 = arith.constant 0 : index
    %c0_2 = arith.constant 0 : index
    %1 = vector.load %arg4[%c0_1, %c0_2] : memref<256x128xbf16, #tpu.memory_space<vmem>>, vector<256x128xbf16>
    %cst = arith.constant dense<0.000000e+00> : vector<4x128xf32>
    %2 = tpu.matmul %0, %1, %cst {dimension_numbers = #tpu.dot_dimension_numbers<[1], [0], [0], [1], [0, 0, 1, 1], [], []>} : vector<4x256xbf16>, vector<256x128xbf16>, vector<4x128xf32> -> vector<4x128xf32>
    %c0_3 = arith.constant 0 : index
    %c0_4 = arith.constant 0 : index
    %3 = vector.load %arg5[%c0_3, %c0_4] : memref<1x128xf32, #tpu.memory_space<vmem>>, vector<1x128xf32>
    %4 = vector.broadcast %3 : vector<1x128xf32> to vector<4x128xf32>
    %5 = arith.addf %2, %4 : vector<4x128xf32>
    %6 = arith.negf %5 : vector<4x128xf32>
    %7 = math.exp %6 : vector<4x128xf32>
    %cst_5 = arith.constant 1.000000e+00 : f32
    %8 = vector.broadcast %cst_5 : f32 to vector<4x128xf32>
    %9 = arith.addf %8, %7 : vector<4x128xf32>
    %10 = arith.divf %8, %9 : vector<4x128xf32>
    %c0_6 = arith.constant 0 : index
    %c0_7 = arith.constant 0 : index
    %11 = vector.load %arg6[%c0_6, %c0_7] : memref<4x128xf32, #tpu.memory_space<vmem>>, vector<4x128xf32>
    tpu.vector_store %arg6[%c0_6, %c0_7], %10 {strides = array<i32>} : memref<4x128xf32, #tpu.memory_space<vmem>>, vector<4x128xf32>,
    return
  }
  func.func @transform_0(%arg0: i32, %arg1: i32, %arg2: i32) -> (i32, i32) {
    %c0_i32 = arith.constant 0 : i32
    return %arg0, %arg2 : i32, i32
  }
  func.func @transform_1(%arg0: i32, %arg1: i32, %arg2: i32) -> (i32, i32) {
    %c0_i32 = arith.constant 0 : i32
    return %arg2, %arg1 : i32, i32
  }
  func.func @transform_2(%arg0: i32, %arg1: i32, %arg2: i32) -> (i32, i32) {
    %c0_i32 = arith.constant 0 : i32
    %c0_i32_0 = arith.constant 0 : i32
    return %c0_i32, %arg1 : i32, i32
  }
  func.func @transform_3(%arg0: i32, %arg1: i32, %arg2: i32) -> (i32, i32) {
    %c0_i32 = arith.constant 0 : i32
    return %arg0, %arg1 : i32, i32
  }
}

module attributes {stable_mosaic.version = 11 : i64} {
  func.func @_linear_kernel(%arg0: i32, %arg1: i32, %arg2: i32, %arg3: memref<4x512xbf16, #tpu.memory_space<vmem>>, %arg4: memref<512x256xbf16, #tpu.memory_space<vmem>>, %arg5: memref<1x256xf32, #tpu.memory_space<vmem>>, %arg6: memref<4x256xbf16, #tpu.memory_space<vmem>>, %arg7: memref<1x256xf32, #tpu.memory_space<vmem>>, %arg8: memref<1x256xf32, #tpu.memory_space<vmem>>, %arg9: memref<4x256xbf16, #tpu.memory_space<vmem>>) attributes {dimension_semantics = [#tpu.dimension_semantics<parallel>, #tpu.dimension_semantics<parallel>, #tpu.dimension_semantics<arbitrary>], iteration_bounds = array<i64: 1, 1, 1>, scalar_prefetch = 0 : i64, scratch_operands = 0 : i64, tpu.core_type = #tpu.core_type<tc>, window_params = [{transform_indices = @transform_0, window_bounds = array<i64: 4, 512>}, {transform_indices = @transform_1, window_bounds = array<i64: 512, 256>}, {transform_indices = @transform_2, window_bounds = array<i64: 1, 256>}, {transform_indices = @transform_3, window_bounds = array<i64: 4, 256>}, {transform_indices = @transform_4, window_bounds = array<i64: 1, 256>}, {transform_indices = @transform_5, window_bounds = array<i64: 1, 256>}, {transform_indices = @transform_6, window_bounds = array<i64: 4, 256>}]} {
    %c0 = arith.constant 0 : index
    %c0_0 = arith.constant 0 : index
    %0 = vector.load %arg3[%c0, %c0_0] : memref<4x512xbf16, #tpu.memory_space<vmem>>, vector<4x512xbf16>
    %c0_1 = arith.constant 0 : index
    %c0_2 = arith.constant 0 : index
    %1 = vector.load %arg4[%c0_1, %c0_2] : memref<512x256xbf16, #tpu.memory_space<vmem>>, vector<512x256xbf16>
    %cst = arith.constant dense<0.000000e+00> : vector<4x256xf32>
    %2 = tpu.matmul %0, %1, %cst {dimension_numbers = #tpu.dot_dimension_numbers<[1], [0], [0], [1], [0, 0, 1, 1], [], []>} : vector<4x512xbf16>, vector<512x256xbf16>, vector<4x256xf32> -> vector<4x256xf32>
    %c0_3 = arith.constant 0 : index
    %c0_4 = arith.constant 0 : index
    %3 = vector.load %arg5[%c0_3, %c0_4] : memref<1x256xf32, #tpu.memory_space<vmem>>, vector<1x256xf32>
    %4 = vector.broadcast %3 : vector<1x256xf32> to vector<4x256xf32>
    %5 = arith.addf %2, %4 : vector<4x256xf32>
    %c0_5 = arith.constant 0 : index
    %c0_6 = arith.constant 0 : index
    %6 = vector.load %arg6[%c0_5, %c0_6] : memref<4x256xbf16, #tpu.memory_space<vmem>>, vector<4x256xbf16>
    %7 = arith.extf %6 : vector<4x256xbf16> to vector<4x256xf32>
    %8 = arith.addf %5, %7 : vector<4x256xf32>
    %cst_7 = arith.constant dense<0.000000e+00> : vector<4xf32>
    %9 = vector.multi_reduction <add>, %8, %cst_7 [1] : vector<4x256xf32> to vector<4xf32>
    %10 = vector.shape_cast %9 : vector<4xf32> to vector<4x1xf32>
    %cst_8 = arith.constant 2.560000e+02 : f32
    %11 = vector.broadcast %cst_8 : f32 to vector<4x1xf32>
    %12 = arith.divf %10, %11 : vector<4x1xf32>
    %13 = vector.broadcast %12 : vector<4x1xf32> to vector<4x256xf32>
    %14 = arith.subf %8, %13 : vector<4x256xf32>
    %15 = arith.mulf %14, %14 : vector<4x256xf32>
    %cst_9 = arith.constant dense<0.000000e+00> : vector<4xf32>
    %16 = vector.multi_reduction <add>, %15, %cst_9 [1] : vector<4x256xf32> to vector<4xf32>
    %17 = vector.shape_cast %16 : vector<4xf32> to vector<4x1xf32>
    %cst_10 = arith.constant 2.560000e+02 : f32
    %18 = vector.broadcast %cst_10 : f32 to vector<4x1xf32>
    %19 = arith.divf %17, %18 : vector<4x1xf32>
    %cst_11 = arith.constant 9.99999974E-6 : f32
    %20 = vector.broadcast %cst_11 : f32 to vector<4x1xf32>
    %21 = arith.addf %19, %20 : vector<4x1xf32>
    %22 = math.rsqrt %21 : vector<4x1xf32>
    %23 = vector.broadcast %22 : vector<4x1xf32> to vector<4x256xf32>
    %24 = arith.mulf %14, %23 : vector<4x256xf32>
    %c0_12 = arith.constant 0 : index
    %c0_13 = arith.constant 0 : index
    %25 = vector.load %arg7[%c0_12, %c0_13] : memref<1x256xf32, #tpu.memory_space<vmem>>, vector<1x256xf32>
    %26 = vector.broadcast %25 : vector<1x256xf32> to vector<4x256xf32>
    %27 = arith.mulf %24, %26 : vector<4x256xf32>
    %c0_14 = arith.constant 0 : index
    %c0_15 = arith.constant 0 : index
    %28 = vector.load %arg8[%c0_14, %c0_15] : memref<1x256xf32, #tpu.memory_space<vmem>>, vector<1x256xf32>
    %29 = vector.broadcast %28 : vector<1x256xf32> to vector<4x256xf32>
    %30 = arith.addf %27, %29 : vector<4x256xf32>
    %31 = arith.truncf %30 : vector<4x256xf32> to vector<4x256xbf16>
    %c0_16 = arith.constant 0 : index
    %c0_17 = arith.constant 0 : index
    %32 = vector.load %arg9[%c0_16, %c0_17] : memref<4x256xbf16, #tpu.memory_space<vmem>>, vector<4x256xbf16>
    tpu.vector_store %arg9[%c0_16, %c0_17], %31 {strides = array<i32>} : memref<4x256xbf16, #tpu.memory_space<vmem>>, vector<4x256xbf16>,
    return
  }
  func.func @transform_0(%arg0: i32, %arg1: i32, %arg2: i32) -> (i32, i32) {
    %c0_i32 = arith.constant 0 : i32
    return %arg0, %arg2 : i32, i32
  }
  func.func @transform_1(%arg0: i32, %arg1: i32, %arg2: i32) -> (i32, i32) {
    %c0_i32 = arith.constant 0 : i32
    return %arg2, %arg1 : i32, i32
  }
  func.func @transform_2(%arg0: i32, %arg1: i32, %arg2: i32) -> (i32, i32) {
    %c0_i32 = arith.constant 0 : i32
    %c0_i32_0 = arith.constant 0 : i32
    return %c0_i32, %arg1 : i32, i32
  }
  func.func @transform_3(%arg0: i32, %arg1: i32, %arg2: i32) -> (i32, i32) {
    %c0_i32 = arith.constant 0 : i32
    return %arg0, %arg1 : i32, i32
  }
  func.func @transform_4(%arg0: i32, %arg1: i32, %arg2: i32) -> (i32, i32) {
    %c0_i32 = arith.constant 0 : i32
    %c0_i32_0 = arith.constant 0 : i32
    return %c0_i32, %arg1 : i32, i32
  }
  func.func @transform_5(%arg0: i32, %arg1: i32, %arg2: i32) -> (i32, i32) {
    %c0_i32 = arith.constant 0 : i32
    %c0_i32_0 = arith.constant 0 : i32
    return %c0_i32, %arg1 : i32, i32
  }
  func.func @transform_6(%arg0: i32, %arg1: i32, %arg2: i32) -> (i32, i32) {
    %c0_i32 = arith.constant 0 : i32
    return %arg0, %arg1 : i32, i32
  }
}

module attributes {stable_mosaic.version = 11 : i64} {
  func.func @_linear_kernel(%arg0: i32, %arg1: i32, %arg2: i32, %arg3: memref<4x256xbf16, #tpu.memory_space<vmem>>, %arg4: memref<256x256xbf16, #tpu.memory_space<vmem>>, %arg5: memref<1x256xf32, #tpu.memory_space<vmem>>, %arg6: memref<4x256xbf16, #tpu.memory_space<vmem>>) attributes {dimension_semantics = [#tpu.dimension_semantics<parallel>, #tpu.dimension_semantics<parallel>, #tpu.dimension_semantics<arbitrary>], iteration_bounds = array<i64: 1, 1, 1>, scalar_prefetch = 0 : i64, scratch_operands = 0 : i64, tpu.core_type = #tpu.core_type<tc>, window_params = [{transform_indices = @transform_0, window_bounds = array<i64: 4, 256>}, {transform_indices = @transform_1, window_bounds = array<i64: 256, 256>}, {transform_indices = @transform_2, window_bounds = array<i64: 1, 256>}, {transform_indices = @transform_3, window_bounds = array<i64: 4, 256>}]} {
    %c0 = arith.constant 0 : index
    %c0_0 = arith.constant 0 : index
    %0 = vector.load %arg3[%c0, %c0_0] : memref<4x256xbf16, #tpu.memory_space<vmem>>, vector<4x256xbf16>
    %1 = arith.extf %0 : vector<4x256xbf16> to vector<4x256xf32>
    %cst = arith.constant 0.000000e+00 : f32
    %2 = vector.broadcast %cst : f32 to vector<4x256xf32>
    %3 = arith.maximumf %1, %2 : vector<4x256xf32>
    %cst_1 = arith.constant 0.999994993 : f32
    %4 = vector.broadcast %cst_1 : f32 to vector<4x256xf32>
    %5 = arith.mulf %3, %4 : vector<4x256xf32>
    %6 = arith.truncf %5 : vector<4x256xf32> to vector<4x256xbf16>
    %c0_2 = arith.constant 0 : index
    %c0_3 = arith.constant 0 : index
    %7 = vector.load %arg4[%c0_2, %c0_3] : memref<256x256xbf16, #tpu.memory_space<vmem>>, vector<256x256xbf16>
    %cst_4 = arith.constant dense<0.000000e+00> : vector<4x256xf32>
    %8 = tpu.matmul %6, %7, %cst_4 {dimension_numbers = #tpu.dot_dimension_numbers<[1], [0], [0], [1], [0, 0, 1, 1], [], []>} : vector<4x256xbf16>, vector<256x256xbf16>, vector<4x256xf32> -> vector<4x256xf32>
    %c0_5 = arith.constant 0 : index
    %c0_6 = arith.constant 0 : index
    %9 = vector.load %arg5[%c0_5, %c0_6] : memref<1x256xf32, #tpu.memory_space<vmem>>, vector<1x256xf32>
    %10 = vector.broadcast %9 : vector<1x256xf32> to vector<4x256xf32>
    %11 = arith.addf %8, %10 : vector<4x256xf32>
    %cst_7 = arith.constant 0.000000e+00 : f32
    %12 = vector.broadcast %cst_7 : f32 to vector<4x256xf32>
    %13 = arith.maximumf %11, %12 : vector<4x256xf32>
    %cst_8 = arith.constant 0.999994993 : f32
    %14 = vector.broadcast %cst_8 : f32 to vector<4x256xf32>
    %15 = arith.mulf %13, %14 : vector<4x256xf32>
    %16 = arith.truncf %15 : vector<4x256xf32> to vector<4x256xbf16>
    %c0_9 = arith.constant 0 : index
    %c0_10 = arith.constant 0 : index
    %17 = vector.load %arg6[%c0_9, %c0_10] : memref<4x256xbf16, #tpu.memory_space<vmem>>, vector<4x256xbf16>
    tpu.vector_store %arg6[%c0_9, %c0_10], %16 {strides = array<i32>} : memref<4x256xbf16, #tpu.memory_space<vmem>>, vector<4x256xbf16>,
    return
  }
  func.func @transform_0(%arg0: i32, %arg1: i32, %arg2: i32) -> (i32, i32) {
    %c0_i32 = arith.constant 0 : i32
    return %arg0, %arg2 : i32, i32
  }
  func.func @transform_1(%arg0: i32, %arg1: i32, %arg2: i32) -> (i32, i32) {
    %c0_i32 = arith.constant 0 : i32
    return %arg2, %arg1 : i32, i32
  }
  func.func @transform_2(%arg0: i32, %arg1: i32, %arg2: i32) -> (i32, i32) {
    %c0_i32 = arith.constant 0 : i32
    %c0_i32_0 = arith.constant 0 : i32
    return %c0_i32, %arg1 : i32, i32
  }
  func.func @transform_3(%arg0: i32, %arg1: i32, %arg2: i32) -> (i32, i32) {
    %c0_i32 = arith.constant 0 : i32
    return %arg0, %arg1 : i32, i32
  }
}

module attributes {stable_mosaic.version = 11 : i64} {
  func.func @_linear_kernel(%arg0: i32, %arg1: i32, %arg2: i32, %arg3: memref<4x256xbf16, #tpu.memory_space<vmem>>, %arg4: memref<256x128xbf16, #tpu.memory_space<vmem>>, %arg5: memref<1x128xf32, #tpu.memory_space<vmem>>, %arg6: memref<4x128xf32, #tpu.memory_space<vmem>>) attributes {dimension_semantics = [#tpu.dimension_semantics<parallel>, #tpu.dimension_semantics<parallel>, #tpu.dimension_semantics<arbitrary>], iteration_bounds = array<i64: 1, 1, 1>, scalar_prefetch = 0 : i64, scratch_operands = 0 : i64, tpu.core_type = #tpu.core_type<tc>, window_params = [{transform_indices = @transform_0, window_bounds = array<i64: 4, 256>}, {transform_indices = @transform_1, window_bounds = array<i64: 256, 128>}, {transform_indices = @transform_2, window_bounds = array<i64: 1, 128>}, {transform_indices = @transform_3, window_bounds = array<i64: 4, 128>}]} {
    %c0 = arith.constant 0 : index
    %c0_0 = arith.constant 0 : index
    %0 = vector.load %arg3[%c0, %c0_0] : memref<4x256xbf16, #tpu.memory_space<vmem>>, vector<4x256xbf16>
    %c0_1 = arith.constant 0 : index
    %c0_2 = arith.constant 0 : index
    %1 = vector.load %arg4[%c0_1, %c0_2] : memref<256x128xbf16, #tpu.memory_space<vmem>>, vector<256x128xbf16>
    %cst = arith.constant dense<0.000000e+00> : vector<4x128xf32>
    %2 = tpu.matmul %0, %1, %cst {dimension_numbers = #tpu.dot_dimension_numbers<[1], [0], [0], [1], [0, 0, 1, 1], [], []>} : vector<4x256xbf16>, vector<256x128xbf16>, vector<4x128xf32> -> vector<4x128xf32>
    %c0_3 = arith.constant 0 : index
    %c0_4 = arith.constant 0 : index
    %3 = vector.load %arg5[%c0_3, %c0_4] : memref<1x128xf32, #tpu.memory_space<vmem>>, vector<1x128xf32>
    %4 = vector.broadcast %3 : vector<1x128xf32> to vector<4x128xf32>
    %5 = arith.addf %2, %4 : vector<4x128xf32>
    %c0_5 = arith.constant 0 : index
    %c0_6 = arith.constant 0 : index
    %6 = vector.load %arg6[%c0_5, %c0_6] : memref<4x128xf32, #tpu.memory_space<vmem>>, vector<4x128xf32>
    tpu.vector_store %arg6[%c0_5, %c0_6], %5 {strides = array<i32>} : memref<4x128xf32, #tpu.memory_space<vmem>>, vector<4x128xf32>,
    return
  }
  func.func @transform_0(%arg0: i32, %arg1: i32, %arg2: i32) -> (i32, i32) {
    %c0_i32 = arith.constant 0 : i32
    return %arg0, %arg2 : i32, i32
  }
  func.func @transform_1(%arg0: i32, %arg1: i32, %arg2: i32) -> (i32, i32) {
    %c0_i32 = arith.constant 0 : i32
    return %arg2, %arg1 : i32, i32
  }
  func.func @transform_2(%arg0: i32, %arg1: i32, %arg2: i32) -> (i32, i32) {
    %c0_i32 = arith.constant 0 : i32
    %c0_i32_0 = arith.constant 0 : i32
    return %c0_i32, %arg1 : i32, i32
  }
  func.func @transform_3(%arg0: i32, %arg1: i32, %arg2: i32) -> (i32, i32) {
    %c0_i32 = arith.constant 0 : i32
    return %arg0, %arg1 : i32, i32
  }
}

</mosaic_0001>

<llo_original>
// kernel: forward.32
$region0: #{forward.32}
  #allocation0 [shape = 'u32[]', space=smem, size = 0x4, offset = 0x4, fixed_abs, tag = 'smem constant byte address 0x4 - core index']
  #allocation1 [shape = 'u32[72,128]{1,0:T(1,128)}', space=vmem, size = 0x9000, scoped, tag = 'internal scratch']
  %s0 = inlined_call_operand.vmem [shape: bf16[2,2,256], index: 0, kind: input, shape index: {}]
  %s1 = inlined_call_operand.vmem [shape: f32[2,256], index: 1, kind: input, shape index: {}]
  %s2 = inlined_call_operand.hbm [shape: f32[1,256], index: 2, kind: input, shape index: {}]
  %s3 = inlined_call_operand.hbm [shape: f32[1,256], index: 3, kind: input, shape index: {}]
  %s4 = inlined_call_operand.hbm [shape: f32[1,256], index: 4, kind: input, shape index: {}]
  %s5 = inlined_call_operand.hbm [shape: f32[1,256], index: 5, kind: input, shape index: {}]
  %s6 = inlined_call_operand.vmem [shape: bf16[2,2,256], index: 6, kind: output, shape index: {}]
  %s7 = sld [smem:[#allocation0]]
  $region73: #{forward.32} parent=0
    _
  %s9 = ssub.s32 1, %s7
  %s10 = scalar_select 0, %s9, %s7
  $region1: #{forward.32} parent=0
    #allocation2 [shape = 'u8[1024]{0}', space=vmem, size = 0x400, scoped, tag = 'input window, operand 2, single buffered']
    #allocation3 [shape = 's32[2]{0}', space=sflag, size = 0x8, scoped, tag = 'scoped memory for forward.32']
    #allocation4 [shape = 'u8[1024]{0}', space=vmem, size = 0x400, scoped, tag = 'input window, operand 3, single buffered']
    #allocation5 [shape = 's32[1]{0}', space=sflag, size = 0x4, scoped, tag = 'scoped memory for forward.32']
    #allocation6 [shape = 'u8[1024]{0}', space=vmem, size = 0x400, scoped, tag = 'input window, operand 4, single buffered']
    #allocation7 [shape = 'u8[1024]{0}', space=vmem, size = 0x400, scoped, tag = 'input window, operand 5, single buffered']
    #allocation8 [shape = 's32[1]{0}', space=sflag, size = 0x4, scoped, tag = 'scoped memory for forward.32']
    %11 = vsyncpa [#allocation3], 0
    %12 = vsyncpa [#allocation5], 0
    %13 = vsyncpa [#allocation8], 0
    loop: start=0, step=1, limit=4
    $region2: #{forward.32} parent=1 // loop_pre_header
      _
    $region3: #{forward.32} parent=1 // loop_header
      %s15 = sphi 0, %s19
      %p16 = scmp.ge.s32.totalorder %s15, 4
      %s22 = sphi 0, %s34
      %s23 = sphi 0, %s30
      %s24 = sphi 0, %s22
      %s25 = sphi 0, %s23
      %s26 = sphi 0, %s24
      %s27 = sphi 0, %s25
      %s39 = sphi 0, %s41
      %s42 = sphi 0, %s39
      %s43 = sphi 0, %s42
      %s59 = sphi 0, %s43
      %s65 = sphi 0, %s67
      %s68 = sphi 0, %s65
      %s69 = sphi 0, %s68
      %s85 = sphi 0, %s69
      %s89 = sphi 0, %s89
      %s91 = sphi 0, %s89
      %s92 = sphi 0, %s91
      %s106 = sphi 0, %s92
      %s110 = sphi 0, %s110
      %s112 = sphi 0, %s110
      %s113 = sphi 0, %s112
      %s127 = sphi 0, %s113
      %s131 = sphi 0, %s131
      %s133 = sphi 0, %s131
      %s134 = sphi 0, %s133
      %s148 = sphi 0, %s134
      %s152 = sphi 0, %s152
      %s154 = sphi 0, %s152
      %s155 = sphi 0, %s154
      %s169 = sphi 0, %s155
      %s177 = sphi 0, %s179
      %s180 = sphi 0, %s177
      %s181 = sphi 0, %s180
      %s197 = sphi 0, %s181
    $region4: #{forward.32} parent=1 // loop_header_branch
      %18 = sbr.rel (%p16) target = $region8
    $region5: #{forward.32} parent=1 // loop_body
      %s20 = ssub.s32 %s15, 1
      %s21 = ssub.s32 %s15, 2
      %s28 = sadd.s32 1, %s23
      %p29 = scmp.ge.s32.totalorder %s28, 1
      %s30 = scalar_select %p29, 0, %s28
      %s31 = sadd.s32 1, %s22
      %s32 = scalar_select %p29, %s31, %s22
      %p33 = scmp.ge.s32.totalorder %s32, 2
      %s34 = scalar_select %p33, 0, %s32
      %s35 = ssub.s32 %s22, %s34
      %s36 = ssub.s32 %s23, %s30
      %s37 = sor.u32 %s35, %s36
      %p38 = scmp.eq.s32.totalorder %s37, 0
      %s40 = sadd.s32 %s39, 1
      %s41 = scalar_select %p38, %s39, %s40
      %p44 = pneg %p38
      %p45 = scmp.eq.s32.totalorder %s15, 1
      %p46 = por %p44, %p45
      %p47 = scmp.ne.s32.totalorder %s39, %s42
      %p48 = scmp.eq.s32.totalorder %s15, 0
      %p49 = por %p47, %p48
      %p50 = scmp.ne.s32.totalorder %s39, %s42
      %p51 = scmp.eq.s32.totalorder %s20, 1
      %p52 = por %p50, %p51
      %p53 = scmp.ne.s32.totalorder %s42, %s43
      %p54 = scmp.eq.s32.totalorder %s20, 0
      %p55 = por %p53, %p54
      %p56 = scmp.ne.s32.totalorder %s42, %s43
      %p57 = scmp.eq.s32.totalorder %s21, 1
      %p58 = por %p56, %p57
      %p60 = scmp.ne.s32.totalorder %s43, %s59
      %p61 = scmp.eq.s32.totalorder %s21, 0
      %p62 = por %p60, %p61
      %s63 = ssub.s32 %s23, %s30
      %p64 = scmp.eq.s32.totalorder %s63, 0
      %s66 = sadd.s32 %s65, 1
      %s67 = scalar_select %p64, %s65, %s66
      %p70 = pneg %p64
      %p71 = scmp.eq.s32.totalorder %s15, 1
      %p72 = por %p70, %p71
      %p73 = scmp.ne.s32.totalorder %s65, %s68
      %p74 = scmp.eq.s32.totalorder %s15, 0
      %p75 = por %p73, %p74
      %p76 = scmp.ne.s32.totalorder %s65, %s68
      %p77 = scmp.eq.s32.totalorder %s20, 1
      %p78 = por %p76, %p77
      %p79 = scmp.ne.s32.totalorder %s68, %s69
      %p80 = scmp.eq.s32.totalorder %s20, 0
      %p81 = por %p79, %p80
      %p82 = scmp.ne.s32.totalorder %s68, %s69
      %p83 = scmp.eq.s32.totalorder %s21, 1
      %p84 = por %p82, %p83
      %p86 = scmp.ne.s32.totalorder %s69, %s85
      %p87 = scmp.eq.s32.totalorder %s21, 0
      %p88 = por %p86, %p87
      %s90 = sadd.s32 %s89, 1
      %p93 = scmp.eq.s32.totalorder %s15, 1
      %p94 = scmp.ne.s32.totalorder %s89, %s91
      %p95 = scmp.eq.s32.totalorder %s15, 0
      %p96 = por %p94, %p95
      %p97 = scmp.ne.s32.totalorder %s89, %s91
      %p98 = scmp.eq.s32.totalorder %s20, 1
      %p99 = por %p97, %p98
      %p100 = scmp.ne.s32.totalorder %s91, %s92
      %p101 = scmp.eq.s32.totalorder %s20, 0
      %p102 = por %p100, %p101
      %p103 = scmp.ne.s32.totalorder %s91, %s92
      %p104 = scmp.eq.s32.totalorder %s21, 1
      %p105 = por %p103, %p104
      %p107 = scmp.ne.s32.totalorder %s92, %s106
      %p108 = scmp.eq.s32.totalorder %s21, 0
      %p109 = por %p107, %p108
      %s111 = sadd.s32 %s110, 1
      %p114 = scmp.eq.s32.totalorder %s15, 1
      %p115 = scmp.ne.s32.totalorder %s110, %s112
      %p116 = scmp.eq.s32.totalorder %s15, 0
      %p117 = por %p115, %p116
      %p118 = scmp.ne.s32.totalorder %s110, %s112
      %p119 = scmp.eq.s32.totalorder %s20, 1
      %p120 = por %p118, %p119
      %p121 = scmp.ne.s32.totalorder %s112, %s113
      %p122 = scmp.eq.s32.totalorder %s20, 0
      %p123 = por %p121, %p122
      %p124 = scmp.ne.s32.totalorder %s112, %s113
      %p125 = scmp.eq.s32.totalorder %s21, 1
      %p126 = por %p124, %p125
      %p128 = scmp.ne.s32.totalorder %s113, %s127
      %p129 = scmp.eq.s32.totalorder %s21, 0
      %p130 = por %p128, %p129
      %s132 = sadd.s32 %s131, 1
      %p135 = scmp.eq.s32.totalorder %s15, 1
      %p136 = scmp.ne.s32.totalorder %s131, %s133
      %p137 = scmp.eq.s32.totalorder %s15, 0
      %p138 = por %p136, %p137
      %p139 = scmp.ne.s32.totalorder %s131, %s133
      %p140 = scmp.eq.s32.totalorder %s20, 1
      %p141 = por %p139, %p140
      %p142 = scmp.ne.s32.totalorder %s133, %s134
      %p143 = scmp.eq.s32.totalorder %s20, 0
      %p144 = por %p142, %p143
      %p145 = scmp.ne.s32.totalorder %s133, %s134
      %p146 = scmp.eq.s32.totalorder %s21, 1
      %p147 = por %p145, %p146
      %p149 = scmp.ne.s32.totalorder %s134, %s148
      %p150 = scmp.eq.s32.totalorder %s21, 0
      %p151 = por %p149, %p150
      %s153 = sadd.s32 %s152, 1
      %p156 = scmp.eq.s32.totalorder %s15, 1
      %p157 = scmp.ne.s32.totalorder %s152, %s154
      %p158 = scmp.eq.s32.totalorder %s15, 0
      %p159 = por %p157, %p158
      %p160 = scmp.ne.s32.totalorder %s152, %s154
      %p161 = scmp.eq.s32.totalorder %s20, 1
      %p162 = por %p160, %p161
      %p163 = scmp.ne.s32.totalorder %s154, %s155
      %p164 = scmp.eq.s32.totalorder %s20, 0
      %p165 = por %p163, %p164
      %p166 = scmp.ne.s32.totalorder %s154, %s155
      %p167 = scmp.eq.s32.totalorder %s21, 1
      %p168 = por %p166, %p167
      %p170 = scmp.ne.s32.totalorder %s155, %s169
      %p171 = scmp.eq.s32.totalorder %s21, 0
      %p172 = por %p170, %p171
      %s173 = ssub.s32 %s22, %s34
      %s174 = ssub.s32 %s23, %s30
      %s175 = sor.u32 %s173, %s174
      %p176 = scmp.eq.s32.totalorder %s175, 0
      %s178 = sadd.s32 %s177, 1
      %s179 = scalar_select %p176, %s177, %s178
      %p182 = pneg %p176
      %p183 = scmp.eq.s32.totalorder %s15, 1
      %p184 = por %p182, %p183
      %p185 = scmp.ne.s32.totalorder %s177, %s180
      %p186 = scmp.eq.s32.totalorder %s15, 0
      %p187 = por %p185, %p186
      %p188 = scmp.ne.s32.totalorder %s177, %s180
      %p189 = scmp.eq.s32.totalorder %s20, 1
      %p190 = por %p188, %p189
      %p191 = scmp.ne.s32.totalorder %s180, %s181
      %p192 = scmp.eq.s32.totalorder %s20, 0
      %p193 = por %p191, %p192
      %p194 = scmp.ne.s32.totalorder %s180, %s181
      %p195 = scmp.eq.s32.totalorder %s21, 1
      %p196 = por %p194, %p195
      %p198 = scmp.ne.s32.totalorder %s181, %s197
      %p199 = scmp.eq.s32.totalorder %s21, 0
      %p200 = por %p198, %p199
      %p201 = scmp.le.s32.totalorder 1, %s15
      %p202 = scmp.lt.s32.totalorder %s15, 3
      %p203 = pnand %p201, %p202
      %p204 = pneg %p203
      // Predicated region
      $region9: #{forward.32} parent=5 // pred_check
        _
      $region10: #{forward.32} parent=5 // pred_check_branch
        %206 = sbr.rel (%p203) target = $region12
      $region11: #{forward.32} parent=5 // pred_region
        %s207 = ssub.s32 %s15, 1
        // Predicated region
        $region13: #{forward.32} parent=11 // pred_check
          %p208 = pneg %p81
        $region14: #{forward.32} parent=11 // pred_check_branch
          %210 = sbr.rel (%p208) target = $region16
        $region15: #{forward.32} parent=11 // pred_region
          %p211 = scmp.lt.s32.totalorder %s25, 0
          %s212 = scalar_select %p211, %s25, 0
          %s213 = smul.addr %s212, 2
          %s214 = smul.addr %s213, 2
          %s215 = scalar_lea.vmem %s1, %s214
        $region16: #{forward.32} parent=11 // pred_fallthru
          _
        // Predicated region
        $region17: #{forward.32} parent=11 // pred_check
          %p216 = pneg %p102
        $region18: #{forward.32} parent=11 // pred_check_branch
          %218 = sbr.rel (%p216) target = $region20
        $region19: #{forward.32} parent=11 // pred_region
          %220 = vsyncadd [#allocation3], 0
          %s222 = sshll.u32 %s2, 4
          %s223 = int_to_ptr.hbm [resolvable:$true] %s222
          %s224 = sshll.u32 [#allocation2], 4
          %s225 = int_to_ptr.vmem [resolvable:$true] %s224
          %227 = dma.hbm_to_vmem [thread:$0]  %s223, 32, %s225, [#allocation3]
        $region20: #{forward.32} parent=11 // pred_fallthru
          _
        // Predicated region
        $region21: #{forward.32} parent=11 // pred_check
          %p228 = pneg %p123
        $region22: #{forward.32} parent=11 // pred_check_branch
          %230 = sbr.rel (%p228) target = $region24
        $region23: #{forward.32} parent=11 // pred_region
          %232 = vsyncadd [#allocation5], 0
          %s234 = sshll.u32 %s3, 4
          %s235 = int_to_ptr.hbm [resolvable:$true] %s234
          %s236 = sshll.u32 [#allocation4], 4
          %s237 = int_to_ptr.vmem [resolvable:$true] %s236
          %239 = dma.hbm_to_vmem [thread:$0]  %s235, 32, %s237, [#allocation5]
        $region24: #{forward.32} parent=11 // pred_fallthru
          _
        // Predicated region
        $region25: #{forward.32} parent=11 // pred_check
          %p240 = pneg %p144
        $region26: #{forward.32} parent=11 // pred_check_branch
          %242 = sbr.rel (%p240) target = $region28
        $region27: #{forward.32} parent=11 // pred_region
          %244 = vsyncadd [#allocation5], 0
          %s246 = sshll.u32 %s4, 4
          %s247 = int_to_ptr.hbm [resolvable:$true] %s246
          %s248 = sshll.u32 [#allocation6], 4
          %s249 = int_to_ptr.vmem [resolvable:$true] %s248
          %251 = dma.hbm_to_vmem [thread:$0]  %s247, 32, %s249, [#allocation5]
        $region28: #{forward.32} parent=11 // pred_fallthru
          _
        // Predicated region
        $region29: #{forward.32} parent=11 // pred_check
          %p252 = pneg %p165
        $region30: #{forward.32} parent=11 // pred_check_branch
          %254 = sbr.rel (%p252) target = $region32
        $region31: #{forward.32} parent=11 // pred_region
          %256 = vsyncadd [#allocation8], 0
          %s258 = sshll.u32 %s5, 4
          %s259 = int_to_ptr.hbm [resolvable:$true] %s258
          %s260 = sshll.u32 [#allocation7], 4
          %s261 = int_to_ptr.vmem [resolvable:$true] %s260
          %263 = dma.hbm_to_vmem [thread:$0]  %s259, 32, %s261, [#allocation8]
        $region32: #{forward.32} parent=11 // pred_fallthru
          _
      $region12: #{forward.32} parent=5 // pred_fallthru
        _
      %p264 = scmp.lt.s32.totalorder %s15, 2
      // Predicated region
      $region33: #{forward.32} parent=5 // pred_check
        %p265 = pneg %p264
      $region34: #{forward.32} parent=5 // pred_check_branch
        %267 = sbr.rel (%p265) target = $region36
      $region35: #{forward.32} parent=5 // pred_region
        // Predicated region
        $region37: #{forward.32} parent=35 // pred_check
          %p268 = pneg %p49
        $region38: #{forward.32} parent=35 // pred_check_branch
          %270 = sbr.rel (%p268) target = $region40
        $region39: #{forward.32} parent=35 // pred_region
          %p271 = scmp.lt.s32.totalorder %s22, 1
          %s272 = scalar_select %p271, %s22, 1
          %p273 = scmp.lt.s32.totalorder %s23, 0
          %s274 = scalar_select %p273, %s23, 0
          %s275 = smul.addr %s274, 2
          %s276 = smul.addr %s272, 2
          %s277 = sadd.s32 %s275, %s276
          %s278 = scalar_lea.vmem %s0, %s277
        $region40: #{forward.32} parent=35 // pred_fallthru
          _
      $region36: #{forward.32} parent=5 // pred_fallthru
        _
      %p279 = scmp.le.s32.totalorder 1, %s15
      %p280 = scmp.lt.s32.totalorder %s15, 3
      %p281 = pnand %p279, %p280
      %p282 = pneg %p281
      // Predicated region
      $region41: #{forward.32} parent=5 // pred_check
        _
      $region42: #{forward.32} parent=5 // pred_check_branch
        %284 = sbr.rel (%p281) target = $region44
      $region43: #{forward.32} parent=5 // pred_region
        %s285 = ssub.s32 %s15, 1
        // Predicated region
        $region45: #{forward.32} parent=43 // pred_check
          %p286 = pneg %p102
        $region46: #{forward.32} parent=43 // pred_check_branch
          %288 = sbr.rel (%p286) target = $region48
        $region47: #{forward.32} parent=43 // pred_region
          %290 = dma.done [#allocation3], 32
        $region48: #{forward.32} parent=43 // pred_fallthru
          _
        // Predicated region
        $region49: #{forward.32} parent=43 // pred_check
          %p291 = pneg %p123
        $region50: #{forward.32} parent=43 // pred_check_branch
          %293 = sbr.rel (%p291) target = $region52
        $region51: #{forward.32} parent=43 // pred_region
          %295 = dma.done [#allocation5], 32
        $region52: #{forward.32} parent=43 // pred_fallthru
          _
        // Predicated region
        $region53: #{forward.32} parent=43 // pred_check
          %p296 = pneg %p144
        $region54: #{forward.32} parent=43 // pred_check_branch
          %298 = sbr.rel (%p296) target = $region56
        $region55: #{forward.32} parent=43 // pred_region
          %300 = dma.done [#allocation5], 32
        $region56: #{forward.32} parent=43 // pred_fallthru
          _
        // Predicated region
        $region57: #{forward.32} parent=43 // pred_check
          %p301 = pneg %p165
        $region58: #{forward.32} parent=43 // pred_check_branch
          %303 = sbr.rel (%p301) target = $region60
        $region59: #{forward.32} parent=43 // pred_region
          %305 = dma.done [#allocation8], 32
        $region60: #{forward.32} parent=43 // pred_fallthru
          _
        %p306 = scmp.lt.s32.totalorder %s24, 1
        %s307 = scalar_select %p306, %s24, 1
        %p308 = scmp.lt.s32.totalorder %s25, 0
        %s309 = scalar_select %p308, %s25, 0
        %s310 = smul.addr %s309, 2
        %s311 = smul.addr %s307, 2
        %s312 = sadd.s32 %s310, %s311
        %s313 = scalar_lea.vmem %s0, %s312
        %p314 = pneg %p55
        %p315 = pneg %p52
        %p316 = scmp.lt.s32.totalorder %s25, 0
        %s317 = scalar_select %p316, %s25, 0
        %s318 = smul.addr %s317, 2
        %s319 = smul.addr %s318, 2
        %s320 = scalar_lea.vmem %s1, %s319
        %p321 = pneg %p81
        %p322 = pneg %p78
        %p323 = pneg %p102
        %p324 = pneg %p99
        %p325 = pneg %p123
        %p326 = pneg %p120
        %p327 = pneg %p144
        %p328 = pneg %p141
        %p329 = pneg %p165
        %p330 = pneg %p162
        %p331 = pneg %p193
        %p332 = pneg %p190
        %p333 = scmp.lt.s32.totalorder %s24, 1
        %s334 = scalar_select %p333, %s24, 1
        %p335 = scmp.lt.s32.totalorder %s25, 0
        %s336 = scalar_select %p335, %s25, 0
        %s337 = smul.addr %s336, 2
        %s338 = smul.addr %s334, 2
        %s339 = sadd.s32 %s337, %s338
        %s340 = scalar_lea.vmem %s6, %s339
        %p341 = scmp.lt.s32.totalorder %s24, 1
        %s342 = scalar_select %p341, %s24, 1
        %p343 = scmp.lt.s32.totalorder %s25, 0
        %s344 = scalar_select %p343, %s25, 0
        %s345 = smul.addr %s344, 2
        %s346 = smul.addr %s342, 2
        %s347 = sadd.s32 %s345, %s346
        %s348 = scalar_lea.vmem %s0, %s347
        %p349 = scmp.lt.s32.totalorder %s25, 0
        %s350 = scalar_select %p349, %s25, 0
        %s351 = smul.addr %s350, 2
        %s352 = smul.addr %s351, 2
        %s353 = scalar_lea.vmem %s1, %s352
        %p354 = scmp.lt.s32.totalorder %s24, 1
        %s355 = scalar_select %p354, %s24, 1
        %p356 = scmp.lt.s32.totalorder %s25, 0
        %s357 = scalar_select %p356, %s25, 0
        %s358 = smul.addr %s357, 2
        %s359 = smul.addr %s355, 2
        %s360 = sadd.s32 %s358, %s359
        %s361 = scalar_lea.vmem %s6, %s360
        %v362 = vld [vmem:[%s348] sm:$0x3]
        %v363 = vunpack.c.l.bf16 %v362
        %v364 = vld [vmem:[#allocation2] sm:$0x3]
        %v365 = vld [vmem:[#allocation4] sm:$0x3]
        %367 = vst [vmem:[#allocation1] ss:$4 sm:$0xff] %v363
        %v368 = vld.sshfl [vmem:[#allocation1] sm:$0xff pattern:$0x73625140]
        %v369 = vld.sshfl [vmem:[#allocation1 + $0x8] sm:$0xff pattern:$0x73625140]
        %vm372 = vcmask 1041408
        %v373 = vsel %vm372, %v368, 0.0
        %v374 = vsel %vm372, %v369, 0.0
        %v375 = vadd.f32 %v373, %v374
        %376 = vadd.xlane.f32.xlu0 %v375
        %v377 = vpop.xlane.xlu0 %376
        %v378 = vrcp.pop 256.0
        %v379 = vmul.f32 256.0, %v378
        %v380 = vsub.f32 1.0, %v379
        %v381 = vmul.f32 %v378, %v380
        %v382 = vadd.f32 %v378, %v381
        %vm383 = vweird.f32 %v378
        %v384 = vsel %vm383, %v378, %v382
        %v385 = vmul.f32 %v377, %v384
        %v388 = vunpack.c.l.s4 269488144
        %v389 = vunpack.c.0.s8 %v388
        %v390 = vperm.slane %v385, %v389
        %v392 = vsub.f32 %v363, %v390
        %v393 = vmul.f32 %v392, %v392
        %395 = vst [vmem:[#allocation1] ss:$4 sm:$0xff] %v393
        %v396 = vld.sshfl [vmem:[#allocation1] sm:$0xff pattern:$0x73625140]
        %v397 = vld.sshfl [vmem:[#allocation1 + $0x8] sm:$0xff pattern:$0x73625140]
        %v400 = vsel %vm372, %v396, 0.0
        %v401 = vsel %vm372, %v397, 0.0
        %v402 = vadd.f32 %v400, %v401
        %403 = vadd.xlane.f32.xlu0 %v402
        %v404 = vpop.xlane.xlu0 %403
        %v405 = vmul.f32 %v404, %v384
        %v406 = vadd.f32 %v405, 1e-05
        %v407 = vrsqrt.pop %v406
        %v408 = vmul.f32 %v407, %v406
        %v409 = vmul.f32 %v408, %v407
        %v410 = vmul.f32 0.5, %v409
        %v411 = vsub.f32 1.5, %v410
        %v412 = vmul.f32 %v407, %v411
        %vm413 = vweird.f32 %v406
        %vm414 = vweird.f32 %v407
        %vm415 = vmor %vm413, %vm414
        %v416 = vsel %vm415, %v407, %v412
        %v419 = vunpack.c.l.s4 269488144
        %v420 = vunpack.c.0.s8 %v419
        %v421 = vperm.slane %v416, %v420
        %v423 = vmul.f32 %v392, %v421
        %v425 = vperm.slane %v364, 0
        %v426 = vperm.slane %v364, 1
        %v427 = vrot.slane %v426, 6
        %v428 = vsel %vm372, %v425, %v427
        %v430 = vmul.f32 %v423, %v428
        %v432 = vperm.slane %v365, 0
        %v433 = vperm.slane %v365, 1
        %v434 = vrot.slane %v433, 6
        %v435 = vsel %vm372, %v432, %v434
        %v437 = vadd.f32 %v430, %v435
        %v438 = vld [vmem:[%s353] sm:$0xf]
        %v439 = vadd.f32 %v437, %v438
        %v440 = vld [vmem:[#allocation6] sm:$0x3]
        %v441 = vld [vmem:[#allocation7] sm:$0x3]
        %443 = vst [vmem:[#allocation1] ss:$4 sm:$0xff] %v439
        %v444 = vld.sshfl [vmem:[#allocation1] sm:$0xff pattern:$0x73625140]
        %v445 = vld.sshfl [vmem:[#allocation1 + $0x8] sm:$0xff pattern:$0x73625140]
        %v448 = vsel %vm372, %v444, 0.0
        %v449 = vsel %vm372, %v445, 0.0
        %v450 = vadd.f32 %v448, %v449
        %451 = vadd.xlane.f32.xlu0 %v450
        %v452 = vpop.xlane.xlu0 %451
        %v453 = vmul.f32 %v452, %v384
        %v456 = vunpack.c.l.s4 269488144
        %v457 = vunpack.c.0.s8 %v456
        %v458 = vperm.slane %v453, %v457
        %v460 = vsub.f32 %v439, %v458
        %v461 = vmul.f32 %v460, %v460
        %463 = vst [vmem:[#allocation1] ss:$4 sm:$0xff] %v461
        %v464 = vld.sshfl [vmem:[#allocation1] sm:$0xff pattern:$0x73625140]
        %v465 = vld.sshfl [vmem:[#allocation1 + $0x8] sm:$0xff pattern:$0x73625140]
        %v468 = vsel %vm372, %v464, 0.0
        %v469 = vsel %vm372, %v465, 0.0
        %v470 = vadd.f32 %v468, %v469
        %471 = vadd.xlane.f32.xlu0 %v470
        %v472 = vpop.xlane.xlu0 %471
        %v473 = vmul.f32 %v472, %v384
        %v474 = vadd.f32 %v473, 1e-05
        %v475 = vrsqrt.pop %v474
        %v476 = vmul.f32 %v475, %v474
        %v477 = vmul.f32 %v476, %v475
        %v478 = vmul.f32 0.5, %v477
        %v479 = vsub.f32 1.5, %v478
        %v480 = vmul.f32 %v475, %v479
        %vm481 = vweird.f32 %v474
        %vm482 = vweird.f32 %v475
        %vm483 = vmor %vm481, %vm482
        %v484 = vsel %vm483, %v475, %v480
        %v487 = vunpack.c.l.s4 269488144
        %v488 = vunpack.c.0.s8 %v487
        %v489 = vperm.slane %v484, %v488
        %v491 = vmul.f32 %v460, %v489
        %v493 = vperm.slane %v440, 0
        %v494 = vperm.slane %v440, 1
        %v495 = vrot.slane %v494, 6
        %v496 = vsel %vm372, %v493, %v495
        %v498 = vmul.f32 %v491, %v496
        %v500 = vperm.slane %v441, 0
        %v501 = vperm.slane %v441, 1
        %v502 = vrot.slane %v501, 6
        %v503 = vsel %vm372, %v500, %v502
        %v505 = vadd.f32 %v498, %v503
        %507 = vst [vmem:[#allocation1] ss:$4 sm:$0xff] %v505
        %v508 = vld.sshfl [vmem:[#allocation1] sm:$0xff pattern:$0x73625140]
        %v509 = vld.sshfl [vmem:[#allocation1 + $0x8] sm:$0xff pattern:$0x73625140]
        %v512 = vpack.c.bf16 %v509, %v508
        %v514 = vrot.slane %v512, 3
        %vm515 = vcmask 1040384
        %v518 = vsel %vm515, %v512, %v514
        %520 = vst [vmem:[%s361] sm:$0x3] %v518
        %p521 = scmp.lt.s32.totalorder %s24, 1
        %s522 = scalar_select %p521, %s24, 1
        %p523 = scmp.lt.s32.totalorder %s25, 0
        %s524 = scalar_select %p523, %s25, 0
        %s525 = smul.addr %s524, 2
        %s526 = smul.addr %s522, 2
        %s527 = sadd.s32 %s525, %s526
        %s528 = scalar_lea.vmem %s6, %s527
        // Predicated region
        $region61: #{forward.32} parent=43 // pred_check
          %p529 = pneg %p190
        $region62: #{forward.32} parent=43 // pred_check_branch
          %531 = sbr.rel (%p529) target = $region64
        $region63: #{forward.32} parent=43 // pred_region
          _
        $region64: #{forward.32} parent=43 // pred_fallthru
          _
      $region44: #{forward.32} parent=5 // pred_fallthru
        _
      %p532 = scmp.le.s32.totalorder 2, %s15
      // Predicated region
      $region65: #{forward.32} parent=5 // pred_check
        %p533 = pneg %p532
      $region66: #{forward.32} parent=5 // pred_check_branch
        %535 = sbr.rel (%p533) target = $region68
      $region67: #{forward.32} parent=5 // pred_region
        %s536 = ssub.s32 %s15, 2
        // Predicated region
        $region69: #{forward.32} parent=67 // pred_check
          %p537 = pneg %p196
        $region70: #{forward.32} parent=67 // pred_check_branch
          %539 = sbr.rel (%p537) target = $region72
        $region71: #{forward.32} parent=67 // pred_region
          %p540 = scmp.lt.s32.totalorder %s26, 1
          %s541 = scalar_select %p540, %s26, 1
          %p542 = scmp.lt.s32.totalorder %s27, 0
          %s543 = scalar_select %p542, %s27, 0
          %s544 = smul.addr %s543, 2
          %s545 = smul.addr %s541, 2
          %s546 = sadd.s32 %s544, %s545
          %s547 = scalar_lea.vmem %s6, %s546
        $region72: #{forward.32} parent=67 // pred_fallthru
          _
      $region68: #{forward.32} parent=5 // pred_fallthru
        _
    $region6: #{forward.32} parent=1 // loop_footer
      %s19 = sadd.s32 1, %s15
    $region7: #{forward.32} parent=1 // loop_footer_branch
      %14 = sbr.rel target = $region3
    $region8: #{forward.32} parent=1 // loop_exit
      _
    %548 = vsyncpa [#allocation3], 1
    %s549 = scalar_lea.sflag [#allocation3], 1
    %550 = vsyncpa %s549, 1
    %551 = vsyncpa [#allocation5], 1
    %552 = vsyncpa [#allocation8], 1

// kernel: forward.27
$region0: #{forward.27}
  #allocation0 [shape = 'u32[]', space=smem, size = 0x4, offset = 0x4, fixed_abs, tag = 'smem constant byte address 0x4 - core index']
  #allocation1 [shape = 'u32[72,128]{1,0:T(1,128)}', space=vmem, size = 0x9000, scoped, tag = 'internal scratch']
  %s0 = inlined_call_operand.vmem [shape: f32[4,10,768], index: 0, kind: input, shape index: {}]
  %s1 = inlined_call_operand.vmem [shape: bf16[4,1536], index: 1, kind: output, shape index: {}]
  %s2 = sld [smem:[#allocation0]]
  $region14: #{forward.27} parent=0
    _
  %s4 = ssub.s32 1, %s2
  %s5 = scalar_select 0, %s4, %s2
  // Predicated region
  $region2: #{forward.27} parent=0 // pred_check
    _
  $region3: #{forward.27} parent=0 // pred_check_branch
    %7 = sbr.rel (0) target = $region5
  $region4: #{forward.27} parent=0 // pred_region
    _
  $region5: #{forward.27} parent=0 // pred_fallthru
    _
  %v8 = vld [vmem:[%s0] sm:$0xff]
  %v9 = vld [vmem:[%s0 + $0x8] sm:$0xff]
  %v10 = vld [vmem:[%s0 + $0x10] sm:$0xff]
  %v11 = vld [vmem:[%s0 + $0x18] sm:$0xff]
  %v12 = vld [vmem:[%s0 + $0x20] sm:$0xff]
  %v13 = vld [vmem:[%s0 + $0x28] sm:$0xff]
  %v14 = vld [vmem:[%s0 + $0x30] sm:$0x3]
  %v15 = vld [vmem:[%s0 + $0x38] sm:$0x3]
  %v16 = vld [vmem:[%s0 + $0x40] sm:$0x3]
  %v17 = vld [vmem:[%s0 + $0x48] sm:$0x3]
  %v18 = vld [vmem:[%s0 + $0x50] sm:$0x3]
  %v19 = vld [vmem:[%s0 + $0x58] sm:$0x3]
  %v20 = vld [vmem:[%s0 + $0x60] sm:$0xff]
  %v21 = vld [vmem:[%s0 + $0x68] sm:$0xff]
  %v22 = vld [vmem:[%s0 + $0x70] sm:$0xff]
  %v23 = vld [vmem:[%s0 + $0x78] sm:$0xff]
  %v24 = vld [vmem:[%s0 + $0x80] sm:$0xff]
  %v25 = vld [vmem:[%s0 + $0x88] sm:$0xff]
  %v26 = vld [vmem:[%s0 + $0x90] sm:$0x3]
  %v27 = vld [vmem:[%s0 + $0x98] sm:$0x3]
  %v28 = vld [vmem:[%s0 + $0xa0] sm:$0x3]
  %v29 = vld [vmem:[%s0 + $0xa8] sm:$0x3]
  %v30 = vld [vmem:[%s0 + $0xb0] sm:$0x3]
  %v31 = vld [vmem:[%s0 + $0xb8] sm:$0x3]
  %v32 = vld [vmem:[%s0 + $0xc0] sm:$0xff]
  %v33 = vld [vmem:[%s0 + $0xc8] sm:$0xff]
  %v34 = vld [vmem:[%s0 + $0xd0] sm:$0xff]
  %v35 = vld [vmem:[%s0 + $0xd8] sm:$0xff]
  %v36 = vld [vmem:[%s0 + $0xe0] sm:$0xff]
  %v37 = vld [vmem:[%s0 + $0xe8] sm:$0xff]
  %v38 = vld [vmem:[%s0 + $0xf0] sm:$0x3]
  %v39 = vld [vmem:[%s0 + $0xf8] sm:$0x3]
  %v40 = vld [vmem:[%s0 + $0x100] sm:$0x3]
  %v41 = vld [vmem:[%s0 + $0x108] sm:$0x3]
  %v42 = vld [vmem:[%s0 + $0x110] sm:$0x3]
  %v43 = vld [vmem:[%s0 + $0x118] sm:$0x3]
  %v44 = vld [vmem:[%s0 + $0x120] sm:$0xff]
  %v45 = vld [vmem:[%s0 + $0x128] sm:$0xff]
  %v46 = vld [vmem:[%s0 + $0x130] sm:$0xff]
  %v47 = vld [vmem:[%s0 + $0x138] sm:$0xff]
  %v48 = vld [vmem:[%s0 + $0x140] sm:$0xff]
  %v49 = vld [vmem:[%s0 + $0x148] sm:$0xff]
  %v50 = vld [vmem:[%s0 + $0x150] sm:$0x3]
  %v51 = vld [vmem:[%s0 + $0x158] sm:$0x3]
  %v52 = vld [vmem:[%s0 + $0x160] sm:$0x3]
  %v53 = vld [vmem:[%s0 + $0x168] sm:$0x3]
  %v54 = vld [vmem:[%s0 + $0x170] sm:$0x3]
  %v55 = vld [vmem:[%s0 + $0x178] sm:$0x3]
  %vm56 = vcmask 1041408
  %v57 = vsel %vm56, %v14, 0.0
  %v58 = vadd.f32 %v8, %v57
  %v59 = vrot.slane %v58, 4
  %v60 = vadd.f32 %v58, %v59
  %v61 = vrot.slane %v60, 2
  %v62 = vadd.f32 %v60, %v61
  %v63 = vrot.slane %v62, 1
  %v64 = vadd.f32 %v62, %v63
  %v65 = vsel %vm56, %v15, 0.0
  %v66 = vadd.f32 %v9, %v65
  %v67 = vrot.slane %v66, 4
  %v68 = vadd.f32 %v66, %v67
  %v69 = vrot.slane %v68, 2
  %v70 = vadd.f32 %v68, %v69
  %v71 = vrot.slane %v70, 1
  %v72 = vadd.f32 %v70, %v71
  %v73 = vsel %vm56, %v16, 0.0
  %v74 = vadd.f32 %v10, %v73
  %v75 = vrot.slane %v74, 4
  %v76 = vadd.f32 %v74, %v75
  %v77 = vrot.slane %v76, 2
  %v78 = vadd.f32 %v76, %v77
  %v79 = vrot.slane %v78, 1
  %v80 = vadd.f32 %v78, %v79
  %v81 = vsel %vm56, %v17, 0.0
  %v82 = vadd.f32 %v11, %v81
  %v83 = vrot.slane %v82, 4
  %v84 = vadd.f32 %v82, %v83
  %v85 = vrot.slane %v84, 2
  %v86 = vadd.f32 %v84, %v85
  %v87 = vrot.slane %v86, 1
  %v88 = vadd.f32 %v86, %v87
  %v89 = vsel %vm56, %v18, 0.0
  %v90 = vadd.f32 %v12, %v89
  %v91 = vrot.slane %v90, 4
  %v92 = vadd.f32 %v90, %v91
  %v93 = vrot.slane %v92, 2
  %v94 = vadd.f32 %v92, %v93
  %v95 = vrot.slane %v94, 1
  %v96 = vadd.f32 %v94, %v95
  %v97 = vsel %vm56, %v19, 0.0
  %v98 = vadd.f32 %v13, %v97
  %v99 = vrot.slane %v98, 4
  %v100 = vadd.f32 %v98, %v99
  %v101 = vrot.slane %v100, 2
  %v102 = vadd.f32 %v100, %v101
  %v103 = vrot.slane %v102, 1
  %v104 = vadd.f32 %v102, %v103
  %v105 = vsel %vm56, %v26, 0.0
  %v106 = vadd.f32 %v20, %v105
  %v107 = vrot.slane %v106, 4
  %v108 = vadd.f32 %v106, %v107
  %v109 = vrot.slane %v108, 2
  %v110 = vadd.f32 %v108, %v109
  %v111 = vrot.slane %v110, 1
  %v112 = vadd.f32 %v110, %v111
  %v113 = vsel %vm56, %v27, 0.0
  %v114 = vadd.f32 %v21, %v113
  %v115 = vrot.slane %v114, 4
  %v116 = vadd.f32 %v114, %v115
  %v117 = vrot.slane %v116, 2
  %v118 = vadd.f32 %v116, %v117
  %v119 = vrot.slane %v118, 1
  %v120 = vadd.f32 %v118, %v119
  %v121 = vsel %vm56, %v28, 0.0
  %v122 = vadd.f32 %v22, %v121
  %v123 = vrot.slane %v122, 4
  %v124 = vadd.f32 %v122, %v123
  %v125 = vrot.slane %v124, 2
  %v126 = vadd.f32 %v124, %v125
  %v127 = vrot.slane %v126, 1
  %v128 = vadd.f32 %v126, %v127
  %v129 = vsel %vm56, %v29, 0.0
  %v130 = vadd.f32 %v23, %v129
  %v131 = vrot.slane %v130, 4
  %v132 = vadd.f32 %v130, %v131
  %v133 = vrot.slane %v132, 2
  %v134 = vadd.f32 %v132, %v133
  %v135 = vrot.slane %v134, 1
  %v136 = vadd.f32 %v134, %v135
  %v137 = vsel %vm56, %v30, 0.0
  %v138 = vadd.f32 %v24, %v137
  %v139 = vrot.slane %v138, 4
  %v140 = vadd.f32 %v138, %v139
  %v141 = vrot.slane %v140, 2
  %v142 = vadd.f32 %v140, %v141
  %v143 = vrot.slane %v142, 1
  %v144 = vadd.f32 %v142, %v143
  %v145 = vsel %vm56, %v31, 0.0
  %v146 = vadd.f32 %v25, %v145
  %v147 = vrot.slane %v146, 4
  %v148 = vadd.f32 %v146, %v147
  %v149 = vrot.slane %v148, 2
  %v150 = vadd.f32 %v148, %v149
  %v151 = vrot.slane %v150, 1
  %v152 = vadd.f32 %v150, %v151
  %v153 = vsel %vm56, %v38, 0.0
  %v154 = vadd.f32 %v32, %v153
  %v155 = vrot.slane %v154, 4
  %v156 = vadd.f32 %v154, %v155
  %v157 = vrot.slane %v156, 2
  %v158 = vadd.f32 %v156, %v157
  %v159 = vrot.slane %v158, 1
  %v160 = vadd.f32 %v158, %v159
  %v161 = vsel %vm56, %v39, 0.0
  %v162 = vadd.f32 %v33, %v161
  %v163 = vrot.slane %v162, 4
  %v164 = vadd.f32 %v162, %v163
  %v165 = vrot.slane %v164, 2
  %v166 = vadd.f32 %v164, %v165
  %v167 = vrot.slane %v166, 1
  %v168 = vadd.f32 %v166, %v167
  %v169 = vsel %vm56, %v40, 0.0
  %v170 = vadd.f32 %v34, %v169
  %v171 = vrot.slane %v170, 4
  %v172 = vadd.f32 %v170, %v171
  %v173 = vrot.slane %v172, 2
  %v174 = vadd.f32 %v172, %v173
  %v175 = vrot.slane %v174, 1
  %v176 = vadd.f32 %v174, %v175
  %v177 = vsel %vm56, %v41, 0.0
  %v178 = vadd.f32 %v35, %v177
  %v179 = vrot.slane %v178, 4
  %v180 = vadd.f32 %v178, %v179
  %v181 = vrot.slane %v180, 2
  %v182 = vadd.f32 %v180, %v181
  %v183 = vrot.slane %v182, 1
  %v184 = vadd.f32 %v182, %v183
  %v185 = vsel %vm56, %v42, 0.0
  %v186 = vadd.f32 %v36, %v185
  %v187 = vrot.slane %v186, 4
  %v188 = vadd.f32 %v186, %v187
  %v189 = vrot.slane %v188, 2
  %v190 = vadd.f32 %v188, %v189
  %v191 = vrot.slane %v190, 1
  %v192 = vadd.f32 %v190, %v191
  %v193 = vsel %vm56, %v43, 0.0
  %v194 = vadd.f32 %v37, %v193
  %v195 = vrot.slane %v194, 4
  %v196 = vadd.f32 %v194, %v195
  %v197 = vrot.slane %v196, 2
  %v198 = vadd.f32 %v196, %v197
  %v199 = vrot.slane %v198, 1
  %v200 = vadd.f32 %v198, %v199
  %v201 = vsel %vm56, %v50, 0.0
  %v202 = vadd.f32 %v44, %v201
  %v203 = vrot.slane %v202, 4
  %v204 = vadd.f32 %v202, %v203
  %v205 = vrot.slane %v204, 2
  %v206 = vadd.f32 %v204, %v205
  %v207 = vrot.slane %v206, 1
  %v208 = vadd.f32 %v206, %v207
  %v209 = vsel %vm56, %v51, 0.0
  %v210 = vadd.f32 %v45, %v209
  %v211 = vrot.slane %v210, 4
  %v212 = vadd.f32 %v210, %v211
  %v213 = vrot.slane %v212, 2
  %v214 = vadd.f32 %v212, %v213
  %v215 = vrot.slane %v214, 1
  %v216 = vadd.f32 %v214, %v215
  %v217 = vsel %vm56, %v52, 0.0
  %v218 = vadd.f32 %v46, %v217
  %v219 = vrot.slane %v218, 4
  %v220 = vadd.f32 %v218, %v219
  %v221 = vrot.slane %v220, 2
  %v222 = vadd.f32 %v220, %v221
  %v223 = vrot.slane %v222, 1
  %v224 = vadd.f32 %v222, %v223
  %v225 = vsel %vm56, %v53, 0.0
  %v226 = vadd.f32 %v47, %v225
  %v227 = vrot.slane %v226, 4
  %v228 = vadd.f32 %v226, %v227
  %v229 = vrot.slane %v228, 2
  %v230 = vadd.f32 %v228, %v229
  %v231 = vrot.slane %v230, 1
  %v232 = vadd.f32 %v230, %v231
  %v233 = vsel %vm56, %v54, 0.0
  %v234 = vadd.f32 %v48, %v233
  %v235 = vrot.slane %v234, 4
  %v236 = vadd.f32 %v234, %v235
  %v237 = vrot.slane %v236, 2
  %v238 = vadd.f32 %v236, %v237
  %v239 = vrot.slane %v238, 1
  %v240 = vadd.f32 %v238, %v239
  %v241 = vsel %vm56, %v55, 0.0
  %v242 = vadd.f32 %v49, %v241
  %v243 = vrot.slane %v242, 4
  %v244 = vadd.f32 %v242, %v243
  %v245 = vrot.slane %v244, 2
  %v246 = vadd.f32 %v244, %v245
  %v247 = vrot.slane %v246, 1
  %v248 = vadd.f32 %v246, %v247
  %v249 = vrcp.pop 10.0
  %v250 = vmul.f32 10.0, %v249
  %v251 = vsub.f32 1.0, %v250
  %v252 = vmul.f32 %v249, %v251
  %v253 = vadd.f32 %v249, %v252
  %vm254 = vweird.f32 %v249
  %v255 = vsel %vm254, %v249, %v253
  %v256 = vmul.f32 %v64, %v255
  %v257 = vmul.f32 %v72, %v255
  %v258 = vmul.f32 %v80, %v255
  %v259 = vmul.f32 %v88, %v255
  %v260 = vmul.f32 %v96, %v255
  %v261 = vmul.f32 %v104, %v255
  %v262 = vmul.f32 %v112, %v255
  %v263 = vmul.f32 %v120, %v255
  %v264 = vmul.f32 %v128, %v255
  %v265 = vmul.f32 %v136, %v255
  %v266 = vmul.f32 %v144, %v255
  %v267 = vmul.f32 %v152, %v255
  %v268 = vmul.f32 %v160, %v255
  %v269 = vmul.f32 %v168, %v255
  %v270 = vmul.f32 %v176, %v255
  %v271 = vmul.f32 %v184, %v255
  %v272 = vmul.f32 %v192, %v255
  %v273 = vmul.f32 %v200, %v255
  %v274 = vmul.f32 %v208, %v255
  %v275 = vmul.f32 %v216, %v255
  %v276 = vmul.f32 %v224, %v255
  %v277 = vmul.f32 %v232, %v255
  %v278 = vmul.f32 %v240, %v255
  %v279 = vmul.f32 %v248, %v255
  %v280 = vsub.f32 %v8, %v256
  %v281 = vsub.f32 %v9, %v257
  %v282 = vsub.f32 %v10, %v258
  %v283 = vsub.f32 %v11, %v259
  %v284 = vsub.f32 %v12, %v260
  %v285 = vsub.f32 %v13, %v261
  %v286 = vsub.f32 %v14, %v256
  %v287 = vsub.f32 %v15, %v257
  %v288 = vsub.f32 %v16, %v258
  %v289 = vsub.f32 %v17, %v259
  %v290 = vsub.f32 %v18, %v260
  %v291 = vsub.f32 %v19, %v261
  %v292 = vsub.f32 %v20, %v262
  %v293 = vsub.f32 %v21, %v263
  %v294 = vsub.f32 %v22, %v264
  %v295 = vsub.f32 %v23, %v265
  %v296 = vsub.f32 %v24, %v266
  %v297 = vsub.f32 %v25, %v267
  %v298 = vsub.f32 %v26, %v262
  %v299 = vsub.f32 %v27, %v263
  %v300 = vsub.f32 %v28, %v264
  %v301 = vsub.f32 %v29, %v265
  %v302 = vsub.f32 %v30, %v266
  %v303 = vsub.f32 %v31, %v267
  %v304 = vsub.f32 %v32, %v268
  %v305 = vsub.f32 %v33, %v269
  %v306 = vsub.f32 %v34, %v270
  %v307 = vsub.f32 %v35, %v271
  %v308 = vsub.f32 %v36, %v272
  %v309 = vsub.f32 %v37, %v273
  %v310 = vsub.f32 %v38, %v268
  %v311 = vsub.f32 %v39, %v269
  %v312 = vsub.f32 %v40, %v270
  %v313 = vsub.f32 %v41, %v271
  %v314 = vsub.f32 %v42, %v272
  %v315 = vsub.f32 %v43, %v273
  %v316 = vsub.f32 %v44, %v274
  %v317 = vsub.f32 %v45, %v275
  %v318 = vsub.f32 %v46, %v276
  %v319 = vsub.f32 %v47, %v277
  %v320 = vsub.f32 %v48, %v278
  %v321 = vsub.f32 %v49, %v279
  %v322 = vsub.f32 %v50, %v274
  %v323 = vsub.f32 %v51, %v275
  %v324 = vsub.f32 %v52, %v276
  %v325 = vsub.f32 %v53, %v277
  %v326 = vsub.f32 %v54, %v278
  %v327 = vsub.f32 %v55, %v279
  %v328 = vmul.f32 %v280, %v280
  %v329 = vmul.f32 %v281, %v281
  %v330 = vmul.f32 %v282, %v282
  %v331 = vmul.f32 %v283, %v283
  %v332 = vmul.f32 %v284, %v284
  %v333 = vmul.f32 %v285, %v285
  %v334 = vmul.f32 %v286, %v286
  %v335 = vmul.f32 %v287, %v287
  %v336 = vmul.f32 %v288, %v288
  %v337 = vmul.f32 %v289, %v289
  %v338 = vmul.f32 %v290, %v290
  %v339 = vmul.f32 %v291, %v291
  %v340 = vmul.f32 %v292, %v292
  %v341 = vmul.f32 %v293, %v293
  %v342 = vmul.f32 %v294, %v294
  %v343 = vmul.f32 %v295, %v295
  %v344 = vmul.f32 %v296, %v296
  %v345 = vmul.f32 %v297, %v297
  %v346 = vmul.f32 %v298, %v298
  %v347 = vmul.f32 %v299, %v299
  %v348 = vmul.f32 %v300, %v300
  %v349 = vmul.f32 %v301, %v301
  %v350 = vmul.f32 %v302, %v302
  %v351 = vmul.f32 %v303, %v303
  %v352 = vmul.f32 %v304, %v304
  %v353 = vmul.f32 %v305, %v305
  %v354 = vmul.f32 %v306, %v306
  %v355 = vmul.f32 %v307, %v307
  %v356 = vmul.f32 %v308, %v308
  %v357 = vmul.f32 %v309, %v309
  %v358 = vmul.f32 %v310, %v310
  %v359 = vmul.f32 %v311, %v311
  %v360 = vmul.f32 %v312, %v312
  %v361 = vmul.f32 %v313, %v313
  %v362 = vmul.f32 %v314, %v314
  %v363 = vmul.f32 %v315, %v315
  %v364 = vmul.f32 %v316, %v316
  %v365 = vmul.f32 %v317, %v317
  %v366 = vmul.f32 %v318, %v318
  %v367 = vmul.f32 %v319, %v319
  %v368 = vmul.f32 %v320, %v320
  %v369 = vmul.f32 %v321, %v321
  %v370 = vmul.f32 %v322, %v322
  %v371 = vmul.f32 %v323, %v323
  %v372 = vmul.f32 %v324, %v324
  %v373 = vmul.f32 %v325, %v325
  %v374 = vmul.f32 %v326, %v326
  %v375 = vmul.f32 %v327, %v327
  %v376 = vsel %vm56, %v334, 0.0
  %v377 = vadd.f32 %v328, %v376
  %v378 = vrot.slane %v377, 4
  %v379 = vadd.f32 %v377, %v378
  %v380 = vrot.slane %v379, 2
  %v381 = vadd.f32 %v379, %v380
  %v382 = vrot.slane %v381, 1
  %v383 = vadd.f32 %v381, %v382
  %v384 = vsel %vm56, %v335, 0.0
  %v385 = vadd.f32 %v329, %v384
  %v386 = vrot.slane %v385, 4
  %v387 = vadd.f32 %v385, %v386
  %v388 = vrot.slane %v387, 2
  %v389 = vadd.f32 %v387, %v388
  %v390 = vrot.slane %v389, 1
  %v391 = vadd.f32 %v389, %v390
  %v392 = vsel %vm56, %v336, 0.0
  %v393 = vadd.f32 %v330, %v392
  %v394 = vrot.slane %v393, 4
  %v395 = vadd.f32 %v393, %v394
  %v396 = vrot.slane %v395, 2
  %v397 = vadd.f32 %v395, %v396
  %v398 = vrot.slane %v397, 1
  %v399 = vadd.f32 %v397, %v398
  %v400 = vsel %vm56, %v337, 0.0
  %v401 = vadd.f32 %v331, %v400
  %v402 = vrot.slane %v401, 4
  %v403 = vadd.f32 %v401, %v402
  %v404 = vrot.slane %v403, 2
  %v405 = vadd.f32 %v403, %v404
  %v406 = vrot.slane %v405, 1
  %v407 = vadd.f32 %v405, %v406
  %v408 = vsel %vm56, %v338, 0.0
  %v409 = vadd.f32 %v332, %v408
  %v410 = vrot.slane %v409, 4
  %v411 = vadd.f32 %v409, %v410
  %v412 = vrot.slane %v411, 2
  %v413 = vadd.f32 %v411, %v412
  %v414 = vrot.slane %v413, 1
  %v415 = vadd.f32 %v413, %v414
  %v416 = vsel %vm56, %v339, 0.0
  %v417 = vadd.f32 %v333, %v416
  %v418 = vrot.slane %v417, 4
  %v419 = vadd.f32 %v417, %v418
  %v420 = vrot.slane %v419, 2
  %v421 = vadd.f32 %v419, %v420
  %v422 = vrot.slane %v421, 1
  %v423 = vadd.f32 %v421, %v422
  %v424 = vsel %vm56, %v346, 0.0
  %v425 = vadd.f32 %v340, %v424
  %v426 = vrot.slane %v425, 4
  %v427 = vadd.f32 %v425, %v426
  %v428 = vrot.slane %v427, 2
  %v429 = vadd.f32 %v427, %v428
  %v430 = vrot.slane %v429, 1
  %v431 = vadd.f32 %v429, %v430
  %v432 = vsel %vm56, %v347, 0.0
  %v433 = vadd.f32 %v341, %v432
  %v434 = vrot.slane %v433, 4
  %v435 = vadd.f32 %v433, %v434
  %v436 = vrot.slane %v435, 2
  %v437 = vadd.f32 %v435, %v436
  %v438 = vrot.slane %v437, 1
  %v439 = vadd.f32 %v437, %v438
  %v440 = vsel %vm56, %v348, 0.0
  %v441 = vadd.f32 %v342, %v440
  %v442 = vrot.slane %v441, 4
  %v443 = vadd.f32 %v441, %v442
  %v444 = vrot.slane %v443, 2
  %v445 = vadd.f32 %v443, %v444
  %v446 = vrot.slane %v445, 1
  %v447 = vadd.f32 %v445, %v446
  %v448 = vsel %vm56, %v349, 0.0
  %v449 = vadd.f32 %v343, %v448
  %v450 = vrot.slane %v449, 4
  %v451 = vadd.f32 %v449, %v450
  %v452 = vrot.slane %v451, 2
  %v453 = vadd.f32 %v451, %v452
  %v454 = vrot.slane %v453, 1
  %v455 = vadd.f32 %v453, %v454
  %v456 = vsel %vm56, %v350, 0.0
  %v457 = vadd.f32 %v344, %v456
  %v458 = vrot.slane %v457, 4
  %v459 = vadd.f32 %v457, %v458
  %v460 = vrot.slane %v459, 2
  %v461 = vadd.f32 %v459, %v460
  %v462 = vrot.slane %v461, 1
  %v463 = vadd.f32 %v461, %v462
  %v464 = vsel %vm56, %v351, 0.0
  %v465 = vadd.f32 %v345, %v464
  %v466 = vrot.slane %v465, 4
  %v467 = vadd.f32 %v465, %v466
  %v468 = vrot.slane %v467, 2
  %v469 = vadd.f32 %v467, %v468
  %v470 = vrot.slane %v469, 1
  %v471 = vadd.f32 %v469, %v470
  %v472 = vsel %vm56, %v358, 0.0
  %v473 = vadd.f32 %v352, %v472
  %v474 = vrot.slane %v473, 4
  %v475 = vadd.f32 %v473, %v474
  %v476 = vrot.slane %v475, 2
  %v477 = vadd.f32 %v475, %v476
  %v478 = vrot.slane %v477, 1
  %v479 = vadd.f32 %v477, %v478
  %v480 = vsel %vm56, %v359, 0.0
  %v481 = vadd.f32 %v353, %v480
  %v482 = vrot.slane %v481, 4
  %v483 = vadd.f32 %v481, %v482
  %v484 = vrot.slane %v483, 2
  %v485 = vadd.f32 %v483, %v484
  %v486 = vrot.slane %v485, 1
  %v487 = vadd.f32 %v485, %v486
  %v488 = vsel %vm56, %v360, 0.0
  %v489 = vadd.f32 %v354, %v488
  %v490 = vrot.slane %v489, 4
  %v491 = vadd.f32 %v489, %v490
  %v492 = vrot.slane %v491, 2
  %v493 = vadd.f32 %v491, %v492
  %v494 = vrot.slane %v493, 1
  %v495 = vadd.f32 %v493, %v494
  %v496 = vsel %vm56, %v361, 0.0
  %v497 = vadd.f32 %v355, %v496
  %v498 = vrot.slane %v497, 4
  %v499 = vadd.f32 %v497, %v498
  %v500 = vrot.slane %v499, 2
  %v501 = vadd.f32 %v499, %v500
  %v502 = vrot.slane %v501, 1
  %v503 = vadd.f32 %v501, %v502
  %v504 = vsel %vm56, %v362, 0.0
  %v505 = vadd.f32 %v356, %v504
  %v506 = vrot.slane %v505, 4
  %v507 = vadd.f32 %v505, %v506
  %v508 = vrot.slane %v507, 2
  %v509 = vadd.f32 %v507, %v508
  %v510 = vrot.slane %v509, 1
  %v511 = vadd.f32 %v509, %v510
  %v512 = vsel %vm56, %v363, 0.0
  %v513 = vadd.f32 %v357, %v512
  %v514 = vrot.slane %v513, 4
  %v515 = vadd.f32 %v513, %v514
  %v516 = vrot.slane %v515, 2
  %v517 = vadd.f32 %v515, %v516
  %v518 = vrot.slane %v517, 1
  %v519 = vadd.f32 %v517, %v518
  %v520 = vsel %vm56, %v370, 0.0
  %v521 = vadd.f32 %v364, %v520
  %v522 = vrot.slane %v521, 4
  %v523 = vadd.f32 %v521, %v522
  %v524 = vrot.slane %v523, 2
  %v525 = vadd.f32 %v523, %v524
  %v526 = vrot.slane %v525, 1
  %v527 = vadd.f32 %v525, %v526
  %v528 = vsel %vm56, %v371, 0.0
  %v529 = vadd.f32 %v365, %v528
  %v530 = vrot.slane %v529, 4
  %v531 = vadd.f32 %v529, %v530
  %v532 = vrot.slane %v531, 2
  %v533 = vadd.f32 %v531, %v532
  %v534 = vrot.slane %v533, 1
  %v535 = vadd.f32 %v533, %v534
  %v536 = vsel %vm56, %v372, 0.0
  %v537 = vadd.f32 %v366, %v536
  %v538 = vrot.slane %v537, 4
  %v539 = vadd.f32 %v537, %v538
  %v540 = vrot.slane %v539, 2
  %v541 = vadd.f32 %v539, %v540
  %v542 = vrot.slane %v541, 1
  %v543 = vadd.f32 %v541, %v542
  %v544 = vsel %vm56, %v373, 0.0
  %v545 = vadd.f32 %v367, %v544
  %v546 = vrot.slane %v545, 4
  %v547 = vadd.f32 %v545, %v546
  %v548 = vrot.slane %v547, 2
  %v549 = vadd.f32 %v547, %v548
  %v550 = vrot.slane %v549, 1
  %v551 = vadd.f32 %v549, %v550
  %v552 = vsel %vm56, %v374, 0.0
  %v553 = vadd.f32 %v368, %v552
  %v554 = vrot.slane %v553, 4
  %v555 = vadd.f32 %v553, %v554
  %v556 = vrot.slane %v555, 2
  %v557 = vadd.f32 %v555, %v556
  %v558 = vrot.slane %v557, 1
  %v559 = vadd.f32 %v557, %v558
  %v560 = vsel %vm56, %v375, 0.0
  %v561 = vadd.f32 %v369, %v560
  %v562 = vrot.slane %v561, 4
  %v563 = vadd.f32 %v561, %v562
  %v564 = vrot.slane %v563, 2
  %v565 = vadd.f32 %v563, %v564
  %v566 = vrot.slane %v565, 1
  %v567 = vadd.f32 %v565, %v566
  %v568 = vrcp.pop 9.0
  %v569 = vmul.f32 9.0, %v568
  %v570 = vsub.f32 1.0, %v569
  %v571 = vmul.f32 %v568, %v570
  %v572 = vadd.f32 %v568, %v571
  %vm573 = vweird.f32 %v568
  %v574 = vsel %vm573, %v568, %v572
  %v575 = vmul.f32 %v383, %v574
  %v576 = vmul.f32 %v391, %v574
  %v577 = vmul.f32 %v399, %v574
  %v578 = vmul.f32 %v407, %v574
  %v579 = vmul.f32 %v415, %v574
  %v580 = vmul.f32 %v423, %v574
  %v581 = vmul.f32 %v431, %v574
  %v582 = vmul.f32 %v439, %v574
  %v583 = vmul.f32 %v447, %v574
  %v584 = vmul.f32 %v455, %v574
  %v585 = vmul.f32 %v463, %v574
  %v586 = vmul.f32 %v471, %v574
  %v587 = vmul.f32 %v479, %v574
  %v588 = vmul.f32 %v487, %v574
  %v589 = vmul.f32 %v495, %v574
  %v590 = vmul.f32 %v503, %v574
  %v591 = vmul.f32 %v511, %v574
  %v592 = vmul.f32 %v519, %v574
  %v593 = vmul.f32 %v527, %v574
  %v594 = vmul.f32 %v535, %v574
  %v595 = vmul.f32 %v543, %v574
  %v596 = vmul.f32 %v551, %v574
  %v597 = vmul.f32 %v559, %v574
  %v598 = vmul.f32 %v567, %v574
  %v599 = vrsqrt.pop %v575
  %v600 = vmul.f32 %v599, %v575
  %v601 = vmul.f32 %v600, %v599
  %v602 = vmul.f32 0.5, %v601
  %v603 = vsub.f32 1.5, %v602
  %v604 = vmul.f32 %v599, %v603
  %v605 = vmul.f32 %v575, %v604
  %vm606 = vcmp.eq.f32.partialorder %v575, inf
  %v607 = vsel %vm606, %v575, %v605
  %vm608 = vcmp.eq.f32.partialorder %v575, 0.0
  %v609 = vand.u32 %v575, 2147483648
  %v610 = vsel %vm608, %v609, %v607
  %v611 = vrsqrt.pop %v576
  %v612 = vmul.f32 %v611, %v576
  %v613 = vmul.f32 %v612, %v611
  %v614 = vmul.f32 0.5, %v613
  %v615 = vsub.f32 1.5, %v614
  %v616 = vmul.f32 %v611, %v615
  %v617 = vmul.f32 %v576, %v616
  %vm618 = vcmp.eq.f32.partialorder %v576, inf
  %v619 = vsel %vm618, %v576, %v617
  %vm620 = vcmp.eq.f32.partialorder %v576, 0.0
  %v621 = vand.u32 %v576, 2147483648
  %v622 = vsel %vm620, %v621, %v619
  %v623 = vrsqrt.pop %v577
  %v624 = vmul.f32 %v623, %v577
  %v625 = vmul.f32 %v624, %v623
  %v626 = vmul.f32 0.5, %v625
  %v627 = vsub.f32 1.5, %v626
  %v628 = vmul.f32 %v623, %v627
  %v629 = vmul.f32 %v577, %v628
  %vm630 = vcmp.eq.f32.partialorder %v577, inf
  %v631 = vsel %vm630, %v577, %v629
  %vm632 = vcmp.eq.f32.partialorder %v577, 0.0
  %v633 = vand.u32 %v577, 2147483648
  %v634 = vsel %vm632, %v633, %v631
  %v635 = vrsqrt.pop %v578
  %v636 = vmul.f32 %v635, %v578
  %v637 = vmul.f32 %v636, %v635
  %v638 = vmul.f32 0.5, %v637
  %v639 = vsub.f32 1.5, %v638
  %v640 = vmul.f32 %v635, %v639
  %v641 = vmul.f32 %v578, %v640
  %vm642 = vcmp.eq.f32.partialorder %v578, inf
  %v643 = vsel %vm642, %v578, %v641
  %vm644 = vcmp.eq.f32.partialorder %v578, 0.0
  %v645 = vand.u32 %v578, 2147483648
  %v646 = vsel %vm644, %v645, %v643
  %v647 = vrsqrt.pop %v579
  %v648 = vmul.f32 %v647, %v579
  %v649 = vmul.f32 %v648, %v647
  %v650 = vmul.f32 0.5, %v649
  %v651 = vsub.f32 1.5, %v650
  %v652 = vmul.f32 %v647, %v651
  %v653 = vmul.f32 %v579, %v652
  %vm654 = vcmp.eq.f32.partialorder %v579, inf
  %v655 = vsel %vm654, %v579, %v653
  %vm656 = vcmp.eq.f32.partialorder %v579, 0.0
  %v657 = vand.u32 %v579, 2147483648
  %v658 = vsel %vm656, %v657, %v655
  %v659 = vrsqrt.pop %v580
  %v660 = vmul.f32 %v659, %v580
  %v661 = vmul.f32 %v660, %v659
  %v662 = vmul.f32 0.5, %v661
  %v663 = vsub.f32 1.5, %v662
  %v664 = vmul.f32 %v659, %v663
  %v665 = vmul.f32 %v580, %v664
  %vm666 = vcmp.eq.f32.partialorder %v580, inf
  %v667 = vsel %vm666, %v580, %v665
  %vm668 = vcmp.eq.f32.partialorder %v580, 0.0
  %v669 = vand.u32 %v580, 2147483648
  %v670 = vsel %vm668, %v669, %v667
  %v671 = vrsqrt.pop %v581
  %v672 = vmul.f32 %v671, %v581
  %v673 = vmul.f32 %v672, %v671
  %v674 = vmul.f32 0.5, %v673
  %v675 = vsub.f32 1.5, %v674
  %v676 = vmul.f32 %v671, %v675
  %v677 = vmul.f32 %v581, %v676
  %vm678 = vcmp.eq.f32.partialorder %v581, inf
  %v679 = vsel %vm678, %v581, %v677
  %vm680 = vcmp.eq.f32.partialorder %v581, 0.0
  %v681 = vand.u32 %v581, 2147483648
  %v682 = vsel %vm680, %v681, %v679
  %v683 = vrsqrt.pop %v582
  %v684 = vmul.f32 %v683, %v582
  %v685 = vmul.f32 %v684, %v683
  %v686 = vmul.f32 0.5, %v685
  %v687 = vsub.f32 1.5, %v686
  %v688 = vmul.f32 %v683, %v687
  %v689 = vmul.f32 %v582, %v688
  %vm690 = vcmp.eq.f32.partialorder %v582, inf
  %v691 = vsel %vm690, %v582, %v689
  %vm692 = vcmp.eq.f32.partialorder %v582, 0.0
  %v693 = vand.u32 %v582, 2147483648
  %v694 = vsel %vm692, %v693, %v691
  %v695 = vrsqrt.pop %v583
  %v696 = vmul.f32 %v695, %v583
  %v697 = vmul.f32 %v696, %v695
  %v698 = vmul.f32 0.5, %v697
  %v699 = vsub.f32 1.5, %v698
  %v700 = vmul.f32 %v695, %v699
  %v701 = vmul.f32 %v583, %v700
  %vm702 = vcmp.eq.f32.partialorder %v583, inf
  %v703 = vsel %vm702, %v583, %v701
  %vm704 = vcmp.eq.f32.partialorder %v583, 0.0
  %v705 = vand.u32 %v583, 2147483648
  %v706 = vsel %vm704, %v705, %v703
  %v707 = vrsqrt.pop %v584
  %v708 = vmul.f32 %v707, %v584
  %v709 = vmul.f32 %v708, %v707
  %v710 = vmul.f32 0.5, %v709
  %v711 = vsub.f32 1.5, %v710
  %v712 = vmul.f32 %v707, %v711
  %v713 = vmul.f32 %v584, %v712
  %vm714 = vcmp.eq.f32.partialorder %v584, inf
  %v715 = vsel %vm714, %v584, %v713
  %vm716 = vcmp.eq.f32.partialorder %v584, 0.0
  %v717 = vand.u32 %v584, 2147483648
  %v718 = vsel %vm716, %v717, %v715
  %v719 = vrsqrt.pop %v585
  %v720 = vmul.f32 %v719, %v585
  %v721 = vmul.f32 %v720, %v719
  %v722 = vmul.f32 0.5, %v721
  %v723 = vsub.f32 1.5, %v722
  %v724 = vmul.f32 %v719, %v723
  %v725 = vmul.f32 %v585, %v724
  %vm726 = vcmp.eq.f32.partialorder %v585, inf
  %v727 = vsel %vm726, %v585, %v725
  %vm728 = vcmp.eq.f32.partialorder %v585, 0.0
  %v729 = vand.u32 %v585, 2147483648
  %v730 = vsel %vm728, %v729, %v727
  %v731 = vrsqrt.pop %v586
  %v732 = vmul.f32 %v731, %v586
  %v733 = vmul.f32 %v732, %v731
  %v734 = vmul.f32 0.5, %v733
  %v735 = vsub.f32 1.5, %v734
  %v736 = vmul.f32 %v731, %v735
  %v737 = vmul.f32 %v586, %v736
  %vm738 = vcmp.eq.f32.partialorder %v586, inf
  %v739 = vsel %vm738, %v586, %v737
  %vm740 = vcmp.eq.f32.partialorder %v586, 0.0
  %v741 = vand.u32 %v586, 2147483648
  %v742 = vsel %vm740, %v741, %v739
  %v743 = vrsqrt.pop %v587
  %v744 = vmul.f32 %v743, %v587
  %v745 = vmul.f32 %v744, %v743
  %v746 = vmul.f32 0.5, %v745
  %v747 = vsub.f32 1.5, %v746
  %v748 = vmul.f32 %v743, %v747
  %v749 = vmul.f32 %v587, %v748
  %vm750 = vcmp.eq.f32.partialorder %v587, inf
  %v751 = vsel %vm750, %v587, %v749
  %vm752 = vcmp.eq.f32.partialorder %v587, 0.0
  %v753 = vand.u32 %v587, 2147483648
  %v754 = vsel %vm752, %v753, %v751
  %v755 = vrsqrt.pop %v588
  %v756 = vmul.f32 %v755, %v588
  %v757 = vmul.f32 %v756, %v755
  %v758 = vmul.f32 0.5, %v757
  %v759 = vsub.f32 1.5, %v758
  %v760 = vmul.f32 %v755, %v759
  %v761 = vmul.f32 %v588, %v760
  %vm762 = vcmp.eq.f32.partialorder %v588, inf
  %v763 = vsel %vm762, %v588, %v761
  %vm764 = vcmp.eq.f32.partialorder %v588, 0.0
  %v765 = vand.u32 %v588, 2147483648
  %v766 = vsel %vm764, %v765, %v763
  %v767 = vrsqrt.pop %v589
  %v768 = vmul.f32 %v767, %v589
  %v769 = vmul.f32 %v768, %v767
  %v770 = vmul.f32 0.5, %v769
  %v771 = vsub.f32 1.5, %v770
  %v772 = vmul.f32 %v767, %v771
  %v773 = vmul.f32 %v589, %v772
  %vm774 = vcmp.eq.f32.partialorder %v589, inf
  %v775 = vsel %vm774, %v589, %v773
  %vm776 = vcmp.eq.f32.partialorder %v589, 0.0
  %v777 = vand.u32 %v589, 2147483648
  %v778 = vsel %vm776, %v777, %v775
  %v779 = vrsqrt.pop %v590
  %v780 = vmul.f32 %v779, %v590
  %v781 = vmul.f32 %v780, %v779
  %v782 = vmul.f32 0.5, %v781
  %v783 = vsub.f32 1.5, %v782
  %v784 = vmul.f32 %v779, %v783
  %v785 = vmul.f32 %v590, %v784
  %vm786 = vcmp.eq.f32.partialorder %v590, inf
  %v787 = vsel %vm786, %v590, %v785
  %vm788 = vcmp.eq.f32.partialorder %v590, 0.0
  %v789 = vand.u32 %v590, 2147483648
  %v790 = vsel %vm788, %v789, %v787
  %v791 = vrsqrt.pop %v591
  %v792 = vmul.f32 %v791, %v591
  %v793 = vmul.f32 %v792, %v791
  %v794 = vmul.f32 0.5, %v793
  %v795 = vsub.f32 1.5, %v794
  %v796 = vmul.f32 %v791, %v795
  %v797 = vmul.f32 %v591, %v796
  %vm798 = vcmp.eq.f32.partialorder %v591, inf
  %v799 = vsel %vm798, %v591, %v797
  %vm800 = vcmp.eq.f32.partialorder %v591, 0.0
  %v801 = vand.u32 %v591, 2147483648
  %v802 = vsel %vm800, %v801, %v799
  %v803 = vrsqrt.pop %v592
  %v804 = vmul.f32 %v803, %v592
  %v805 = vmul.f32 %v804, %v803
  %v806 = vmul.f32 0.5, %v805
  %v807 = vsub.f32 1.5, %v806
  %v808 = vmul.f32 %v803, %v807
  %v809 = vmul.f32 %v592, %v808
  %vm810 = vcmp.eq.f32.partialorder %v592, inf
  %v811 = vsel %vm810, %v592, %v809
  %vm812 = vcmp.eq.f32.partialorder %v592, 0.0
  %v813 = vand.u32 %v592, 2147483648
  %v814 = vsel %vm812, %v813, %v811
  %v815 = vrsqrt.pop %v593
  %v816 = vmul.f32 %v815, %v593
  %v817 = vmul.f32 %v816, %v815
  %v818 = vmul.f32 0.5, %v817
  %v819 = vsub.f32 1.5, %v818
  %v820 = vmul.f32 %v815, %v819
  %v821 = vmul.f32 %v593, %v820
  %vm822 = vcmp.eq.f32.partialorder %v593, inf
  %v823 = vsel %vm822, %v593, %v821
  %vm824 = vcmp.eq.f32.partialorder %v593, 0.0
  %v825 = vand.u32 %v593, 2147483648
  %v826 = vsel %vm824, %v825, %v823
  %v827 = vrsqrt.pop %v594
  %v828 = vmul.f32 %v827, %v594
  %v829 = vmul.f32 %v828, %v827
  %v830 = vmul.f32 0.5, %v829
  %v831 = vsub.f32 1.5, %v830
  %v832 = vmul.f32 %v827, %v831
  %v833 = vmul.f32 %v594, %v832
  %vm834 = vcmp.eq.f32.partialorder %v594, inf
  %v835 = vsel %vm834, %v594, %v833
  %vm836 = vcmp.eq.f32.partialorder %v594, 0.0
  %v837 = vand.u32 %v594, 2147483648
  %v838 = vsel %vm836, %v837, %v835
  %v839 = vrsqrt.pop %v595
  %v840 = vmul.f32 %v839, %v595
  %v841 = vmul.f32 %v840, %v839
  %v842 = vmul.f32 0.5, %v841
  %v843 = vsub.f32 1.5, %v842
  %v844 = vmul.f32 %v839, %v843
  %v845 = vmul.f32 %v595, %v844
  %vm846 = vcmp.eq.f32.partialorder %v595, inf
  %v847 = vsel %vm846, %v595, %v845
  %vm848 = vcmp.eq.f32.partialorder %v595, 0.0
  %v849 = vand.u32 %v595, 2147483648
  %v850 = vsel %vm848, %v849, %v847
  %v851 = vrsqrt.pop %v596
  %v852 = vmul.f32 %v851, %v596
  %v853 = vmul.f32 %v852, %v851
  %v854 = vmul.f32 0.5, %v853
  %v855 = vsub.f32 1.5, %v854
  %v856 = vmul.f32 %v851, %v855
  %v857 = vmul.f32 %v596, %v856
  %vm858 = vcmp.eq.f32.partialorder %v596, inf
  %v859 = vsel %vm858, %v596, %v857
  %vm860 = vcmp.eq.f32.partialorder %v596, 0.0
  %v861 = vand.u32 %v596, 2147483648
  %v862 = vsel %vm860, %v861, %v859
  %v863 = vrsqrt.pop %v597
  %v864 = vmul.f32 %v863, %v597
  %v865 = vmul.f32 %v864, %v863
  %v866 = vmul.f32 0.5, %v865
  %v867 = vsub.f32 1.5, %v866
  %v868 = vmul.f32 %v863, %v867
  %v869 = vmul.f32 %v597, %v868
  %vm870 = vcmp.eq.f32.partialorder %v597, inf
  %v871 = vsel %vm870, %v597, %v869
  %vm872 = vcmp.eq.f32.partialorder %v597, 0.0
  %v873 = vand.u32 %v597, 2147483648
  %v874 = vsel %vm872, %v873, %v871
  %v875 = vrsqrt.pop %v598
  %v876 = vmul.f32 %v875, %v598
  %v877 = vmul.f32 %v876, %v875
  %v878 = vmul.f32 0.5, %v877
  %v879 = vsub.f32 1.5, %v878
  %v880 = vmul.f32 %v875, %v879
  %v881 = vmul.f32 %v598, %v880
  %vm882 = vcmp.eq.f32.partialorder %v598, inf
  %v883 = vsel %vm882, %v598, %v881
  %vm884 = vcmp.eq.f32.partialorder %v598, 0.0
  %v885 = vand.u32 %v598, 2147483648
  %v886 = vsel %vm884, %v885, %v883
  %vm911 = vcmask 1041409
  %v912 = vsel %vm911, %v262, %v256
  %vm913 = vcmask 1042434
  %v914 = vsel %vm913, %v268, %v912
  %vm915 = vcmask 1043459
  %v916 = vsel %vm915, %v274, %v914
  %v917 = vsel %vm911, %v263, %v257
  %v918 = vsel %vm913, %v269, %v917
  %v919 = vsel %vm915, %v275, %v918
  %v920 = vsel %vm911, %v264, %v258
  %v921 = vsel %vm913, %v270, %v920
  %v922 = vsel %vm915, %v276, %v921
  %v923 = vsel %vm911, %v265, %v259
  %v924 = vsel %vm913, %v271, %v923
  %v925 = vsel %vm915, %v277, %v924
  %v926 = vsel %vm911, %v266, %v260
  %v927 = vsel %vm913, %v272, %v926
  %v928 = vsel %vm915, %v278, %v927
  %v929 = vsel %vm911, %v267, %v261
  %v930 = vsel %vm913, %v273, %v929
  %v931 = vsel %vm915, %v279, %v930
  %v962 = vsel %vm911, %v682, %v610
  %v963 = vsel %vm913, %v754, %v962
  %v964 = vsel %vm915, %v826, %v963
  %v965 = vsel %vm911, %v694, %v622
  %v966 = vsel %vm913, %v766, %v965
  %v967 = vsel %vm915, %v838, %v966
  %v968 = vsel %vm911, %v706, %v634
  %v969 = vsel %vm913, %v778, %v968
  %v970 = vsel %vm915, %v850, %v969
  %v971 = vsel %vm911, %v718, %v646
  %v972 = vsel %vm913, %v790, %v971
  %v973 = vsel %vm915, %v862, %v972
  %v974 = vsel %vm911, %v730, %v658
  %v975 = vsel %vm913, %v802, %v974
  %v976 = vsel %vm915, %v874, %v975
  %v977 = vsel %vm911, %v742, %v670
  %v978 = vsel %vm913, %v814, %v977
  %v979 = vsel %vm915, %v886, %v978
  %v986 = vpack.c.bf16 %v919, %v916
  %v987 = vpack.c.bf16 %v925, %v922
  %v988 = vpack.c.bf16 %v931, %v928
  %v989 = vpack.c.bf16 %v967, %v964
  %v990 = vpack.c.bf16 %v973, %v970
  %v991 = vpack.c.bf16 %v979, %v976
  %v998 = vrot.slane %v986, 2
  %v999 = vrot.slane %v987, 4
  %v1000 = vrot.slane %v987, 6
  %v1001 = vrot.slane %v988, 2
  %v1002 = vrot.slane %v989, 4
  %v1003 = vrot.slane %v989, 6
  %v1004 = vrot.slane %v990, 2
  %v1005 = vrot.slane %v991, 4
  %v1006 = vrot.slane %v991, 6
  %v1009 = vsel %vm56, %v986, %v998
  %vm1010 = vcmask 1045508
  %v1013 = vsel %vm1010, %v999, %v1000
  %vm1014 = vcmask 1043456
  %v1015 = vsel %vm1014, %v1009, %v1013
  %v1018 = vsel %vm56, %v988, %v1001
  %v1021 = vsel %vm1010, %v1002, %v1003
  %v1022 = vsel %vm1014, %v1018, %v1021
  %v1025 = vsel %vm56, %v990, %v1004
  %v1028 = vsel %vm1010, %v1005, %v1006
  %v1029 = vsel %vm1014, %v1025, %v1028
  %1033 = vst [vmem:[%s1] sm:$0xff] %v1015
  %1034 = vst [vmem:[%s1 + $0x8] sm:$0xff] %v1022
  %1035 = vst [vmem:[%s1 + $0x10] sm:$0xff] %v1029
  // Predicated region
  $region6: #{forward.27} parent=0 // pred_check
    _
  $region7: #{forward.27} parent=0 // pred_check_branch
    %1037 = sbr.rel (0) target = $region9
  $region8: #{forward.27} parent=0 // pred_region
    _
  $region9: #{forward.27} parent=0 // pred_fallthru
    _
  // Predicated region
  $region10: #{forward.27} parent=0 // pred_check
    _
  $region11: #{forward.27} parent=0 // pred_check_branch
    %1039 = sbr.rel (0) target = $region13
  $region12: #{forward.27} parent=0 // pred_region
    _
  $region13: #{forward.27} parent=0 // pred_fallthru
    _

// kernel: forward.29
$region0: #{forward.29}
  #allocation0 [shape = 'u32[]', space=smem, size = 0x4, offset = 0x4, fixed_abs, tag = 'smem constant byte address 0x4 - core index']
  #allocation1 [shape = 'u32[72,128]{1,0:T(1,128)}', space=vmem, size = 0x9000, scoped, tag = 'internal scratch']
  #allocation2 [shape = 'f32[4,256]{1,0:T(4,128)}', space=vmem, size = 0x1000, scoped, tag = 'scratch operand']
  %s0 = inlined_call_operand.vmem [shape: bf16[4,3072], index: 0, kind: input, shape index: {}]
  %s1 = inlined_call_operand.hbm [shape: bf16[3072,256], index: 1, kind: input, shape index: {}]
  %s2 = inlined_call_operand.hbm [shape: f32[1,256], index: 2, kind: input, shape index: {}]
  %s3 = inlined_call_operand.vmem [shape: bf16[4,256], index: 3, kind: output, shape index: {}]
  %s4 = sld [smem:[#allocation0]]
  $region61: #{forward.29} parent=0
    _
  %s6 = ssub.s32 1, %s4
  %s7 = scalar_select 0, %s6, %s4
  $region1: #{forward.29} parent=0
    #allocation3 [shape = 'u8[524288]{0}', space=vmem, size = 0x80000, scoped, tag = 'input window, operand 1']
    #allocation4 [shape = 's32[2]{0}', space=sflag, size = 0x8, scoped, tag = 'scoped memory for forward.29']
    #allocation5 [shape = 'u8[1024]{0}', space=vmem, size = 0x400, scoped, tag = 'input window, operand 2, single buffered']
    #allocation6 [shape = 's32[1]{0}', space=sflag, size = 0x4, scoped, tag = 'scoped memory for forward.29']
    %8 = vsyncpa [#allocation4], 0
    %s9 = scalar_lea.sflag [#allocation4], 1
    %10 = vsyncpa %s9, 0
    %11 = vsyncpa [#allocation6], 0
    loop: start=0, step=1, limit=8
    $region2: #{forward.29} parent=1 // loop_pre_header
      _
    $region3: #{forward.29} parent=1 // loop_header
      %s13 = sphi 0, %s17
      %p14 = scmp.ge.s32.totalorder %s13, 8
      %s20 = sphi 0, %s39
      %s21 = sphi 0, %s35
      %s22 = sphi 0, %s31
      %s23 = sphi 0, %s20
      %s24 = sphi 0, %s21
      %s25 = sphi 0, %s22
      %s26 = sphi 0, %s23
      %s27 = sphi 0, %s24
      %s28 = sphi 0, %s25
      %s44 = sphi 0, %s46
      %s47 = sphi 0, %s44
      %s48 = sphi 0, %s47
      %s64 = sphi 0, %s48
      %s72 = sphi 0, %s74
      %s75 = sphi 0, %s72
      %s76 = sphi 0, %s75
      %s92 = sphi 0, %s76
      %s98 = sphi 0, %s100
      %s101 = sphi 0, %s98
      %s102 = sphi 0, %s101
      %s118 = sphi 0, %s102
      %s126 = sphi 0, %s128
      %s129 = sphi 0, %s126
      %s130 = sphi 0, %s129
      %s146 = sphi 0, %s130
    $region4: #{forward.29} parent=1 // loop_header_branch
      %16 = sbr.rel (%p14) target = $region8
    $region5: #{forward.29} parent=1 // loop_body
      %s18 = ssub.s32 %s13, 1
      %s19 = ssub.s32 %s13, 2
      %s29 = sadd.s32 1, %s22
      %p30 = scmp.ge.s32.totalorder %s29, 6
      %s31 = scalar_select %p30, 0, %s29
      %s32 = sadd.s32 1, %s21
      %s33 = scalar_select %p30, %s32, %s21
      %p34 = scmp.ge.s32.totalorder %s33, 1
      %s35 = scalar_select %p34, 0, %s33
      %s36 = sadd.s32 1, %s20
      %s37 = scalar_select %p34, %s36, %s20
      %p38 = scmp.ge.s32.totalorder %s37, 1
      %s39 = scalar_select %p38, 0, %s37
      %s40 = ssub.s32 %s20, %s39
      %s41 = ssub.s32 %s22, %s31
      %s42 = sor.u32 %s40, %s41
      %p43 = scmp.eq.s32.totalorder %s42, 0
      %s45 = sadd.s32 %s44, 1
      %s46 = scalar_select %p43, %s44, %s45
      %p49 = pneg %p43
      %p50 = scmp.eq.s32.totalorder %s13, 5
      %p51 = por %p49, %p50
      %p52 = scmp.ne.s32.totalorder %s44, %s47
      %p53 = scmp.eq.s32.totalorder %s13, 0
      %p54 = por %p52, %p53
      %p55 = scmp.ne.s32.totalorder %s44, %s47
      %p56 = scmp.eq.s32.totalorder %s18, 5
      %p57 = por %p55, %p56
      %p58 = scmp.ne.s32.totalorder %s47, %s48
      %p59 = scmp.eq.s32.totalorder %s18, 0
      %p60 = por %p58, %p59
      %p61 = scmp.ne.s32.totalorder %s47, %s48
      %p62 = scmp.eq.s32.totalorder %s19, 5
      %p63 = por %p61, %p62
      %p65 = scmp.ne.s32.totalorder %s48, %s64
      %p66 = scmp.eq.s32.totalorder %s19, 0
      %p67 = por %p65, %p66
      %s68 = ssub.s32 %s22, %s31
      %s69 = ssub.s32 %s21, %s35
      %s70 = sor.u32 %s68, %s69
      %p71 = scmp.eq.s32.totalorder %s70, 0
      %s73 = sadd.s32 %s72, 1
      %s74 = scalar_select %p71, %s72, %s73
      %p77 = pneg %p71
      %p78 = scmp.eq.s32.totalorder %s13, 5
      %p79 = por %p77, %p78
      %p80 = scmp.ne.s32.totalorder %s72, %s75
      %p81 = scmp.eq.s32.totalorder %s13, 0
      %p82 = por %p80, %p81
      %p83 = scmp.ne.s32.totalorder %s72, %s75
      %p84 = scmp.eq.s32.totalorder %s18, 5
      %p85 = por %p83, %p84
      %p86 = scmp.ne.s32.totalorder %s75, %s76
      %p87 = scmp.eq.s32.totalorder %s18, 0
      %p88 = por %p86, %p87
      %p89 = scmp.ne.s32.totalorder %s75, %s76
      %p90 = scmp.eq.s32.totalorder %s19, 5
      %p91 = por %p89, %p90
      %p93 = scmp.ne.s32.totalorder %s76, %s92
      %p94 = scmp.eq.s32.totalorder %s19, 0
      %p95 = por %p93, %p94
      %s96 = ssub.s32 %s21, %s35
      %p97 = scmp.eq.s32.totalorder %s96, 0
      %s99 = sadd.s32 %s98, 1
      %s100 = scalar_select %p97, %s98, %s99
      %p103 = pneg %p97
      %p104 = scmp.eq.s32.totalorder %s13, 5
      %p105 = por %p103, %p104
      %p106 = scmp.ne.s32.totalorder %s98, %s101
      %p107 = scmp.eq.s32.totalorder %s13, 0
      %p108 = por %p106, %p107
      %p109 = scmp.ne.s32.totalorder %s98, %s101
      %p110 = scmp.eq.s32.totalorder %s18, 5
      %p111 = por %p109, %p110
      %p112 = scmp.ne.s32.totalorder %s101, %s102
      %p113 = scmp.eq.s32.totalorder %s18, 0
      %p114 = por %p112, %p113
      %p115 = scmp.ne.s32.totalorder %s101, %s102
      %p116 = scmp.eq.s32.totalorder %s19, 5
      %p117 = por %p115, %p116
      %p119 = scmp.ne.s32.totalorder %s102, %s118
      %p120 = scmp.eq.s32.totalorder %s19, 0
      %p121 = por %p119, %p120
      %s122 = ssub.s32 %s20, %s39
      %s123 = ssub.s32 %s21, %s35
      %s124 = sor.u32 %s122, %s123
      %p125 = scmp.eq.s32.totalorder %s124, 0
      %s127 = sadd.s32 %s126, 1
      %s128 = scalar_select %p125, %s126, %s127
      %p131 = pneg %p125
      %p132 = scmp.eq.s32.totalorder %s13, 5
      %p133 = por %p131, %p132
      %p134 = scmp.ne.s32.totalorder %s126, %s129
      %p135 = scmp.eq.s32.totalorder %s13, 0
      %p136 = por %p134, %p135
      %p137 = scmp.ne.s32.totalorder %s126, %s129
      %p138 = scmp.eq.s32.totalorder %s18, 5
      %p139 = por %p137, %p138
      %p140 = scmp.ne.s32.totalorder %s129, %s130
      %p141 = scmp.eq.s32.totalorder %s18, 0
      %p142 = por %p140, %p141
      %p143 = scmp.ne.s32.totalorder %s129, %s130
      %p144 = scmp.eq.s32.totalorder %s19, 5
      %p145 = por %p143, %p144
      %p147 = scmp.ne.s32.totalorder %s130, %s146
      %p148 = scmp.eq.s32.totalorder %s19, 0
      %p149 = por %p147, %p148
      %p150 = scmp.le.s32.totalorder 1, %s13
      %p151 = scmp.lt.s32.totalorder %s13, 7
      %p152 = pnand %p150, %p151
      %p153 = pneg %p152
      // Predicated region
      $region9: #{forward.29} parent=5 // pred_check
        _
      $region10: #{forward.29} parent=5 // pred_check_branch
        %155 = sbr.rel (%p152) target = $region12
      $region11: #{forward.29} parent=5 // pred_region
        %s156 = ssub.s32 %s13, 1
        // Predicated region
        $region13: #{forward.29} parent=11 // pred_check
          %p157 = pneg %p114
        $region14: #{forward.29} parent=11 // pred_check_branch
          %159 = sbr.rel (%p157) target = $region16
        $region15: #{forward.29} parent=11 // pred_region
          %s160 = smul.u32 2, %s24
          %162 = vsyncadd [#allocation6], 0
          %s163 = scalar_lea.hbm %s2, %s160
          %s165 = sshll.u32 %s163, 4
          %s166 = int_to_ptr.hbm [resolvable:$true] %s165
          %s167 = sshll.u32 [#allocation5], 4
          %s168 = int_to_ptr.vmem [resolvable:$true] %s167
          %170 = dma.hbm_to_vmem [thread:$0]  %s166, 32, %s168, [#allocation6]
        $region16: #{forward.29} parent=11 // pred_fallthru
          _
      $region12: #{forward.29} parent=5 // pred_fallthru
        _
      %p171 = scmp.lt.s32.totalorder %s13, 6
      // Predicated region
      $region17: #{forward.29} parent=5 // pred_check
        %p172 = pneg %p171
      $region18: #{forward.29} parent=5 // pred_check_branch
        %174 = sbr.rel (%p172) target = $region20
      $region19: #{forward.29} parent=5 // pred_region
        // Predicated region
        $region21: #{forward.29} parent=19 // pred_check
          %p175 = pneg %p54
        $region22: #{forward.29} parent=19 // pred_check_branch
          %177 = sbr.rel (%p175) target = $region24
        $region23: #{forward.29} parent=19 // pred_region
          %s178 = smul.u32 4, %s22
          %p179 = scmp.lt.s32.totalorder %s20, 0
          %s180 = scalar_select %p179, %s20, 0
          %p181 = scmp.lt.s32.totalorder %s178, 23
          %s182 = scalar_select %p181, %s178, 23
          %s183 = smul.addr %s180, 24
          %s184 = sadd.s32 %s182, %s183
          %s185 = smul.addr %s184, 2
          %s186 = scalar_lea.vmem %s0, %s185
          %s187 = smul.u32 4, %s22
        $region24: #{forward.29} parent=19 // pred_fallthru
          _
        // Predicated region
        $region25: #{forward.29} parent=19 // pred_check
          %p188 = pneg %p82
        $region26: #{forward.29} parent=19 // pred_check_branch
          %190 = sbr.rel (%p188) target = $region28
        $region27: #{forward.29} parent=19 // pred_region
          %s191 = sand.u32 %s72, 1
          %s192 = scalar_lea.sflag [#allocation4], %s191
          %s193 = sand.u32 %s72, 1
          %s194 = smul.addr %s193, 512
          %s195 = scalar_lea.vmem [#allocation3], %s194
          %s196 = smul.u32 64, %s22
          %s197 = smul.u32 2, %s21
          %199 = vsyncadd %s192, 0
          %s200 = smul.addr %s196, 2
          %s201 = sadd.s32 %s197, %s200
          %s202 = smul.addr %s201, 4
          %s203 = scalar_lea.hbm %s1, %s202
          %s204 = sshll.u32 %s203, 4
          %s205 = int_to_ptr.hbm [resolvable:$true] %s204
          %s206 = sshll.u32 %s195, 4
          %s207 = int_to_ptr.vmem [resolvable:$true] %s206
          %212 = dma.hbm_to_vmem [thread:$0]  %s205, 8192, %s207, %s192, 128, 128, 8
        $region28: #{forward.29} parent=19 // pred_fallthru
          _
      $region20: #{forward.29} parent=5 // pred_fallthru
        _
      %p213 = scmp.le.s32.totalorder 1, %s13
      %p214 = scmp.lt.s32.totalorder %s13, 7
      %p215 = pnand %p213, %p214
      %p216 = pneg %p215
      // Predicated region
      $region29: #{forward.29} parent=5 // pred_check
        _
      $region30: #{forward.29} parent=5 // pred_check_branch
        %218 = sbr.rel (%p215) target = $region32
      $region31: #{forward.29} parent=5 // pred_region
        %s219 = ssub.s32 %s13, 1
        %s220 = sand.u32 %s75, 1
        %s221 = scalar_lea.sflag [#allocation4], %s220
        %s222 = sand.u32 %s75, 1
        %s223 = smul.addr %s222, 512
        %s224 = scalar_lea.vmem [#allocation3], %s223
        // Predicated region
        $region33: #{forward.29} parent=31 // pred_check
          %p225 = pneg %p88
        $region34: #{forward.29} parent=31 // pred_check_branch
          %227 = sbr.rel (%p225) target = $region36
        $region35: #{forward.29} parent=31 // pred_region
          %229 = dma.done %s221, 8192
        $region36: #{forward.29} parent=31 // pred_fallthru
          _
        // Predicated region
        $region37: #{forward.29} parent=31 // pred_check
          %p230 = pneg %p114
        $region38: #{forward.29} parent=31 // pred_check_branch
          %232 = sbr.rel (%p230) target = $region40
        $region39: #{forward.29} parent=31 // pred_region
          %234 = dma.done [#allocation6], 32
        $region40: #{forward.29} parent=31 // pred_fallthru
          _
        %s235 = smul.u32 4, %s25
        %p236 = scmp.lt.s32.totalorder %s23, 0
        %s237 = scalar_select %p236, %s23, 0
        %p238 = scmp.lt.s32.totalorder %s235, 23
        %s239 = scalar_select %p238, %s235, 23
        %s240 = smul.addr %s237, 24
        %s241 = sadd.s32 %s239, %s240
        %s242 = smul.addr %s241, 2
        %s243 = scalar_lea.vmem %s0, %s242
        %p244 = pneg %p60
        %p245 = pneg %p57
        %s246 = sand.u32 %s75, 1
        %s247 = scalar_lea.sflag [#allocation4], %s246
        %s248 = sand.u32 %s75, 1
        %s249 = smul.addr %s248, 512
        %s250 = scalar_lea.vmem [#allocation3], %s249
        %p251 = pneg %p88
        %p252 = pneg %p85
        %p253 = pneg %p114
        %p254 = pneg %p111
        %p255 = pneg %p142
        %p256 = pneg %p139
        %s257 = smul.u32 2, %s24
        %p258 = scmp.lt.s32.totalorder %s23, 0
        %s259 = scalar_select %p258, %s23, 0
        %p260 = scmp.lt.s32.totalorder %s257, 1
        %s261 = scalar_select %p260, %s257, 1
        %s262 = smul.addr %s259, 2
        %s263 = sadd.s32 %s261, %s262
        %s264 = smul.addr %s263, 2
        %s265 = scalar_lea.vmem %s3, %s264
        %s266 = smul.u32 4, %s25
        %p267 = scmp.lt.s32.totalorder %s23, 0
        %s268 = scalar_select %p267, %s23, 0
        %p269 = scmp.lt.s32.totalorder %s266, 23
        %s270 = scalar_select %p269, %s266, 23
        %s271 = smul.addr %s268, 24
        %s272 = sadd.s32 %s270, %s271
        %s273 = smul.addr %s272, 2
        %s274 = scalar_lea.vmem %s0, %s273
        %s275 = smul.u32 4, %s25
        %s276 = smul.u32 64, %s25
        %s277 = smul.u32 2, %s24
        %s278 = smul.u32 2, %s24
        %s279 = smul.u32 2, %s24
        %p280 = scmp.lt.s32.totalorder %s23, 0
        %s281 = scalar_select %p280, %s23, 0
        %p282 = scmp.lt.s32.totalorder %s279, 1
        %s283 = scalar_select %p282, %s279, 1
        %s284 = smul.addr %s281, 2
        %s285 = sadd.s32 %s283, %s284
        %s286 = smul.addr %s285, 2
        %s287 = scalar_lea.vmem %s3, %s286
        %s288 = smul.u32 2, %s24
        %v289 = vld [vmem:[%s274] sm:$0xff]
        %v290 = vld [vmem:[%s224] sm:$0xff]
        %v291 = vld [vmem:[%s224 + $0x8] sm:$0xff]
        %v292 = vld [vmem:[%s224 + $0x10] sm:$0xff]
        %v293 = vld [vmem:[%s224 + $0x18] sm:$0xff]
        %v294 = vld [vmem:[%s224 + $0x20] sm:$0xff]
        %v295 = vld [vmem:[%s224 + $0x28] sm:$0xff]
        %v296 = vld [vmem:[%s224 + $0x30] sm:$0xff]
        %v297 = vld [vmem:[%s224 + $0x38] sm:$0xff]
        %v298 = vld [vmem:[%s224 + $0x40] sm:$0xff]
        %v299 = vld [vmem:[%s224 + $0x48] sm:$0xff]
        %v300 = vld [vmem:[%s224 + $0x50] sm:$0xff]
        %v301 = vld [vmem:[%s224 + $0x58] sm:$0xff]
        %v302 = vld [vmem:[%s224 + $0x60] sm:$0xff]
        %v303 = vld [vmem:[%s224 + $0x68] sm:$0xff]
        %v304 = vld [vmem:[%s224 + $0x70] sm:$0xff]
        %v305 = vld [vmem:[%s224 + $0x78] sm:$0xff]
        %v306 = vld [vmem:[%s224 + $0x80] sm:$0xff]
        %v307 = vld [vmem:[%s224 + $0x88] sm:$0xff]
        %v308 = vld [vmem:[%s224 + $0x90] sm:$0xff]
        %v309 = vld [vmem:[%s224 + $0x98] sm:$0xff]
        %v310 = vld [vmem:[%s224 + $0xa0] sm:$0xff]
        %v311 = vld [vmem:[%s224 + $0xa8] sm:$0xff]
        %v312 = vld [vmem:[%s224 + $0xb0] sm:$0xff]
        %v313 = vld [vmem:[%s224 + $0xb8] sm:$0xff]
        %v314 = vld [vmem:[%s224 + $0xc0] sm:$0xff]
        %v315 = vld [vmem:[%s224 + $0xc8] sm:$0xff]
        %v316 = vld [vmem:[%s224 + $0xd0] sm:$0xff]
        %v317 = vld [vmem:[%s224 + $0xd8] sm:$0xff]
        %v318 = vld [vmem:[%s224 + $0xe0] sm:$0xff]
        %v319 = vld [vmem:[%s224 + $0xe8] sm:$0xff]
        %v320 = vld [vmem:[%s224 + $0xf0] sm:$0xff]
        %v321 = vld [vmem:[%s224 + $0xf8] sm:$0xff]
        %v322 = vld [vmem:[%s224 + $0x100] sm:$0xff]
        %v323 = vld [vmem:[%s224 + $0x108] sm:$0xff]
        %v324 = vld [vmem:[%s224 + $0x110] sm:$0xff]
        %v325 = vld [vmem:[%s224 + $0x118] sm:$0xff]
        %v326 = vld [vmem:[%s224 + $0x120] sm:$0xff]
        %v327 = vld [vmem:[%s224 + $0x128] sm:$0xff]
        %v328 = vld [vmem:[%s224 + $0x130] sm:$0xff]
        %v329 = vld [vmem:[%s224 + $0x138] sm:$0xff]
        %v330 = vld [vmem:[%s224 + $0x140] sm:$0xff]
        %v331 = vld [vmem:[%s224 + $0x148] sm:$0xff]
        %v332 = vld [vmem:[%s224 + $0x150] sm:$0xff]
        %v333 = vld [vmem:[%s224 + $0x158] sm:$0xff]
        %v334 = vld [vmem:[%s224 + $0x160] sm:$0xff]
        %v335 = vld [vmem:[%s224 + $0x168] sm:$0xff]
        %v336 = vld [vmem:[%s224 + $0x170] sm:$0xff]
        %v337 = vld [vmem:[%s224 + $0x178] sm:$0xff]
        %v338 = vld [vmem:[%s224 + $0x180] sm:$0xff]
        %v339 = vld [vmem:[%s224 + $0x188] sm:$0xff]
        %v340 = vld [vmem:[%s224 + $0x190] sm:$0xff]
        %v341 = vld [vmem:[%s224 + $0x198] sm:$0xff]
        %v342 = vld [vmem:[%s224 + $0x1a0] sm:$0xff]
        %v343 = vld [vmem:[%s224 + $0x1a8] sm:$0xff]
        %v344 = vld [vmem:[%s224 + $0x1b0] sm:$0xff]
        %v345 = vld [vmem:[%s224 + $0x1b8] sm:$0xff]
        %v346 = vld [vmem:[%s224 + $0x1c0] sm:$0xff]
        %v347 = vld [vmem:[%s224 + $0x1c8] sm:$0xff]
        %v348 = vld [vmem:[%s224 + $0x1d0] sm:$0xff]
        %v349 = vld [vmem:[%s224 + $0x1d8] sm:$0xff]
        %v350 = vld [vmem:[%s224 + $0x1e0] sm:$0xff]
        %v351 = vld [vmem:[%s224 + $0x1e8] sm:$0xff]
        %v352 = vld [vmem:[%s224 + $0x1f0] sm:$0xff]
        %v353 = vld [vmem:[%s224 + $0x1f8] sm:$0xff]
        %355 = vst [vmem:[#allocation1] ss:$4 sm:$0xff] %v289
        %v356 = vld.sshfl [vmem:[#allocation1] sm:$0xff pattern:$0x73625140]
        %v357 = vld.sshfl [vmem:[#allocation1 + $0x8] sm:$0xff pattern:$0x73625140]
        %v358 = vld.sshfl [vmem:[#allocation1 + $0x10] sm:$0xff pattern:$0x73625140]
        %v359 = vld.sshfl [vmem:[#allocation1 + $0x18] sm:$0xff pattern:$0x73625140]
        %v428 = vunpack.c.l.b16 %v290
        %v429 = vunpack.c.h.b16 %v290
        %v430 = vunpack.c.l.b16 %v291
        %v431 = vunpack.c.h.b16 %v291
        %v432 = vunpack.c.l.b16 %v292
        %v433 = vunpack.c.h.b16 %v292
        %v434 = vunpack.c.l.b16 %v293
        %v435 = vunpack.c.h.b16 %v293
        %v436 = vunpack.c.l.b16 %v294
        %v437 = vunpack.c.h.b16 %v294
        %v438 = vunpack.c.l.b16 %v295
        %v439 = vunpack.c.h.b16 %v295
        %v440 = vunpack.c.l.b16 %v296
        %v441 = vunpack.c.h.b16 %v296
        %v442 = vunpack.c.l.b16 %v297
        %v443 = vunpack.c.h.b16 %v297
        %v444 = vunpack.c.l.b16 %v298
        %v445 = vunpack.c.h.b16 %v298
        %v446 = vunpack.c.l.b16 %v299
        %v447 = vunpack.c.h.b16 %v299
        %v448 = vunpack.c.l.b16 %v300
        %v449 = vunpack.c.h.b16 %v300
        %v450 = vunpack.c.l.b16 %v301
        %v451 = vunpack.c.h.b16 %v301
        %v452 = vunpack.c.l.b16 %v302
        %v453 = vunpack.c.h.b16 %v302
        %v454 = vunpack.c.l.b16 %v303
        %v455 = vunpack.c.h.b16 %v303
        %v456 = vunpack.c.l.b16 %v304
        %v457 = vunpack.c.h.b16 %v304
        %v458 = vunpack.c.l.b16 %v305
        %v459 = vunpack.c.h.b16 %v305
        %v460 = vunpack.c.l.b16 %v306
        %v461 = vunpack.c.h.b16 %v306
        %v462 = vunpack.c.l.b16 %v307
        %v463 = vunpack.c.h.b16 %v307
        %v464 = vunpack.c.l.b16 %v308
        %v465 = vunpack.c.h.b16 %v308
        %v466 = vunpack.c.l.b16 %v309
        %v467 = vunpack.c.h.b16 %v309
        %v468 = vunpack.c.l.b16 %v310
        %v469 = vunpack.c.h.b16 %v310
        %v470 = vunpack.c.l.b16 %v311
        %v471 = vunpack.c.h.b16 %v311
        %v472 = vunpack.c.l.b16 %v312
        %v473 = vunpack.c.h.b16 %v312
        %v474 = vunpack.c.l.b16 %v313
        %v475 = vunpack.c.h.b16 %v313
        %v476 = vunpack.c.l.b16 %v314
        %v477 = vunpack.c.h.b16 %v314
        %v478 = vunpack.c.l.b16 %v315
        %v479 = vunpack.c.h.b16 %v315
        %v480 = vunpack.c.l.b16 %v316
        %v481 = vunpack.c.h.b16 %v316
        %v482 = vunpack.c.l.b16 %v317
        %v483 = vunpack.c.h.b16 %v317
        %v484 = vunpack.c.l.b16 %v318
        %v485 = vunpack.c.h.b16 %v318
        %v486 = vunpack.c.l.b16 %v319
        %v487 = vunpack.c.h.b16 %v319
        %v488 = vunpack.c.l.b16 %v320
        %v489 = vunpack.c.h.b16 %v320
        %v490 = vunpack.c.l.b16 %v321
        %v491 = vunpack.c.h.b16 %v321
        %v492 = vunpack.c.l.b16 %v322
        %v493 = vunpack.c.h.b16 %v322
        %v494 = vunpack.c.l.b16 %v323
        %v495 = vunpack.c.h.b16 %v323
        %v496 = vunpack.c.l.b16 %v324
        %v497 = vunpack.c.h.b16 %v324
        %v498 = vunpack.c.l.b16 %v325
        %v499 = vunpack.c.h.b16 %v325
        %v500 = vunpack.c.l.b16 %v326
        %v501 = vunpack.c.h.b16 %v326
        %v502 = vunpack.c.l.b16 %v327
        %v503 = vunpack.c.h.b16 %v327
        %v504 = vunpack.c.l.b16 %v328
        %v505 = vunpack.c.h.b16 %v328
        %v506 = vunpack.c.l.b16 %v329
        %v507 = vunpack.c.h.b16 %v329
        %v508 = vunpack.c.l.b16 %v330
        %v509 = vunpack.c.h.b16 %v330
        %v510 = vunpack.c.l.b16 %v331
        %v511 = vunpack.c.h.b16 %v331
        %v512 = vunpack.c.l.b16 %v332
        %v513 = vunpack.c.h.b16 %v332
        %v514 = vunpack.c.l.b16 %v333
        %v515 = vunpack.c.h.b16 %v333
        %v516 = vunpack.c.l.b16 %v334
        %v517 = vunpack.c.h.b16 %v334
        %v518 = vunpack.c.l.b16 %v335
        %v519 = vunpack.c.h.b16 %v335
        %v520 = vunpack.c.l.b16 %v336
        %v521 = vunpack.c.h.b16 %v336
        %v522 = vunpack.c.l.b16 %v337
        %v523 = vunpack.c.h.b16 %v337
        %v524 = vunpack.c.l.b16 %v338
        %v525 = vunpack.c.h.b16 %v338
        %v526 = vunpack.c.l.b16 %v339
        %v527 = vunpack.c.h.b16 %v339
        %v528 = vunpack.c.l.b16 %v340
        %v529 = vunpack.c.h.b16 %v340
        %v530 = vunpack.c.l.b16 %v341
        %v531 = vunpack.c.h.b16 %v341
        %v532 = vunpack.c.l.b16 %v342
        %v533 = vunpack.c.h.b16 %v342
        %v534 = vunpack.c.l.b16 %v343
        %v535 = vunpack.c.h.b16 %v343
        %v536 = vunpack.c.l.b16 %v344
        %v537 = vunpack.c.h.b16 %v344
        %v538 = vunpack.c.l.b16 %v345
        %v539 = vunpack.c.h.b16 %v345
        %v540 = vunpack.c.l.b16 %v346
        %v541 = vunpack.c.h.b16 %v346
        %v542 = vunpack.c.l.b16 %v347
        %v543 = vunpack.c.h.b16 %v347
        %v544 = vunpack.c.l.b16 %v348
        %v545 = vunpack.c.h.b16 %v348
        %v546 = vunpack.c.l.b16 %v349
        %v547 = vunpack.c.h.b16 %v349
        %v548 = vunpack.c.l.b16 %v350
        %v549 = vunpack.c.h.b16 %v350
        %v550 = vunpack.c.l.b16 %v351
        %v551 = vunpack.c.h.b16 %v351
        %v552 = vunpack.c.l.b16 %v352
        %v553 = vunpack.c.h.b16 %v352
        %v554 = vunpack.c.l.b16 %v353
        %v555 = vunpack.c.h.b16 %v353
        %v556 = vpack.c.b16 %v430, %v428
        %v557 = vpack.c.b16 %v431, %v429
        %v558 = vpack.c.b16 %v434, %v432
        %v559 = vpack.c.b16 %v435, %v433
        %v560 = vpack.c.b16 %v438, %v436
        %v561 = vpack.c.b16 %v439, %v437
        %v562 = vpack.c.b16 %v442, %v440
        %v563 = vpack.c.b16 %v443, %v441
        %v564 = vpack.c.b16 %v446, %v444
        %v565 = vpack.c.b16 %v447, %v445
        %v566 = vpack.c.b16 %v450, %v448
        %v567 = vpack.c.b16 %v451, %v449
        %v568 = vpack.c.b16 %v454, %v452
        %v569 = vpack.c.b16 %v455, %v453
        %v570 = vpack.c.b16 %v458, %v456
        %v571 = vpack.c.b16 %v459, %v457
        %v572 = vpack.c.b16 %v462, %v460
        %v573 = vpack.c.b16 %v463, %v461
        %v574 = vpack.c.b16 %v466, %v464
        %v575 = vpack.c.b16 %v467, %v465
        %v576 = vpack.c.b16 %v470, %v468
        %v577 = vpack.c.b16 %v471, %v469
        %v578 = vpack.c.b16 %v474, %v472
        %v579 = vpack.c.b16 %v475, %v473
        %v580 = vpack.c.b16 %v478, %v476
        %v581 = vpack.c.b16 %v479, %v477
        %v582 = vpack.c.b16 %v482, %v480
        %v583 = vpack.c.b16 %v483, %v481
        %v584 = vpack.c.b16 %v486, %v484
        %v585 = vpack.c.b16 %v487, %v485
        %v586 = vpack.c.b16 %v490, %v488
        %v587 = vpack.c.b16 %v491, %v489
        %v588 = vpack.c.b16 %v494, %v492
        %v589 = vpack.c.b16 %v495, %v493
        %v590 = vpack.c.b16 %v498, %v496
        %v591 = vpack.c.b16 %v499, %v497
        %v592 = vpack.c.b16 %v502, %v500
        %v593 = vpack.c.b16 %v503, %v501
        %v594 = vpack.c.b16 %v506, %v504
        %v595 = vpack.c.b16 %v507, %v505
        %v596 = vpack.c.b16 %v510, %v508
        %v597 = vpack.c.b16 %v511, %v509
        %v598 = vpack.c.b16 %v514, %v512
        %v599 = vpack.c.b16 %v515, %v513
        %v600 = vpack.c.b16 %v518, %v516
        %v601 = vpack.c.b16 %v519, %v517
        %v602 = vpack.c.b16 %v522, %v520
        %v603 = vpack.c.b16 %v523, %v521
        %v604 = vpack.c.b16 %v526, %v524
        %v605 = vpack.c.b16 %v527, %v525
        %v606 = vpack.c.b16 %v530, %v528
        %v607 = vpack.c.b16 %v531, %v529
        %v608 = vpack.c.b16 %v534, %v532
        %v609 = vpack.c.b16 %v535, %v533
        %v610 = vpack.c.b16 %v538, %v536
        %v611 = vpack.c.b16 %v539, %v537
        %v612 = vpack.c.b16 %v542, %v540
        %v613 = vpack.c.b16 %v543, %v541
        %v614 = vpack.c.b16 %v546, %v544
        %v615 = vpack.c.b16 %v547, %v545
        %v616 = vpack.c.b16 %v550, %v548
        %v617 = vpack.c.b16 %v551, %v549
        %v618 = vpack.c.b16 %v554, %v552
        %v619 = vpack.c.b16 %v555, %v553
        %684 = vmatpush.bf16.msra.mxu0 %v570
        %685 = vmatpush.bf16.msra.mxu0 %v568
        %686 = vmatpush.bf16.msra.mxu0 %v566
        %687 = vmatpush.bf16.msra.mxu0 %v564
        %688 = vmatpush.bf16.msra.mxu0 %v562
        %689 = vmatpush.bf16.msra.mxu0 %v560
        %690 = vmatpush.bf16.msra.mxu0 %v558
        %691 = vmatpush.bf16.msra.mxu0 %v556
        %692 = vmatmul.bf16.gmra.mxu0 %v356
        %v693 = vpop.f32.mrf.mxu0
        %v694 = vadd.f32 0.0, %v693
        %v695 = vpop.f32.mrf.mxu0
        %696 = vdwg.mxu0
        %697 = vmatpush.bf16.msra.mxu0 %v586
        %698 = vmatpush.bf16.msra.mxu0 %v584
        %699 = vmatpush.bf16.msra.mxu0 %v582
        %700 = vmatpush.bf16.msra.mxu0 %v580
        %701 = vmatpush.bf16.msra.mxu0 %v578
        %702 = vmatpush.bf16.msra.mxu0 %v576
        %703 = vmatpush.bf16.msra.mxu0 %v574
        %704 = vmatpush.bf16.msra.mxu0 %v572
        %705 = vmatmul.bf16.gmra.mxu0 %v357
        %v706 = vpop.f32.mrf.mxu0
        %v707 = vadd.f32 %v694, %v706
        %v708 = vpop.f32.mrf.mxu0
        %709 = vdwg.mxu0
        %710 = vmatpush.bf16.msra.mxu0 %v602
        %711 = vmatpush.bf16.msra.mxu0 %v600
        %712 = vmatpush.bf16.msra.mxu0 %v598
        %713 = vmatpush.bf16.msra.mxu0 %v596
        %714 = vmatpush.bf16.msra.mxu0 %v594
        %715 = vmatpush.bf16.msra.mxu0 %v592
        %716 = vmatpush.bf16.msra.mxu0 %v590
        %717 = vmatpush.bf16.msra.mxu0 %v588
        %718 = vmatmul.bf16.gmra.mxu0 %v358
        %v719 = vpop.f32.mrf.mxu0
        %v720 = vadd.f32 %v707, %v719
        %v721 = vpop.f32.mrf.mxu0
        %722 = vdwg.mxu0
        %723 = vmatpush.bf16.msra.mxu0 %v618
        %724 = vmatpush.bf16.msra.mxu0 %v616
        %725 = vmatpush.bf16.msra.mxu0 %v614
        %726 = vmatpush.bf16.msra.mxu0 %v612
        %727 = vmatpush.bf16.msra.mxu0 %v610
        %728 = vmatpush.bf16.msra.mxu0 %v608
        %729 = vmatpush.bf16.msra.mxu0 %v606
        %730 = vmatpush.bf16.msra.mxu0 %v604
        %731 = vmatmul.bf16.gmra.mxu0 %v359
        %v732 = vpop.f32.mrf.mxu0
        %v733 = vadd.f32 %v720, %v732
        %v734 = vpop.f32.mrf.mxu0
        %735 = vdwg.mxu0
        %736 = vmatpush.bf16.msra.mxu0 %v571
        %737 = vmatpush.bf16.msra.mxu0 %v569
        %738 = vmatpush.bf16.msra.mxu0 %v567
        %739 = vmatpush.bf16.msra.mxu0 %v565
        %740 = vmatpush.bf16.msra.mxu0 %v563
        %741 = vmatpush.bf16.msra.mxu0 %v561
        %742 = vmatpush.bf16.msra.mxu0 %v559
        %743 = vmatpush.bf16.msra.mxu0 %v557
        %744 = vmatmul.bf16.gmra.mxu0 %v356
        %v745 = vpop.f32.mrf.mxu0
        %v746 = vadd.f32 0.0, %v745
        %v747 = vpop.f32.mrf.mxu0
        %748 = vdwg.mxu0
        %749 = vmatpush.bf16.msra.mxu0 %v587
        %750 = vmatpush.bf16.msra.mxu0 %v585
        %751 = vmatpush.bf16.msra.mxu0 %v583
        %752 = vmatpush.bf16.msra.mxu0 %v581
        %753 = vmatpush.bf16.msra.mxu0 %v579
        %754 = vmatpush.bf16.msra.mxu0 %v577
        %755 = vmatpush.bf16.msra.mxu0 %v575
        %756 = vmatpush.bf16.msra.mxu0 %v573
        %757 = vmatmul.bf16.gmra.mxu0 %v357
        %v758 = vpop.f32.mrf.mxu0
        %v759 = vadd.f32 %v746, %v758
        %v760 = vpop.f32.mrf.mxu0
        %761 = vdwg.mxu0
        %762 = vmatpush.bf16.msra.mxu0 %v603
        %763 = vmatpush.bf16.msra.mxu0 %v601
        %764 = vmatpush.bf16.msra.mxu0 %v599
        %765 = vmatpush.bf16.msra.mxu0 %v597
        %766 = vmatpush.bf16.msra.mxu0 %v595
        %767 = vmatpush.bf16.msra.mxu0 %v593
        %768 = vmatpush.bf16.msra.mxu0 %v591
        %769 = vmatpush.bf16.msra.mxu0 %v589
        %770 = vmatmul.bf16.gmra.mxu0 %v358
        %v771 = vpop.f32.mrf.mxu0
        %v772 = vadd.f32 %v759, %v771
        %v773 = vpop.f32.mrf.mxu0
        %774 = vdwg.mxu0
        %775 = vmatpush.bf16.msra.mxu0 %v619
        %776 = vmatpush.bf16.msra.mxu0 %v617
        %777 = vmatpush.bf16.msra.mxu0 %v615
        %778 = vmatpush.bf16.msra.mxu0 %v613
        %779 = vmatpush.bf16.msra.mxu0 %v611
        %780 = vmatpush.bf16.msra.mxu0 %v609
        %781 = vmatpush.bf16.msra.mxu0 %v607
        %782 = vmatpush.bf16.msra.mxu0 %v605
        %783 = vmatmul.bf16.gmra.mxu0 %v359
        %v784 = vpop.f32.mrf.mxu0
        %v785 = vadd.f32 %v772, %v784
        %v786 = vpop.f32.mrf.mxu0
        %787 = vdwg.mxu0
        %p788 = scmp.eq.s32.totalorder %s25, 0
        // Predicated region
        $region41: #{forward.29} parent=31 // pred_check
          %p789 = pneg %p788
        $region42: #{forward.29} parent=31 // pred_check_branch
          %791 = sbr.rel (%p789) target = $region44
        $region43: #{forward.29} parent=31 // pred_region
          %792 = vst [vmem:[#allocation2] sm:$0xff] 0.0
        $region44: #{forward.29} parent=31 // pred_fallthru
          _
        %v793 = vld [vmem:[#allocation2] sm:$0xff]
        %v796 = vrot.slane %v785, 4
        %vm797 = vcmask 1043456
        %v798 = vsel %vm797, %v733, %v796
        %v800 = vadd.f32 %v793, %v798
        %801 = vst [vmem:[#allocation2] sm:$0xff] %v800
        %p802 = scmp.eq.s32.totalorder %s25, 5
        // Predicated region
        $region45: #{forward.29} parent=31 // pred_check
          %p803 = pneg %p802
        $region46: #{forward.29} parent=31 // pred_check_branch
          %805 = sbr.rel (%p803) target = $region48
        $region47: #{forward.29} parent=31 // pred_region
          %v806 = vld [vmem:[#allocation2] sm:$0xff]
          %v807 = vld [vmem:[#allocation5] sm:$0x3]
          %v809 = vperm.slane %v807, 0
          %v810 = vperm.slane %v807, 1
          %v811 = vrot.slane %v810, 4
          %v812 = vsel %vm797, %v809, %v811
          %v814 = vadd.f32 %v806, %v812
          %816 = vst [vmem:[#allocation1] ss:$2 sm:$0xff] %v814
          %v817 = vld.sshfl [vmem:[#allocation1] sm:$0xff pattern:$0x75316420]
          %v818 = vld.sshfl [vmem:[#allocation1 + $0x8] sm:$0xff pattern:$0x75316420]
          %v821 = vpack.c.bf16 %v818, %v817
          %v823 = vrot.slane %v821, 2
          %vm824 = vcmask 1041408
          %v827 = vsel %vm824, %v821, %v823
          %829 = vst [vmem:[%s287] sm:$0xf] %v827
        $region48: #{forward.29} parent=31 // pred_fallthru
          _
        %s830 = smul.u32 2, %s24
        %p831 = scmp.lt.s32.totalorder %s23, 0
        %s832 = scalar_select %p831, %s23, 0
        %p833 = scmp.lt.s32.totalorder %s830, 1
        %s834 = scalar_select %p833, %s830, 1
        %s835 = smul.addr %s832, 2
        %s836 = sadd.s32 %s834, %s835
        %s837 = smul.addr %s836, 2
        %s838 = scalar_lea.vmem %s3, %s837
        // Predicated region
        $region49: #{forward.29} parent=31 // pred_check
          %p839 = pneg %p139
        $region50: #{forward.29} parent=31 // pred_check_branch
          %841 = sbr.rel (%p839) target = $region52
        $region51: #{forward.29} parent=31 // pred_region
          %s842 = smul.u32 2, %s24
        $region52: #{forward.29} parent=31 // pred_fallthru
          _
        // Predicated region
        $region53: #{forward.29} parent=31 // pred_check
          %p843 = pneg %p139
        $region54: #{forward.29} parent=31 // pred_check_branch
          %845 = sbr.rel (%p843) target = $region56
        $region55: #{forward.29} parent=31 // pred_region
          %s846 = smul.u32 2, %s24
          %p847 = scmp.lt.s32.totalorder %s23, 0
          %s848 = scalar_select %p847, %s23, 0
          %p849 = scmp.lt.s32.totalorder %s846, 1
          %s850 = scalar_select %p849, %s846, 1
          %s851 = smul.addr %s848, 2
          %s852 = sadd.s32 %s850, %s851
          %s853 = smul.addr %s852, 2
          %s854 = scalar_lea.vmem %s3, %s853
        $region56: #{forward.29} parent=31 // pred_fallthru
          _
      $region32: #{forward.29} parent=5 // pred_fallthru
        _
      %p855 = scmp.le.s32.totalorder 2, %s13
      // Predicated region
      $region57: #{forward.29} parent=5 // pred_check
        %p856 = pneg %p855
      $region58: #{forward.29} parent=5 // pred_check_branch
        %858 = sbr.rel (%p856) target = $region60
      $region59: #{forward.29} parent=5 // pred_region
        %s859 = ssub.s32 %s13, 2
      $region60: #{forward.29} parent=5 // pred_fallthru
        _
    $region6: #{forward.29} parent=1 // loop_footer
      %s17 = sadd.s32 1, %s13
    $region7: #{forward.29} parent=1 // loop_footer_branch
      %12 = sbr.rel target = $region3
    $region8: #{forward.29} parent=1 // loop_exit
      _
    %860 = vsyncpa [#allocation4], 1
    %s861 = scalar_lea.sflag [#allocation4], 1
    %862 = vsyncpa %s861, 1
    %863 = vsyncpa [#allocation6], 1

// kernel: forward.33
$region0: #{forward.33}
  #allocation0 [shape = 'u32[]', space=smem, size = 0x4, offset = 0x4, fixed_abs, tag = 'smem constant byte address 0x4 - core index']
  #allocation1 [shape = 'u32[72,128]{1,0:T(1,128)}', space=vmem, size = 0x9000, scoped, tag = 'internal scratch']
  %s0 = inlined_call_operand.vmem [shape: bf16[4,256], index: 0, kind: input, shape index: {}]
  %s1 = inlined_call_operand.hbm [shape: bf16[256,768], index: 1, kind: input, shape index: {}]
  %s2 = inlined_call_operand.hbm [shape: f32[1,768], index: 2, kind: input, shape index: {}]
  %s3 = inlined_call_operand.vmem [shape: bf16[4,768], index: 3, kind: output, shape index: {}]
  %s4 = sld [smem:[#allocation0]]
  $region30: #{forward.33} parent=0
    _
  %s6 = ssub.s32 1, %s4
  %s7 = scalar_select 0, %s6, %s4
  $region1: #{forward.33} parent=0
    #allocation2 [shape = 'u8[393216]{0}', space=vmem, size = 0x60000, scoped, tag = 'input window, operand 1, single buffered']
    #allocation3 [shape = 's32[1]{0}', space=sflag, size = 0x4, scoped, tag = 'scoped memory for forward.33']
    #allocation4 [shape = 'u8[3072]{0}', space=vmem, size = 0xc00, scoped, tag = 'input window, operand 2, single buffered']
    #allocation5 [shape = 's32[1]{0}', space=sflag, size = 0x4, scoped, tag = 'scoped memory for forward.33']
    %8 = vsyncpa [#allocation3], 0
    %9 = vsyncpa [#allocation5], 0
    // Predicated region
    $region2: #{forward.33} parent=1 // pred_check
      _
    $region3: #{forward.33} parent=1 // pred_check_branch
      %11 = sbr.rel (0) target = $region5
    $region4: #{forward.33} parent=1 // pred_region
      _
    $region5: #{forward.33} parent=1 // pred_fallthru
      _
    // Predicated region
    $region6: #{forward.33} parent=1 // pred_check
      _
    $region7: #{forward.33} parent=1 // pred_check_branch
      %13 = sbr.rel (0) target = $region9
    $region8: #{forward.33} parent=1 // pred_region
      %15 = vsyncadd [#allocation3], 0
      %s16 = sshll.u32 %s1, 4
      %s17 = int_to_ptr.hbm [resolvable:$true] %s16
      %s18 = sshll.u32 [#allocation2], 4
      %s19 = int_to_ptr.vmem [resolvable:$true] %s18
      %24 = dma.hbm_to_vmem [thread:$0]  %s17, 12288, %s19, [#allocation3], 384, 384, 24
    $region9: #{forward.33} parent=1 // pred_fallthru
      _
    // Predicated region
    $region10: #{forward.33} parent=1 // pred_check
      _
    $region11: #{forward.33} parent=1 // pred_check_branch
      %26 = sbr.rel (0) target = $region13
    $region12: #{forward.33} parent=1 // pred_region
      %28 = vsyncadd [#allocation5], 0
      %s30 = sshll.u32 %s2, 4
      %s31 = int_to_ptr.hbm [resolvable:$true] %s30
      %s32 = sshll.u32 [#allocation4], 4
      %s33 = int_to_ptr.vmem [resolvable:$true] %s32
      %35 = dma.hbm_to_vmem [thread:$0]  %s31, 96, %s33, [#allocation5]
    $region13: #{forward.33} parent=1 // pred_fallthru
      _
    // Predicated region
    $region14: #{forward.33} parent=1 // pred_check
      _
    $region15: #{forward.33} parent=1 // pred_check_branch
      %37 = sbr.rel (0) target = $region17
    $region16: #{forward.33} parent=1 // pred_region
      %39 = dma.done [#allocation3], 12288
    $region17: #{forward.33} parent=1 // pred_fallthru
      _
    // Predicated region
    $region18: #{forward.33} parent=1 // pred_check
      _
    $region19: #{forward.33} parent=1 // pred_check_branch
      %41 = sbr.rel (0) target = $region21
    $region20: #{forward.33} parent=1 // pred_region
      %43 = dma.done [#allocation5], 96
    $region21: #{forward.33} parent=1 // pred_fallthru
      _
    %v44 = vld [vmem:[%s0] sm:$0xf]
    %v45 = vld [vmem:[#allocation2] sm:$0xff]
    %v46 = vld [vmem:[#allocation2 + $0x8] sm:$0xff]
    %v47 = vld [vmem:[#allocation2 + $0x10] sm:$0xff]
    %v48 = vld [vmem:[#allocation2 + $0x18] sm:$0xff]
    %v49 = vld [vmem:[#allocation2 + $0x20] sm:$0xff]
    %v50 = vld [vmem:[#allocation2 + $0x28] sm:$0xff]
    %v51 = vld [vmem:[#allocation2 + $0x30] sm:$0xff]
    %v52 = vld [vmem:[#allocation2 + $0x38] sm:$0xff]
    %v53 = vld [vmem:[#allocation2 + $0x40] sm:$0xff]
    %v54 = vld [vmem:[#allocation2 + $0x48] sm:$0xff]
    %v55 = vld [vmem:[#allocation2 + $0x50] sm:$0xff]
    %v56 = vld [vmem:[#allocation2 + $0x58] sm:$0xff]
    %v57 = vld [vmem:[#allocation2 + $0x60] sm:$0xff]
    %v58 = vld [vmem:[#allocation2 + $0x68] sm:$0xff]
    %v59 = vld [vmem:[#allocation2 + $0x70] sm:$0xff]
    %v60 = vld [vmem:[#allocation2 + $0x78] sm:$0xff]
    %v61 = vld [vmem:[#allocation2 + $0x80] sm:$0xff]
    %v62 = vld [vmem:[#allocation2 + $0x88] sm:$0xff]
    %v63 = vld [vmem:[#allocation2 + $0x90] sm:$0xff]
    %v64 = vld [vmem:[#allocation2 + $0x98] sm:$0xff]
    %v65 = vld [vmem:[#allocation2 + $0xa0] sm:$0xff]
    %v66 = vld [vmem:[#allocation2 + $0xa8] sm:$0xff]
    %v67 = vld [vmem:[#allocation2 + $0xb0] sm:$0xff]
    %v68 = vld [vmem:[#allocation2 + $0xb8] sm:$0xff]
    %v69 = vld [vmem:[#allocation2 + $0xc0] sm:$0xff]
    %v70 = vld [vmem:[#allocation2 + $0xc8] sm:$0xff]
    %v71 = vld [vmem:[#allocation2 + $0xd0] sm:$0xff]
    %v72 = vld [vmem:[#allocation2 + $0xd8] sm:$0xff]
    %v73 = vld [vmem:[#allocation2 + $0xe0] sm:$0xff]
    %v74 = vld [vmem:[#allocation2 + $0xe8] sm:$0xff]
    %v75 = vld [vmem:[#allocation2 + $0xf0] sm:$0xff]
    %v76 = vld [vmem:[#allocation2 + $0xf8] sm:$0xff]
    %v77 = vld [vmem:[#allocation2 + $0x100] sm:$0xff]
    %v78 = vld [vmem:[#allocation2 + $0x108] sm:$0xff]
    %v79 = vld [vmem:[#allocation2 + $0x110] sm:$0xff]
    %v80 = vld [vmem:[#allocation2 + $0x118] sm:$0xff]
    %v81 = vld [vmem:[#allocation2 + $0x120] sm:$0xff]
    %v82 = vld [vmem:[#allocation2 + $0x128] sm:$0xff]
    %v83 = vld [vmem:[#allocation2 + $0x130] sm:$0xff]
    %v84 = vld [vmem:[#allocation2 + $0x138] sm:$0xff]
    %v85 = vld [vmem:[#allocation2 + $0x140] sm:$0xff]
    %v86 = vld [vmem:[#allocation2 + $0x148] sm:$0xff]
    %v87 = vld [vmem:[#allocation2 + $0x150] sm:$0xff]
    %v88 = vld [vmem:[#allocation2 + $0x158] sm:$0xff]
    %v89 = vld [vmem:[#allocation2 + $0x160] sm:$0xff]
    %v90 = vld [vmem:[#allocation2 + $0x168] sm:$0xff]
    %v91 = vld [vmem:[#allocation2 + $0x170] sm:$0xff]
    %v92 = vld [vmem:[#allocation2 + $0x178] sm:$0xff]
    %v93 = vld [vmem:[#allocation2 + $0x180] sm:$0xff]
    %v94 = vld [vmem:[#allocation2 + $0x188] sm:$0xff]
    %v95 = vld [vmem:[#allocation2 + $0x190] sm:$0xff]
    %v96 = vld [vmem:[#allocation2 + $0x198] sm:$0xff]
    %v97 = vld [vmem:[#allocation2 + $0x1a0] sm:$0xff]
    %v98 = vld [vmem:[#allocation2 + $0x1a8] sm:$0xff]
    %v99 = vld [vmem:[#allocation2 + $0x1b0] sm:$0xff]
    %v100 = vld [vmem:[#allocation2 + $0x1b8] sm:$0xff]
    %v101 = vld [vmem:[#allocation2 + $0x1c0] sm:$0xff]
    %v102 = vld [vmem:[#allocation2 + $0x1c8] sm:$0xff]
    %v103 = vld [vmem:[#allocation2 + $0x1d0] sm:$0xff]
    %v104 = vld [vmem:[#allocation2 + $0x1d8] sm:$0xff]
    %v105 = vld [vmem:[#allocation2 + $0x1e0] sm:$0xff]
    %v106 = vld [vmem:[#allocation2 + $0x1e8] sm:$0xff]
    %v107 = vld [vmem:[#allocation2 + $0x1f0] sm:$0xff]
    %v108 = vld [vmem:[#allocation2 + $0x1f8] sm:$0xff]
    %v109 = vld [vmem:[#allocation2 + $0x200] sm:$0xff]
    %v110 = vld [vmem:[#allocation2 + $0x208] sm:$0xff]
    %v111 = vld [vmem:[#allocation2 + $0x210] sm:$0xff]
    %v112 = vld [vmem:[#allocation2 + $0x218] sm:$0xff]
    %v113 = vld [vmem:[#allocation2 + $0x220] sm:$0xff]
    %v114 = vld [vmem:[#allocation2 + $0x228] sm:$0xff]
    %v115 = vld [vmem:[#allocation2 + $0x230] sm:$0xff]
    %v116 = vld [vmem:[#allocation2 + $0x238] sm:$0xff]
    %v117 = vld [vmem:[#allocation2 + $0x240] sm:$0xff]
    %v118 = vld [vmem:[#allocation2 + $0x248] sm:$0xff]
    %v119 = vld [vmem:[#allocation2 + $0x250] sm:$0xff]
    %v120 = vld [vmem:[#allocation2 + $0x258] sm:$0xff]
    %v121 = vld [vmem:[#allocation2 + $0x260] sm:$0xff]
    %v122 = vld [vmem:[#allocation2 + $0x268] sm:$0xff]
    %v123 = vld [vmem:[#allocation2 + $0x270] sm:$0xff]
    %v124 = vld [vmem:[#allocation2 + $0x278] sm:$0xff]
    %v125 = vld [vmem:[#allocation2 + $0x280] sm:$0xff]
    %v126 = vld [vmem:[#allocation2 + $0x288] sm:$0xff]
    %v127 = vld [vmem:[#allocation2 + $0x290] sm:$0xff]
    %v128 = vld [vmem:[#allocation2 + $0x298] sm:$0xff]
    %v129 = vld [vmem:[#allocation2 + $0x2a0] sm:$0xff]
    %v130 = vld [vmem:[#allocation2 + $0x2a8] sm:$0xff]
    %v131 = vld [vmem:[#allocation2 + $0x2b0] sm:$0xff]
    %v132 = vld [vmem:[#allocation2 + $0x2b8] sm:$0xff]
    %v133 = vld [vmem:[#allocation2 + $0x2c0] sm:$0xff]
    %v134 = vld [vmem:[#allocation2 + $0x2c8] sm:$0xff]
    %v135 = vld [vmem:[#allocation2 + $0x2d0] sm:$0xff]
    %v136 = vld [vmem:[#allocation2 + $0x2d8] sm:$0xff]
    %v137 = vld [vmem:[#allocation2 + $0x2e0] sm:$0xff]
    %v138 = vld [vmem:[#allocation2 + $0x2e8] sm:$0xff]
    %v139 = vld [vmem:[#allocation2 + $0x2f0] sm:$0xff]
    %v140 = vld [vmem:[#allocation2 + $0x2f8] sm:$0xff]
    %v141 = vld [vmem:[#allocation4] sm:$0x3f]
    %v143 = vperm.slane %v141, 0
    %v144 = vperm.slane %v141, 1
    %v145 = vperm.slane %v141, 2
    %v146 = vperm.slane %v141, 3
    %v147 = vperm.slane %v141, 4
    %v148 = vperm.slane %v141, 5
    %156 = vst [vmem:[#allocation1] ss:$4 sm:$0xff] %v44
    %v157 = vld.sshfl [vmem:[#allocation1] sm:$0xff pattern:$0x73625140]
    %v158 = vld.sshfl [vmem:[#allocation1 + $0x8] sm:$0xff pattern:$0x73625140]
    %v257 = vunpack.c.l.b16 %v45
    %v258 = vunpack.c.h.b16 %v45
    %v259 = vunpack.c.l.b16 %v46
    %v260 = vunpack.c.h.b16 %v46
    %v261 = vunpack.c.l.b16 %v47
    %v262 = vunpack.c.h.b16 %v47
    %v263 = vunpack.c.l.b16 %v48
    %v264 = vunpack.c.h.b16 %v48
    %v265 = vunpack.c.l.b16 %v49
    %v266 = vunpack.c.h.b16 %v49
    %v267 = vunpack.c.l.b16 %v50
    %v268 = vunpack.c.h.b16 %v50
    %v269 = vunpack.c.l.b16 %v51
    %v270 = vunpack.c.h.b16 %v51
    %v271 = vunpack.c.l.b16 %v52
    %v272 = vunpack.c.h.b16 %v52
    %v273 = vunpack.c.l.b16 %v53
    %v274 = vunpack.c.h.b16 %v53
    %v275 = vunpack.c.l.b16 %v54
    %v276 = vunpack.c.h.b16 %v54
    %v277 = vunpack.c.l.b16 %v55
    %v278 = vunpack.c.h.b16 %v55
    %v279 = vunpack.c.l.b16 %v56
    %v280 = vunpack.c.h.b16 %v56
    %v281 = vunpack.c.l.b16 %v57
    %v282 = vunpack.c.h.b16 %v57
    %v283 = vunpack.c.l.b16 %v58
    %v284 = vunpack.c.h.b16 %v58
    %v285 = vunpack.c.l.b16 %v59
    %v286 = vunpack.c.h.b16 %v59
    %v287 = vunpack.c.l.b16 %v60
    %v288 = vunpack.c.h.b16 %v60
    %v289 = vunpack.c.l.b16 %v61
    %v290 = vunpack.c.h.b16 %v61
    %v291 = vunpack.c.l.b16 %v62
    %v292 = vunpack.c.h.b16 %v62
    %v293 = vunpack.c.l.b16 %v63
    %v294 = vunpack.c.h.b16 %v63
    %v295 = vunpack.c.l.b16 %v64
    %v296 = vunpack.c.h.b16 %v64
    %v297 = vunpack.c.l.b16 %v65
    %v298 = vunpack.c.h.b16 %v65
    %v299 = vunpack.c.l.b16 %v66
    %v300 = vunpack.c.h.b16 %v66
    %v301 = vunpack.c.l.b16 %v67
    %v302 = vunpack.c.h.b16 %v67
    %v303 = vunpack.c.l.b16 %v68
    %v304 = vunpack.c.h.b16 %v68
    %v305 = vunpack.c.l.b16 %v69
    %v306 = vunpack.c.h.b16 %v69
    %v307 = vunpack.c.l.b16 %v70
    %v308 = vunpack.c.h.b16 %v70
    %v309 = vunpack.c.l.b16 %v71
    %v310 = vunpack.c.h.b16 %v71
    %v311 = vunpack.c.l.b16 %v72
    %v312 = vunpack.c.h.b16 %v72
    %v313 = vunpack.c.l.b16 %v73
    %v314 = vunpack.c.h.b16 %v73
    %v315 = vunpack.c.l.b16 %v74
    %v316 = vunpack.c.h.b16 %v74
    %v317 = vunpack.c.l.b16 %v75
    %v318 = vunpack.c.h.b16 %v75
    %v319 = vunpack.c.l.b16 %v76
    %v320 = vunpack.c.h.b16 %v76
    %v321 = vunpack.c.l.b16 %v77
    %v322 = vunpack.c.h.b16 %v77
    %v323 = vunpack.c.l.b16 %v78
    %v324 = vunpack.c.h.b16 %v78
    %v325 = vunpack.c.l.b16 %v79
    %v326 = vunpack.c.h.b16 %v79
    %v327 = vunpack.c.l.b16 %v80
    %v328 = vunpack.c.h.b16 %v80
    %v329 = vunpack.c.l.b16 %v81
    %v330 = vunpack.c.h.b16 %v81
    %v331 = vunpack.c.l.b16 %v82
    %v332 = vunpack.c.h.b16 %v82
    %v333 = vunpack.c.l.b16 %v83
    %v334 = vunpack.c.h.b16 %v83
    %v335 = vunpack.c.l.b16 %v84
    %v336 = vunpack.c.h.b16 %v84
    %v337 = vunpack.c.l.b16 %v85
    %v338 = vunpack.c.h.b16 %v85
    %v339 = vunpack.c.l.b16 %v86
    %v340 = vunpack.c.h.b16 %v86
    %v341 = vunpack.c.l.b16 %v87
    %v342 = vunpack.c.h.b16 %v87
    %v343 = vunpack.c.l.b16 %v88
    %v344 = vunpack.c.h.b16 %v88
    %v345 = vunpack.c.l.b16 %v89
    %v346 = vunpack.c.h.b16 %v89
    %v347 = vunpack.c.l.b16 %v90
    %v348 = vunpack.c.h.b16 %v90
    %v349 = vunpack.c.l.b16 %v91
    %v350 = vunpack.c.h.b16 %v91
    %v351 = vunpack.c.l.b16 %v92
    %v352 = vunpack.c.h.b16 %v92
    %v353 = vunpack.c.l.b16 %v93
    %v354 = vunpack.c.h.b16 %v93
    %v355 = vunpack.c.l.b16 %v94
    %v356 = vunpack.c.h.b16 %v94
    %v357 = vunpack.c.l.b16 %v95
    %v358 = vunpack.c.h.b16 %v95
    %v359 = vunpack.c.l.b16 %v96
    %v360 = vunpack.c.h.b16 %v96
    %v361 = vunpack.c.l.b16 %v97
    %v362 = vunpack.c.h.b16 %v97
    %v363 = vunpack.c.l.b16 %v98
    %v364 = vunpack.c.h.b16 %v98
    %v365 = vunpack.c.l.b16 %v99
    %v366 = vunpack.c.h.b16 %v99
    %v367 = vunpack.c.l.b16 %v100
    %v368 = vunpack.c.h.b16 %v100
    %v369 = vunpack.c.l.b16 %v101
    %v370 = vunpack.c.h.b16 %v101
    %v371 = vunpack.c.l.b16 %v102
    %v372 = vunpack.c.h.b16 %v102
    %v373 = vunpack.c.l.b16 %v103
    %v374 = vunpack.c.h.b16 %v103
    %v375 = vunpack.c.l.b16 %v104
    %v376 = vunpack.c.h.b16 %v104
    %v377 = vunpack.c.l.b16 %v105
    %v378 = vunpack.c.h.b16 %v105
    %v379 = vunpack.c.l.b16 %v106
    %v380 = vunpack.c.h.b16 %v106
    %v381 = vunpack.c.l.b16 %v107
    %v382 = vunpack.c.h.b16 %v107
    %v383 = vunpack.c.l.b16 %v108
    %v384 = vunpack.c.h.b16 %v108
    %v385 = vunpack.c.l.b16 %v109
    %v386 = vunpack.c.h.b16 %v109
    %v387 = vunpack.c.l.b16 %v110
    %v388 = vunpack.c.h.b16 %v110
    %v389 = vunpack.c.l.b16 %v111
    %v390 = vunpack.c.h.b16 %v111
    %v391 = vunpack.c.l.b16 %v112
    %v392 = vunpack.c.h.b16 %v112
    %v393 = vunpack.c.l.b16 %v113
    %v394 = vunpack.c.h.b16 %v113
    %v395 = vunpack.c.l.b16 %v114
    %v396 = vunpack.c.h.b16 %v114
    %v397 = vunpack.c.l.b16 %v115
    %v398 = vunpack.c.h.b16 %v115
    %v399 = vunpack.c.l.b16 %v116
    %v400 = vunpack.c.h.b16 %v116
    %v401 = vunpack.c.l.b16 %v117
    %v402 = vunpack.c.h.b16 %v117
    %v403 = vunpack.c.l.b16 %v118
    %v404 = vunpack.c.h.b16 %v118
    %v405 = vunpack.c.l.b16 %v119
    %v406 = vunpack.c.h.b16 %v119
    %v407 = vunpack.c.l.b16 %v120
    %v408 = vunpack.c.h.b16 %v120
    %v409 = vunpack.c.l.b16 %v121
    %v410 = vunpack.c.h.b16 %v121
    %v411 = vunpack.c.l.b16 %v122
    %v412 = vunpack.c.h.b16 %v122
    %v413 = vunpack.c.l.b16 %v123
    %v414 = vunpack.c.h.b16 %v123
    %v415 = vunpack.c.l.b16 %v124
    %v416 = vunpack.c.h.b16 %v124
    %v417 = vunpack.c.l.b16 %v125
    %v418 = vunpack.c.h.b16 %v125
    %v419 = vunpack.c.l.b16 %v126
    %v420 = vunpack.c.h.b16 %v126
    %v421 = vunpack.c.l.b16 %v127
    %v422 = vunpack.c.h.b16 %v127
    %v423 = vunpack.c.l.b16 %v128
    %v424 = vunpack.c.h.b16 %v128
    %v425 = vunpack.c.l.b16 %v129
    %v426 = vunpack.c.h.b16 %v129
    %v427 = vunpack.c.l.b16 %v130
    %v428 = vunpack.c.h.b16 %v130
    %v429 = vunpack.c.l.b16 %v131
    %v430 = vunpack.c.h.b16 %v131
    %v431 = vunpack.c.l.b16 %v132
    %v432 = vunpack.c.h.b16 %v132
    %v433 = vunpack.c.l.b16 %v133
    %v434 = vunpack.c.h.b16 %v133
    %v435 = vunpack.c.l.b16 %v134
    %v436 = vunpack.c.h.b16 %v134
    %v437 = vunpack.c.l.b16 %v135
    %v438 = vunpack.c.h.b16 %v135
    %v439 = vunpack.c.l.b16 %v136
    %v440 = vunpack.c.h.b16 %v136
    %v441 = vunpack.c.l.b16 %v137
    %v442 = vunpack.c.h.b16 %v137
    %v443 = vunpack.c.l.b16 %v138
    %v444 = vunpack.c.h.b16 %v138
    %v445 = vunpack.c.l.b16 %v139
    %v446 = vunpack.c.h.b16 %v139
    %v447 = vunpack.c.l.b16 %v140
    %v448 = vunpack.c.h.b16 %v140
    %v449 = vpack.c.b16 %v263, %v257
    %v450 = vpack.c.b16 %v264, %v258
    %v451 = vpack.c.b16 %v265, %v259
    %v452 = vpack.c.b16 %v266, %v260
    %v453 = vpack.c.b16 %v267, %v261
    %v454 = vpack.c.b16 %v268, %v262
    %v455 = vpack.c.b16 %v275, %v269
    %v456 = vpack.c.b16 %v276, %v270
    %v457 = vpack.c.b16 %v277, %v271
    %v458 = vpack.c.b16 %v278, %v272
    %v459 = vpack.c.b16 %v279, %v273
    %v460 = vpack.c.b16 %v280, %v274
    %v461 = vpack.c.b16 %v287, %v281
    %v462 = vpack.c.b16 %v288, %v282
    %v463 = vpack.c.b16 %v289, %v283
    %v464 = vpack.c.b16 %v290, %v284
    %v465 = vpack.c.b16 %v291, %v285
    %v466 = vpack.c.b16 %v292, %v286
    %v467 = vpack.c.b16 %v299, %v293
    %v468 = vpack.c.b16 %v300, %v294
    %v469 = vpack.c.b16 %v301, %v295
    %v470 = vpack.c.b16 %v302, %v296
    %v471 = vpack.c.b16 %v303, %v297
    %v472 = vpack.c.b16 %v304, %v298
    %v473 = vpack.c.b16 %v311, %v305
    %v474 = vpack.c.b16 %v312, %v306
    %v475 = vpack.c.b16 %v313, %v307
    %v476 = vpack.c.b16 %v314, %v308
    %v477 = vpack.c.b16 %v315, %v309
    %v478 = vpack.c.b16 %v316, %v310
    %v479 = vpack.c.b16 %v323, %v317
    %v480 = vpack.c.b16 %v324, %v318
    %v481 = vpack.c.b16 %v325, %v319
    %v482 = vpack.c.b16 %v326, %v320
    %v483 = vpack.c.b16 %v327, %v321
    %v484 = vpack.c.b16 %v328, %v322
    %v485 = vpack.c.b16 %v335, %v329
    %v486 = vpack.c.b16 %v336, %v330
    %v487 = vpack.c.b16 %v337, %v331
    %v488 = vpack.c.b16 %v338, %v332
    %v489 = vpack.c.b16 %v339, %v333
    %v490 = vpack.c.b16 %v340, %v334
    %v491 = vpack.c.b16 %v347, %v341
    %v492 = vpack.c.b16 %v348, %v342
    %v493 = vpack.c.b16 %v349, %v343
    %v494 = vpack.c.b16 %v350, %v344
    %v495 = vpack.c.b16 %v351, %v345
    %v496 = vpack.c.b16 %v352, %v346
    %v497 = vpack.c.b16 %v359, %v353
    %v498 = vpack.c.b16 %v360, %v354
    %v499 = vpack.c.b16 %v361, %v355
    %v500 = vpack.c.b16 %v362, %v356
    %v501 = vpack.c.b16 %v363, %v357
    %v502 = vpack.c.b16 %v364, %v358
    %v503 = vpack.c.b16 %v371, %v365
    %v504 = vpack.c.b16 %v372, %v366
    %v505 = vpack.c.b16 %v373, %v367
    %v506 = vpack.c.b16 %v374, %v368
    %v507 = vpack.c.b16 %v375, %v369
    %v508 = vpack.c.b16 %v376, %v370
    %v509 = vpack.c.b16 %v383, %v377
    %v510 = vpack.c.b16 %v384, %v378
    %v511 = vpack.c.b16 %v385, %v379
    %v512 = vpack.c.b16 %v386, %v380
    %v513 = vpack.c.b16 %v387, %v381
    %v514 = vpack.c.b16 %v388, %v382
    %v515 = vpack.c.b16 %v395, %v389
    %v516 = vpack.c.b16 %v396, %v390
    %v517 = vpack.c.b16 %v397, %v391
    %v518 = vpack.c.b16 %v398, %v392
    %v519 = vpack.c.b16 %v399, %v393
    %v520 = vpack.c.b16 %v400, %v394
    %v521 = vpack.c.b16 %v407, %v401
    %v522 = vpack.c.b16 %v408, %v402
    %v523 = vpack.c.b16 %v409, %v403
    %v524 = vpack.c.b16 %v410, %v404
    %v525 = vpack.c.b16 %v411, %v405
    %v526 = vpack.c.b16 %v412, %v406
    %v527 = vpack.c.b16 %v419, %v413
    %v528 = vpack.c.b16 %v420, %v414
    %v529 = vpack.c.b16 %v421, %v415
    %v530 = vpack.c.b16 %v422, %v416
    %v531 = vpack.c.b16 %v423, %v417
    %v532 = vpack.c.b16 %v424, %v418
    %v533 = vpack.c.b16 %v431, %v425
    %v534 = vpack.c.b16 %v432, %v426
    %v535 = vpack.c.b16 %v433, %v427
    %v536 = vpack.c.b16 %v434, %v428
    %v537 = vpack.c.b16 %v435, %v429
    %v538 = vpack.c.b16 %v436, %v430
    %v539 = vpack.c.b16 %v443, %v437
    %v540 = vpack.c.b16 %v444, %v438
    %v541 = vpack.c.b16 %v445, %v439
    %v542 = vpack.c.b16 %v446, %v440
    %v543 = vpack.c.b16 %v447, %v441
    %v544 = vpack.c.b16 %v448, %v442
    %641 = vmatpush.bf16.msra.mxu0 %v491
    %642 = vmatpush.bf16.msra.mxu0 %v485
    %643 = vmatpush.bf16.msra.mxu0 %v479
    %644 = vmatpush.bf16.msra.mxu0 %v473
    %645 = vmatpush.bf16.msra.mxu0 %v467
    %646 = vmatpush.bf16.msra.mxu0 %v461
    %647 = vmatpush.bf16.msra.mxu0 %v455
    %648 = vmatpush.bf16.msra.mxu0 %v449
    %649 = vmatmul.bf16.gmra.mxu0 %v157
    %v650 = vpop.f32.mrf.mxu0
    %v651 = vadd.f32 %v143, %v650
    %v652 = vpop.f32.mrf.mxu0
    %653 = vdwg.mxu0
    %654 = vmatpush.bf16.msra.mxu0 %v539
    %655 = vmatpush.bf16.msra.mxu0 %v533
    %656 = vmatpush.bf16.msra.mxu0 %v527
    %657 = vmatpush.bf16.msra.mxu0 %v521
    %658 = vmatpush.bf16.msra.mxu0 %v515
    %659 = vmatpush.bf16.msra.mxu0 %v509
    %660 = vmatpush.bf16.msra.mxu0 %v503
    %661 = vmatpush.bf16.msra.mxu0 %v497
    %662 = vmatmul.bf16.gmra.mxu0 %v158
    %v663 = vpop.f32.mrf.mxu0
    %v664 = vadd.f32 %v651, %v663
    %v665 = vpop.f32.mrf.mxu0
    %666 = vdwg.mxu0
    %667 = vmatpush.bf16.msra.mxu0 %v492
    %668 = vmatpush.bf16.msra.mxu0 %v486
    %669 = vmatpush.bf16.msra.mxu0 %v480
    %670 = vmatpush.bf16.msra.mxu0 %v474
    %671 = vmatpush.bf16.msra.mxu0 %v468
    %672 = vmatpush.bf16.msra.mxu0 %v462
    %673 = vmatpush.bf16.msra.mxu0 %v456
    %674 = vmatpush.bf16.msra.mxu0 %v450
    %675 = vmatmul.bf16.gmra.mxu0 %v157
    %v676 = vpop.f32.mrf.mxu0
    %v677 = vadd.f32 %v144, %v676
    %v678 = vpop.f32.mrf.mxu0
    %679 = vdwg.mxu0
    %680 = vmatpush.bf16.msra.mxu0 %v540
    %681 = vmatpush.bf16.msra.mxu0 %v534
    %682 = vmatpush.bf16.msra.mxu0 %v528
    %683 = vmatpush.bf16.msra.mxu0 %v522
    %684 = vmatpush.bf16.msra.mxu0 %v516
    %685 = vmatpush.bf16.msra.mxu0 %v510
    %686 = vmatpush.bf16.msra.mxu0 %v504
    %687 = vmatpush.bf16.msra.mxu0 %v498
    %688 = vmatmul.bf16.gmra.mxu0 %v158
    %v689 = vpop.f32.mrf.mxu0
    %v690 = vadd.f32 %v677, %v689
    %v691 = vpop.f32.mrf.mxu0
    %692 = vdwg.mxu0
    %693 = vmatpush.bf16.msra.mxu0 %v493
    %694 = vmatpush.bf16.msra.mxu0 %v487
    %695 = vmatpush.bf16.msra.mxu0 %v481
    %696 = vmatpush.bf16.msra.mxu0 %v475
    %697 = vmatpush.bf16.msra.mxu0 %v469
    %698 = vmatpush.bf16.msra.mxu0 %v463
    %699 = vmatpush.bf16.msra.mxu0 %v457
    %700 = vmatpush.bf16.msra.mxu0 %v451
    %701 = vmatmul.bf16.gmra.mxu0 %v157
    %v702 = vpop.f32.mrf.mxu0
    %v703 = vadd.f32 %v145, %v702
    %v704 = vpop.f32.mrf.mxu0
    %705 = vdwg.mxu0
    %706 = vmatpush.bf16.msra.mxu0 %v541
    %707 = vmatpush.bf16.msra.mxu0 %v535
    %708 = vmatpush.bf16.msra.mxu0 %v529
    %709 = vmatpush.bf16.msra.mxu0 %v523
    %710 = vmatpush.bf16.msra.mxu0 %v517
    %711 = vmatpush.bf16.msra.mxu0 %v511
    %712 = vmatpush.bf16.msra.mxu0 %v505
    %713 = vmatpush.bf16.msra.mxu0 %v499
    %714 = vmatmul.bf16.gmra.mxu0 %v158
    %v715 = vpop.f32.mrf.mxu0
    %v716 = vadd.f32 %v703, %v715
    %v717 = vpop.f32.mrf.mxu0
    %718 = vdwg.mxu0
    %719 = vmatpush.bf16.msra.mxu0 %v494
    %720 = vmatpush.bf16.msra.mxu0 %v488
    %721 = vmatpush.bf16.msra.mxu0 %v482
    %722 = vmatpush.bf16.msra.mxu0 %v476
    %723 = vmatpush.bf16.msra.mxu0 %v470
    %724 = vmatpush.bf16.msra.mxu0 %v464
    %725 = vmatpush.bf16.msra.mxu0 %v458
    %726 = vmatpush.bf16.msra.mxu0 %v452
    %727 = vmatmul.bf16.gmra.mxu0 %v157
    %v728 = vpop.f32.mrf.mxu0
    %v729 = vadd.f32 %v146, %v728
    %v730 = vpop.f32.mrf.mxu0
    %731 = vdwg.mxu0
    %732 = vmatpush.bf16.msra.mxu0 %v542
    %733 = vmatpush.bf16.msra.mxu0 %v536
    %734 = vmatpush.bf16.msra.mxu0 %v530
    %735 = vmatpush.bf16.msra.mxu0 %v524
    %736 = vmatpush.bf16.msra.mxu0 %v518
    %737 = vmatpush.bf16.msra.mxu0 %v512
    %738 = vmatpush.bf16.msra.mxu0 %v506
    %739 = vmatpush.bf16.msra.mxu0 %v500
    %740 = vmatmul.bf16.gmra.mxu0 %v158
    %v741 = vpop.f32.mrf.mxu0
    %v742 = vadd.f32 %v729, %v741
    %v743 = vpop.f32.mrf.mxu0
    %744 = vdwg.mxu0
    %745 = vmatpush.bf16.msra.mxu0 %v495
    %746 = vmatpush.bf16.msra.mxu0 %v489
    %747 = vmatpush.bf16.msra.mxu0 %v483
    %748 = vmatpush.bf16.msra.mxu0 %v477
    %749 = vmatpush.bf16.msra.mxu0 %v471
    %750 = vmatpush.bf16.msra.mxu0 %v465
    %751 = vmatpush.bf16.msra.mxu0 %v459
    %752 = vmatpush.bf16.msra.mxu0 %v453
    %753 = vmatmul.bf16.gmra.mxu0 %v157
    %v754 = vpop.f32.mrf.mxu0
    %v755 = vadd.f32 %v147, %v754
    %v756 = vpop.f32.mrf.mxu0
    %757 = vdwg.mxu0
    %758 = vmatpush.bf16.msra.mxu0 %v543
    %759 = vmatpush.bf16.msra.mxu0 %v537
    %760 = vmatpush.bf16.msra.mxu0 %v531
    %761 = vmatpush.bf16.msra.mxu0 %v525
    %762 = vmatpush.bf16.msra.mxu0 %v519
    %763 = vmatpush.bf16.msra.mxu0 %v513
    %764 = vmatpush.bf16.msra.mxu0 %v507
    %765 = vmatpush.bf16.msra.mxu0 %v501
    %766 = vmatmul.bf16.gmra.mxu0 %v158
    %v767 = vpop.f32.mrf.mxu0
    %v768 = vadd.f32 %v755, %v767
    %v769 = vpop.f32.mrf.mxu0
    %770 = vdwg.mxu0
    %771 = vmatpush.bf16.msra.mxu0 %v496
    %772 = vmatpush.bf16.msra.mxu0 %v490
    %773 = vmatpush.bf16.msra.mxu0 %v484
    %774 = vmatpush.bf16.msra.mxu0 %v478
    %775 = vmatpush.bf16.msra.mxu0 %v472
    %776 = vmatpush.bf16.msra.mxu0 %v466
    %777 = vmatpush.bf16.msra.mxu0 %v460
    %778 = vmatpush.bf16.msra.mxu0 %v454
    %779 = vmatmul.bf16.gmra.mxu0 %v157
    %v780 = vpop.f32.mrf.mxu0
    %v781 = vadd.f32 %v148, %v780
    %v782 = vpop.f32.mrf.mxu0
    %783 = vdwg.mxu0
    %784 = vmatpush.bf16.msra.mxu0 %v544
    %785 = vmatpush.bf16.msra.mxu0 %v538
    %786 = vmatpush.bf16.msra.mxu0 %v532
    %787 = vmatpush.bf16.msra.mxu0 %v526
    %788 = vmatpush.bf16.msra.mxu0 %v520
    %789 = vmatpush.bf16.msra.mxu0 %v514
    %790 = vmatpush.bf16.msra.mxu0 %v508
    %791 = vmatpush.bf16.msra.mxu0 %v502
    %792 = vmatmul.bf16.gmra.mxu0 %v158
    %v793 = vpop.f32.mrf.mxu0
    %v794 = vadd.f32 %v781, %v793
    %v795 = vpop.f32.mrf.mxu0
    %796 = vdwg.mxu0
    %v797 = vpack.c.bf16 %v690, %v664
    %v798 = vpack.c.bf16 %v742, %v716
    %v799 = vpack.c.bf16 %v794, %v768
    %v803 = vrot.slane %v797, 2
    %v804 = vrot.slane %v798, 4
    %v805 = vrot.slane %v798, 6
    %v806 = vrot.slane %v799, 2
    %vm807 = vcmask 1041408
    %v810 = vsel %vm807, %v797, %v803
    %vm811 = vcmask 1045508
    %v814 = vsel %vm811, %v804, %v805
    %vm815 = vcmask 1043456
    %v816 = vsel %vm815, %v810, %v814
    %v819 = vsel %vm807, %v799, %v806
    %822 = vst [vmem:[%s3] sm:$0xff] %v816
    %823 = vst [vmem:[%s3 + $0x8] sm:$0xf] %v819
    // Predicated region
    $region22: #{forward.33} parent=1 // pred_check
      _
    $region23: #{forward.33} parent=1 // pred_check_branch
      %825 = sbr.rel (0) target = $region25
    $region24: #{forward.33} parent=1 // pred_region
      _
    $region25: #{forward.33} parent=1 // pred_fallthru
      _
    // Predicated region
    $region26: #{forward.33} parent=1 // pred_check
      _
    $region27: #{forward.33} parent=1 // pred_check_branch
      %827 = sbr.rel (0) target = $region29
    $region28: #{forward.33} parent=1 // pred_region
      _
    $region29: #{forward.33} parent=1 // pred_fallthru
      _
    %828 = vsyncpa [#allocation3], 1
    %829 = vsyncpa [#allocation5], 1

// kernel: forward.28
$region0: #{forward.28}
  #allocation0 [shape = 'u32[]', space=smem, size = 0x4, offset = 0x4, fixed_abs, tag = 'smem constant byte address 0x4 - core index']
  #allocation1 [shape = 'u32[72,128]{1,0:T(1,128)}', space=vmem, size = 0x9000, scoped, tag = 'internal scratch']
  #allocation2 [shape = 'f32[4,1024]{1,0:T(4,128)}', space=vmem, size = 0x4000, scoped, tag = 'scratch operand']
  %s0 = inlined_call_operand.vmem [shape: bf16[4,1536], index: 0, kind: input, shape index: {}]
  %s1 = inlined_call_operand.hbm [shape: bf16[1536,3072], index: 1, kind: input, shape index: {}]
  %s2 = inlined_call_operand.hbm [shape: f32[1,3072], index: 2, kind: input, shape index: {}]
  %s3 = inlined_call_operand.vmem [shape: bf16[4,3072], index: 3, kind: output, shape index: {}]
  %s4 = sld [smem:[#allocation0]]
  $region61: #{forward.28} parent=0
    _
  %s6 = ssub.s32 1, %s4
  %s7 = scalar_select 0, %s6, %s4
  $region1: #{forward.28} parent=0
    #allocation3 [shape = 'u8[2097152]{0}', space=vmem, size = 0x200000, scoped, tag = 'input window, operand 1']
    #allocation4 [shape = 's32[2]{0}', space=sflag, size = 0x8, scoped, tag = 'scoped memory for forward.28']
    #allocation5 [shape = 'u8[8192]{0}', space=vmem, size = 0x2000, scoped, tag = 'input window, operand 2']
    #allocation6 [shape = 's32[2]{0}', space=sflag, size = 0x8, scoped, tag = 'scoped memory for forward.28']
    %8 = vsyncpa [#allocation4], 0
    %s9 = scalar_lea.sflag [#allocation4], 1
    %10 = vsyncpa %s9, 0
    %11 = vsyncpa [#allocation6], 0
    %s12 = scalar_lea.sflag [#allocation6], 1
    %13 = vsyncpa %s12, 0
    loop: start=0, step=1, limit=11
    $region2: #{forward.28} parent=1 // loop_pre_header
      _
    $region3: #{forward.28} parent=1 // loop_header
      %s15 = sphi 0, %s19
      %p16 = scmp.ge.s32.totalorder %s15, 11
      %s22 = sphi 0, %s41
      %s23 = sphi 0, %s37
      %s24 = sphi 0, %s33
      %s25 = sphi 0, %s22
      %s26 = sphi 0, %s23
      %s27 = sphi 0, %s24
      %s28 = sphi 0, %s25
      %s29 = sphi 0, %s26
      %s30 = sphi 0, %s27
      %s46 = sphi 0, %s48
      %s49 = sphi 0, %s46
      %s50 = sphi 0, %s49
      %s66 = sphi 0, %s50
      %s74 = sphi 0, %s76
      %s77 = sphi 0, %s74
      %s78 = sphi 0, %s77
      %s94 = sphi 0, %s78
      %s100 = sphi 0, %s102
      %s103 = sphi 0, %s100
      %s104 = sphi 0, %s103
      %s120 = sphi 0, %s104
      %s128 = sphi 0, %s130
      %s131 = sphi 0, %s128
      %s132 = sphi 0, %s131
      %s148 = sphi 0, %s132
    $region4: #{forward.28} parent=1 // loop_header_branch
      %18 = sbr.rel (%p16) target = $region8
    $region5: #{forward.28} parent=1 // loop_body
      %s20 = ssub.s32 %s15, 1
      %s21 = ssub.s32 %s15, 2
      %s31 = sadd.s32 1, %s24
      %p32 = scmp.ge.s32.totalorder %s31, 3
      %s33 = scalar_select %p32, 0, %s31
      %s34 = sadd.s32 1, %s23
      %s35 = scalar_select %p32, %s34, %s23
      %p36 = scmp.ge.s32.totalorder %s35, 3
      %s37 = scalar_select %p36, 0, %s35
      %s38 = sadd.s32 1, %s22
      %s39 = scalar_select %p36, %s38, %s22
      %p40 = scmp.ge.s32.totalorder %s39, 1
      %s41 = scalar_select %p40, 0, %s39
      %s42 = ssub.s32 %s22, %s41
      %s43 = ssub.s32 %s24, %s33
      %s44 = sor.u32 %s42, %s43
      %p45 = scmp.eq.s32.totalorder %s44, 0
      %s47 = sadd.s32 %s46, 1
      %s48 = scalar_select %p45, %s46, %s47
      %p51 = pneg %p45
      %p52 = scmp.eq.s32.totalorder %s15, 8
      %p53 = por %p51, %p52
      %p54 = scmp.ne.s32.totalorder %s46, %s49
      %p55 = scmp.eq.s32.totalorder %s15, 0
      %p56 = por %p54, %p55
      %p57 = scmp.ne.s32.totalorder %s46, %s49
      %p58 = scmp.eq.s32.totalorder %s20, 8
      %p59 = por %p57, %p58
      %p60 = scmp.ne.s32.totalorder %s49, %s50
      %p61 = scmp.eq.s32.totalorder %s20, 0
      %p62 = por %p60, %p61
      %p63 = scmp.ne.s32.totalorder %s49, %s50
      %p64 = scmp.eq.s32.totalorder %s21, 8
      %p65 = por %p63, %p64
      %p67 = scmp.ne.s32.totalorder %s50, %s66
      %p68 = scmp.eq.s32.totalorder %s21, 0
      %p69 = por %p67, %p68
      %s70 = ssub.s32 %s24, %s33
      %s71 = ssub.s32 %s23, %s37
      %s72 = sor.u32 %s70, %s71
      %p73 = scmp.eq.s32.totalorder %s72, 0
      %s75 = sadd.s32 %s74, 1
      %s76 = scalar_select %p73, %s74, %s75
      %p79 = pneg %p73
      %p80 = scmp.eq.s32.totalorder %s15, 8
      %p81 = por %p79, %p80
      %p82 = scmp.ne.s32.totalorder %s74, %s77
      %p83 = scmp.eq.s32.totalorder %s15, 0
      %p84 = por %p82, %p83
      %p85 = scmp.ne.s32.totalorder %s74, %s77
      %p86 = scmp.eq.s32.totalorder %s20, 8
      %p87 = por %p85, %p86
      %p88 = scmp.ne.s32.totalorder %s77, %s78
      %p89 = scmp.eq.s32.totalorder %s20, 0
      %p90 = por %p88, %p89
      %p91 = scmp.ne.s32.totalorder %s77, %s78
      %p92 = scmp.eq.s32.totalorder %s21, 8
      %p93 = por %p91, %p92
      %p95 = scmp.ne.s32.totalorder %s78, %s94
      %p96 = scmp.eq.s32.totalorder %s21, 0
      %p97 = por %p95, %p96
      %s98 = ssub.s32 %s23, %s37
      %p99 = scmp.eq.s32.totalorder %s98, 0
      %s101 = sadd.s32 %s100, 1
      %s102 = scalar_select %p99, %s100, %s101
      %p105 = pneg %p99
      %p106 = scmp.eq.s32.totalorder %s15, 8
      %p107 = por %p105, %p106
      %p108 = scmp.ne.s32.totalorder %s100, %s103
      %p109 = scmp.eq.s32.totalorder %s15, 0
      %p110 = por %p108, %p109
      %p111 = scmp.ne.s32.totalorder %s100, %s103
      %p112 = scmp.eq.s32.totalorder %s20, 8
      %p113 = por %p111, %p112
      %p114 = scmp.ne.s32.totalorder %s103, %s104
      %p115 = scmp.eq.s32.totalorder %s20, 0
      %p116 = por %p114, %p115
      %p117 = scmp.ne.s32.totalorder %s103, %s104
      %p118 = scmp.eq.s32.totalorder %s21, 8
      %p119 = por %p117, %p118
      %p121 = scmp.ne.s32.totalorder %s104, %s120
      %p122 = scmp.eq.s32.totalorder %s21, 0
      %p123 = por %p121, %p122
      %s124 = ssub.s32 %s22, %s41
      %s125 = ssub.s32 %s23, %s37
      %s126 = sor.u32 %s124, %s125
      %p127 = scmp.eq.s32.totalorder %s126, 0
      %s129 = sadd.s32 %s128, 1
      %s130 = scalar_select %p127, %s128, %s129
      %p133 = pneg %p127
      %p134 = scmp.eq.s32.totalorder %s15, 8
      %p135 = por %p133, %p134
      %p136 = scmp.ne.s32.totalorder %s128, %s131
      %p137 = scmp.eq.s32.totalorder %s15, 0
      %p138 = por %p136, %p137
      %p139 = scmp.ne.s32.totalorder %s128, %s131
      %p140 = scmp.eq.s32.totalorder %s20, 8
      %p141 = por %p139, %p140
      %p142 = scmp.ne.s32.totalorder %s131, %s132
      %p143 = scmp.eq.s32.totalorder %s20, 0
      %p144 = por %p142, %p143
      %p145 = scmp.ne.s32.totalorder %s131, %s132
      %p146 = scmp.eq.s32.totalorder %s21, 8
      %p147 = por %p145, %p146
      %p149 = scmp.ne.s32.totalorder %s132, %s148
      %p150 = scmp.eq.s32.totalorder %s21, 0
      %p151 = por %p149, %p150
      %p152 = scmp.le.s32.totalorder 1, %s15
      %p153 = scmp.lt.s32.totalorder %s15, 10
      %p154 = pnand %p152, %p153
      %p155 = pneg %p154
      // Predicated region
      $region9: #{forward.28} parent=5 // pred_check
        _
      $region10: #{forward.28} parent=5 // pred_check_branch
        %157 = sbr.rel (%p154) target = $region12
      $region11: #{forward.28} parent=5 // pred_region
        %s158 = ssub.s32 %s15, 1
      $region12: #{forward.28} parent=5 // pred_fallthru
        _
      %p159 = scmp.lt.s32.totalorder %s15, 9
      // Predicated region
      $region13: #{forward.28} parent=5 // pred_check
        %p160 = pneg %p159
      $region14: #{forward.28} parent=5 // pred_check_branch
        %162 = sbr.rel (%p160) target = $region16
      $region15: #{forward.28} parent=5 // pred_region
        // Predicated region
        $region17: #{forward.28} parent=15 // pred_check
          %p163 = pneg %p56
        $region18: #{forward.28} parent=15 // pred_check_branch
          %165 = sbr.rel (%p163) target = $region20
        $region19: #{forward.28} parent=15 // pred_region
          %s166 = smul.u32 4, %s24
          %p167 = scmp.lt.s32.totalorder %s22, 0
          %s168 = scalar_select %p167, %s22, 0
          %p169 = scmp.lt.s32.totalorder %s166, 11
          %s170 = scalar_select %p169, %s166, 11
          %s171 = smul.addr %s168, 12
          %s172 = sadd.s32 %s170, %s171
          %s173 = smul.addr %s172, 2
          %s174 = scalar_lea.vmem %s0, %s173
          %s175 = smul.u32 4, %s24
        $region20: #{forward.28} parent=15 // pred_fallthru
          _
        // Predicated region
        $region21: #{forward.28} parent=15 // pred_check
          %p176 = pneg %p84
        $region22: #{forward.28} parent=15 // pred_check_branch
          %178 = sbr.rel (%p176) target = $region24
        $region23: #{forward.28} parent=15 // pred_region
          %s179 = sand.u32 %s74, 1
          %s180 = scalar_lea.sflag [#allocation4], %s179
          %s181 = sand.u32 %s74, 1
          %s182 = smul.addr %s181, 2048
          %s183 = scalar_lea.vmem [#allocation3], %s182
          %s184 = smul.u32 64, %s24
          %s185 = smul.u32 8, %s23
          %187 = vsyncadd %s180, 0
          %s188 = smul.addr %s184, 24
          %s189 = sadd.s32 %s185, %s188
          %s190 = smul.addr %s189, 4
          %s191 = scalar_lea.hbm %s1, %s190
          %s192 = sshll.u32 %s191, 4
          %s193 = int_to_ptr.hbm [resolvable:$true] %s192
          %s194 = sshll.u32 %s183, 4
          %s195 = int_to_ptr.vmem [resolvable:$true] %s194
          %200 = dma.hbm_to_vmem [thread:$0]  %s193, 32768, %s195, %s180, 1536, 512, 32
        $region24: #{forward.28} parent=15 // pred_fallthru
          _
        // Predicated region
        $region25: #{forward.28} parent=15 // pred_check
          %p201 = pneg %p110
        $region26: #{forward.28} parent=15 // pred_check_branch
          %203 = sbr.rel (%p201) target = $region28
        $region27: #{forward.28} parent=15 // pred_region
          %s204 = sand.u32 %s100, 1
          %s205 = scalar_lea.sflag [#allocation6], %s204
          %s206 = sand.u32 %s100, 1
          %s207 = smul.addr %s206, 8
          %s208 = scalar_lea.vmem [#allocation5], %s207
          %s209 = smul.u32 8, %s23
          %211 = vsyncadd %s205, 0
          %s212 = scalar_lea.hbm %s2, %s209
          %s214 = sshll.u32 %s212, 4
          %s215 = int_to_ptr.hbm [resolvable:$true] %s214
          %s216 = sshll.u32 %s208, 4
          %s217 = int_to_ptr.vmem [resolvable:$true] %s216
          %219 = dma.hbm_to_vmem [thread:$0]  %s215, 128, %s217, %s205
        $region28: #{forward.28} parent=15 // pred_fallthru
          _
      $region16: #{forward.28} parent=5 // pred_fallthru
        _
      %p220 = scmp.le.s32.totalorder 1, %s15
      %p221 = scmp.lt.s32.totalorder %s15, 10
      %p222 = pnand %p220, %p221
      %p223 = pneg %p222
      // Predicated region
      $region29: #{forward.28} parent=5 // pred_check
        _
      $region30: #{forward.28} parent=5 // pred_check_branch
        %225 = sbr.rel (%p222) target = $region32
      $region31: #{forward.28} parent=5 // pred_region
        %s226 = ssub.s32 %s15, 1
        %s227 = sand.u32 %s77, 1
        %s228 = scalar_lea.sflag [#allocation4], %s227
        %s229 = sand.u32 %s77, 1
        %s230 = smul.addr %s229, 2048
        %s231 = scalar_lea.vmem [#allocation3], %s230
        // Predicated region
        $region33: #{forward.28} parent=31 // pred_check
          %p232 = pneg %p90
        $region34: #{forward.28} parent=31 // pred_check_branch
          %234 = sbr.rel (%p232) target = $region36
        $region35: #{forward.28} parent=31 // pred_region
          %236 = dma.done %s228, 32768
        $region36: #{forward.28} parent=31 // pred_fallthru
          _
        %s237 = sand.u32 %s103, 1
        %s238 = scalar_lea.sflag [#allocation6], %s237
        %s239 = sand.u32 %s103, 1
        %s240 = smul.addr %s239, 8
        %s241 = scalar_lea.vmem [#allocation5], %s240
        // Predicated region
        $region37: #{forward.28} parent=31 // pred_check
          %p242 = pneg %p116
        $region38: #{forward.28} parent=31 // pred_check_branch
          %244 = sbr.rel (%p242) target = $region40
        $region39: #{forward.28} parent=31 // pred_region
          %246 = dma.done %s238, 128
        $region40: #{forward.28} parent=31 // pred_fallthru
          _
        %s247 = smul.u32 4, %s27
        %p248 = scmp.lt.s32.totalorder %s25, 0
        %s249 = scalar_select %p248, %s25, 0
        %p250 = scmp.lt.s32.totalorder %s247, 11
        %s251 = scalar_select %p250, %s247, 11
        %s252 = smul.addr %s249, 12
        %s253 = sadd.s32 %s251, %s252
        %s254 = smul.addr %s253, 2
        %s255 = scalar_lea.vmem %s0, %s254
        %p256 = pneg %p62
        %p257 = pneg %p59
        %s258 = sand.u32 %s77, 1
        %s259 = scalar_lea.sflag [#allocation4], %s258
        %s260 = sand.u32 %s77, 1
        %s261 = smul.addr %s260, 2048
        %s262 = scalar_lea.vmem [#allocation3], %s261
        %p263 = pneg %p90
        %p264 = pneg %p87
        %s265 = sand.u32 %s103, 1
        %s266 = scalar_lea.sflag [#allocation6], %s265
        %s267 = sand.u32 %s103, 1
        %s268 = smul.addr %s267, 8
        %s269 = scalar_lea.vmem [#allocation5], %s268
        %p270 = pneg %p116
        %p271 = pneg %p113
        %p272 = pneg %p144
        %p273 = pneg %p141
        %s274 = smul.u32 8, %s26
        %p275 = scmp.lt.s32.totalorder %s25, 0
        %s276 = scalar_select %p275, %s25, 0
        %p277 = scmp.lt.s32.totalorder %s274, 23
        %s278 = scalar_select %p277, %s274, 23
        %s279 = smul.addr %s276, 24
        %s280 = sadd.s32 %s278, %s279
        %s281 = smul.addr %s280, 2
        %s282 = scalar_lea.vmem %s3, %s281
        %s283 = smul.u32 4, %s27
        %p284 = scmp.lt.s32.totalorder %s25, 0
        %s285 = scalar_select %p284, %s25, 0
        %p286 = scmp.lt.s32.totalorder %s283, 11
        %s287 = scalar_select %p286, %s283, 11
        %s288 = smul.addr %s285, 12
        %s289 = sadd.s32 %s287, %s288
        %s290 = smul.addr %s289, 2
        %s291 = scalar_lea.vmem %s0, %s290
        %s292 = smul.u32 4, %s27
        %s293 = smul.u32 64, %s27
        %s294 = smul.u32 8, %s26
        %s295 = smul.u32 8, %s26
        %s296 = smul.u32 8, %s26
        %p297 = scmp.lt.s32.totalorder %s25, 0
        %s298 = scalar_select %p297, %s25, 0
        %p299 = scmp.lt.s32.totalorder %s296, 23
        %s300 = scalar_select %p299, %s296, 23
        %s301 = smul.addr %s298, 24
        %s302 = sadd.s32 %s300, %s301
        %s303 = smul.addr %s302, 2
        %s304 = scalar_lea.vmem %s3, %s303
        %s305 = smul.u32 8, %s26
        %v306 = vld [vmem:[%s291] sm:$0xff]
        %v307 = vld [vmem:[%s231] sm:$0xff]
        %v308 = vld [vmem:[%s231 + $0x8] sm:$0xff]
        %v309 = vld [vmem:[%s231 + $0x10] sm:$0xff]
        %v310 = vld [vmem:[%s231 + $0x18] sm:$0xff]
        %v311 = vld [vmem:[%s231 + $0x20] sm:$0xff]
        %v312 = vld [vmem:[%s231 + $0x28] sm:$0xff]
        %v313 = vld [vmem:[%s231 + $0x30] sm:$0xff]
        %v314 = vld [vmem:[%s231 + $0x38] sm:$0xff]
        %v315 = vld [vmem:[%s231 + $0x40] sm:$0xff]
        %v316 = vld [vmem:[%s231 + $0x48] sm:$0xff]
        %v317 = vld [vmem:[%s231 + $0x50] sm:$0xff]
        %v318 = vld [vmem:[%s231 + $0x58] sm:$0xff]
        %v319 = vld [vmem:[%s231 + $0x60] sm:$0xff]
        %v320 = vld [vmem:[%s231 + $0x68] sm:$0xff]
        %v321 = vld [vmem:[%s231 + $0x70] sm:$0xff]
        %v322 = vld [vmem:[%s231 + $0x78] sm:$0xff]
        %v323 = vld [vmem:[%s231 + $0x80] sm:$0xff]
        %v324 = vld [vmem:[%s231 + $0x88] sm:$0xff]
        %v325 = vld [vmem:[%s231 + $0x90] sm:$0xff]
        %v326 = vld [vmem:[%s231 + $0x98] sm:$0xff]
        %v327 = vld [vmem:[%s231 + $0xa0] sm:$0xff]
        %v328 = vld [vmem:[%s231 + $0xa8] sm:$0xff]
        %v329 = vld [vmem:[%s231 + $0xb0] sm:$0xff]
        %v330 = vld [vmem:[%s231 + $0xb8] sm:$0xff]
        %v331 = vld [vmem:[%s231 + $0xc0] sm:$0xff]
        %v332 = vld [vmem:[%s231 + $0xc8] sm:$0xff]
        %v333 = vld [vmem:[%s231 + $0xd0] sm:$0xff]
        %v334 = vld [vmem:[%s231 + $0xd8] sm:$0xff]
        %v335 = vld [vmem:[%s231 + $0xe0] sm:$0xff]
        %v336 = vld [vmem:[%s231 + $0xe8] sm:$0xff]
        %v337 = vld [vmem:[%s231 + $0xf0] sm:$0xff]
        %v338 = vld [vmem:[%s231 + $0xf8] sm:$0xff]
        %v339 = vld [vmem:[%s231 + $0x100] sm:$0xff]
        %v340 = vld [vmem:[%s231 + $0x108] sm:$0xff]
        %v341 = vld [vmem:[%s231 + $0x110] sm:$0xff]
        %v342 = vld [vmem:[%s231 + $0x118] sm:$0xff]
        %v343 = vld [vmem:[%s231 + $0x120] sm:$0xff]
        %v344 = vld [vmem:[%s231 + $0x128] sm:$0xff]
        %v345 = vld [vmem:[%s231 + $0x130] sm:$0xff]
        %v346 = vld [vmem:[%s231 + $0x138] sm:$0xff]
        %v347 = vld [vmem:[%s231 + $0x140] sm:$0xff]
        %v348 = vld [vmem:[%s231 + $0x148] sm:$0xff]
        %v349 = vld [vmem:[%s231 + $0x150] sm:$0xff]
        %v350 = vld [vmem:[%s231 + $0x158] sm:$0xff]
        %v351 = vld [vmem:[%s231 + $0x160] sm:$0xff]
        %v352 = vld [vmem:[%s231 + $0x168] sm:$0xff]
        %v353 = vld [vmem:[%s231 + $0x170] sm:$0xff]
        %v354 = vld [vmem:[%s231 + $0x178] sm:$0xff]
        %v355 = vld [vmem:[%s231 + $0x180] sm:$0xff]
        %v356 = vld [vmem:[%s231 + $0x188] sm:$0xff]
        %v357 = vld [vmem:[%s231 + $0x190] sm:$0xff]
        %v358 = vld [vmem:[%s231 + $0x198] sm:$0xff]
        %v359 = vld [vmem:[%s231 + $0x1a0] sm:$0xff]
        %v360 = vld [vmem:[%s231 + $0x1a8] sm:$0xff]
        %v361 = vld [vmem:[%s231 + $0x1b0] sm:$0xff]
        %v362 = vld [vmem:[%s231 + $0x1b8] sm:$0xff]
        %v363 = vld [vmem:[%s231 + $0x1c0] sm:$0xff]
        %v364 = vld [vmem:[%s231 + $0x1c8] sm:$0xff]
        %v365 = vld [vmem:[%s231 + $0x1d0] sm:$0xff]
        %v366 = vld [vmem:[%s231 + $0x1d8] sm:$0xff]
        %v367 = vld [vmem:[%s231 + $0x1e0] sm:$0xff]
        %v368 = vld [vmem:[%s231 + $0x1e8] sm:$0xff]
        %v369 = vld [vmem:[%s231 + $0x1f0] sm:$0xff]
        %v370 = vld [vmem:[%s231 + $0x1f8] sm:$0xff]
        %v371 = vld [vmem:[%s231 + $0x200] sm:$0xff]
        %v372 = vld [vmem:[%s231 + $0x208] sm:$0xff]
        %v373 = vld [vmem:[%s231 + $0x210] sm:$0xff]
        %v374 = vld [vmem:[%s231 + $0x218] sm:$0xff]
        %v375 = vld [vmem:[%s231 + $0x220] sm:$0xff]
        %v376 = vld [vmem:[%s231 + $0x228] sm:$0xff]
        %v377 = vld [vmem:[%s231 + $0x230] sm:$0xff]
        %v378 = vld [vmem:[%s231 + $0x238] sm:$0xff]
        %v379 = vld [vmem:[%s231 + $0x240] sm:$0xff]
        %v380 = vld [vmem:[%s231 + $0x248] sm:$0xff]
        %v381 = vld [vmem:[%s231 + $0x250] sm:$0xff]
        %v382 = vld [vmem:[%s231 + $0x258] sm:$0xff]
        %v383 = vld [vmem:[%s231 + $0x260] sm:$0xff]
        %v384 = vld [vmem:[%s231 + $0x268] sm:$0xff]
        %v385 = vld [vmem:[%s231 + $0x270] sm:$0xff]
        %v386 = vld [vmem:[%s231 + $0x278] sm:$0xff]
        %v387 = vld [vmem:[%s231 + $0x280] sm:$0xff]
        %v388 = vld [vmem:[%s231 + $0x288] sm:$0xff]
        %v389 = vld [vmem:[%s231 + $0x290] sm:$0xff]
        %v390 = vld [vmem:[%s231 + $0x298] sm:$0xff]
        %v391 = vld [vmem:[%s231 + $0x2a0] sm:$0xff]
        %v392 = vld [vmem:[%s231 + $0x2a8] sm:$0xff]
        %v393 = vld [vmem:[%s231 + $0x2b0] sm:$0xff]
        %v394 = vld [vmem:[%s231 + $0x2b8] sm:$0xff]
        %v395 = vld [vmem:[%s231 + $0x2c0] sm:$0xff]
        %v396 = vld [vmem:[%s231 + $0x2c8] sm:$0xff]
        %v397 = vld [vmem:[%s231 + $0x2d0] sm:$0xff]
        %v398 = vld [vmem:[%s231 + $0x2d8] sm:$0xff]
        %v399 = vld [vmem:[%s231 + $0x2e0] sm:$0xff]
        %v400 = vld [vmem:[%s231 + $0x2e8] sm:$0xff]
        %v401 = vld [vmem:[%s231 + $0x2f0] sm:$0xff]
        %v402 = vld [vmem:[%s231 + $0x2f8] sm:$0xff]
        %v403 = vld [vmem:[%s231 + $0x300] sm:$0xff]
        %v404 = vld [vmem:[%s231 + $0x308] sm:$0xff]
        %v405 = vld [vmem:[%s231 + $0x310] sm:$0xff]
        %v406 = vld [vmem:[%s231 + $0x318] sm:$0xff]
        %v407 = vld [vmem:[%s231 + $0x320] sm:$0xff]
        %v408 = vld [vmem:[%s231 + $0x328] sm:$0xff]
        %v409 = vld [vmem:[%s231 + $0x330] sm:$0xff]
        %v410 = vld [vmem:[%s231 + $0x338] sm:$0xff]
        %v411 = vld [vmem:[%s231 + $0x340] sm:$0xff]
        %v412 = vld [vmem:[%s231 + $0x348] sm:$0xff]
        %v413 = vld [vmem:[%s231 + $0x350] sm:$0xff]
        %v414 = vld [vmem:[%s231 + $0x358] sm:$0xff]
        %v415 = vld [vmem:[%s231 + $0x360] sm:$0xff]
        %v416 = vld [vmem:[%s231 + $0x368] sm:$0xff]
        %v417 = vld [vmem:[%s231 + $0x370] sm:$0xff]
        %v418 = vld [vmem:[%s231 + $0x378] sm:$0xff]
        %v419 = vld [vmem:[%s231 + $0x380] sm:$0xff]
        %v420 = vld [vmem:[%s231 + $0x388] sm:$0xff]
        %v421 = vld [vmem:[%s231 + $0x390] sm:$0xff]
        %v422 = vld [vmem:[%s231 + $0x398] sm:$0xff]
        %v423 = vld [vmem:[%s231 + $0x3a0] sm:$0xff]
        %v424 = vld [vmem:[%s231 + $0x3a8] sm:$0xff]
        %v425 = vld [vmem:[%s231 + $0x3b0] sm:$0xff]
        %v426 = vld [vmem:[%s231 + $0x3b8] sm:$0xff]
        %v427 = vld [vmem:[%s231 + $0x3c0] sm:$0xff]
        %v428 = vld [vmem:[%s231 + $0x3c8] sm:$0xff]
        %v429 = vld [vmem:[%s231 + $0x3d0] sm:$0xff]
        %v430 = vld [vmem:[%s231 + $0x3d8] sm:$0xff]
        %v431 = vld [vmem:[%s231 + $0x3e0] sm:$0xff]
        %v432 = vld [vmem:[%s231 + $0x3e8] sm:$0xff]
        %v433 = vld [vmem:[%s231 + $0x3f0] sm:$0xff]
        %v434 = vld [vmem:[%s231 + $0x3f8] sm:$0xff]
        %v435 = vld [vmem:[%s231 + $0x400] sm:$0xff]
        %v436 = vld [vmem:[%s231 + $0x408] sm:$0xff]
        %v437 = vld [vmem:[%s231 + $0x410] sm:$0xff]
        %v438 = vld [vmem:[%s231 + $0x418] sm:$0xff]
        %v439 = vld [vmem:[%s231 + $0x420] sm:$0xff]
        %v440 = vld [vmem:[%s231 + $0x428] sm:$0xff]
        %v441 = vld [vmem:[%s231 + $0x430] sm:$0xff]
        %v442 = vld [vmem:[%s231 + $0x438] sm:$0xff]
        %v443 = vld [vmem:[%s231 + $0x440] sm:$0xff]
        %v444 = vld [vmem:[%s231 + $0x448] sm:$0xff]
        %v445 = vld [vmem:[%s231 + $0x450] sm:$0xff]
        %v446 = vld [vmem:[%s231 + $0x458] sm:$0xff]
        %v447 = vld [vmem:[%s231 + $0x460] sm:$0xff]
        %v448 = vld [vmem:[%s231 + $0x468] sm:$0xff]
        %v449 = vld [vmem:[%s231 + $0x470] sm:$0xff]
        %v450 = vld [vmem:[%s231 + $0x478] sm:$0xff]
        %v451 = vld [vmem:[%s231 + $0x480] sm:$0xff]
        %v452 = vld [vmem:[%s231 + $0x488] sm:$0xff]
        %v453 = vld [vmem:[%s231 + $0x490] sm:$0xff]
        %v454 = vld [vmem:[%s231 + $0x498] sm:$0xff]
        %v455 = vld [vmem:[%s231 + $0x4a0] sm:$0xff]
        %v456 = vld [vmem:[%s231 + $0x4a8] sm:$0xff]
        %v457 = vld [vmem:[%s231 + $0x4b0] sm:$0xff]
        %v458 = vld [vmem:[%s231 + $0x4b8] sm:$0xff]
        %v459 = vld [vmem:[%s231 + $0x4c0] sm:$0xff]
        %v460 = vld [vmem:[%s231 + $0x4c8] sm:$0xff]
        %v461 = vld [vmem:[%s231 + $0x4d0] sm:$0xff]
        %v462 = vld [vmem:[%s231 + $0x4d8] sm:$0xff]
        %v463 = vld [vmem:[%s231 + $0x4e0] sm:$0xff]
        %v464 = vld [vmem:[%s231 + $0x4e8] sm:$0xff]
        %v465 = vld [vmem:[%s231 + $0x4f0] sm:$0xff]
        %v466 = vld [vmem:[%s231 + $0x4f8] sm:$0xff]
        %v467 = vld [vmem:[%s231 + $0x500] sm:$0xff]
        %v468 = vld [vmem:[%s231 + $0x508] sm:$0xff]
        %v469 = vld [vmem:[%s231 + $0x510] sm:$0xff]
        %v470 = vld [vmem:[%s231 + $0x518] sm:$0xff]
        %v471 = vld [vmem:[%s231 + $0x520] sm:$0xff]
        %v472 = vld [vmem:[%s231 + $0x528] sm:$0xff]
        %v473 = vld [vmem:[%s231 + $0x530] sm:$0xff]
        %v474 = vld [vmem:[%s231 + $0x538] sm:$0xff]
        %v475 = vld [vmem:[%s231 + $0x540] sm:$0xff]
        %v476 = vld [vmem:[%s231 + $0x548] sm:$0xff]
        %v477 = vld [vmem:[%s231 + $0x550] sm:$0xff]
        %v478 = vld [vmem:[%s231 + $0x558] sm:$0xff]
        %v479 = vld [vmem:[%s231 + $0x560] sm:$0xff]
        %v480 = vld [vmem:[%s231 + $0x568] sm:$0xff]
        %v481 = vld [vmem:[%s231 + $0x570] sm:$0xff]
        %v482 = vld [vmem:[%s231 + $0x578] sm:$0xff]
        %v483 = vld [vmem:[%s231 + $0x580] sm:$0xff]
        %v484 = vld [vmem:[%s231 + $0x588] sm:$0xff]
        %v485 = vld [vmem:[%s231 + $0x590] sm:$0xff]
        %v486 = vld [vmem:[%s231 + $0x598] sm:$0xff]
        %v487 = vld [vmem:[%s231 + $0x5a0] sm:$0xff]
        %v488 = vld [vmem:[%s231 + $0x5a8] sm:$0xff]
        %v489 = vld [vmem:[%s231 + $0x5b0] sm:$0xff]
        %v490 = vld [vmem:[%s231 + $0x5b8] sm:$0xff]
        %v491 = vld [vmem:[%s231 + $0x5c0] sm:$0xff]
        %v492 = vld [vmem:[%s231 + $0x5c8] sm:$0xff]
        %v493 = vld [vmem:[%s231 + $0x5d0] sm:$0xff]
        %v494 = vld [vmem:[%s231 + $0x5d8] sm:$0xff]
        %v495 = vld [vmem:[%s231 + $0x5e0] sm:$0xff]
        %v496 = vld [vmem:[%s231 + $0x5e8] sm:$0xff]
        %v497 = vld [vmem:[%s231 + $0x5f0] sm:$0xff]
        %v498 = vld [vmem:[%s231 + $0x5f8] sm:$0xff]
        %v499 = vld [vmem:[%s231 + $0x600] sm:$0xff]
        %v500 = vld [vmem:[%s231 + $0x608] sm:$0xff]
        %v501 = vld [vmem:[%s231 + $0x610] sm:$0xff]
        %v502 = vld [vmem:[%s231 + $0x618] sm:$0xff]
        %v503 = vld [vmem:[%s231 + $0x620] sm:$0xff]
        %v504 = vld [vmem:[%s231 + $0x628] sm:$0xff]
        %v505 = vld [vmem:[%s231 + $0x630] sm:$0xff]
        %v506 = vld [vmem:[%s231 + $0x638] sm:$0xff]
        %v507 = vld [vmem:[%s231 + $0x640] sm:$0xff]
        %v508 = vld [vmem:[%s231 + $0x648] sm:$0xff]
        %v509 = vld [vmem:[%s231 + $0x650] sm:$0xff]
        %v510 = vld [vmem:[%s231 + $0x658] sm:$0xff]
        %v511 = vld [vmem:[%s231 + $0x660] sm:$0xff]
        %v512 = vld [vmem:[%s231 + $0x668] sm:$0xff]
        %v513 = vld [vmem:[%s231 + $0x670] sm:$0xff]
        %v514 = vld [vmem:[%s231 + $0x678] sm:$0xff]
        %v515 = vld [vmem:[%s231 + $0x680] sm:$0xff]
        %v516 = vld [vmem:[%s231 + $0x688] sm:$0xff]
        %v517 = vld [vmem:[%s231 + $0x690] sm:$0xff]
        %v518 = vld [vmem:[%s231 + $0x698] sm:$0xff]
        %v519 = vld [vmem:[%s231 + $0x6a0] sm:$0xff]
        %v520 = vld [vmem:[%s231 + $0x6a8] sm:$0xff]
        %v521 = vld [vmem:[%s231 + $0x6b0] sm:$0xff]
        %v522 = vld [vmem:[%s231 + $0x6b8] sm:$0xff]
        %v523 = vld [vmem:[%s231 + $0x6c0] sm:$0xff]
        %v524 = vld [vmem:[%s231 + $0x6c8] sm:$0xff]
        %v525 = vld [vmem:[%s231 + $0x6d0] sm:$0xff]
        %v526 = vld [vmem:[%s231 + $0x6d8] sm:$0xff]
        %v527 = vld [vmem:[%s231 + $0x6e0] sm:$0xff]
        %v528 = vld [vmem:[%s231 + $0x6e8] sm:$0xff]
        %v529 = vld [vmem:[%s231 + $0x6f0] sm:$0xff]
        %v530 = vld [vmem:[%s231 + $0x6f8] sm:$0xff]
        %v531 = vld [vmem:[%s231 + $0x700] sm:$0xff]
        %v532 = vld [vmem:[%s231 + $0x708] sm:$0xff]
        %v533 = vld [vmem:[%s231 + $0x710] sm:$0xff]
        %v534 = vld [vmem:[%s231 + $0x718] sm:$0xff]
        %v535 = vld [vmem:[%s231 + $0x720] sm:$0xff]
        %v536 = vld [vmem:[%s231 + $0x728] sm:$0xff]
        %v537 = vld [vmem:[%s231 + $0x730] sm:$0xff]
        %v538 = vld [vmem:[%s231 + $0x738] sm:$0xff]
        %v539 = vld [vmem:[%s231 + $0x740] sm:$0xff]
        %v540 = vld [vmem:[%s231 + $0x748] sm:$0xff]
        %v541 = vld [vmem:[%s231 + $0x750] sm:$0xff]
        %v542 = vld [vmem:[%s231 + $0x758] sm:$0xff]
        %v543 = vld [vmem:[%s231 + $0x760] sm:$0xff]
        %v544 = vld [vmem:[%s231 + $0x768] sm:$0xff]
        %v545 = vld [vmem:[%s231 + $0x770] sm:$0xff]
        %v546 = vld [vmem:[%s231 + $0x778] sm:$0xff]
        %v547 = vld [vmem:[%s231 + $0x780] sm:$0xff]
        %v548 = vld [vmem:[%s231 + $0x788] sm:$0xff]
        %v549 = vld [vmem:[%s231 + $0x790] sm:$0xff]
        %v550 = vld [vmem:[%s231 + $0x798] sm:$0xff]
        %v551 = vld [vmem:[%s231 + $0x7a0] sm:$0xff]
        %v552 = vld [vmem:[%s231 + $0x7a8] sm:$0xff]
        %v553 = vld [vmem:[%s231 + $0x7b0] sm:$0xff]
        %v554 = vld [vmem:[%s231 + $0x7b8] sm:$0xff]
        %v555 = vld [vmem:[%s231 + $0x7c0] sm:$0xff]
        %v556 = vld [vmem:[%s231 + $0x7c8] sm:$0xff]
        %v557 = vld [vmem:[%s231 + $0x7d0] sm:$0xff]
        %v558 = vld [vmem:[%s231 + $0x7d8] sm:$0xff]
        %v559 = vld [vmem:[%s231 + $0x7e0] sm:$0xff]
        %v560 = vld [vmem:[%s231 + $0x7e8] sm:$0xff]
        %v561 = vld [vmem:[%s231 + $0x7f0] sm:$0xff]
        %v562 = vld [vmem:[%s231 + $0x7f8] sm:$0xff]
        %564 = vst [vmem:[#allocation1] ss:$4 sm:$0xff] %v306
        %v565 = vld.sshfl [vmem:[#allocation1] sm:$0xff pattern:$0x73625140]
        %v566 = vld.sshfl [vmem:[#allocation1 + $0x8] sm:$0xff pattern:$0x73625140]
        %v567 = vld.sshfl [vmem:[#allocation1 + $0x10] sm:$0xff pattern:$0x73625140]
        %v568 = vld.sshfl [vmem:[#allocation1 + $0x18] sm:$0xff pattern:$0x73625140]
        %v829 = vunpack.c.l.b16 %v307
        %v830 = vunpack.c.h.b16 %v307
        %v831 = vunpack.c.l.b16 %v308
        %v832 = vunpack.c.h.b16 %v308
        %v833 = vunpack.c.l.b16 %v309
        %v834 = vunpack.c.h.b16 %v309
        %v835 = vunpack.c.l.b16 %v310
        %v836 = vunpack.c.h.b16 %v310
        %v837 = vunpack.c.l.b16 %v311
        %v838 = vunpack.c.h.b16 %v311
        %v839 = vunpack.c.l.b16 %v312
        %v840 = vunpack.c.h.b16 %v312
        %v841 = vunpack.c.l.b16 %v313
        %v842 = vunpack.c.h.b16 %v313
        %v843 = vunpack.c.l.b16 %v314
        %v844 = vunpack.c.h.b16 %v314
        %v845 = vunpack.c.l.b16 %v315
        %v846 = vunpack.c.h.b16 %v315
        %v847 = vunpack.c.l.b16 %v316
        %v848 = vunpack.c.h.b16 %v316
        %v849 = vunpack.c.l.b16 %v317
        %v850 = vunpack.c.h.b16 %v317
        %v851 = vunpack.c.l.b16 %v318
        %v852 = vunpack.c.h.b16 %v318
        %v853 = vunpack.c.l.b16 %v319
        %v854 = vunpack.c.h.b16 %v319
        %v855 = vunpack.c.l.b16 %v320
        %v856 = vunpack.c.h.b16 %v320
        %v857 = vunpack.c.l.b16 %v321
        %v858 = vunpack.c.h.b16 %v321
        %v859 = vunpack.c.l.b16 %v322
        %v860 = vunpack.c.h.b16 %v322
        %v861 = vunpack.c.l.b16 %v323
        %v862 = vunpack.c.h.b16 %v323
        %v863 = vunpack.c.l.b16 %v324
        %v864 = vunpack.c.h.b16 %v324
        %v865 = vunpack.c.l.b16 %v325
        %v866 = vunpack.c.h.b16 %v325
        %v867 = vunpack.c.l.b16 %v326
        %v868 = vunpack.c.h.b16 %v326
        %v869 = vunpack.c.l.b16 %v327
        %v870 = vunpack.c.h.b16 %v327
        %v871 = vunpack.c.l.b16 %v328
        %v872 = vunpack.c.h.b16 %v328
        %v873 = vunpack.c.l.b16 %v329
        %v874 = vunpack.c.h.b16 %v329
        %v875 = vunpack.c.l.b16 %v330
        %v876 = vunpack.c.h.b16 %v330
        %v877 = vunpack.c.l.b16 %v331
        %v878 = vunpack.c.h.b16 %v331
        %v879 = vunpack.c.l.b16 %v332
        %v880 = vunpack.c.h.b16 %v332
        %v881 = vunpack.c.l.b16 %v333
        %v882 = vunpack.c.h.b16 %v333
        %v883 = vunpack.c.l.b16 %v334
        %v884 = vunpack.c.h.b16 %v334
        %v885 = vunpack.c.l.b16 %v335
        %v886 = vunpack.c.h.b16 %v335
        %v887 = vunpack.c.l.b16 %v336
        %v888 = vunpack.c.h.b16 %v336
        %v889 = vunpack.c.l.b16 %v337
        %v890 = vunpack.c.h.b16 %v337
        %v891 = vunpack.c.l.b16 %v338
        %v892 = vunpack.c.h.b16 %v338
        %v893 = vunpack.c.l.b16 %v339
        %v894 = vunpack.c.h.b16 %v339
        %v895 = vunpack.c.l.b16 %v340
        %v896 = vunpack.c.h.b16 %v340
        %v897 = vunpack.c.l.b16 %v341
        %v898 = vunpack.c.h.b16 %v341
        %v899 = vunpack.c.l.b16 %v342
        %v900 = vunpack.c.h.b16 %v342
        %v901 = vunpack.c.l.b16 %v343
        %v902 = vunpack.c.h.b16 %v343
        %v903 = vunpack.c.l.b16 %v344
        %v904 = vunpack.c.h.b16 %v344
        %v905 = vunpack.c.l.b16 %v345
        %v906 = vunpack.c.h.b16 %v345
        %v907 = vunpack.c.l.b16 %v346
        %v908 = vunpack.c.h.b16 %v346
        %v909 = vunpack.c.l.b16 %v347
        %v910 = vunpack.c.h.b16 %v347
        %v911 = vunpack.c.l.b16 %v348
        %v912 = vunpack.c.h.b16 %v348
        %v913 = vunpack.c.l.b16 %v349
        %v914 = vunpack.c.h.b16 %v349
        %v915 = vunpack.c.l.b16 %v350
        %v916 = vunpack.c.h.b16 %v350
        %v917 = vunpack.c.l.b16 %v351
        %v918 = vunpack.c.h.b16 %v351
        %v919 = vunpack.c.l.b16 %v352
        %v920 = vunpack.c.h.b16 %v352
        %v921 = vunpack.c.l.b16 %v353
        %v922 = vunpack.c.h.b16 %v353
        %v923 = vunpack.c.l.b16 %v354
        %v924 = vunpack.c.h.b16 %v354
        %v925 = vunpack.c.l.b16 %v355
        %v926 = vunpack.c.h.b16 %v355
        %v927 = vunpack.c.l.b16 %v356
        %v928 = vunpack.c.h.b16 %v356
        %v929 = vunpack.c.l.b16 %v357
        %v930 = vunpack.c.h.b16 %v357
        %v931 = vunpack.c.l.b16 %v358
        %v932 = vunpack.c.h.b16 %v358
        %v933 = vunpack.c.l.b16 %v359
        %v934 = vunpack.c.h.b16 %v359
        %v935 = vunpack.c.l.b16 %v360
        %v936 = vunpack.c.h.b16 %v360
        %v937 = vunpack.c.l.b16 %v361
        %v938 = vunpack.c.h.b16 %v361
        %v939 = vunpack.c.l.b16 %v362
        %v940 = vunpack.c.h.b16 %v362
        %v941 = vunpack.c.l.b16 %v363
        %v942 = vunpack.c.h.b16 %v363
        %v943 = vunpack.c.l.b16 %v364
        %v944 = vunpack.c.h.b16 %v364
        %v945 = vunpack.c.l.b16 %v365
        %v946 = vunpack.c.h.b16 %v365
        %v947 = vunpack.c.l.b16 %v366
        %v948 = vunpack.c.h.b16 %v366
        %v949 = vunpack.c.l.b16 %v367
        %v950 = vunpack.c.h.b16 %v367
        %v951 = vunpack.c.l.b16 %v368
        %v952 = vunpack.c.h.b16 %v368
        %v953 = vunpack.c.l.b16 %v369
        %v954 = vunpack.c.h.b16 %v369
        %v955 = vunpack.c.l.b16 %v370
        %v956 = vunpack.c.h.b16 %v370
        %v957 = vunpack.c.l.b16 %v371
        %v958 = vunpack.c.h.b16 %v371
        %v959 = vunpack.c.l.b16 %v372
        %v960 = vunpack.c.h.b16 %v372
        %v961 = vunpack.c.l.b16 %v373
        %v962 = vunpack.c.h.b16 %v373
        %v963 = vunpack.c.l.b16 %v374
        %v964 = vunpack.c.h.b16 %v374
        %v965 = vunpack.c.l.b16 %v375
        %v966 = vunpack.c.h.b16 %v375
        %v967 = vunpack.c.l.b16 %v376
        %v968 = vunpack.c.h.b16 %v376
        %v969 = vunpack.c.l.b16 %v377
        %v970 = vunpack.c.h.b16 %v377
        %v971 = vunpack.c.l.b16 %v378
        %v972 = vunpack.c.h.b16 %v378
        %v973 = vunpack.c.l.b16 %v379
        %v974 = vunpack.c.h.b16 %v379
        %v975 = vunpack.c.l.b16 %v380
        %v976 = vunpack.c.h.b16 %v380
        %v977 = vunpack.c.l.b16 %v381
        %v978 = vunpack.c.h.b16 %v381
        %v979 = vunpack.c.l.b16 %v382
        %v980 = vunpack.c.h.b16 %v382
        %v981 = vunpack.c.l.b16 %v383
        %v982 = vunpack.c.h.b16 %v383
        %v983 = vunpack.c.l.b16 %v384
        %v984 = vunpack.c.h.b16 %v384
        %v985 = vunpack.c.l.b16 %v385
        %v986 = vunpack.c.h.b16 %v385
        %v987 = vunpack.c.l.b16 %v386
        %v988 = vunpack.c.h.b16 %v386
        %v989 = vunpack.c.l.b16 %v387
        %v990 = vunpack.c.h.b16 %v387
        %v991 = vunpack.c.l.b16 %v388
        %v992 = vunpack.c.h.b16 %v388
        %v993 = vunpack.c.l.b16 %v389
        %v994 = vunpack.c.h.b16 %v389
        %v995 = vunpack.c.l.b16 %v390
        %v996 = vunpack.c.h.b16 %v390
        %v997 = vunpack.c.l.b16 %v391
        %v998 = vunpack.c.h.b16 %v391
        %v999 = vunpack.c.l.b16 %v392
        %v1000 = vunpack.c.h.b16 %v392
        %v1001 = vunpack.c.l.b16 %v393
        %v1002 = vunpack.c.h.b16 %v393
        %v1003 = vunpack.c.l.b16 %v394
        %v1004 = vunpack.c.h.b16 %v394
        %v1005 = vunpack.c.l.b16 %v395
        %v1006 = vunpack.c.h.b16 %v395
        %v1007 = vunpack.c.l.b16 %v396
        %v1008 = vunpack.c.h.b16 %v396
        %v1009 = vunpack.c.l.b16 %v397
        %v1010 = vunpack.c.h.b16 %v397
        %v1011 = vunpack.c.l.b16 %v398
        %v1012 = vunpack.c.h.b16 %v398
        %v1013 = vunpack.c.l.b16 %v399
        %v1014 = vunpack.c.h.b16 %v399
        %v1015 = vunpack.c.l.b16 %v400
        %v1016 = vunpack.c.h.b16 %v400
        %v1017 = vunpack.c.l.b16 %v401
        %v1018 = vunpack.c.h.b16 %v401
        %v1019 = vunpack.c.l.b16 %v402
        %v1020 = vunpack.c.h.b16 %v402
        %v1021 = vunpack.c.l.b16 %v403
        %v1022 = vunpack.c.h.b16 %v403
        %v1023 = vunpack.c.l.b16 %v404
        %v1024 = vunpack.c.h.b16 %v404
        %v1025 = vunpack.c.l.b16 %v405
        %v1026 = vunpack.c.h.b16 %v405
        %v1027 = vunpack.c.l.b16 %v406
        %v1028 = vunpack.c.h.b16 %v406
        %v1029 = vunpack.c.l.b16 %v407
        %v1030 = vunpack.c.h.b16 %v407
        %v1031 = vunpack.c.l.b16 %v408
        %v1032 = vunpack.c.h.b16 %v408
        %v1033 = vunpack.c.l.b16 %v409
        %v1034 = vunpack.c.h.b16 %v409
        %v1035 = vunpack.c.l.b16 %v410
        %v1036 = vunpack.c.h.b16 %v410
        %v1037 = vunpack.c.l.b16 %v411
        %v1038 = vunpack.c.h.b16 %v411
        %v1039 = vunpack.c.l.b16 %v412
        %v1040 = vunpack.c.h.b16 %v412
        %v1041 = vunpack.c.l.b16 %v413
        %v1042 = vunpack.c.h.b16 %v413
        %v1043 = vunpack.c.l.b16 %v414
        %v1044 = vunpack.c.h.b16 %v414
        %v1045 = vunpack.c.l.b16 %v415
        %v1046 = vunpack.c.h.b16 %v415
        %v1047 = vunpack.c.l.b16 %v416
        %v1048 = vunpack.c.h.b16 %v416
        %v1049 = vunpack.c.l.b16 %v417
        %v1050 = vunpack.c.h.b16 %v417
        %v1051 = vunpack.c.l.b16 %v418
        %v1052 = vunpack.c.h.b16 %v418
        %v1053 = vunpack.c.l.b16 %v419
        %v1054 = vunpack.c.h.b16 %v419
        %v1055 = vunpack.c.l.b16 %v420
        %v1056 = vunpack.c.h.b16 %v420
        %v1057 = vunpack.c.l.b16 %v421
        %v1058 = vunpack.c.h.b16 %v421
        %v1059 = vunpack.c.l.b16 %v422
        %v1060 = vunpack.c.h.b16 %v422
        %v1061 = vunpack.c.l.b16 %v423
        %v1062 = vunpack.c.h.b16 %v423
        %v1063 = vunpack.c.l.b16 %v424
        %v1064 = vunpack.c.h.b16 %v424
        %v1065 = vunpack.c.l.b16 %v425
        %v1066 = vunpack.c.h.b16 %v425
        %v1067 = vunpack.c.l.b16 %v426
        %v1068 = vunpack.c.h.b16 %v426
        %v1069 = vunpack.c.l.b16 %v427
        %v1070 = vunpack.c.h.b16 %v427
        %v1071 = vunpack.c.l.b16 %v428
        %v1072 = vunpack.c.h.b16 %v428
        %v1073 = vunpack.c.l.b16 %v429
        %v1074 = vunpack.c.h.b16 %v429
        %v1075 = vunpack.c.l.b16 %v430
        %v1076 = vunpack.c.h.b16 %v430
        %v1077 = vunpack.c.l.b16 %v431
        %v1078 = vunpack.c.h.b16 %v431
        %v1079 = vunpack.c.l.b16 %v432
        %v1080 = vunpack.c.h.b16 %v432
        %v1081 = vunpack.c.l.b16 %v433
        %v1082 = vunpack.c.h.b16 %v433
        %v1083 = vunpack.c.l.b16 %v434
        %v1084 = vunpack.c.h.b16 %v434
        %v1085 = vunpack.c.l.b16 %v435
        %v1086 = vunpack.c.h.b16 %v435
        %v1087 = vunpack.c.l.b16 %v436
        %v1088 = vunpack.c.h.b16 %v436
        %v1089 = vunpack.c.l.b16 %v437
        %v1090 = vunpack.c.h.b16 %v437
        %v1091 = vunpack.c.l.b16 %v438
        %v1092 = vunpack.c.h.b16 %v438
        %v1093 = vunpack.c.l.b16 %v439
        %v1094 = vunpack.c.h.b16 %v439
        %v1095 = vunpack.c.l.b16 %v440
        %v1096 = vunpack.c.h.b16 %v440
        %v1097 = vunpack.c.l.b16 %v441
        %v1098 = vunpack.c.h.b16 %v441
        %v1099 = vunpack.c.l.b16 %v442
        %v1100 = vunpack.c.h.b16 %v442
        %v1101 = vunpack.c.l.b16 %v443
        %v1102 = vunpack.c.h.b16 %v443
        %v1103 = vunpack.c.l.b16 %v444
        %v1104 = vunpack.c.h.b16 %v444
        %v1105 = vunpack.c.l.b16 %v445
        %v1106 = vunpack.c.h.b16 %v445
        %v1107 = vunpack.c.l.b16 %v446
        %v1108 = vunpack.c.h.b16 %v446
        %v1109 = vunpack.c.l.b16 %v447
        %v1110 = vunpack.c.h.b16 %v447
        %v1111 = vunpack.c.l.b16 %v448
        %v1112 = vunpack.c.h.b16 %v448
        %v1113 = vunpack.c.l.b16 %v449
        %v1114 = vunpack.c.h.b16 %v449
        %v1115 = vunpack.c.l.b16 %v450
        %v1116 = vunpack.c.h.b16 %v450
        %v1117 = vunpack.c.l.b16 %v451
        %v1118 = vunpack.c.h.b16 %v451
        %v1119 = vunpack.c.l.b16 %v452
        %v1120 = vunpack.c.h.b16 %v452
        %v1121 = vunpack.c.l.b16 %v453
        %v1122 = vunpack.c.h.b16 %v453
        %v1123 = vunpack.c.l.b16 %v454
        %v1124 = vunpack.c.h.b16 %v454
        %v1125 = vunpack.c.l.b16 %v455
        %v1126 = vunpack.c.h.b16 %v455
        %v1127 = vunpack.c.l.b16 %v456
        %v1128 = vunpack.c.h.b16 %v456
        %v1129 = vunpack.c.l.b16 %v457
        %v1130 = vunpack.c.h.b16 %v457
        %v1131 = vunpack.c.l.b16 %v458
        %v1132 = vunpack.c.h.b16 %v458
        %v1133 = vunpack.c.l.b16 %v459
        %v1134 = vunpack.c.h.b16 %v459
        %v1135 = vunpack.c.l.b16 %v460
        %v1136 = vunpack.c.h.b16 %v460
        %v1137 = vunpack.c.l.b16 %v461
        %v1138 = vunpack.c.h.b16 %v461
        %v1139 = vunpack.c.l.b16 %v462
        %v1140 = vunpack.c.h.b16 %v462
        %v1141 = vunpack.c.l.b16 %v463
        %v1142 = vunpack.c.h.b16 %v463
        %v1143 = vunpack.c.l.b16 %v464
        %v1144 = vunpack.c.h.b16 %v464
        %v1145 = vunpack.c.l.b16 %v465
        %v1146 = vunpack.c.h.b16 %v465
        %v1147 = vunpack.c.l.b16 %v466
        %v1148 = vunpack.c.h.b16 %v466
        %v1149 = vunpack.c.l.b16 %v467
        %v1150 = vunpack.c.h.b16 %v467
        %v1151 = vunpack.c.l.b16 %v468
        %v1152 = vunpack.c.h.b16 %v468
        %v1153 = vunpack.c.l.b16 %v469
        %v1154 = vunpack.c.h.b16 %v469
        %v1155 = vunpack.c.l.b16 %v470
        %v1156 = vunpack.c.h.b16 %v470
        %v1157 = vunpack.c.l.b16 %v471
        %v1158 = vunpack.c.h.b16 %v471
        %v1159 = vunpack.c.l.b16 %v472
        %v1160 = vunpack.c.h.b16 %v472
        %v1161 = vunpack.c.l.b16 %v473
        %v1162 = vunpack.c.h.b16 %v473
        %v1163 = vunpack.c.l.b16 %v474
        %v1164 = vunpack.c.h.b16 %v474
        %v1165 = vunpack.c.l.b16 %v475
        %v1166 = vunpack.c.h.b16 %v475
        %v1167 = vunpack.c.l.b16 %v476
        %v1168 = vunpack.c.h.b16 %v476
        %v1169 = vunpack.c.l.b16 %v477
        %v1170 = vunpack.c.h.b16 %v477
        %v1171 = vunpack.c.l.b16 %v478
        %v1172 = vunpack.c.h.b16 %v478
        %v1173 = vunpack.c.l.b16 %v479
        %v1174 = vunpack.c.h.b16 %v479
        %v1175 = vunpack.c.l.b16 %v480
        %v1176 = vunpack.c.h.b16 %v480
        %v1177 = vunpack.c.l.b16 %v481
        %v1178 = vunpack.c.h.b16 %v481
        %v1179 = vunpack.c.l.b16 %v482
        %v1180 = vunpack.c.h.b16 %v482
        %v1181 = vunpack.c.l.b16 %v483
        %v1182 = vunpack.c.h.b16 %v483
        %v1183 = vunpack.c.l.b16 %v484
        %v1184 = vunpack.c.h.b16 %v484
        %v1185 = vunpack.c.l.b16 %v485
        %v1186 = vunpack.c.h.b16 %v485
        %v1187 = vunpack.c.l.b16 %v486
        %v1188 = vunpack.c.h.b16 %v486
        %v1189 = vunpack.c.l.b16 %v487
        %v1190 = vunpack.c.h.b16 %v487
        %v1191 = vunpack.c.l.b16 %v488
        %v1192 = vunpack.c.h.b16 %v488
        %v1193 = vunpack.c.l.b16 %v489
        %v1194 = vunpack.c.h.b16 %v489
        %v1195 = vunpack.c.l.b16 %v490
        %v1196 = vunpack.c.h.b16 %v490
        %v1197 = vunpack.c.l.b16 %v491
        %v1198 = vunpack.c.h.b16 %v491
        %v1199 = vunpack.c.l.b16 %v492
        %v1200 = vunpack.c.h.b16 %v492
        %v1201 = vunpack.c.l.b16 %v493
        %v1202 = vunpack.c.h.b16 %v493
        %v1203 = vunpack.c.l.b16 %v494
        %v1204 = vunpack.c.h.b16 %v494
        %v1205 = vunpack.c.l.b16 %v495
        %v1206 = vunpack.c.h.b16 %v495
        %v1207 = vunpack.c.l.b16 %v496
        %v1208 = vunpack.c.h.b16 %v496
        %v1209 = vunpack.c.l.b16 %v497
        %v1210 = vunpack.c.h.b16 %v497
        %v1211 = vunpack.c.l.b16 %v498
        %v1212 = vunpack.c.h.b16 %v498
        %v1213 = vunpack.c.l.b16 %v499
        %v1214 = vunpack.c.h.b16 %v499
        %v1215 = vunpack.c.l.b16 %v500
        %v1216 = vunpack.c.h.b16 %v500
        %v1217 = vunpack.c.l.b16 %v501
        %v1218 = vunpack.c.h.b16 %v501
        %v1219 = vunpack.c.l.b16 %v502
        %v1220 = vunpack.c.h.b16 %v502
        %v1221 = vunpack.c.l.b16 %v503
        %v1222 = vunpack.c.h.b16 %v503
        %v1223 = vunpack.c.l.b16 %v504
        %v1224 = vunpack.c.h.b16 %v504
        %v1225 = vunpack.c.l.b16 %v505
        %v1226 = vunpack.c.h.b16 %v505
        %v1227 = vunpack.c.l.b16 %v506
        %v1228 = vunpack.c.h.b16 %v506
        %v1229 = vunpack.c.l.b16 %v507
        %v1230 = vunpack.c.h.b16 %v507
        %v1231 = vunpack.c.l.b16 %v508
        %v1232 = vunpack.c.h.b16 %v508
        %v1233 = vunpack.c.l.b16 %v509
        %v1234 = vunpack.c.h.b16 %v509
        %v1235 = vunpack.c.l.b16 %v510
        %v1236 = vunpack.c.h.b16 %v510
        %v1237 = vunpack.c.l.b16 %v511
        %v1238 = vunpack.c.h.b16 %v511
        %v1239 = vunpack.c.l.b16 %v512
        %v1240 = vunpack.c.h.b16 %v512
        %v1241 = vunpack.c.l.b16 %v513
        %v1242 = vunpack.c.h.b16 %v513
        %v1243 = vunpack.c.l.b16 %v514
        %v1244 = vunpack.c.h.b16 %v514
        %v1245 = vunpack.c.l.b16 %v515
        %v1246 = vunpack.c.h.b16 %v515
        %v1247 = vunpack.c.l.b16 %v516
        %v1248 = vunpack.c.h.b16 %v516
        %v1249 = vunpack.c.l.b16 %v517
        %v1250 = vunpack.c.h.b16 %v517
        %v1251 = vunpack.c.l.b16 %v518
        %v1252 = vunpack.c.h.b16 %v518
        %v1253 = vunpack.c.l.b16 %v519
        %v1254 = vunpack.c.h.b16 %v519
        %v1255 = vunpack.c.l.b16 %v520
        %v1256 = vunpack.c.h.b16 %v520
        %v1257 = vunpack.c.l.b16 %v521
        %v1258 = vunpack.c.h.b16 %v521
        %v1259 = vunpack.c.l.b16 %v522
        %v1260 = vunpack.c.h.b16 %v522
        %v1261 = vunpack.c.l.b16 %v523
        %v1262 = vunpack.c.h.b16 %v523
        %v1263 = vunpack.c.l.b16 %v524
        %v1264 = vunpack.c.h.b16 %v524
        %v1265 = vunpack.c.l.b16 %v525
        %v1266 = vunpack.c.h.b16 %v525
        %v1267 = vunpack.c.l.b16 %v526
        %v1268 = vunpack.c.h.b16 %v526
        %v1269 = vunpack.c.l.b16 %v527
        %v1270 = vunpack.c.h.b16 %v527
        %v1271 = vunpack.c.l.b16 %v528
        %v1272 = vunpack.c.h.b16 %v528
        %v1273 = vunpack.c.l.b16 %v529
        %v1274 = vunpack.c.h.b16 %v529
        %v1275 = vunpack.c.l.b16 %v530
        %v1276 = vunpack.c.h.b16 %v530
        %v1277 = vunpack.c.l.b16 %v531
        %v1278 = vunpack.c.h.b16 %v531
        %v1279 = vunpack.c.l.b16 %v532
        %v1280 = vunpack.c.h.b16 %v532
        %v1281 = vunpack.c.l.b16 %v533
        %v1282 = vunpack.c.h.b16 %v533
        %v1283 = vunpack.c.l.b16 %v534
        %v1284 = vunpack.c.h.b16 %v534
        %v1285 = vunpack.c.l.b16 %v535
        %v1286 = vunpack.c.h.b16 %v535
        %v1287 = vunpack.c.l.b16 %v536
        %v1288 = vunpack.c.h.b16 %v536
        %v1289 = vunpack.c.l.b16 %v537
        %v1290 = vunpack.c.h.b16 %v537
        %v1291 = vunpack.c.l.b16 %v538
        %v1292 = vunpack.c.h.b16 %v538
        %v1293 = vunpack.c.l.b16 %v539
        %v1294 = vunpack.c.h.b16 %v539
        %v1295 = vunpack.c.l.b16 %v540
        %v1296 = vunpack.c.h.b16 %v540
        %v1297 = vunpack.c.l.b16 %v541
        %v1298 = vunpack.c.h.b16 %v541
        %v1299 = vunpack.c.l.b16 %v542
        %v1300 = vunpack.c.h.b16 %v542
        %v1301 = vunpack.c.l.b16 %v543
        %v1302 = vunpack.c.h.b16 %v543
        %v1303 = vunpack.c.l.b16 %v544
        %v1304 = vunpack.c.h.b16 %v544
        %v1305 = vunpack.c.l.b16 %v545
        %v1306 = vunpack.c.h.b16 %v545
        %v1307 = vunpack.c.l.b16 %v546
        %v1308 = vunpack.c.h.b16 %v546
        %v1309 = vunpack.c.l.b16 %v547
        %v1310 = vunpack.c.h.b16 %v547
        %v1311 = vunpack.c.l.b16 %v548
        %v1312 = vunpack.c.h.b16 %v548
        %v1313 = vunpack.c.l.b16 %v549
        %v1314 = vunpack.c.h.b16 %v549
        %v1315 = vunpack.c.l.b16 %v550
        %v1316 = vunpack.c.h.b16 %v550
        %v1317 = vunpack.c.l.b16 %v551
        %v1318 = vunpack.c.h.b16 %v551
        %v1319 = vunpack.c.l.b16 %v552
        %v1320 = vunpack.c.h.b16 %v552
        %v1321 = vunpack.c.l.b16 %v553
        %v1322 = vunpack.c.h.b16 %v553
        %v1323 = vunpack.c.l.b16 %v554
        %v1324 = vunpack.c.h.b16 %v554
        %v1325 = vunpack.c.l.b16 %v555
        %v1326 = vunpack.c.h.b16 %v555
        %v1327 = vunpack.c.l.b16 %v556
        %v1328 = vunpack.c.h.b16 %v556
        %v1329 = vunpack.c.l.b16 %v557
        %v1330 = vunpack.c.h.b16 %v557
        %v1331 = vunpack.c.l.b16 %v558
        %v1332 = vunpack.c.h.b16 %v558
        %v1333 = vunpack.c.l.b16 %v559
        %v1334 = vunpack.c.h.b16 %v559
        %v1335 = vunpack.c.l.b16 %v560
        %v1336 = vunpack.c.h.b16 %v560
        %v1337 = vunpack.c.l.b16 %v561
        %v1338 = vunpack.c.h.b16 %v561
        %v1339 = vunpack.c.l.b16 %v562
        %v1340 = vunpack.c.h.b16 %v562
        %v1341 = vpack.c.b16 %v837, %v829
        %v1342 = vpack.c.b16 %v838, %v830
        %v1343 = vpack.c.b16 %v839, %v831
        %v1344 = vpack.c.b16 %v840, %v832
        %v1345 = vpack.c.b16 %v841, %v833
        %v1346 = vpack.c.b16 %v842, %v834
        %v1347 = vpack.c.b16 %v843, %v835
        %v1348 = vpack.c.b16 %v844, %v836
        %v1349 = vpack.c.b16 %v853, %v845
        %v1350 = vpack.c.b16 %v854, %v846
        %v1351 = vpack.c.b16 %v855, %v847
        %v1352 = vpack.c.b16 %v856, %v848
        %v1353 = vpack.c.b16 %v857, %v849
        %v1354 = vpack.c.b16 %v858, %v850
        %v1355 = vpack.c.b16 %v859, %v851
        %v1356 = vpack.c.b16 %v860, %v852
        %v1357 = vpack.c.b16 %v869, %v861
        %v1358 = vpack.c.b16 %v870, %v862
        %v1359 = vpack.c.b16 %v871, %v863
        %v1360 = vpack.c.b16 %v872, %v864
        %v1361 = vpack.c.b16 %v873, %v865
        %v1362 = vpack.c.b16 %v874, %v866
        %v1363 = vpack.c.b16 %v875, %v867
        %v1364 = vpack.c.b16 %v876, %v868
        %v1365 = vpack.c.b16 %v885, %v877
        %v1366 = vpack.c.b16 %v886, %v878
        %v1367 = vpack.c.b16 %v887, %v879
        %v1368 = vpack.c.b16 %v888, %v880
        %v1369 = vpack.c.b16 %v889, %v881
        %v1370 = vpack.c.b16 %v890, %v882
        %v1371 = vpack.c.b16 %v891, %v883
        %v1372 = vpack.c.b16 %v892, %v884
        %v1373 = vpack.c.b16 %v901, %v893
        %v1374 = vpack.c.b16 %v902, %v894
        %v1375 = vpack.c.b16 %v903, %v895
        %v1376 = vpack.c.b16 %v904, %v896
        %v1377 = vpack.c.b16 %v905, %v897
        %v1378 = vpack.c.b16 %v906, %v898
        %v1379 = vpack.c.b16 %v907, %v899
        %v1380 = vpack.c.b16 %v908, %v900
        %v1381 = vpack.c.b16 %v917, %v909
        %v1382 = vpack.c.b16 %v918, %v910
        %v1383 = vpack.c.b16 %v919, %v911
        %v1384 = vpack.c.b16 %v920, %v912
        %v1385 = vpack.c.b16 %v921, %v913
        %v1386 = vpack.c.b16 %v922, %v914
        %v1387 = vpack.c.b16 %v923, %v915
        %v1388 = vpack.c.b16 %v924, %v916
        %v1389 = vpack.c.b16 %v933, %v925
        %v1390 = vpack.c.b16 %v934, %v926
        %v1391 = vpack.c.b16 %v935, %v927
        %v1392 = vpack.c.b16 %v936, %v928
        %v1393 = vpack.c.b16 %v937, %v929
        %v1394 = vpack.c.b16 %v938, %v930
        %v1395 = vpack.c.b16 %v939, %v931
        %v1396 = vpack.c.b16 %v940, %v932
        %v1397 = vpack.c.b16 %v949, %v941
        %v1398 = vpack.c.b16 %v950, %v942
        %v1399 = vpack.c.b16 %v951, %v943
        %v1400 = vpack.c.b16 %v952, %v944
        %v1401 = vpack.c.b16 %v953, %v945
        %v1402 = vpack.c.b16 %v954, %v946
        %v1403 = vpack.c.b16 %v955, %v947
        %v1404 = vpack.c.b16 %v956, %v948
        %v1405 = vpack.c.b16 %v965, %v957
        %v1406 = vpack.c.b16 %v966, %v958
        %v1407 = vpack.c.b16 %v967, %v959
        %v1408 = vpack.c.b16 %v968, %v960
        %v1409 = vpack.c.b16 %v969, %v961
        %v1410 = vpack.c.b16 %v970, %v962
        %v1411 = vpack.c.b16 %v971, %v963
        %v1412 = vpack.c.b16 %v972, %v964
        %v1413 = vpack.c.b16 %v981, %v973
        %v1414 = vpack.c.b16 %v982, %v974
        %v1415 = vpack.c.b16 %v983, %v975
        %v1416 = vpack.c.b16 %v984, %v976
        %v1417 = vpack.c.b16 %v985, %v977
        %v1418 = vpack.c.b16 %v986, %v978
        %v1419 = vpack.c.b16 %v987, %v979
        %v1420 = vpack.c.b16 %v988, %v980
        %v1421 = vpack.c.b16 %v997, %v989
        %v1422 = vpack.c.b16 %v998, %v990
        %v1423 = vpack.c.b16 %v999, %v991
        %v1424 = vpack.c.b16 %v1000, %v992
        %v1425 = vpack.c.b16 %v1001, %v993
        %v1426 = vpack.c.b16 %v1002, %v994
        %v1427 = vpack.c.b16 %v1003, %v995
        %v1428 = vpack.c.b16 %v1004, %v996
        %v1429 = vpack.c.b16 %v1013, %v1005
        %v1430 = vpack.c.b16 %v1014, %v1006
        %v1431 = vpack.c.b16 %v1015, %v1007
        %v1432 = vpack.c.b16 %v1016, %v1008
        %v1433 = vpack.c.b16 %v1017, %v1009
        %v1434 = vpack.c.b16 %v1018, %v1010
        %v1435 = vpack.c.b16 %v1019, %v1011
        %v1436 = vpack.c.b16 %v1020, %v1012
        %v1437 = vpack.c.b16 %v1029, %v1021
        %v1438 = vpack.c.b16 %v1030, %v1022
        %v1439 = vpack.c.b16 %v1031, %v1023
        %v1440 = vpack.c.b16 %v1032, %v1024
        %v1441 = vpack.c.b16 %v1033, %v1025
        %v1442 = vpack.c.b16 %v1034, %v1026
        %v1443 = vpack.c.b16 %v1035, %v1027
        %v1444 = vpack.c.b16 %v1036, %v1028
        %v1445 = vpack.c.b16 %v1045, %v1037
        %v1446 = vpack.c.b16 %v1046, %v1038
        %v1447 = vpack.c.b16 %v1047, %v1039
        %v1448 = vpack.c.b16 %v1048, %v1040
        %v1449 = vpack.c.b16 %v1049, %v1041
        %v1450 = vpack.c.b16 %v1050, %v1042
        %v1451 = vpack.c.b16 %v1051, %v1043
        %v1452 = vpack.c.b16 %v1052, %v1044
        %v1453 = vpack.c.b16 %v1061, %v1053
        %v1454 = vpack.c.b16 %v1062, %v1054
        %v1455 = vpack.c.b16 %v1063, %v1055
        %v1456 = vpack.c.b16 %v1064, %v1056
        %v1457 = vpack.c.b16 %v1065, %v1057
        %v1458 = vpack.c.b16 %v1066, %v1058
        %v1459 = vpack.c.b16 %v1067, %v1059
        %v1460 = vpack.c.b16 %v1068, %v1060
        %v1461 = vpack.c.b16 %v1077, %v1069
        %v1462 = vpack.c.b16 %v1078, %v1070
        %v1463 = vpack.c.b16 %v1079, %v1071
        %v1464 = vpack.c.b16 %v1080, %v1072
        %v1465 = vpack.c.b16 %v1081, %v1073
        %v1466 = vpack.c.b16 %v1082, %v1074
        %v1467 = vpack.c.b16 %v1083, %v1075
        %v1468 = vpack.c.b16 %v1084, %v1076
        %v1469 = vpack.c.b16 %v1093, %v1085
        %v1470 = vpack.c.b16 %v1094, %v1086
        %v1471 = vpack.c.b16 %v1095, %v1087
        %v1472 = vpack.c.b16 %v1096, %v1088
        %v1473 = vpack.c.b16 %v1097, %v1089
        %v1474 = vpack.c.b16 %v1098, %v1090
        %v1475 = vpack.c.b16 %v1099, %v1091
        %v1476 = vpack.c.b16 %v1100, %v1092
        %v1477 = vpack.c.b16 %v1109, %v1101
        %v1478 = vpack.c.b16 %v1110, %v1102
        %v1479 = vpack.c.b16 %v1111, %v1103
        %v1480 = vpack.c.b16 %v1112, %v1104
        %v1481 = vpack.c.b16 %v1113, %v1105
        %v1482 = vpack.c.b16 %v1114, %v1106
        %v1483 = vpack.c.b16 %v1115, %v1107
        %v1484 = vpack.c.b16 %v1116, %v1108
        %v1485 = vpack.c.b16 %v1125, %v1117
        %v1486 = vpack.c.b16 %v1126, %v1118
        %v1487 = vpack.c.b16 %v1127, %v1119
        %v1488 = vpack.c.b16 %v1128, %v1120
        %v1489 = vpack.c.b16 %v1129, %v1121
        %v1490 = vpack.c.b16 %v1130, %v1122
        %v1491 = vpack.c.b16 %v1131, %v1123
        %v1492 = vpack.c.b16 %v1132, %v1124
        %v1493 = vpack.c.b16 %v1141, %v1133
        %v1494 = vpack.c.b16 %v1142, %v1134
        %v1495 = vpack.c.b16 %v1143, %v1135
        %v1496 = vpack.c.b16 %v1144, %v1136
        %v1497 = vpack.c.b16 %v1145, %v1137
        %v1498 = vpack.c.b16 %v1146, %v1138
        %v1499 = vpack.c.b16 %v1147, %v1139
        %v1500 = vpack.c.b16 %v1148, %v1140
        %v1501 = vpack.c.b16 %v1157, %v1149
        %v1502 = vpack.c.b16 %v1158, %v1150
        %v1503 = vpack.c.b16 %v1159, %v1151
        %v1504 = vpack.c.b16 %v1160, %v1152
        %v1505 = vpack.c.b16 %v1161, %v1153
        %v1506 = vpack.c.b16 %v1162, %v1154
        %v1507 = vpack.c.b16 %v1163, %v1155
        %v1508 = vpack.c.b16 %v1164, %v1156
        %v1509 = vpack.c.b16 %v1173, %v1165
        %v1510 = vpack.c.b16 %v1174, %v1166
        %v1511 = vpack.c.b16 %v1175, %v1167
        %v1512 = vpack.c.b16 %v1176, %v1168
        %v1513 = vpack.c.b16 %v1177, %v1169
        %v1514 = vpack.c.b16 %v1178, %v1170
        %v1515 = vpack.c.b16 %v1179, %v1171
        %v1516 = vpack.c.b16 %v1180, %v1172
        %v1517 = vpack.c.b16 %v1189, %v1181
        %v1518 = vpack.c.b16 %v1190, %v1182
        %v1519 = vpack.c.b16 %v1191, %v1183
        %v1520 = vpack.c.b16 %v1192, %v1184
        %v1521 = vpack.c.b16 %v1193, %v1185
        %v1522 = vpack.c.b16 %v1194, %v1186
        %v1523 = vpack.c.b16 %v1195, %v1187
        %v1524 = vpack.c.b16 %v1196, %v1188
        %v1525 = vpack.c.b16 %v1205, %v1197
        %v1526 = vpack.c.b16 %v1206, %v1198
        %v1527 = vpack.c.b16 %v1207, %v1199
        %v1528 = vpack.c.b16 %v1208, %v1200
        %v1529 = vpack.c.b16 %v1209, %v1201
        %v1530 = vpack.c.b16 %v1210, %v1202
        %v1531 = vpack.c.b16 %v1211, %v1203
        %v1532 = vpack.c.b16 %v1212, %v1204
        %v1533 = vpack.c.b16 %v1221, %v1213
        %v1534 = vpack.c.b16 %v1222, %v1214
        %v1535 = vpack.c.b16 %v1223, %v1215
        %v1536 = vpack.c.b16 %v1224, %v1216
        %v1537 = vpack.c.b16 %v1225, %v1217
        %v1538 = vpack.c.b16 %v1226, %v1218
        %v1539 = vpack.c.b16 %v1227, %v1219
        %v1540 = vpack.c.b16 %v1228, %v1220
        %v1541 = vpack.c.b16 %v1237, %v1229
        %v1542 = vpack.c.b16 %v1238, %v1230
        %v1543 = vpack.c.b16 %v1239, %v1231
        %v1544 = vpack.c.b16 %v1240, %v1232
        %v1545 = vpack.c.b16 %v1241, %v1233
        %v1546 = vpack.c.b16 %v1242, %v1234
        %v1547 = vpack.c.b16 %v1243, %v1235
        %v1548 = vpack.c.b16 %v1244, %v1236
        %v1549 = vpack.c.b16 %v1253, %v1245
        %v1550 = vpack.c.b16 %v1254, %v1246
        %v1551 = vpack.c.b16 %v1255, %v1247
        %v1552 = vpack.c.b16 %v1256, %v1248
        %v1553 = vpack.c.b16 %v1257, %v1249
        %v1554 = vpack.c.b16 %v1258, %v1250
        %v1555 = vpack.c.b16 %v1259, %v1251
        %v1556 = vpack.c.b16 %v1260, %v1252
        %v1557 = vpack.c.b16 %v1269, %v1261
        %v1558 = vpack.c.b16 %v1270, %v1262
        %v1559 = vpack.c.b16 %v1271, %v1263
        %v1560 = vpack.c.b16 %v1272, %v1264
        %v1561 = vpack.c.b16 %v1273, %v1265
        %v1562 = vpack.c.b16 %v1274, %v1266
        %v1563 = vpack.c.b16 %v1275, %v1267
        %v1564 = vpack.c.b16 %v1276, %v1268
        %v1565 = vpack.c.b16 %v1285, %v1277
        %v1566 = vpack.c.b16 %v1286, %v1278
        %v1567 = vpack.c.b16 %v1287, %v1279
        %v1568 = vpack.c.b16 %v1288, %v1280
        %v1569 = vpack.c.b16 %v1289, %v1281
        %v1570 = vpack.c.b16 %v1290, %v1282
        %v1571 = vpack.c.b16 %v1291, %v1283
        %v1572 = vpack.c.b16 %v1292, %v1284
        %v1573 = vpack.c.b16 %v1301, %v1293
        %v1574 = vpack.c.b16 %v1302, %v1294
        %v1575 = vpack.c.b16 %v1303, %v1295
        %v1576 = vpack.c.b16 %v1304, %v1296
        %v1577 = vpack.c.b16 %v1305, %v1297
        %v1578 = vpack.c.b16 %v1306, %v1298
        %v1579 = vpack.c.b16 %v1307, %v1299
        %v1580 = vpack.c.b16 %v1308, %v1300
        %v1581 = vpack.c.b16 %v1317, %v1309
        %v1582 = vpack.c.b16 %v1318, %v1310
        %v1583 = vpack.c.b16 %v1319, %v1311
        %v1584 = vpack.c.b16 %v1320, %v1312
        %v1585 = vpack.c.b16 %v1321, %v1313
        %v1586 = vpack.c.b16 %v1322, %v1314
        %v1587 = vpack.c.b16 %v1323, %v1315
        %v1588 = vpack.c.b16 %v1324, %v1316
        %v1589 = vpack.c.b16 %v1333, %v1325
        %v1590 = vpack.c.b16 %v1334, %v1326
        %v1591 = vpack.c.b16 %v1335, %v1327
        %v1592 = vpack.c.b16 %v1336, %v1328
        %v1593 = vpack.c.b16 %v1337, %v1329
        %v1594 = vpack.c.b16 %v1338, %v1330
        %v1595 = vpack.c.b16 %v1339, %v1331
        %v1596 = vpack.c.b16 %v1340, %v1332
        %1853 = vmatpush.bf16.msra.mxu0 %v1397
        %1854 = vmatpush.bf16.msra.mxu0 %v1389
        %1855 = vmatpush.bf16.msra.mxu0 %v1381
        %1856 = vmatpush.bf16.msra.mxu0 %v1373
        %1857 = vmatpush.bf16.msra.mxu0 %v1365
        %1858 = vmatpush.bf16.msra.mxu0 %v1357
        %1859 = vmatpush.bf16.msra.mxu0 %v1349
        %1860 = vmatpush.bf16.msra.mxu0 %v1341
        %1861 = vmatmul.bf16.gmra.mxu0 %v565
        %v1862 = vpop.f32.mrf.mxu0
        %v1863 = vadd.f32 0.0, %v1862
        %v1864 = vpop.f32.mrf.mxu0
        %1865 = vdwg.mxu0
        %1866 = vmatpush.bf16.msra.mxu0 %v1461
        %1867 = vmatpush.bf16.msra.mxu0 %v1453
        %1868 = vmatpush.bf16.msra.mxu0 %v1445
        %1869 = vmatpush.bf16.msra.mxu0 %v1437
        %1870 = vmatpush.bf16.msra.mxu0 %v1429
        %1871 = vmatpush.bf16.msra.mxu0 %v1421
        %1872 = vmatpush.bf16.msra.mxu0 %v1413
        %1873 = vmatpush.bf16.msra.mxu0 %v1405
        %1874 = vmatmul.bf16.gmra.mxu0 %v566
        %v1875 = vpop.f32.mrf.mxu0
        %v1876 = vadd.f32 %v1863, %v1875
        %v1877 = vpop.f32.mrf.mxu0
        %1878 = vdwg.mxu0
        %1879 = vmatpush.bf16.msra.mxu0 %v1525
        %1880 = vmatpush.bf16.msra.mxu0 %v1517
        %1881 = vmatpush.bf16.msra.mxu0 %v1509
        %1882 = vmatpush.bf16.msra.mxu0 %v1501
        %1883 = vmatpush.bf16.msra.mxu0 %v1493
        %1884 = vmatpush.bf16.msra.mxu0 %v1485
        %1885 = vmatpush.bf16.msra.mxu0 %v1477
        %1886 = vmatpush.bf16.msra.mxu0 %v1469
        %1887 = vmatmul.bf16.gmra.mxu0 %v567
        %v1888 = vpop.f32.mrf.mxu0
        %v1889 = vadd.f32 %v1876, %v1888
        %v1890 = vpop.f32.mrf.mxu0
        %1891 = vdwg.mxu0
        %1892 = vmatpush.bf16.msra.mxu0 %v1589
        %1893 = vmatpush.bf16.msra.mxu0 %v1581
        %1894 = vmatpush.bf16.msra.mxu0 %v1573
        %1895 = vmatpush.bf16.msra.mxu0 %v1565
        %1896 = vmatpush.bf16.msra.mxu0 %v1557
        %1897 = vmatpush.bf16.msra.mxu0 %v1549
        %1898 = vmatpush.bf16.msra.mxu0 %v1541
        %1899 = vmatpush.bf16.msra.mxu0 %v1533
        %1900 = vmatmul.bf16.gmra.mxu0 %v568
        %v1901 = vpop.f32.mrf.mxu0
        %v1902 = vadd.f32 %v1889, %v1901
        %v1903 = vpop.f32.mrf.mxu0
        %1904 = vdwg.mxu0
        %1905 = vmatpush.bf16.msra.mxu0 %v1398
        %1906 = vmatpush.bf16.msra.mxu0 %v1390
        %1907 = vmatpush.bf16.msra.mxu0 %v1382
        %1908 = vmatpush.bf16.msra.mxu0 %v1374
        %1909 = vmatpush.bf16.msra.mxu0 %v1366
        %1910 = vmatpush.bf16.msra.mxu0 %v1358
        %1911 = vmatpush.bf16.msra.mxu0 %v1350
        %1912 = vmatpush.bf16.msra.mxu0 %v1342
        %1913 = vmatmul.bf16.gmra.mxu0 %v565
        %v1914 = vpop.f32.mrf.mxu0
        %v1915 = vadd.f32 0.0, %v1914
        %v1916 = vpop.f32.mrf.mxu0
        %1917 = vdwg.mxu0
        %1918 = vmatpush.bf16.msra.mxu0 %v1462
        %1919 = vmatpush.bf16.msra.mxu0 %v1454
        %1920 = vmatpush.bf16.msra.mxu0 %v1446
        %1921 = vmatpush.bf16.msra.mxu0 %v1438
        %1922 = vmatpush.bf16.msra.mxu0 %v1430
        %1923 = vmatpush.bf16.msra.mxu0 %v1422
        %1924 = vmatpush.bf16.msra.mxu0 %v1414
        %1925 = vmatpush.bf16.msra.mxu0 %v1406
        %1926 = vmatmul.bf16.gmra.mxu0 %v566
        %v1927 = vpop.f32.mrf.mxu0
        %v1928 = vadd.f32 %v1915, %v1927
        %v1929 = vpop.f32.mrf.mxu0
        %1930 = vdwg.mxu0
        %1931 = vmatpush.bf16.msra.mxu0 %v1526
        %1932 = vmatpush.bf16.msra.mxu0 %v1518
        %1933 = vmatpush.bf16.msra.mxu0 %v1510
        %1934 = vmatpush.bf16.msra.mxu0 %v1502
        %1935 = vmatpush.bf16.msra.mxu0 %v1494
        %1936 = vmatpush.bf16.msra.mxu0 %v1486
        %1937 = vmatpush.bf16.msra.mxu0 %v1478
        %1938 = vmatpush.bf16.msra.mxu0 %v1470
        %1939 = vmatmul.bf16.gmra.mxu0 %v567
        %v1940 = vpop.f32.mrf.mxu0
        %v1941 = vadd.f32 %v1928, %v1940
        %v1942 = vpop.f32.mrf.mxu0
        %1943 = vdwg.mxu0
        %1944 = vmatpush.bf16.msra.mxu0 %v1590
        %1945 = vmatpush.bf16.msra.mxu0 %v1582
        %1946 = vmatpush.bf16.msra.mxu0 %v1574
        %1947 = vmatpush.bf16.msra.mxu0 %v1566
        %1948 = vmatpush.bf16.msra.mxu0 %v1558
        %1949 = vmatpush.bf16.msra.mxu0 %v1550
        %1950 = vmatpush.bf16.msra.mxu0 %v1542
        %1951 = vmatpush.bf16.msra.mxu0 %v1534
        %1952 = vmatmul.bf16.gmra.mxu0 %v568
        %v1953 = vpop.f32.mrf.mxu0
        %v1954 = vadd.f32 %v1941, %v1953
        %v1955 = vpop.f32.mrf.mxu0
        %1956 = vdwg.mxu0
        %1957 = vmatpush.bf16.msra.mxu0 %v1399
        %1958 = vmatpush.bf16.msra.mxu0 %v1391
        %1959 = vmatpush.bf16.msra.mxu0 %v1383
        %1960 = vmatpush.bf16.msra.mxu0 %v1375
        %1961 = vmatpush.bf16.msra.mxu0 %v1367
        %1962 = vmatpush.bf16.msra.mxu0 %v1359
        %1963 = vmatpush.bf16.msra.mxu0 %v1351
        %1964 = vmatpush.bf16.msra.mxu0 %v1343
        %1965 = vmatmul.bf16.gmra.mxu0 %v565
        %v1966 = vpop.f32.mrf.mxu0
        %v1967 = vadd.f32 0.0, %v1966
        %v1968 = vpop.f32.mrf.mxu0
        %1969 = vdwg.mxu0
        %1970 = vmatpush.bf16.msra.mxu0 %v1463
        %1971 = vmatpush.bf16.msra.mxu0 %v1455
        %1972 = vmatpush.bf16.msra.mxu0 %v1447
        %1973 = vmatpush.bf16.msra.mxu0 %v1439
        %1974 = vmatpush.bf16.msra.mxu0 %v1431
        %1975 = vmatpush.bf16.msra.mxu0 %v1423
        %1976 = vmatpush.bf16.msra.mxu0 %v1415
        %1977 = vmatpush.bf16.msra.mxu0 %v1407
        %1978 = vmatmul.bf16.gmra.mxu0 %v566
        %v1979 = vpop.f32.mrf.mxu0
        %v1980 = vadd.f32 %v1967, %v1979
        %v1981 = vpop.f32.mrf.mxu0
        %1982 = vdwg.mxu0
        %1983 = vmatpush.bf16.msra.mxu0 %v1527
        %1984 = vmatpush.bf16.msra.mxu0 %v1519
        %1985 = vmatpush.bf16.msra.mxu0 %v1511
        %1986 = vmatpush.bf16.msra.mxu0 %v1503
        %1987 = vmatpush.bf16.msra.mxu0 %v1495
        %1988 = vmatpush.bf16.msra.mxu0 %v1487
        %1989 = vmatpush.bf16.msra.mxu0 %v1479
        %1990 = vmatpush.bf16.msra.mxu0 %v1471
        %1991 = vmatmul.bf16.gmra.mxu0 %v567
        %v1992 = vpop.f32.mrf.mxu0
        %v1993 = vadd.f32 %v1980, %v1992
        %v1994 = vpop.f32.mrf.mxu0
        %1995 = vdwg.mxu0
        %1996 = vmatpush.bf16.msra.mxu0 %v1591
        %1997 = vmatpush.bf16.msra.mxu0 %v1583
        %1998 = vmatpush.bf16.msra.mxu0 %v1575
        %1999 = vmatpush.bf16.msra.mxu0 %v1567
        %2000 = vmatpush.bf16.msra.mxu0 %v1559
        %2001 = vmatpush.bf16.msra.mxu0 %v1551
        %2002 = vmatpush.bf16.msra.mxu0 %v1543
        %2003 = vmatpush.bf16.msra.mxu0 %v1535
        %2004 = vmatmul.bf16.gmra.mxu0 %v568
        %v2005 = vpop.f32.mrf.mxu0
        %v2006 = vadd.f32 %v1993, %v2005
        %v2007 = vpop.f32.mrf.mxu0
        %2008 = vdwg.mxu0
        %2009 = vmatpush.bf16.msra.mxu0 %v1400
        %2010 = vmatpush.bf16.msra.mxu0 %v1392
        %2011 = vmatpush.bf16.msra.mxu0 %v1384
        %2012 = vmatpush.bf16.msra.mxu0 %v1376
        %2013 = vmatpush.bf16.msra.mxu0 %v1368
        %2014 = vmatpush.bf16.msra.mxu0 %v1360
        %2015 = vmatpush.bf16.msra.mxu0 %v1352
        %2016 = vmatpush.bf16.msra.mxu0 %v1344
        %2017 = vmatmul.bf16.gmra.mxu0 %v565
        %v2018 = vpop.f32.mrf.mxu0
        %v2019 = vadd.f32 0.0, %v2018
        %v2020 = vpop.f32.mrf.mxu0
        %2021 = vdwg.mxu0
        %2022 = vmatpush.bf16.msra.mxu0 %v1464
        %2023 = vmatpush.bf16.msra.mxu0 %v1456
        %2024 = vmatpush.bf16.msra.mxu0 %v1448
        %2025 = vmatpush.bf16.msra.mxu0 %v1440
        %2026 = vmatpush.bf16.msra.mxu0 %v1432
        %2027 = vmatpush.bf16.msra.mxu0 %v1424
        %2028 = vmatpush.bf16.msra.mxu0 %v1416
        %2029 = vmatpush.bf16.msra.mxu0 %v1408
        %2030 = vmatmul.bf16.gmra.mxu0 %v566
        %v2031 = vpop.f32.mrf.mxu0
        %v2032 = vadd.f32 %v2019, %v2031
        %v2033 = vpop.f32.mrf.mxu0
        %2034 = vdwg.mxu0
        %2035 = vmatpush.bf16.msra.mxu0 %v1528
        %2036 = vmatpush.bf16.msra.mxu0 %v1520
        %2037 = vmatpush.bf16.msra.mxu0 %v1512
        %2038 = vmatpush.bf16.msra.mxu0 %v1504
        %2039 = vmatpush.bf16.msra.mxu0 %v1496
        %2040 = vmatpush.bf16.msra.mxu0 %v1488
        %2041 = vmatpush.bf16.msra.mxu0 %v1480
        %2042 = vmatpush.bf16.msra.mxu0 %v1472
        %2043 = vmatmul.bf16.gmra.mxu0 %v567
        %v2044 = vpop.f32.mrf.mxu0
        %v2045 = vadd.f32 %v2032, %v2044
        %v2046 = vpop.f32.mrf.mxu0
        %2047 = vdwg.mxu0
        %2048 = vmatpush.bf16.msra.mxu0 %v1592
        %2049 = vmatpush.bf16.msra.mxu0 %v1584
        %2050 = vmatpush.bf16.msra.mxu0 %v1576
        %2051 = vmatpush.bf16.msra.mxu0 %v1568
        %2052 = vmatpush.bf16.msra.mxu0 %v1560
        %2053 = vmatpush.bf16.msra.mxu0 %v1552
        %2054 = vmatpush.bf16.msra.mxu0 %v1544
        %2055 = vmatpush.bf16.msra.mxu0 %v1536
        %2056 = vmatmul.bf16.gmra.mxu0 %v568
        %v2057 = vpop.f32.mrf.mxu0
        %v2058 = vadd.f32 %v2045, %v2057
        %v2059 = vpop.f32.mrf.mxu0
        %2060 = vdwg.mxu0
        %2061 = vmatpush.bf16.msra.mxu0 %v1401
        %2062 = vmatpush.bf16.msra.mxu0 %v1393
        %2063 = vmatpush.bf16.msra.mxu0 %v1385
        %2064 = vmatpush.bf16.msra.mxu0 %v1377
        %2065 = vmatpush.bf16.msra.mxu0 %v1369
        %2066 = vmatpush.bf16.msra.mxu0 %v1361
        %2067 = vmatpush.bf16.msra.mxu0 %v1353
        %2068 = vmatpush.bf16.msra.mxu0 %v1345
        %2069 = vmatmul.bf16.gmra.mxu0 %v565
        %v2070 = vpop.f32.mrf.mxu0
        %v2071 = vadd.f32 0.0, %v2070
        %v2072 = vpop.f32.mrf.mxu0
        %2073 = vdwg.mxu0
        %2074 = vmatpush.bf16.msra.mxu0 %v1465
        %2075 = vmatpush.bf16.msra.mxu0 %v1457
        %2076 = vmatpush.bf16.msra.mxu0 %v1449
        %2077 = vmatpush.bf16.msra.mxu0 %v1441
        %2078 = vmatpush.bf16.msra.mxu0 %v1433
        %2079 = vmatpush.bf16.msra.mxu0 %v1425
        %2080 = vmatpush.bf16.msra.mxu0 %v1417
        %2081 = vmatpush.bf16.msra.mxu0 %v1409
        %2082 = vmatmul.bf16.gmra.mxu0 %v566
        %v2083 = vpop.f32.mrf.mxu0
        %v2084 = vadd.f32 %v2071, %v2083
        %v2085 = vpop.f32.mrf.mxu0
        %2086 = vdwg.mxu0
        %2087 = vmatpush.bf16.msra.mxu0 %v1529
        %2088 = vmatpush.bf16.msra.mxu0 %v1521
        %2089 = vmatpush.bf16.msra.mxu0 %v1513
        %2090 = vmatpush.bf16.msra.mxu0 %v1505
        %2091 = vmatpush.bf16.msra.mxu0 %v1497
        %2092 = vmatpush.bf16.msra.mxu0 %v1489
        %2093 = vmatpush.bf16.msra.mxu0 %v1481
        %2094 = vmatpush.bf16.msra.mxu0 %v1473
        %2095 = vmatmul.bf16.gmra.mxu0 %v567
        %v2096 = vpop.f32.mrf.mxu0
        %v2097 = vadd.f32 %v2084, %v2096
        %v2098 = vpop.f32.mrf.mxu0
        %2099 = vdwg.mxu0
        %2100 = vmatpush.bf16.msra.mxu0 %v1593
        %2101 = vmatpush.bf16.msra.mxu0 %v1585
        %2102 = vmatpush.bf16.msra.mxu0 %v1577
        %2103 = vmatpush.bf16.msra.mxu0 %v1569
        %2104 = vmatpush.bf16.msra.mxu0 %v1561
        %2105 = vmatpush.bf16.msra.mxu0 %v1553
        %2106 = vmatpush.bf16.msra.mxu0 %v1545
        %2107 = vmatpush.bf16.msra.mxu0 %v1537
        %2108 = vmatmul.bf16.gmra.mxu0 %v568
        %v2109 = vpop.f32.mrf.mxu0
        %v2110 = vadd.f32 %v2097, %v2109
        %v2111 = vpop.f32.mrf.mxu0
        %2112 = vdwg.mxu0
        %2113 = vmatpush.bf16.msra.mxu0 %v1402
        %2114 = vmatpush.bf16.msra.mxu0 %v1394
        %2115 = vmatpush.bf16.msra.mxu0 %v1386
        %2116 = vmatpush.bf16.msra.mxu0 %v1378
        %2117 = vmatpush.bf16.msra.mxu0 %v1370
        %2118 = vmatpush.bf16.msra.mxu0 %v1362
        %2119 = vmatpush.bf16.msra.mxu0 %v1354
        %2120 = vmatpush.bf16.msra.mxu0 %v1346
        %2121 = vmatmul.bf16.gmra.mxu0 %v565
        %v2122 = vpop.f32.mrf.mxu0
        %v2123 = vadd.f32 0.0, %v2122
        %v2124 = vpop.f32.mrf.mxu0
        %2125 = vdwg.mxu0
        %2126 = vmatpush.bf16.msra.mxu0 %v1466
        %2127 = vmatpush.bf16.msra.mxu0 %v1458
        %2128 = vmatpush.bf16.msra.mxu0 %v1450
        %2129 = vmatpush.bf16.msra.mxu0 %v1442
        %2130 = vmatpush.bf16.msra.mxu0 %v1434
        %2131 = vmatpush.bf16.msra.mxu0 %v1426
        %2132 = vmatpush.bf16.msra.mxu0 %v1418
        %2133 = vmatpush.bf16.msra.mxu0 %v1410
        %2134 = vmatmul.bf16.gmra.mxu0 %v566
        %v2135 = vpop.f32.mrf.mxu0
        %v2136 = vadd.f32 %v2123, %v2135
        %v2137 = vpop.f32.mrf.mxu0
        %2138 = vdwg.mxu0
        %2139 = vmatpush.bf16.msra.mxu0 %v1530
        %2140 = vmatpush.bf16.msra.mxu0 %v1522
        %2141 = vmatpush.bf16.msra.mxu0 %v1514
        %2142 = vmatpush.bf16.msra.mxu0 %v1506
        %2143 = vmatpush.bf16.msra.mxu0 %v1498
        %2144 = vmatpush.bf16.msra.mxu0 %v1490
        %2145 = vmatpush.bf16.msra.mxu0 %v1482
        %2146 = vmatpush.bf16.msra.mxu0 %v1474
        %2147 = vmatmul.bf16.gmra.mxu0 %v567
        %v2148 = vpop.f32.mrf.mxu0
        %v2149 = vadd.f32 %v2136, %v2148
        %v2150 = vpop.f32.mrf.mxu0
        %2151 = vdwg.mxu0
        %2152 = vmatpush.bf16.msra.mxu0 %v1594
        %2153 = vmatpush.bf16.msra.mxu0 %v1586
        %2154 = vmatpush.bf16.msra.mxu0 %v1578
        %2155 = vmatpush.bf16.msra.mxu0 %v1570
        %2156 = vmatpush.bf16.msra.mxu0 %v1562
        %2157 = vmatpush.bf16.msra.mxu0 %v1554
        %2158 = vmatpush.bf16.msra.mxu0 %v1546
        %2159 = vmatpush.bf16.msra.mxu0 %v1538
        %2160 = vmatmul.bf16.gmra.mxu0 %v568
        %v2161 = vpop.f32.mrf.mxu0
        %v2162 = vadd.f32 %v2149, %v2161
        %v2163 = vpop.f32.mrf.mxu0
        %2164 = vdwg.mxu0
        %2165 = vmatpush.bf16.msra.mxu0 %v1403
        %2166 = vmatpush.bf16.msra.mxu0 %v1395
        %2167 = vmatpush.bf16.msra.mxu0 %v1387
        %2168 = vmatpush.bf16.msra.mxu0 %v1379
        %2169 = vmatpush.bf16.msra.mxu0 %v1371
        %2170 = vmatpush.bf16.msra.mxu0 %v1363
        %2171 = vmatpush.bf16.msra.mxu0 %v1355
        %2172 = vmatpush.bf16.msra.mxu0 %v1347
        %2173 = vmatmul.bf16.gmra.mxu0 %v565
        %v2174 = vpop.f32.mrf.mxu0
        %v2175 = vadd.f32 0.0, %v2174
        %v2176 = vpop.f32.mrf.mxu0
        %2177 = vdwg.mxu0
        %2178 = vmatpush.bf16.msra.mxu0 %v1467
        %2179 = vmatpush.bf16.msra.mxu0 %v1459
        %2180 = vmatpush.bf16.msra.mxu0 %v1451
        %2181 = vmatpush.bf16.msra.mxu0 %v1443
        %2182 = vmatpush.bf16.msra.mxu0 %v1435
        %2183 = vmatpush.bf16.msra.mxu0 %v1427
        %2184 = vmatpush.bf16.msra.mxu0 %v1419
        %2185 = vmatpush.bf16.msra.mxu0 %v1411
        %2186 = vmatmul.bf16.gmra.mxu0 %v566
        %v2187 = vpop.f32.mrf.mxu0
        %v2188 = vadd.f32 %v2175, %v2187
        %v2189 = vpop.f32.mrf.mxu0
        %2190 = vdwg.mxu0
        %2191 = vmatpush.bf16.msra.mxu0 %v1531
        %2192 = vmatpush.bf16.msra.mxu0 %v1523
        %2193 = vmatpush.bf16.msra.mxu0 %v1515
        %2194 = vmatpush.bf16.msra.mxu0 %v1507
        %2195 = vmatpush.bf16.msra.mxu0 %v1499
        %2196 = vmatpush.bf16.msra.mxu0 %v1491
        %2197 = vmatpush.bf16.msra.mxu0 %v1483
        %2198 = vmatpush.bf16.msra.mxu0 %v1475
        %2199 = vmatmul.bf16.gmra.mxu0 %v567
        %v2200 = vpop.f32.mrf.mxu0
        %v2201 = vadd.f32 %v2188, %v2200
        %v2202 = vpop.f32.mrf.mxu0
        %2203 = vdwg.mxu0
        %2204 = vmatpush.bf16.msra.mxu0 %v1595
        %2205 = vmatpush.bf16.msra.mxu0 %v1587
        %2206 = vmatpush.bf16.msra.mxu0 %v1579
        %2207 = vmatpush.bf16.msra.mxu0 %v1571
        %2208 = vmatpush.bf16.msra.mxu0 %v1563
        %2209 = vmatpush.bf16.msra.mxu0 %v1555
        %2210 = vmatpush.bf16.msra.mxu0 %v1547
        %2211 = vmatpush.bf16.msra.mxu0 %v1539
        %2212 = vmatmul.bf16.gmra.mxu0 %v568
        %v2213 = vpop.f32.mrf.mxu0
        %v2214 = vadd.f32 %v2201, %v2213
        %v2215 = vpop.f32.mrf.mxu0
        %2216 = vdwg.mxu0
        %2217 = vmatpush.bf16.msra.mxu0 %v1404
        %2218 = vmatpush.bf16.msra.mxu0 %v1396
        %2219 = vmatpush.bf16.msra.mxu0 %v1388
        %2220 = vmatpush.bf16.msra.mxu0 %v1380
        %2221 = vmatpush.bf16.msra.mxu0 %v1372
        %2222 = vmatpush.bf16.msra.mxu0 %v1364
        %2223 = vmatpush.bf16.msra.mxu0 %v1356
        %2224 = vmatpush.bf16.msra.mxu0 %v1348
        %2225 = vmatmul.bf16.gmra.mxu0 %v565
        %v2226 = vpop.f32.mrf.mxu0
        %v2227 = vadd.f32 0.0, %v2226
        %v2228 = vpop.f32.mrf.mxu0
        %2229 = vdwg.mxu0
        %2230 = vmatpush.bf16.msra.mxu0 %v1468
        %2231 = vmatpush.bf16.msra.mxu0 %v1460
        %2232 = vmatpush.bf16.msra.mxu0 %v1452
        %2233 = vmatpush.bf16.msra.mxu0 %v1444
        %2234 = vmatpush.bf16.msra.mxu0 %v1436
        %2235 = vmatpush.bf16.msra.mxu0 %v1428
        %2236 = vmatpush.bf16.msra.mxu0 %v1420
        %2237 = vmatpush.bf16.msra.mxu0 %v1412
        %2238 = vmatmul.bf16.gmra.mxu0 %v566
        %v2239 = vpop.f32.mrf.mxu0
        %v2240 = vadd.f32 %v2227, %v2239
        %v2241 = vpop.f32.mrf.mxu0
        %2242 = vdwg.mxu0
        %2243 = vmatpush.bf16.msra.mxu0 %v1532
        %2244 = vmatpush.bf16.msra.mxu0 %v1524
        %2245 = vmatpush.bf16.msra.mxu0 %v1516
        %2246 = vmatpush.bf16.msra.mxu0 %v1508
        %2247 = vmatpush.bf16.msra.mxu0 %v1500
        %2248 = vmatpush.bf16.msra.mxu0 %v1492
        %2249 = vmatpush.bf16.msra.mxu0 %v1484
        %2250 = vmatpush.bf16.msra.mxu0 %v1476
        %2251 = vmatmul.bf16.gmra.mxu0 %v567
        %v2252 = vpop.f32.mrf.mxu0
        %v2253 = vadd.f32 %v2240, %v2252
        %v2254 = vpop.f32.mrf.mxu0
        %2255 = vdwg.mxu0
        %2256 = vmatpush.bf16.msra.mxu0 %v1596
        %2257 = vmatpush.bf16.msra.mxu0 %v1588
        %2258 = vmatpush.bf16.msra.mxu0 %v1580
        %2259 = vmatpush.bf16.msra.mxu0 %v1572
        %2260 = vmatpush.bf16.msra.mxu0 %v1564
        %2261 = vmatpush.bf16.msra.mxu0 %v1556
        %2262 = vmatpush.bf16.msra.mxu0 %v1548
        %2263 = vmatpush.bf16.msra.mxu0 %v1540
        %2264 = vmatmul.bf16.gmra.mxu0 %v568
        %v2265 = vpop.f32.mrf.mxu0
        %v2266 = vadd.f32 %v2253, %v2265
        %v2267 = vpop.f32.mrf.mxu0
        %2268 = vdwg.mxu0
        %p2269 = scmp.eq.s32.totalorder %s27, 0
        // Predicated region
        $region41: #{forward.28} parent=31 // pred_check
          %p2270 = pneg %p2269
        $region42: #{forward.28} parent=31 // pred_check_branch
          %2272 = sbr.rel (%p2270) target = $region44
        $region43: #{forward.28} parent=31 // pred_region
          %2273 = vst [vmem:[#allocation2] sm:$0xff] 0.0
          %2274 = vst [vmem:[#allocation2 + $0x8] sm:$0xff] 0.0
          %2275 = vst [vmem:[#allocation2 + $0x10] sm:$0xff] 0.0
          %2276 = vst [vmem:[#allocation2 + $0x18] sm:$0xff] 0.0
        $region44: #{forward.28} parent=31 // pred_fallthru
          _
        %v2277 = vld [vmem:[#allocation2] sm:$0xff]
        %v2278 = vld [vmem:[#allocation2 + $0x8] sm:$0xff]
        %v2279 = vld [vmem:[#allocation2 + $0x10] sm:$0xff]
        %v2280 = vld [vmem:[#allocation2 + $0x18] sm:$0xff]
        %v2289 = vrot.slane %v1954, 4
        %v2290 = vrot.slane %v2058, 4
        %v2291 = vrot.slane %v2162, 4
        %v2292 = vrot.slane %v2266, 4
        %vm2293 = vcmask 1043456
        %v2294 = vsel %vm2293, %v1902, %v2289
        %v2295 = vsel %vm2293, %v2006, %v2290
        %v2296 = vsel %vm2293, %v2110, %v2291
        %v2297 = vsel %vm2293, %v2214, %v2292
        %v2302 = vadd.f32 %v2277, %v2294
        %v2303 = vadd.f32 %v2278, %v2295
        %v2304 = vadd.f32 %v2279, %v2296
        %v2305 = vadd.f32 %v2280, %v2297
        %2306 = vst [vmem:[#allocation2] sm:$0xff] %v2302
        %2307 = vst [vmem:[#allocation2 + $0x8] sm:$0xff] %v2303
        %2308 = vst [vmem:[#allocation2 + $0x10] sm:$0xff] %v2304
        %2309 = vst [vmem:[#allocation2 + $0x18] sm:$0xff] %v2305
        %p2310 = scmp.eq.s32.totalorder %s27, 2
        // Predicated region
        $region45: #{forward.28} parent=31 // pred_check
          %p2311 = pneg %p2310
        $region46: #{forward.28} parent=31 // pred_check_branch
          %2313 = sbr.rel (%p2311) target = $region48
        $region47: #{forward.28} parent=31 // pred_region
          %v2314 = vld [vmem:[#allocation2] sm:$0xff]
          %v2315 = vld [vmem:[#allocation2 + $0x8] sm:$0xff]
          %v2316 = vld [vmem:[#allocation2 + $0x10] sm:$0xff]
          %v2317 = vld [vmem:[#allocation2 + $0x18] sm:$0xff]
          %v2318 = vld [vmem:[%s241] sm:$0xff]
          %v2320 = vperm.slane %v2318, 0
          %v2321 = vperm.slane %v2318, 1
          %v2322 = vperm.slane %v2318, 2
          %v2323 = vperm.slane %v2318, 3
          %v2324 = vperm.slane %v2318, 4
          %v2325 = vperm.slane %v2318, 5
          %v2326 = vperm.slane %v2318, 6
          %v2327 = vperm.slane %v2318, 7
          %v2328 = vrot.slane %v2321, 4
          %v2329 = vrot.slane %v2323, 4
          %v2330 = vrot.slane %v2325, 4
          %v2331 = vrot.slane %v2327, 4
          %v2332 = vsel %vm2293, %v2320, %v2328
          %v2333 = vsel %vm2293, %v2322, %v2329
          %v2334 = vsel %vm2293, %v2324, %v2330
          %v2335 = vsel %vm2293, %v2326, %v2331
          %v2340 = vadd.f32 %v2314, %v2332
          %v2341 = vadd.f32 %v2315, %v2333
          %v2342 = vadd.f32 %v2316, %v2334
          %v2343 = vadd.f32 %v2317, %v2335
          %v2344 = vmax.f32 %v2340, 0.0
          %v2345 = vmax.f32 %v2341, 0.0
          %v2346 = vmax.f32 %v2342, 0.0
          %v2347 = vmax.f32 %v2343, 0.0
          %v2348 = vmul.f32 %v2344, 0.999995
          %v2349 = vmul.f32 %v2345, 0.999995
          %v2350 = vmul.f32 %v2346, 0.999995
          %v2351 = vmul.f32 %v2347, 0.999995
          %2356 = vst [vmem:[#allocation1] ss:$2 sm:$0xff] %v2348
          %s2357 = scalar_lea.vmem [#allocation1], 16
          %2358 = vst [vmem:[%s2357] ss:$2 sm:$0xff] %v2349
          %s2359 = scalar_lea.vmem [#allocation1], 32
          %2360 = vst [vmem:[%s2359] ss:$2 sm:$0xff] %v2350
          %s2361 = scalar_lea.vmem [#allocation1], 48
          %2362 = vst [vmem:[%s2361] ss:$2 sm:$0xff] %v2351
          %v2363 = vld.sshfl [vmem:[#allocation1] sm:$0xff pattern:$0x75316420]
          %v2364 = vld.sshfl [vmem:[#allocation1 + $0x8] sm:$0xff pattern:$0x75316420]
          %v2365 = vld.sshfl [vmem:[#allocation1 + $0x10] sm:$0xff pattern:$0x75316420]
          %v2366 = vld.sshfl [vmem:[#allocation1 + $0x18] sm:$0xff pattern:$0x75316420]
          %v2367 = vld.sshfl [vmem:[#allocation1 + $0x20] sm:$0xff pattern:$0x75316420]
          %v2368 = vld.sshfl [vmem:[#allocation1 + $0x28] sm:$0xff pattern:$0x75316420]
          %v2369 = vld.sshfl [vmem:[#allocation1 + $0x30] sm:$0xff pattern:$0x75316420]
          %v2370 = vld.sshfl [vmem:[#allocation1 + $0x38] sm:$0xff pattern:$0x75316420]
          %v2379 = vpack.c.bf16 %v2364, %v2363
          %v2380 = vpack.c.bf16 %v2366, %v2365
          %v2381 = vpack.c.bf16 %v2368, %v2367
          %v2382 = vpack.c.bf16 %v2370, %v2369
          %v2387 = vrot.slane %v2379, 2
          %v2388 = vrot.slane %v2380, 4
          %v2389 = vrot.slane %v2380, 6
          %v2390 = vrot.slane %v2381, 2
          %v2391 = vrot.slane %v2382, 4
          %v2392 = vrot.slane %v2382, 6
          %vm2393 = vcmask 1041408
          %v2396 = vsel %vm2393, %v2379, %v2387
          %vm2397 = vcmask 1045508
          %v2400 = vsel %vm2397, %v2388, %v2389
          %v2401 = vsel %vm2293, %v2396, %v2400
          %v2404 = vsel %vm2393, %v2381, %v2390
          %v2407 = vsel %vm2397, %v2391, %v2392
          %v2408 = vsel %vm2293, %v2404, %v2407
          %2411 = vst [vmem:[%s304] sm:$0xff] %v2401
          %2412 = vst [vmem:[%s304 + $0x8] sm:$0xff] %v2408
        $region48: #{forward.28} parent=31 // pred_fallthru
          _
        %s2413 = smul.u32 8, %s26
        %p2414 = scmp.lt.s32.totalorder %s25, 0
        %s2415 = scalar_select %p2414, %s25, 0
        %p2416 = scmp.lt.s32.totalorder %s2413, 23
        %s2417 = scalar_select %p2416, %s2413, 23
        %s2418 = smul.addr %s2415, 24
        %s2419 = sadd.s32 %s2417, %s2418
        %s2420 = smul.addr %s2419, 2
        %s2421 = scalar_lea.vmem %s3, %s2420
        // Predicated region
        $region49: #{forward.28} parent=31 // pred_check
          %p2422 = pneg %p141
        $region50: #{forward.28} parent=31 // pred_check_branch
          %2424 = sbr.rel (%p2422) target = $region52
        $region51: #{forward.28} parent=31 // pred_region
          %s2425 = smul.u32 8, %s26
        $region52: #{forward.28} parent=31 // pred_fallthru
          _
      $region32: #{forward.28} parent=5 // pred_fallthru
        _
      %p2426 = scmp.le.s32.totalorder 2, %s15
      // Predicated region
      $region53: #{forward.28} parent=5 // pred_check
        %p2427 = pneg %p2426
      $region54: #{forward.28} parent=5 // pred_check_branch
        %2429 = sbr.rel (%p2427) target = $region56
      $region55: #{forward.28} parent=5 // pred_region
        %s2430 = ssub.s32 %s15, 2
        // Predicated region
        $region57: #{forward.28} parent=55 // pred_check
          %p2431 = pneg %p147
        $region58: #{forward.28} parent=55 // pred_check_branch
          %2433 = sbr.rel (%p2431) target = $region60
        $region59: #{forward.28} parent=55 // pred_region
          %s2434 = smul.u32 8, %s29
          %p2435 = scmp.lt.s32.totalorder %s28, 0
          %s2436 = scalar_select %p2435, %s28, 0
          %p2437 = scmp.lt.s32.totalorder %s2434, 23
          %s2438 = scalar_select %p2437, %s2434, 23
          %s2439 = smul.addr %s2436, 24
          %s2440 = sadd.s32 %s2438, %s2439
          %s2441 = smul.addr %s2440, 2
          %s2442 = scalar_lea.vmem %s3, %s2441
        $region60: #{forward.28} parent=55 // pred_fallthru
          _
      $region56: #{forward.28} parent=5 // pred_fallthru
        _
    $region6: #{forward.28} parent=1 // loop_footer
      %s19 = sadd.s32 1, %s15
    $region7: #{forward.28} parent=1 // loop_footer_branch
      %14 = sbr.rel target = $region3
    $region8: #{forward.28} parent=1 // loop_exit
      _
    %2443 = vsyncpa [#allocation4], 1
    %s2444 = scalar_lea.sflag [#allocation4], 1
    %2445 = vsyncpa %s2444, 1
    %2446 = vsyncpa [#allocation6], 1
    %s2447 = scalar_lea.sflag [#allocation6], 1
    %2448 = vsyncpa %s2447, 1

// kernel: forward.34
$region0: #{forward.34}
  #allocation0 [shape = 'u32[]', space=smem, size = 0x4, offset = 0x4, fixed_abs, tag = 'smem constant byte address 0x4 - core index']
  #allocation1 [shape = 'u32[72,128]{1,0:T(1,128)}', space=vmem, size = 0x9000, scoped, tag = 'internal scratch']
  %s0 = inlined_call_operand.vmem [shape: bf16[2,2,768], index: 0, kind: input, shape index: {}]
  %s1 = inlined_call_operand.hbm [shape: f32[2,2,2], index: 1, kind: input, shape index: {}]
  %s2 = inlined_call_operand.vmem [shape: bf16[2,2,256], index: 2, kind: output, shape index: {}]
  %s3 = sld [smem:[#allocation0]]
  $region45: #{forward.34} parent=0
    _
  %s5 = ssub.s32 1, %s3
  %s6 = scalar_select 0, %s5, %s3
  $region1: #{forward.34} parent=0
    #allocation2 [shape = 'u8[2048]{0}', space=vmem, size = 0x800, scoped, tag = 'input window, operand 1']
    #allocation3 [shape = 's32[2]{0}', space=sflag, size = 0x8, scoped, tag = 'scoped memory for forward.34']
    %7 = vsyncpa [#allocation3], 0
    %s8 = scalar_lea.sflag [#allocation3], 1
    %9 = vsyncpa %s8, 0
    loop: start=0, step=1, limit=4
    $region2: #{forward.34} parent=1 // loop_pre_header
      _
    $region3: #{forward.34} parent=1 // loop_header
      %s11 = sphi 0, %s15
      %p12 = scmp.ge.s32.totalorder %s11, 4
      %s21 = sphi 0, %s23
      %s24 = sphi 0, %s21
      %s25 = sphi 0, %s24
      %s41 = sphi 0, %s25
      %s47 = sphi 0, %s49
      %s50 = sphi 0, %s47
      %s51 = sphi 0, %s50
      %s67 = sphi 0, %s51
      %s73 = sphi 0, %s75
      %s76 = sphi 0, %s73
      %s77 = sphi 0, %s76
      %s93 = sphi 0, %s77
    $region4: #{forward.34} parent=1 // loop_header_branch
      %14 = sbr.rel (%p12) target = $region8
    $region5: #{forward.34} parent=1 // loop_body
      %s16 = ssub.s32 %s11, 1
      %s17 = ssub.s32 %s11, 2
      %s18 = sadd.s32 %s11, 1
      %s19 = ssub.s32 %s11, %s18
      %p20 = scmp.eq.s32.totalorder %s19, 0
      %s22 = sadd.s32 %s21, 1
      %s23 = scalar_select %p20, %s21, %s22
      %p26 = pneg %p20
      %p27 = scmp.eq.s32.totalorder %s11, 1
      %p28 = por %p26, %p27
      %p29 = scmp.ne.s32.totalorder %s21, %s24
      %p30 = scmp.eq.s32.totalorder %s11, 0
      %p31 = por %p29, %p30
      %p32 = scmp.ne.s32.totalorder %s21, %s24
      %p33 = scmp.eq.s32.totalorder %s16, 1
      %p34 = por %p32, %p33
      %p35 = scmp.ne.s32.totalorder %s24, %s25
      %p36 = scmp.eq.s32.totalorder %s16, 0
      %p37 = por %p35, %p36
      %p38 = scmp.ne.s32.totalorder %s24, %s25
      %p39 = scmp.eq.s32.totalorder %s17, 1
      %p40 = por %p38, %p39
      %p42 = scmp.ne.s32.totalorder %s25, %s41
      %p43 = scmp.eq.s32.totalorder %s17, 0
      %p44 = por %p42, %p43
      %s45 = ssub.s32 %s11, %s18
      %p46 = scmp.eq.s32.totalorder %s45, 0
      %s48 = sadd.s32 %s47, 1
      %s49 = scalar_select %p46, %s47, %s48
      %p52 = pneg %p46
      %p53 = scmp.eq.s32.totalorder %s11, 1
      %p54 = por %p52, %p53
      %p55 = scmp.ne.s32.totalorder %s47, %s50
      %p56 = scmp.eq.s32.totalorder %s11, 0
      %p57 = por %p55, %p56
      %p58 = scmp.ne.s32.totalorder %s47, %s50
      %p59 = scmp.eq.s32.totalorder %s16, 1
      %p60 = por %p58, %p59
      %p61 = scmp.ne.s32.totalorder %s50, %s51
      %p62 = scmp.eq.s32.totalorder %s16, 0
      %p63 = por %p61, %p62
      %p64 = scmp.ne.s32.totalorder %s50, %s51
      %p65 = scmp.eq.s32.totalorder %s17, 1
      %p66 = por %p64, %p65
      %p68 = scmp.ne.s32.totalorder %s51, %s67
      %p69 = scmp.eq.s32.totalorder %s17, 0
      %p70 = por %p68, %p69
      %s71 = ssub.s32 %s11, %s18
      %p72 = scmp.eq.s32.totalorder %s71, 0
      %s74 = sadd.s32 %s73, 1
      %s75 = scalar_select %p72, %s73, %s74
      %p78 = pneg %p72
      %p79 = scmp.eq.s32.totalorder %s11, 1
      %p80 = por %p78, %p79
      %p81 = scmp.ne.s32.totalorder %s73, %s76
      %p82 = scmp.eq.s32.totalorder %s11, 0
      %p83 = por %p81, %p82
      %p84 = scmp.ne.s32.totalorder %s73, %s76
      %p85 = scmp.eq.s32.totalorder %s16, 1
      %p86 = por %p84, %p85
      %p87 = scmp.ne.s32.totalorder %s76, %s77
      %p88 = scmp.eq.s32.totalorder %s16, 0
      %p89 = por %p87, %p88
      %p90 = scmp.ne.s32.totalorder %s76, %s77
      %p91 = scmp.eq.s32.totalorder %s17, 1
      %p92 = por %p90, %p91
      %p94 = scmp.ne.s32.totalorder %s77, %s93
      %p95 = scmp.eq.s32.totalorder %s17, 0
      %p96 = por %p94, %p95
      %p97 = scmp.le.s32.totalorder 1, %s11
      %p98 = scmp.lt.s32.totalorder %s11, 3
      %p99 = pnand %p97, %p98
      %p100 = pneg %p99
      // Predicated region
      $region9: #{forward.34} parent=5 // pred_check
        _
      $region10: #{forward.34} parent=5 // pred_check_branch
        %102 = sbr.rel (%p99) target = $region12
      $region11: #{forward.34} parent=5 // pred_region
        %s103 = ssub.s32 %s11, 1
      $region12: #{forward.34} parent=5 // pred_fallthru
        _
      %p104 = scmp.lt.s32.totalorder %s11, 2
      // Predicated region
      $region13: #{forward.34} parent=5 // pred_check
        %p105 = pneg %p104
      $region14: #{forward.34} parent=5 // pred_check_branch
        %107 = sbr.rel (%p105) target = $region16
      $region15: #{forward.34} parent=5 // pred_region
        // Predicated region
        $region17: #{forward.34} parent=15 // pred_check
          %p108 = pneg %p31
        $region18: #{forward.34} parent=15 // pred_check_branch
          %110 = sbr.rel (%p108) target = $region20
        $region19: #{forward.34} parent=15 // pred_region
          %p111 = scmp.lt.s32.totalorder %s11, 1
          %s112 = scalar_select %p111, %s11, 1
          %s113 = smul.addr %s112, 6
          %s114 = scalar_lea.vmem %s0, %s113
        $region20: #{forward.34} parent=15 // pred_fallthru
          _
        // Predicated region
        $region21: #{forward.34} parent=15 // pred_check
          %p115 = pneg %p57
        $region22: #{forward.34} parent=15 // pred_check_branch
          %117 = sbr.rel (%p115) target = $region24
        $region23: #{forward.34} parent=15 // pred_region
          %s118 = sand.u32 %s47, 1
          %s119 = scalar_lea.sflag [#allocation3], %s118
          %s120 = sand.u32 %s47, 1
          %s121 = smul.addr %s120, 2
          %s122 = scalar_lea.vmem [#allocation2], %s121
          %124 = vsyncadd %s119, 0
          %s125 = smul.addr %s11, 2
          %s126 = scalar_lea.hbm %s1, %s125
          %s128 = sshll.u32 %s126, 4
          %s129 = int_to_ptr.hbm [resolvable:$true] %s128
          %s130 = sshll.u32 %s122, 4
          %s131 = int_to_ptr.vmem [resolvable:$true] %s130
          %133 = dma.hbm_to_vmem [thread:$0]  %s129, 32, %s131, %s119
        $region24: #{forward.34} parent=15 // pred_fallthru
          _
      $region16: #{forward.34} parent=5 // pred_fallthru
        _
      %p134 = scmp.le.s32.totalorder 1, %s11
      %p135 = scmp.lt.s32.totalorder %s11, 3
      %p136 = pnand %p134, %p135
      %p137 = pneg %p136
      // Predicated region
      $region25: #{forward.34} parent=5 // pred_check
        _
      $region26: #{forward.34} parent=5 // pred_check_branch
        %139 = sbr.rel (%p136) target = $region28
      $region27: #{forward.34} parent=5 // pred_region
        %s140 = ssub.s32 %s11, 1
        %s141 = sand.u32 %s50, 1
        %s142 = scalar_lea.sflag [#allocation3], %s141
        %s143 = sand.u32 %s50, 1
        %s144 = smul.addr %s143, 2
        %s145 = scalar_lea.vmem [#allocation2], %s144
        // Predicated region
        $region29: #{forward.34} parent=27 // pred_check
          %p146 = pneg %p63
        $region30: #{forward.34} parent=27 // pred_check_branch
          %148 = sbr.rel (%p146) target = $region32
        $region31: #{forward.34} parent=27 // pred_region
          %150 = dma.done %s142, 32
        $region32: #{forward.34} parent=27 // pred_fallthru
          _
        %p151 = scmp.lt.s32.totalorder %s16, 1
        %s152 = scalar_select %p151, %s16, 1
        %s153 = smul.addr %s152, 6
        %s154 = scalar_lea.vmem %s0, %s153
        %p155 = pneg %p37
        %p156 = pneg %p34
        %s157 = sand.u32 %s50, 1
        %s158 = scalar_lea.sflag [#allocation3], %s157
        %s159 = sand.u32 %s50, 1
        %s160 = smul.addr %s159, 2
        %s161 = scalar_lea.vmem [#allocation2], %s160
        %p162 = pneg %p63
        %p163 = pneg %p60
        %p164 = pneg %p89
        %p165 = pneg %p86
        %p166 = scmp.lt.s32.totalorder %s16, 1
        %s167 = scalar_select %p166, %s16, 1
        %s168 = smul.addr %s167, 2
        %s169 = scalar_lea.vmem %s2, %s168
        %p170 = scmp.lt.s32.totalorder %s16, 1
        %s171 = scalar_select %p170, %s16, 1
        %s172 = smul.addr %s171, 6
        %s173 = scalar_lea.vmem %s0, %s172
        %p174 = scmp.lt.s32.totalorder %s16, 1
        %s175 = scalar_select %p174, %s16, 1
        %s176 = smul.addr %s175, 2
        %s177 = scalar_lea.vmem %s2, %s176
        %v179 = vld [vmem:[%s173] sm:$0x3f]
        %v180 = vld [vmem:[%s145] sm:$0x3]
        %182 = vst [vmem:[#allocation1] ss:$9 sm:$0xff] %v179
        %v183 = vld [vmem:[#allocation1 + $0x12] sm:$0xff]
        %vm184 = vcmask 523264
        %v185 = vsel %vm184, %v179, 0
        %v187 = vsel %vm184, %v183, 0
        %189 = vmatpush.bf16.xpose.msra.mxu0 0
        %190 = vmatpush.bf16.xpose.msra.mxu0 0
        %191 = vmatpush.bf16.xpose.msra.mxu0 0
        %192 = vmatpush.bf16.xpose.msra.mxu0 0
        %193 = vmatpush.bf16.xpose.msra.mxu0 0
        %194 = vmatpush.bf16.xpose.msra.mxu0 0
        %195 = vmatpush.bf16.xpose.msra.mxu0 0
        %196 = vmatpush.bf16.xpose.msra.mxu0 %v187
        %197 = vmatmul.bf16.gmra.mxu0 %v185
        %v198 = vpop.f32.mrf.mxu0
        %v199 = vadd.f32 0.0, %v198
        %v200 = vpop.f32.mrf.mxu0
        %201 = vdwg.mxu0
        %v202 = vmul.f32 %v199, 0.125
        %v203 = vadd.f32 %v202, %v180
        %vm204 = vcmask 9216
        %v205 = vsel %vm204, %v203, -inf
        %206 = vmax.xlane.f32.xlu0 %v205
        %v207 = vpop.xlane.xlu0 %206
        %v208 = vsub.f32 %v203, %v207
        %v209 = vmul.f32 %v208, 1.442695
        %v210 = vpow.pop %v209
        %v211 = vsel %vm204, %v210, 0.0
        %212 = vadd.xlane.f32.xlu0 %v211
        %v213 = vpop.xlane.xlu0 %212
        %v214 = vrcp.pop %v213
        %v215 = vmul.f32 %v210, %v214
        %v216 = vpack.c.bf16 %v215, %v215
        %217 = vst [vmem:[#allocation1] ss:$9 sm:$0xff] %v179
        %v218 = vld [vmem:[#allocation1 + $0x24] sm:$0xff]
        %vm219 = vcmask 15360
        %v221 = vsel %vm219, %v216, 0
        %vm223 = vcmask 1040384
        %v224 = vsel %vm223, %v218, 0
        %226 = vmatpush.bf16.msra.mxu0 0
        %227 = vmatpush.bf16.msra.mxu0 0
        %228 = vmatpush.bf16.msra.mxu0 0
        %229 = vmatpush.bf16.msra.mxu0 0
        %230 = vmatpush.bf16.msra.mxu0 0
        %231 = vmatpush.bf16.msra.mxu0 0
        %232 = vmatpush.bf16.msra.mxu0 0
        %233 = vmatpush.bf16.msra.mxu0 %v224
        %234 = vmatmul.bf16.gmra.mxu0 %v221
        %v235 = vpop.f32.mrf.mxu0
        %v236 = vadd.f32 0.0, %v235
        %v237 = vpop.f32.mrf.mxu0
        %238 = vdwg.mxu0
        %239 = vst [vmem:[#allocation1] ss:$9 sm:$0xff] %v179
        %v240 = vld [vmem:[#allocation1] sm:$0xff]
        %242 = vrot.lane.b32.xlu0 %v240, 64
        %v243 = vpop.permute.xlu0 %242
        %244 = vst [vmem:[#allocation1] ss:$9 sm:$0xff] %v179
        %v245 = vld [vmem:[#allocation1 + $0x12] sm:$0xff]
        %247 = vrot.lane.b32.xlu0 %v245, 64
        %v248 = vpop.permute.xlu0 %247
        %v250 = vsel %vm184, %v243, 0
        %v253 = vsel %vm184, %v248, 0
        %255 = vmatpush.bf16.xpose.msra.mxu0 0
        %256 = vmatpush.bf16.xpose.msra.mxu0 0
        %257 = vmatpush.bf16.xpose.msra.mxu0 0
        %258 = vmatpush.bf16.xpose.msra.mxu0 0
        %259 = vmatpush.bf16.xpose.msra.mxu0 0
        %260 = vmatpush.bf16.xpose.msra.mxu0 0
        %261 = vmatpush.bf16.xpose.msra.mxu0 0
        %262 = vmatpush.bf16.xpose.msra.mxu0 %v253
        %263 = vmatmul.bf16.gmra.mxu0 %v250
        %v264 = vpop.f32.mrf.mxu0
        %v265 = vadd.f32 0.0, %v264
        %v266 = vpop.f32.mrf.mxu0
        %267 = vdwg.mxu0
        %v268 = vmul.f32 %v265, 0.125
        %v269 = vadd.f32 %v268, %v180
        %v270 = vsel %vm204, %v269, -inf
        %271 = vmax.xlane.f32.xlu0 %v270
        %v272 = vpop.xlane.xlu0 %271
        %v273 = vsub.f32 %v269, %v272
        %v274 = vmul.f32 %v273, 1.442695
        %v275 = vpow.pop %v274
        %v276 = vsel %vm204, %v275, 0.0
        %277 = vadd.xlane.f32.xlu0 %v276
        %v278 = vpop.xlane.xlu0 %277
        %v279 = vrcp.pop %v278
        %v280 = vmul.f32 %v275, %v279
        %v281 = vpack.c.bf16 %v280, %v280
        %282 = vst [vmem:[#allocation1] ss:$9 sm:$0xff] %v179
        %v283 = vld [vmem:[#allocation1 + $0x24] sm:$0xff]
        %285 = vrot.lane.b32.xlu0 %v283, 64
        %v286 = vpop.permute.xlu0 %285
        %v288 = vsel %vm219, %v281, 0
        %v291 = vsel %vm223, %v286, 0
        %293 = vmatpush.bf16.msra.mxu0 0
        %294 = vmatpush.bf16.msra.mxu0 0
        %295 = vmatpush.bf16.msra.mxu0 0
        %296 = vmatpush.bf16.msra.mxu0 0
        %297 = vmatpush.bf16.msra.mxu0 0
        %298 = vmatpush.bf16.msra.mxu0 0
        %299 = vmatpush.bf16.msra.mxu0 0
        %300 = vmatpush.bf16.msra.mxu0 %v291
        %301 = vmatmul.bf16.gmra.mxu0 %v288
        %v302 = vpop.f32.mrf.mxu0
        %v303 = vadd.f32 0.0, %v302
        %v304 = vpop.f32.mrf.mxu0
        %305 = vdwg.mxu0
        %306 = vst [vmem:[#allocation1] ss:$9 sm:$0xff] %v179
        %v307 = vld [vmem:[#allocation1 + $0x9] sm:$0xff]
        %308 = vst [vmem:[#allocation1] ss:$9 sm:$0xff] %v179
        %v309 = vld [vmem:[#allocation1 + $0x1b] sm:$0xff]
        %v310 = vsel %vm184, %v307, 0
        %v312 = vsel %vm184, %v309, 0
        %314 = vmatpush.bf16.xpose.msra.mxu0 0
        %315 = vmatpush.bf16.xpose.msra.mxu0 0
        %316 = vmatpush.bf16.xpose.msra.mxu0 0
        %317 = vmatpush.bf16.xpose.msra.mxu0 0
        %318 = vmatpush.bf16.xpose.msra.mxu0 0
        %319 = vmatpush.bf16.xpose.msra.mxu0 0
        %320 = vmatpush.bf16.xpose.msra.mxu0 0
        %321 = vmatpush.bf16.xpose.msra.mxu0 %v312
        %322 = vmatmul.bf16.gmra.mxu0 %v310
        %v323 = vpop.f32.mrf.mxu0
        %v324 = vadd.f32 0.0, %v323
        %v325 = vpop.f32.mrf.mxu0
        %326 = vdwg.mxu0
        %v327 = vmul.f32 %v324, 0.125
        %v328 = vadd.f32 %v327, %v180
        %v329 = vsel %vm204, %v328, -inf
        %330 = vmax.xlane.f32.xlu0 %v329
        %v331 = vpop.xlane.xlu0 %330
        %v332 = vsub.f32 %v328, %v331
        %v333 = vmul.f32 %v332, 1.442695
        %v334 = vpow.pop %v333
        %v335 = vsel %vm204, %v334, 0.0
        %336 = vadd.xlane.f32.xlu0 %v335
        %v337 = vpop.xlane.xlu0 %336
        %v338 = vrcp.pop %v337
        %v339 = vmul.f32 %v334, %v338
        %v340 = vpack.c.bf16 %v339, %v339
        %341 = vst [vmem:[#allocation1] ss:$9 sm:$0xff] %v179
        %v342 = vld [vmem:[#allocation1 + $0x2d] sm:$0xff]
        %v344 = vsel %vm219, %v340, 0
        %v346 = vsel %vm223, %v342, 0
        %348 = vmatpush.bf16.msra.mxu0 0
        %349 = vmatpush.bf16.msra.mxu0 0
        %350 = vmatpush.bf16.msra.mxu0 0
        %351 = vmatpush.bf16.msra.mxu0 0
        %352 = vmatpush.bf16.msra.mxu0 0
        %353 = vmatpush.bf16.msra.mxu0 0
        %354 = vmatpush.bf16.msra.mxu0 0
        %355 = vmatpush.bf16.msra.mxu0 %v346
        %356 = vmatmul.bf16.gmra.mxu0 %v344
        %v357 = vpop.f32.mrf.mxu0
        %v358 = vadd.f32 0.0, %v357
        %v359 = vpop.f32.mrf.mxu0
        %360 = vdwg.mxu0
        %361 = vst [vmem:[#allocation1] ss:$9 sm:$0xff] %v179
        %v362 = vld [vmem:[#allocation1 + $0x9] sm:$0xff]
        %364 = vrot.lane.b32.xlu0 %v362, 64
        %v365 = vpop.permute.xlu0 %364
        %366 = vst [vmem:[#allocation1] ss:$9 sm:$0xff] %v179
        %v367 = vld [vmem:[#allocation1 + $0x1b] sm:$0xff]
        %369 = vrot.lane.b32.xlu0 %v367, 64
        %v370 = vpop.permute.xlu0 %369
        %v372 = vsel %vm184, %v365, 0
        %v375 = vsel %vm184, %v370, 0
        %377 = vmatpush.bf16.xpose.msra.mxu0 0
        %378 = vmatpush.bf16.xpose.msra.mxu0 0
        %379 = vmatpush.bf16.xpose.msra.mxu0 0
        %380 = vmatpush.bf16.xpose.msra.mxu0 0
        %381 = vmatpush.bf16.xpose.msra.mxu0 0
        %382 = vmatpush.bf16.xpose.msra.mxu0 0
        %383 = vmatpush.bf16.xpose.msra.mxu0 0
        %384 = vmatpush.bf16.xpose.msra.mxu0 %v375
        %385 = vmatmul.bf16.gmra.mxu0 %v372
        %v386 = vpop.f32.mrf.mxu0
        %v387 = vadd.f32 0.0, %v386
        %v388 = vpop.f32.mrf.mxu0
        %389 = vdwg.mxu0
        %v390 = vmul.f32 %v387, 0.125
        %v391 = vadd.f32 %v390, %v180
        %v392 = vsel %vm204, %v391, -inf
        %393 = vmax.xlane.f32.xlu0 %v392
        %v394 = vpop.xlane.xlu0 %393
        %v395 = vsub.f32 %v391, %v394
        %v396 = vmul.f32 %v395, 1.442695
        %v397 = vpow.pop %v396
        %v398 = vsel %vm204, %v397, 0.0
        %399 = vadd.xlane.f32.xlu0 %v398
        %v400 = vpop.xlane.xlu0 %399
        %v401 = vrcp.pop %v400
        %v402 = vmul.f32 %v397, %v401
        %v403 = vpack.c.bf16 %v402, %v402
        %404 = vst [vmem:[#allocation1] ss:$9 sm:$0xff] %v179
        %v405 = vld [vmem:[#allocation1 + $0x2d] sm:$0xff]
        %407 = vrot.lane.b32.xlu0 %v405, 64
        %v408 = vpop.permute.xlu0 %407
        %v410 = vsel %vm219, %v403, 0
        %v413 = vsel %vm223, %v408, 0
        %415 = vmatpush.bf16.msra.mxu0 0
        %416 = vmatpush.bf16.msra.mxu0 0
        %417 = vmatpush.bf16.msra.mxu0 0
        %418 = vmatpush.bf16.msra.mxu0 0
        %419 = vmatpush.bf16.msra.mxu0 0
        %420 = vmatpush.bf16.msra.mxu0 0
        %421 = vmatpush.bf16.msra.mxu0 0
        %422 = vmatpush.bf16.msra.mxu0 %v413
        %423 = vmatmul.bf16.gmra.mxu0 %v410
        %v424 = vpop.f32.mrf.mxu0
        %v425 = vadd.f32 0.0, %v424
        %v426 = vpop.f32.mrf.mxu0
        %427 = vdwg.mxu0
        %429 = vrot.lane.b32.xlu0 %v303, 64
        %v430 = vpop.permute.xlu0 %429
        %433 = vrot.lane.b32.xlu0 %v425, 64
        %v434 = vpop.permute.xlu0 %433
        %v436 = vsel %vm184, %v236, %v430
        %v437 = vsel %vm184, %v358, %v434
        %v438 = vpack.c.bf16 %v437, %v436
        %v440 = vrot.slane %v438, 3
        %v443 = vsel %vm223, %v438, %v440
        %445 = vst [vmem:[%s177] sm:$0x3] %v443
        %p446 = scmp.lt.s32.totalorder %s16, 1
        %s447 = scalar_select %p446, %s16, 1
        %s448 = smul.addr %s447, 2
        %s449 = scalar_lea.vmem %s2, %s448
        // Predicated region
        $region33: #{forward.34} parent=27 // pred_check
          %p450 = pneg %p86
        $region34: #{forward.34} parent=27 // pred_check_branch
          %452 = sbr.rel (%p450) target = $region36
        $region35: #{forward.34} parent=27 // pred_region
          _
        $region36: #{forward.34} parent=27 // pred_fallthru
          _
      $region28: #{forward.34} parent=5 // pred_fallthru
        _
      %p453 = scmp.le.s32.totalorder 2, %s11
      // Predicated region
      $region37: #{forward.34} parent=5 // pred_check
        %p454 = pneg %p453
      $region38: #{forward.34} parent=5 // pred_check_branch
        %456 = sbr.rel (%p454) target = $region40
      $region39: #{forward.34} parent=5 // pred_region
        %s457 = ssub.s32 %s11, 2
        // Predicated region
        $region41: #{forward.34} parent=39 // pred_check
          %p458 = pneg %p92
        $region42: #{forward.34} parent=39 // pred_check_branch
          %460 = sbr.rel (%p458) target = $region44
        $region43: #{forward.34} parent=39 // pred_region
          %p461 = scmp.lt.s32.totalorder %s17, 1
          %s462 = scalar_select %p461, %s17, 1
          %s463 = smul.addr %s462, 2
          %s464 = scalar_lea.vmem %s2, %s463
        $region44: #{forward.34} parent=39 // pred_fallthru
          _
      $region40: #{forward.34} parent=5 // pred_fallthru
        _
    $region6: #{forward.34} parent=1 // loop_footer
      %s15 = sadd.s32 1, %s11
    $region7: #{forward.34} parent=1 // loop_footer_branch
      %10 = sbr.rel target = $region3
    $region8: #{forward.34} parent=1 // loop_exit
      _
    %465 = vsyncpa [#allocation3], 1
    %s466 = scalar_lea.sflag [#allocation3], 1
    %467 = vsyncpa %s466, 1

// kernel: forward.36
$region0: #{forward.36}
  #allocation0 [shape = 'u32[]', space=smem, size = 0x4, offset = 0x4, fixed_abs, tag = 'smem constant byte address 0x4 - core index']
  #allocation1 [shape = 'u32[72,128]{1,0:T(1,128)}', space=vmem, size = 0x9000, scoped, tag = 'internal scratch']
  %s0 = inlined_call_operand.vmem [shape: bf16[4,256], index: 0, kind: input, shape index: {}]
  %s1 = inlined_call_operand.hbm [shape: bf16[256,512], index: 1, kind: input, shape index: {}]
  %s2 = inlined_call_operand.hbm [shape: f32[1,512], index: 2, kind: input, shape index: {}]
  %s3 = inlined_call_operand.vmem [shape: bf16[4,512], index: 3, kind: output, shape index: {}]
  %s4 = sld [smem:[#allocation0]]
  $region30: #{forward.36} parent=0
    _
  %s6 = ssub.s32 1, %s4
  %s7 = scalar_select 0, %s6, %s4
  $region1: #{forward.36} parent=0
    #allocation2 [shape = 'u8[262144]{0}', space=vmem, size = 0x40000, scoped, tag = 'input window, operand 1, single buffered']
    #allocation3 [shape = 's32[1]{0}', space=sflag, size = 0x4, scoped, tag = 'scoped memory for forward.36']
    #allocation4 [shape = 'u8[2048]{0}', space=vmem, size = 0x800, scoped, tag = 'input window, operand 2, single buffered']
    #allocation5 [shape = 's32[1]{0}', space=sflag, size = 0x4, scoped, tag = 'scoped memory for forward.36']
    %8 = vsyncpa [#allocation3], 0
    %9 = vsyncpa [#allocation5], 0
    // Predicated region
    $region2: #{forward.36} parent=1 // pred_check
      _
    $region3: #{forward.36} parent=1 // pred_check_branch
      %11 = sbr.rel (0) target = $region5
    $region4: #{forward.36} parent=1 // pred_region
      _
    $region5: #{forward.36} parent=1 // pred_fallthru
      _
    // Predicated region
    $region6: #{forward.36} parent=1 // pred_check
      _
    $region7: #{forward.36} parent=1 // pred_check_branch
      %13 = sbr.rel (0) target = $region9
    $region8: #{forward.36} parent=1 // pred_region
      %15 = vsyncadd [#allocation3], 0
      %s16 = sshll.u32 %s1, 4
      %s17 = int_to_ptr.hbm [resolvable:$true] %s16
      %s18 = sshll.u32 [#allocation2], 4
      %s19 = int_to_ptr.vmem [resolvable:$true] %s18
      %24 = dma.hbm_to_vmem [thread:$0]  %s17, 8192, %s19, [#allocation3], 256, 256, 16
    $region9: #{forward.36} parent=1 // pred_fallthru
      _
    // Predicated region
    $region10: #{forward.36} parent=1 // pred_check
      _
    $region11: #{forward.36} parent=1 // pred_check_branch
      %26 = sbr.rel (0) target = $region13
    $region12: #{forward.36} parent=1 // pred_region
      %28 = vsyncadd [#allocation5], 0
      %s30 = sshll.u32 %s2, 4
      %s31 = int_to_ptr.hbm [resolvable:$true] %s30
      %s32 = sshll.u32 [#allocation4], 4
      %s33 = int_to_ptr.vmem [resolvable:$true] %s32
      %35 = dma.hbm_to_vmem [thread:$0]  %s31, 64, %s33, [#allocation5]
    $region13: #{forward.36} parent=1 // pred_fallthru
      _
    // Predicated region
    $region14: #{forward.36} parent=1 // pred_check
      _
    $region15: #{forward.36} parent=1 // pred_check_branch
      %37 = sbr.rel (0) target = $region17
    $region16: #{forward.36} parent=1 // pred_region
      %39 = dma.done [#allocation3], 8192
    $region17: #{forward.36} parent=1 // pred_fallthru
      _
    // Predicated region
    $region18: #{forward.36} parent=1 // pred_check
      _
    $region19: #{forward.36} parent=1 // pred_check_branch
      %41 = sbr.rel (0) target = $region21
    $region20: #{forward.36} parent=1 // pred_region
      %43 = dma.done [#allocation5], 64
    $region21: #{forward.36} parent=1 // pred_fallthru
      _
    %v44 = vld [vmem:[%s0] sm:$0xf]
    %v45 = vld [vmem:[#allocation2] sm:$0xff]
    %v46 = vld [vmem:[#allocation2 + $0x8] sm:$0xff]
    %v47 = vld [vmem:[#allocation2 + $0x10] sm:$0xff]
    %v48 = vld [vmem:[#allocation2 + $0x18] sm:$0xff]
    %v49 = vld [vmem:[#allocation2 + $0x20] sm:$0xff]
    %v50 = vld [vmem:[#allocation2 + $0x28] sm:$0xff]
    %v51 = vld [vmem:[#allocation2 + $0x30] sm:$0xff]
    %v52 = vld [vmem:[#allocation2 + $0x38] sm:$0xff]
    %v53 = vld [vmem:[#allocation2 + $0x40] sm:$0xff]
    %v54 = vld [vmem:[#allocation2 + $0x48] sm:$0xff]
    %v55 = vld [vmem:[#allocation2 + $0x50] sm:$0xff]
    %v56 = vld [vmem:[#allocation2 + $0x58] sm:$0xff]
    %v57 = vld [vmem:[#allocation2 + $0x60] sm:$0xff]
    %v58 = vld [vmem:[#allocation2 + $0x68] sm:$0xff]
    %v59 = vld [vmem:[#allocation2 + $0x70] sm:$0xff]
    %v60 = vld [vmem:[#allocation2 + $0x78] sm:$0xff]
    %v61 = vld [vmem:[#allocation2 + $0x80] sm:$0xff]
    %v62 = vld [vmem:[#allocation2 + $0x88] sm:$0xff]
    %v63 = vld [vmem:[#allocation2 + $0x90] sm:$0xff]
    %v64 = vld [vmem:[#allocation2 + $0x98] sm:$0xff]
    %v65 = vld [vmem:[#allocation2 + $0xa0] sm:$0xff]
    %v66 = vld [vmem:[#allocation2 + $0xa8] sm:$0xff]
    %v67 = vld [vmem:[#allocation2 + $0xb0] sm:$0xff]
    %v68 = vld [vmem:[#allocation2 + $0xb8] sm:$0xff]
    %v69 = vld [vmem:[#allocation2 + $0xc0] sm:$0xff]
    %v70 = vld [vmem:[#allocation2 + $0xc8] sm:$0xff]
    %v71 = vld [vmem:[#allocation2 + $0xd0] sm:$0xff]
    %v72 = vld [vmem:[#allocation2 + $0xd8] sm:$0xff]
    %v73 = vld [vmem:[#allocation2 + $0xe0] sm:$0xff]
    %v74 = vld [vmem:[#allocation2 + $0xe8] sm:$0xff]
    %v75 = vld [vmem:[#allocation2 + $0xf0] sm:$0xff]
    %v76 = vld [vmem:[#allocation2 + $0xf8] sm:$0xff]
    %v77 = vld [vmem:[#allocation2 + $0x100] sm:$0xff]
    %v78 = vld [vmem:[#allocation2 + $0x108] sm:$0xff]
    %v79 = vld [vmem:[#allocation2 + $0x110] sm:$0xff]
    %v80 = vld [vmem:[#allocation2 + $0x118] sm:$0xff]
    %v81 = vld [vmem:[#allocation2 + $0x120] sm:$0xff]
    %v82 = vld [vmem:[#allocation2 + $0x128] sm:$0xff]
    %v83 = vld [vmem:[#allocation2 + $0x130] sm:$0xff]
    %v84 = vld [vmem:[#allocation2 + $0x138] sm:$0xff]
    %v85 = vld [vmem:[#allocation2 + $0x140] sm:$0xff]
    %v86 = vld [vmem:[#allocation2 + $0x148] sm:$0xff]
    %v87 = vld [vmem:[#allocation2 + $0x150] sm:$0xff]
    %v88 = vld [vmem:[#allocation2 + $0x158] sm:$0xff]
    %v89 = vld [vmem:[#allocation2 + $0x160] sm:$0xff]
    %v90 = vld [vmem:[#allocation2 + $0x168] sm:$0xff]
    %v91 = vld [vmem:[#allocation2 + $0x170] sm:$0xff]
    %v92 = vld [vmem:[#allocation2 + $0x178] sm:$0xff]
    %v93 = vld [vmem:[#allocation2 + $0x180] sm:$0xff]
    %v94 = vld [vmem:[#allocation2 + $0x188] sm:$0xff]
    %v95 = vld [vmem:[#allocation2 + $0x190] sm:$0xff]
    %v96 = vld [vmem:[#allocation2 + $0x198] sm:$0xff]
    %v97 = vld [vmem:[#allocation2 + $0x1a0] sm:$0xff]
    %v98 = vld [vmem:[#allocation2 + $0x1a8] sm:$0xff]
    %v99 = vld [vmem:[#allocation2 + $0x1b0] sm:$0xff]
    %v100 = vld [vmem:[#allocation2 + $0x1b8] sm:$0xff]
    %v101 = vld [vmem:[#allocation2 + $0x1c0] sm:$0xff]
    %v102 = vld [vmem:[#allocation2 + $0x1c8] sm:$0xff]
    %v103 = vld [vmem:[#allocation2 + $0x1d0] sm:$0xff]
    %v104 = vld [vmem:[#allocation2 + $0x1d8] sm:$0xff]
    %v105 = vld [vmem:[#allocation2 + $0x1e0] sm:$0xff]
    %v106 = vld [vmem:[#allocation2 + $0x1e8] sm:$0xff]
    %v107 = vld [vmem:[#allocation2 + $0x1f0] sm:$0xff]
    %v108 = vld [vmem:[#allocation2 + $0x1f8] sm:$0xff]
    %v109 = vld [vmem:[#allocation4] sm:$0xf]
    %v111 = vperm.slane %v109, 0
    %v112 = vperm.slane %v109, 1
    %v113 = vperm.slane %v109, 2
    %v114 = vperm.slane %v109, 3
    %120 = vst [vmem:[#allocation1] ss:$4 sm:$0xff] %v44
    %v121 = vld.sshfl [vmem:[#allocation1] sm:$0xff pattern:$0x73625140]
    %v122 = vld.sshfl [vmem:[#allocation1 + $0x8] sm:$0xff pattern:$0x73625140]
    %v189 = vunpack.c.l.b16 %v45
    %v190 = vunpack.c.h.b16 %v45
    %v191 = vunpack.c.l.b16 %v46
    %v192 = vunpack.c.h.b16 %v46
    %v193 = vunpack.c.l.b16 %v47
    %v194 = vunpack.c.h.b16 %v47
    %v195 = vunpack.c.l.b16 %v48
    %v196 = vunpack.c.h.b16 %v48
    %v197 = vunpack.c.l.b16 %v49
    %v198 = vunpack.c.h.b16 %v49
    %v199 = vunpack.c.l.b16 %v50
    %v200 = vunpack.c.h.b16 %v50
    %v201 = vunpack.c.l.b16 %v51
    %v202 = vunpack.c.h.b16 %v51
    %v203 = vunpack.c.l.b16 %v52
    %v204 = vunpack.c.h.b16 %v52
    %v205 = vunpack.c.l.b16 %v53
    %v206 = vunpack.c.h.b16 %v53
    %v207 = vunpack.c.l.b16 %v54
    %v208 = vunpack.c.h.b16 %v54
    %v209 = vunpack.c.l.b16 %v55
    %v210 = vunpack.c.h.b16 %v55
    %v211 = vunpack.c.l.b16 %v56
    %v212 = vunpack.c.h.b16 %v56
    %v213 = vunpack.c.l.b16 %v57
    %v214 = vunpack.c.h.b16 %v57
    %v215 = vunpack.c.l.b16 %v58
    %v216 = vunpack.c.h.b16 %v58
    %v217 = vunpack.c.l.b16 %v59
    %v218 = vunpack.c.h.b16 %v59
    %v219 = vunpack.c.l.b16 %v60
    %v220 = vunpack.c.h.b16 %v60
    %v221 = vunpack.c.l.b16 %v61
    %v222 = vunpack.c.h.b16 %v61
    %v223 = vunpack.c.l.b16 %v62
    %v224 = vunpack.c.h.b16 %v62
    %v225 = vunpack.c.l.b16 %v63
    %v226 = vunpack.c.h.b16 %v63
    %v227 = vunpack.c.l.b16 %v64
    %v228 = vunpack.c.h.b16 %v64
    %v229 = vunpack.c.l.b16 %v65
    %v230 = vunpack.c.h.b16 %v65
    %v231 = vunpack.c.l.b16 %v66
    %v232 = vunpack.c.h.b16 %v66
    %v233 = vunpack.c.l.b16 %v67
    %v234 = vunpack.c.h.b16 %v67
    %v235 = vunpack.c.l.b16 %v68
    %v236 = vunpack.c.h.b16 %v68
    %v237 = vunpack.c.l.b16 %v69
    %v238 = vunpack.c.h.b16 %v69
    %v239 = vunpack.c.l.b16 %v70
    %v240 = vunpack.c.h.b16 %v70
    %v241 = vunpack.c.l.b16 %v71
    %v242 = vunpack.c.h.b16 %v71
    %v243 = vunpack.c.l.b16 %v72
    %v244 = vunpack.c.h.b16 %v72
    %v245 = vunpack.c.l.b16 %v73
    %v246 = vunpack.c.h.b16 %v73
    %v247 = vunpack.c.l.b16 %v74
    %v248 = vunpack.c.h.b16 %v74
    %v249 = vunpack.c.l.b16 %v75
    %v250 = vunpack.c.h.b16 %v75
    %v251 = vunpack.c.l.b16 %v76
    %v252 = vunpack.c.h.b16 %v76
    %v253 = vunpack.c.l.b16 %v77
    %v254 = vunpack.c.h.b16 %v77
    %v255 = vunpack.c.l.b16 %v78
    %v256 = vunpack.c.h.b16 %v78
    %v257 = vunpack.c.l.b16 %v79
    %v258 = vunpack.c.h.b16 %v79
    %v259 = vunpack.c.l.b16 %v80
    %v260 = vunpack.c.h.b16 %v80
    %v261 = vunpack.c.l.b16 %v81
    %v262 = vunpack.c.h.b16 %v81
    %v263 = vunpack.c.l.b16 %v82
    %v264 = vunpack.c.h.b16 %v82
    %v265 = vunpack.c.l.b16 %v83
    %v266 = vunpack.c.h.b16 %v83
    %v267 = vunpack.c.l.b16 %v84
    %v268 = vunpack.c.h.b16 %v84
    %v269 = vunpack.c.l.b16 %v85
    %v270 = vunpack.c.h.b16 %v85
    %v271 = vunpack.c.l.b16 %v86
    %v272 = vunpack.c.h.b16 %v86
    %v273 = vunpack.c.l.b16 %v87
    %v274 = vunpack.c.h.b16 %v87
    %v275 = vunpack.c.l.b16 %v88
    %v276 = vunpack.c.h.b16 %v88
    %v277 = vunpack.c.l.b16 %v89
    %v278 = vunpack.c.h.b16 %v89
    %v279 = vunpack.c.l.b16 %v90
    %v280 = vunpack.c.h.b16 %v90
    %v281 = vunpack.c.l.b16 %v91
    %v282 = vunpack.c.h.b16 %v91
    %v283 = vunpack.c.l.b16 %v92
    %v284 = vunpack.c.h.b16 %v92
    %v285 = vunpack.c.l.b16 %v93
    %v286 = vunpack.c.h.b16 %v93
    %v287 = vunpack.c.l.b16 %v94
    %v288 = vunpack.c.h.b16 %v94
    %v289 = vunpack.c.l.b16 %v95
    %v290 = vunpack.c.h.b16 %v95
    %v291 = vunpack.c.l.b16 %v96
    %v292 = vunpack.c.h.b16 %v96
    %v293 = vunpack.c.l.b16 %v97
    %v294 = vunpack.c.h.b16 %v97
    %v295 = vunpack.c.l.b16 %v98
    %v296 = vunpack.c.h.b16 %v98
    %v297 = vunpack.c.l.b16 %v99
    %v298 = vunpack.c.h.b16 %v99
    %v299 = vunpack.c.l.b16 %v100
    %v300 = vunpack.c.h.b16 %v100
    %v301 = vunpack.c.l.b16 %v101
    %v302 = vunpack.c.h.b16 %v101
    %v303 = vunpack.c.l.b16 %v102
    %v304 = vunpack.c.h.b16 %v102
    %v305 = vunpack.c.l.b16 %v103
    %v306 = vunpack.c.h.b16 %v103
    %v307 = vunpack.c.l.b16 %v104
    %v308 = vunpack.c.h.b16 %v104
    %v309 = vunpack.c.l.b16 %v105
    %v310 = vunpack.c.h.b16 %v105
    %v311 = vunpack.c.l.b16 %v106
    %v312 = vunpack.c.h.b16 %v106
    %v313 = vunpack.c.l.b16 %v107
    %v314 = vunpack.c.h.b16 %v107
    %v315 = vunpack.c.l.b16 %v108
    %v316 = vunpack.c.h.b16 %v108
    %v317 = vpack.c.b16 %v193, %v189
    %v318 = vpack.c.b16 %v194, %v190
    %v319 = vpack.c.b16 %v195, %v191
    %v320 = vpack.c.b16 %v196, %v192
    %v321 = vpack.c.b16 %v201, %v197
    %v322 = vpack.c.b16 %v202, %v198
    %v323 = vpack.c.b16 %v203, %v199
    %v324 = vpack.c.b16 %v204, %v200
    %v325 = vpack.c.b16 %v209, %v205
    %v326 = vpack.c.b16 %v210, %v206
    %v327 = vpack.c.b16 %v211, %v207
    %v328 = vpack.c.b16 %v212, %v208
    %v329 = vpack.c.b16 %v217, %v213
    %v330 = vpack.c.b16 %v218, %v214
    %v331 = vpack.c.b16 %v219, %v215
    %v332 = vpack.c.b16 %v220, %v216
    %v333 = vpack.c.b16 %v225, %v221
    %v334 = vpack.c.b16 %v226, %v222
    %v335 = vpack.c.b16 %v227, %v223
    %v336 = vpack.c.b16 %v228, %v224
    %v337 = vpack.c.b16 %v233, %v229
    %v338 = vpack.c.b16 %v234, %v230
    %v339 = vpack.c.b16 %v235, %v231
    %v340 = vpack.c.b16 %v236, %v232
    %v341 = vpack.c.b16 %v241, %v237
    %v342 = vpack.c.b16 %v242, %v238
    %v343 = vpack.c.b16 %v243, %v239
    %v344 = vpack.c.b16 %v244, %v240
    %v345 = vpack.c.b16 %v249, %v245
    %v346 = vpack.c.b16 %v250, %v246
    %v347 = vpack.c.b16 %v251, %v247
    %v348 = vpack.c.b16 %v252, %v248
    %v349 = vpack.c.b16 %v257, %v253
    %v350 = vpack.c.b16 %v258, %v254
    %v351 = vpack.c.b16 %v259, %v255
    %v352 = vpack.c.b16 %v260, %v256
    %v353 = vpack.c.b16 %v265, %v261
    %v354 = vpack.c.b16 %v266, %v262
    %v355 = vpack.c.b16 %v267, %v263
    %v356 = vpack.c.b16 %v268, %v264
    %v357 = vpack.c.b16 %v273, %v269
    %v358 = vpack.c.b16 %v274, %v270
    %v359 = vpack.c.b16 %v275, %v271
    %v360 = vpack.c.b16 %v276, %v272
    %v361 = vpack.c.b16 %v281, %v277
    %v362 = vpack.c.b16 %v282, %v278
    %v363 = vpack.c.b16 %v283, %v279
    %v364 = vpack.c.b16 %v284, %v280
    %v365 = vpack.c.b16 %v289, %v285
    %v366 = vpack.c.b16 %v290, %v286
    %v367 = vpack.c.b16 %v291, %v287
    %v368 = vpack.c.b16 %v292, %v288
    %v369 = vpack.c.b16 %v297, %v293
    %v370 = vpack.c.b16 %v298, %v294
    %v371 = vpack.c.b16 %v299, %v295
    %v372 = vpack.c.b16 %v300, %v296
    %v373 = vpack.c.b16 %v305, %v301
    %v374 = vpack.c.b16 %v306, %v302
    %v375 = vpack.c.b16 %v307, %v303
    %v376 = vpack.c.b16 %v308, %v304
    %v377 = vpack.c.b16 %v313, %v309
    %v378 = vpack.c.b16 %v314, %v310
    %v379 = vpack.c.b16 %v315, %v311
    %v380 = vpack.c.b16 %v316, %v312
    %445 = vmatpush.bf16.msra.mxu0 %v345
    %446 = vmatpush.bf16.msra.mxu0 %v341
    %447 = vmatpush.bf16.msra.mxu0 %v337
    %448 = vmatpush.bf16.msra.mxu0 %v333
    %449 = vmatpush.bf16.msra.mxu0 %v329
    %450 = vmatpush.bf16.msra.mxu0 %v325
    %451 = vmatpush.bf16.msra.mxu0 %v321
    %452 = vmatpush.bf16.msra.mxu0 %v317
    %453 = vmatmul.bf16.gmra.mxu0 %v121
    %v454 = vpop.f32.mrf.mxu0
    %v455 = vadd.f32 %v111, %v454
    %v456 = vpop.f32.mrf.mxu0
    %457 = vdwg.mxu0
    %458 = vmatpush.bf16.msra.mxu0 %v377
    %459 = vmatpush.bf16.msra.mxu0 %v373
    %460 = vmatpush.bf16.msra.mxu0 %v369
    %461 = vmatpush.bf16.msra.mxu0 %v365
    %462 = vmatpush.bf16.msra.mxu0 %v361
    %463 = vmatpush.bf16.msra.mxu0 %v357
    %464 = vmatpush.bf16.msra.mxu0 %v353
    %465 = vmatpush.bf16.msra.mxu0 %v349
    %466 = vmatmul.bf16.gmra.mxu0 %v122
    %v467 = vpop.f32.mrf.mxu0
    %v468 = vadd.f32 %v455, %v467
    %v469 = vpop.f32.mrf.mxu0
    %470 = vdwg.mxu0
    %471 = vmatpush.bf16.msra.mxu0 %v346
    %472 = vmatpush.bf16.msra.mxu0 %v342
    %473 = vmatpush.bf16.msra.mxu0 %v338
    %474 = vmatpush.bf16.msra.mxu0 %v334
    %475 = vmatpush.bf16.msra.mxu0 %v330
    %476 = vmatpush.bf16.msra.mxu0 %v326
    %477 = vmatpush.bf16.msra.mxu0 %v322
    %478 = vmatpush.bf16.msra.mxu0 %v318
    %479 = vmatmul.bf16.gmra.mxu0 %v121
    %v480 = vpop.f32.mrf.mxu0
    %v481 = vadd.f32 %v112, %v480
    %v482 = vpop.f32.mrf.mxu0
    %483 = vdwg.mxu0
    %484 = vmatpush.bf16.msra.mxu0 %v378
    %485 = vmatpush.bf16.msra.mxu0 %v374
    %486 = vmatpush.bf16.msra.mxu0 %v370
    %487 = vmatpush.bf16.msra.mxu0 %v366
    %488 = vmatpush.bf16.msra.mxu0 %v362
    %489 = vmatpush.bf16.msra.mxu0 %v358
    %490 = vmatpush.bf16.msra.mxu0 %v354
    %491 = vmatpush.bf16.msra.mxu0 %v350
    %492 = vmatmul.bf16.gmra.mxu0 %v122
    %v493 = vpop.f32.mrf.mxu0
    %v494 = vadd.f32 %v481, %v493
    %v495 = vpop.f32.mrf.mxu0
    %496 = vdwg.mxu0
    %497 = vmatpush.bf16.msra.mxu0 %v347
    %498 = vmatpush.bf16.msra.mxu0 %v343
    %499 = vmatpush.bf16.msra.mxu0 %v339
    %500 = vmatpush.bf16.msra.mxu0 %v335
    %501 = vmatpush.bf16.msra.mxu0 %v331
    %502 = vmatpush.bf16.msra.mxu0 %v327
    %503 = vmatpush.bf16.msra.mxu0 %v323
    %504 = vmatpush.bf16.msra.mxu0 %v319
    %505 = vmatmul.bf16.gmra.mxu0 %v121
    %v506 = vpop.f32.mrf.mxu0
    %v507 = vadd.f32 %v113, %v506
    %v508 = vpop.f32.mrf.mxu0
    %509 = vdwg.mxu0
    %510 = vmatpush.bf16.msra.mxu0 %v379
    %511 = vmatpush.bf16.msra.mxu0 %v375
    %512 = vmatpush.bf16.msra.mxu0 %v371
    %513 = vmatpush.bf16.msra.mxu0 %v367
    %514 = vmatpush.bf16.msra.mxu0 %v363
    %515 = vmatpush.bf16.msra.mxu0 %v359
    %516 = vmatpush.bf16.msra.mxu0 %v355
    %517 = vmatpush.bf16.msra.mxu0 %v351
    %518 = vmatmul.bf16.gmra.mxu0 %v122
    %v519 = vpop.f32.mrf.mxu0
    %v520 = vadd.f32 %v507, %v519
    %v521 = vpop.f32.mrf.mxu0
    %522 = vdwg.mxu0
    %523 = vmatpush.bf16.msra.mxu0 %v348
    %524 = vmatpush.bf16.msra.mxu0 %v344
    %525 = vmatpush.bf16.msra.mxu0 %v340
    %526 = vmatpush.bf16.msra.mxu0 %v336
    %527 = vmatpush.bf16.msra.mxu0 %v332
    %528 = vmatpush.bf16.msra.mxu0 %v328
    %529 = vmatpush.bf16.msra.mxu0 %v324
    %530 = vmatpush.bf16.msra.mxu0 %v320
    %531 = vmatmul.bf16.gmra.mxu0 %v121
    %v532 = vpop.f32.mrf.mxu0
    %v533 = vadd.f32 %v114, %v532
    %v534 = vpop.f32.mrf.mxu0
    %535 = vdwg.mxu0
    %536 = vmatpush.bf16.msra.mxu0 %v380
    %537 = vmatpush.bf16.msra.mxu0 %v376
    %538 = vmatpush.bf16.msra.mxu0 %v372
    %539 = vmatpush.bf16.msra.mxu0 %v368
    %540 = vmatpush.bf16.msra.mxu0 %v364
    %541 = vmatpush.bf16.msra.mxu0 %v360
    %542 = vmatpush.bf16.msra.mxu0 %v356
    %543 = vmatpush.bf16.msra.mxu0 %v352
    %544 = vmatmul.bf16.gmra.mxu0 %v122
    %v545 = vpop.f32.mrf.mxu0
    %v546 = vadd.f32 %v533, %v545
    %v547 = vpop.f32.mrf.mxu0
    %548 = vdwg.mxu0
    %v549 = vmax.f32 %v468, 0.0
    %v550 = vmax.f32 %v494, 0.0
    %v551 = vmax.f32 %v520, 0.0
    %v552 = vmax.f32 %v546, 0.0
    %v553 = vpack.c.bf16 %v550, %v549
    %v554 = vpack.c.bf16 %v552, %v551
    %v557 = vrot.slane %v553, 2
    %v558 = vrot.slane %v554, 4
    %v559 = vrot.slane %v554, 6
    %vm560 = vcmask 1041408
    %v563 = vsel %vm560, %v553, %v557
    %vm564 = vcmask 1045508
    %v567 = vsel %vm564, %v558, %v559
    %vm568 = vcmask 1043456
    %v569 = vsel %vm568, %v563, %v567
    %571 = vst [vmem:[%s3] sm:$0xff] %v569
    // Predicated region
    $region22: #{forward.36} parent=1 // pred_check
      _
    $region23: #{forward.36} parent=1 // pred_check_branch
      %573 = sbr.rel (0) target = $region25
    $region24: #{forward.36} parent=1 // pred_region
      _
    $region25: #{forward.36} parent=1 // pred_fallthru
      _
    // Predicated region
    $region26: #{forward.36} parent=1 // pred_check
      _
    $region27: #{forward.36} parent=1 // pred_check_branch
      %575 = sbr.rel (0) target = $region29
    $region28: #{forward.36} parent=1 // pred_region
      _
    $region29: #{forward.36} parent=1 // pred_fallthru
      _
    %576 = vsyncpa [#allocation3], 1
    %577 = vsyncpa [#allocation5], 1

// kernel: forward.35
$region0: #{forward.35}
  #allocation0 [shape = 'u32[]', space=smem, size = 0x4, offset = 0x4, fixed_abs, tag = 'smem constant byte address 0x4 - core index']
  #allocation1 [shape = 'u32[72,128]{1,0:T(1,128)}', space=vmem, size = 0x9000, scoped, tag = 'internal scratch']
  %s0 = inlined_call_operand.vmem [shape: bf16[4,256], index: 0, kind: input, shape index: {}]
  %s1 = inlined_call_operand.hbm [shape: bf16[256,256], index: 1, kind: input, shape index: {}]
  %s2 = inlined_call_operand.hbm [shape: f32[1,256], index: 2, kind: input, shape index: {}]
  %s3 = inlined_call_operand.vmem [shape: bf16[4,256], index: 3, kind: input, shape index: {}]
  %s4 = inlined_call_operand.hbm [shape: f32[1,256], index: 4, kind: input, shape index: {}]
  %s5 = inlined_call_operand.hbm [shape: f32[1,256], index: 5, kind: input, shape index: {}]
  %s6 = inlined_call_operand.vmem [shape: bf16[4,256], index: 6, kind: output, shape index: {}]
  %s7 = sld [smem:[#allocation0]]
  $region50: #{forward.35} parent=0
    _
  %s9 = ssub.s32 1, %s7
  %s10 = scalar_select 0, %s9, %s7
  $region1: #{forward.35} parent=0
    #allocation2 [shape = 'u8[131072]{0}', space=vmem, size = 0x20000, scoped, tag = 'input window, operand 1, single buffered']
    #allocation3 [shape = 's32[1]{0}', space=sflag, size = 0x4, scoped, tag = 'scoped memory for forward.35']
    #allocation4 [shape = 'u8[1024]{0}', space=vmem, size = 0x400, scoped, tag = 'input window, operand 2, single buffered']
    #allocation5 [shape = 's32[1]{0}', space=sflag, size = 0x4, scoped, tag = 'scoped memory for forward.35']
    #allocation6 [shape = 'u8[1024]{0}', space=vmem, size = 0x400, scoped, tag = 'input window, operand 4, single buffered']
    #allocation7 [shape = 'u8[1024]{0}', space=vmem, size = 0x400, scoped, tag = 'input window, operand 5, single buffered']
    #allocation8 [shape = 's32[1]{0}', space=sflag, size = 0x4, scoped, tag = 'scoped memory for forward.35']
    %11 = vsyncpa [#allocation3], 0
    %12 = vsyncpa [#allocation5], 0
    %13 = vsyncpa [#allocation8], 0
    // Predicated region
    $region2: #{forward.35} parent=1 // pred_check
      _
    $region3: #{forward.35} parent=1 // pred_check_branch
      %15 = sbr.rel (0) target = $region5
    $region4: #{forward.35} parent=1 // pred_region
      _
    $region5: #{forward.35} parent=1 // pred_fallthru
      _
    // Predicated region
    $region6: #{forward.35} parent=1 // pred_check
      _
    $region7: #{forward.35} parent=1 // pred_check_branch
      %17 = sbr.rel (0) target = $region9
    $region8: #{forward.35} parent=1 // pred_region
      %19 = vsyncadd [#allocation3], 0
      %s20 = sshll.u32 %s1, 4
      %s21 = int_to_ptr.hbm [resolvable:$true] %s20
      %s22 = sshll.u32 [#allocation2], 4
      %s23 = int_to_ptr.vmem [resolvable:$true] %s22
      %28 = dma.hbm_to_vmem [thread:$0]  %s21, 4096, %s23, [#allocation3], 128, 128, 8
    $region9: #{forward.35} parent=1 // pred_fallthru
      _
    // Predicated region
    $region10: #{forward.35} parent=1 // pred_check
      _
    $region11: #{forward.35} parent=1 // pred_check_branch
      %30 = sbr.rel (0) target = $region13
    $region12: #{forward.35} parent=1 // pred_region
      %32 = vsyncadd [#allocation5], 0
      %s34 = sshll.u32 %s2, 4
      %s35 = int_to_ptr.hbm [resolvable:$true] %s34
      %s36 = sshll.u32 [#allocation4], 4
      %s37 = int_to_ptr.vmem [resolvable:$true] %s36
      %39 = dma.hbm_to_vmem [thread:$0]  %s35, 32, %s37, [#allocation5]
    $region13: #{forward.35} parent=1 // pred_fallthru
      _
    // Predicated region
    $region14: #{forward.35} parent=1 // pred_check
      _
    $region15: #{forward.35} parent=1 // pred_check_branch
      %41 = sbr.rel (0) target = $region17
    $region16: #{forward.35} parent=1 // pred_region
      _
    $region17: #{forward.35} parent=1 // pred_fallthru
      _
    // Predicated region
    $region18: #{forward.35} parent=1 // pred_check
      _
    $region19: #{forward.35} parent=1 // pred_check_branch
      %43 = sbr.rel (0) target = $region21
    $region20: #{forward.35} parent=1 // pred_region
      %45 = vsyncadd [#allocation5], 0
      %s47 = sshll.u32 %s4, 4
      %s48 = int_to_ptr.hbm [resolvable:$true] %s47
      %s49 = sshll.u32 [#allocation6], 4
      %s50 = int_to_ptr.vmem [resolvable:$true] %s49
      %52 = dma.hbm_to_vmem [thread:$0]  %s48, 32, %s50, [#allocation5]
    $region21: #{forward.35} parent=1 // pred_fallthru
      _
    // Predicated region
    $region22: #{forward.35} parent=1 // pred_check
      _
    $region23: #{forward.35} parent=1 // pred_check_branch
      %54 = sbr.rel (0) target = $region25
    $region24: #{forward.35} parent=1 // pred_region
      %56 = vsyncadd [#allocation8], 0
      %s58 = sshll.u32 %s5, 4
      %s59 = int_to_ptr.hbm [resolvable:$true] %s58
      %s60 = sshll.u32 [#allocation7], 4
      %s61 = int_to_ptr.vmem [resolvable:$true] %s60
      %63 = dma.hbm_to_vmem [thread:$0]  %s59, 32, %s61, [#allocation8]
    $region25: #{forward.35} parent=1 // pred_fallthru
      _
    // Predicated region
    $region26: #{forward.35} parent=1 // pred_check
      _
    $region27: #{forward.35} parent=1 // pred_check_branch
      %65 = sbr.rel (0) target = $region29
    $region28: #{forward.35} parent=1 // pred_region
      %67 = dma.done [#allocation3], 4096
    $region29: #{forward.35} parent=1 // pred_fallthru
      _
    // Predicated region
    $region30: #{forward.35} parent=1 // pred_check
      _
    $region31: #{forward.35} parent=1 // pred_check_branch
      %69 = sbr.rel (0) target = $region33
    $region32: #{forward.35} parent=1 // pred_region
      %71 = dma.done [#allocation5], 32
    $region33: #{forward.35} parent=1 // pred_fallthru
      _
    // Predicated region
    $region34: #{forward.35} parent=1 // pred_check
      _
    $region35: #{forward.35} parent=1 // pred_check_branch
      %73 = sbr.rel (0) target = $region37
    $region36: #{forward.35} parent=1 // pred_region
      %75 = dma.done [#allocation5], 32
    $region37: #{forward.35} parent=1 // pred_fallthru
      _
    // Predicated region
    $region38: #{forward.35} parent=1 // pred_check
      _
    $region39: #{forward.35} parent=1 // pred_check_branch
      %77 = sbr.rel (0) target = $region41
    $region40: #{forward.35} parent=1 // pred_region
      %79 = dma.done [#allocation8], 32
    $region41: #{forward.35} parent=1 // pred_fallthru
      _
    %v80 = vld [vmem:[%s0] sm:$0xf]
    %v81 = vld [vmem:[#allocation2] sm:$0xff]
    %v82 = vld [vmem:[#allocation2 + $0x8] sm:$0xff]
    %v83 = vld [vmem:[#allocation2 + $0x10] sm:$0xff]
    %v84 = vld [vmem:[#allocation2 + $0x18] sm:$0xff]
    %v85 = vld [vmem:[#allocation2 + $0x20] sm:$0xff]
    %v86 = vld [vmem:[#allocation2 + $0x28] sm:$0xff]
    %v87 = vld [vmem:[#allocation2 + $0x30] sm:$0xff]
    %v88 = vld [vmem:[#allocation2 + $0x38] sm:$0xff]
    %v89 = vld [vmem:[#allocation2 + $0x40] sm:$0xff]
    %v90 = vld [vmem:[#allocation2 + $0x48] sm:$0xff]
    %v91 = vld [vmem:[#allocation2 + $0x50] sm:$0xff]
    %v92 = vld [vmem:[#allocation2 + $0x58] sm:$0xff]
    %v93 = vld [vmem:[#allocation2 + $0x60] sm:$0xff]
    %v94 = vld [vmem:[#allocation2 + $0x68] sm:$0xff]
    %v95 = vld [vmem:[#allocation2 + $0x70] sm:$0xff]
    %v96 = vld [vmem:[#allocation2 + $0x78] sm:$0xff]
    %v97 = vld [vmem:[#allocation2 + $0x80] sm:$0xff]
    %v98 = vld [vmem:[#allocation2 + $0x88] sm:$0xff]
    %v99 = vld [vmem:[#allocation2 + $0x90] sm:$0xff]
    %v100 = vld [vmem:[#allocation2 + $0x98] sm:$0xff]
    %v101 = vld [vmem:[#allocation2 + $0xa0] sm:$0xff]
    %v102 = vld [vmem:[#allocation2 + $0xa8] sm:$0xff]
    %v103 = vld [vmem:[#allocation2 + $0xb0] sm:$0xff]
    %v104 = vld [vmem:[#allocation2 + $0xb8] sm:$0xff]
    %v105 = vld [vmem:[#allocation2 + $0xc0] sm:$0xff]
    %v106 = vld [vmem:[#allocation2 + $0xc8] sm:$0xff]
    %v107 = vld [vmem:[#allocation2 + $0xd0] sm:$0xff]
    %v108 = vld [vmem:[#allocation2 + $0xd8] sm:$0xff]
    %v109 = vld [vmem:[#allocation2 + $0xe0] sm:$0xff]
    %v110 = vld [vmem:[#allocation2 + $0xe8] sm:$0xff]
    %v111 = vld [vmem:[#allocation2 + $0xf0] sm:$0xff]
    %v112 = vld [vmem:[#allocation2 + $0xf8] sm:$0xff]
    %v113 = vld [vmem:[#allocation4] sm:$0x3]
    %v115 = vperm.slane %v113, 0
    %v116 = vperm.slane %v113, 1
    %120 = vst [vmem:[#allocation1] ss:$4 sm:$0xff] %v80
    %v121 = vld.sshfl [vmem:[#allocation1] sm:$0xff pattern:$0x73625140]
    %v122 = vld.sshfl [vmem:[#allocation1 + $0x8] sm:$0xff pattern:$0x73625140]
    %v157 = vunpack.c.l.b16 %v81
    %v158 = vunpack.c.h.b16 %v81
    %v159 = vunpack.c.l.b16 %v82
    %v160 = vunpack.c.h.b16 %v82
    %v161 = vunpack.c.l.b16 %v83
    %v162 = vunpack.c.h.b16 %v83
    %v163 = vunpack.c.l.b16 %v84
    %v164 = vunpack.c.h.b16 %v84
    %v165 = vunpack.c.l.b16 %v85
    %v166 = vunpack.c.h.b16 %v85
    %v167 = vunpack.c.l.b16 %v86
    %v168 = vunpack.c.h.b16 %v86
    %v169 = vunpack.c.l.b16 %v87
    %v170 = vunpack.c.h.b16 %v87
    %v171 = vunpack.c.l.b16 %v88
    %v172 = vunpack.c.h.b16 %v88
    %v173 = vunpack.c.l.b16 %v89
    %v174 = vunpack.c.h.b16 %v89
    %v175 = vunpack.c.l.b16 %v90
    %v176 = vunpack.c.h.b16 %v90
    %v177 = vunpack.c.l.b16 %v91
    %v178 = vunpack.c.h.b16 %v91
    %v179 = vunpack.c.l.b16 %v92
    %v180 = vunpack.c.h.b16 %v92
    %v181 = vunpack.c.l.b16 %v93
    %v182 = vunpack.c.h.b16 %v93
    %v183 = vunpack.c.l.b16 %v94
    %v184 = vunpack.c.h.b16 %v94
    %v185 = vunpack.c.l.b16 %v95
    %v186 = vunpack.c.h.b16 %v95
    %v187 = vunpack.c.l.b16 %v96
    %v188 = vunpack.c.h.b16 %v96
    %v189 = vunpack.c.l.b16 %v97
    %v190 = vunpack.c.h.b16 %v97
    %v191 = vunpack.c.l.b16 %v98
    %v192 = vunpack.c.h.b16 %v98
    %v193 = vunpack.c.l.b16 %v99
    %v194 = vunpack.c.h.b16 %v99
    %v195 = vunpack.c.l.b16 %v100
    %v196 = vunpack.c.h.b16 %v100
    %v197 = vunpack.c.l.b16 %v101
    %v198 = vunpack.c.h.b16 %v101
    %v199 = vunpack.c.l.b16 %v102
    %v200 = vunpack.c.h.b16 %v102
    %v201 = vunpack.c.l.b16 %v103
    %v202 = vunpack.c.h.b16 %v103
    %v203 = vunpack.c.l.b16 %v104
    %v204 = vunpack.c.h.b16 %v104
    %v205 = vunpack.c.l.b16 %v105
    %v206 = vunpack.c.h.b16 %v105
    %v207 = vunpack.c.l.b16 %v106
    %v208 = vunpack.c.h.b16 %v106
    %v209 = vunpack.c.l.b16 %v107
    %v210 = vunpack.c.h.b16 %v107
    %v211 = vunpack.c.l.b16 %v108
    %v212 = vunpack.c.h.b16 %v108
    %v213 = vunpack.c.l.b16 %v109
    %v214 = vunpack.c.h.b16 %v109
    %v215 = vunpack.c.l.b16 %v110
    %v216 = vunpack.c.h.b16 %v110
    %v217 = vunpack.c.l.b16 %v111
    %v218 = vunpack.c.h.b16 %v111
    %v219 = vunpack.c.l.b16 %v112
    %v220 = vunpack.c.h.b16 %v112
    %v221 = vpack.c.b16 %v159, %v157
    %v222 = vpack.c.b16 %v160, %v158
    %v223 = vpack.c.b16 %v163, %v161
    %v224 = vpack.c.b16 %v164, %v162
    %v225 = vpack.c.b16 %v167, %v165
    %v226 = vpack.c.b16 %v168, %v166
    %v227 = vpack.c.b16 %v171, %v169
    %v228 = vpack.c.b16 %v172, %v170
    %v229 = vpack.c.b16 %v175, %v173
    %v230 = vpack.c.b16 %v176, %v174
    %v231 = vpack.c.b16 %v179, %v177
    %v232 = vpack.c.b16 %v180, %v178
    %v233 = vpack.c.b16 %v183, %v181
    %v234 = vpack.c.b16 %v184, %v182
    %v235 = vpack.c.b16 %v187, %v185
    %v236 = vpack.c.b16 %v188, %v186
    %v237 = vpack.c.b16 %v191, %v189
    %v238 = vpack.c.b16 %v192, %v190
    %v239 = vpack.c.b16 %v195, %v193
    %v240 = vpack.c.b16 %v196, %v194
    %v241 = vpack.c.b16 %v199, %v197
    %v242 = vpack.c.b16 %v200, %v198
    %v243 = vpack.c.b16 %v203, %v201
    %v244 = vpack.c.b16 %v204, %v202
    %v245 = vpack.c.b16 %v207, %v205
    %v246 = vpack.c.b16 %v208, %v206
    %v247 = vpack.c.b16 %v211, %v209
    %v248 = vpack.c.b16 %v212, %v210
    %v249 = vpack.c.b16 %v215, %v213
    %v250 = vpack.c.b16 %v216, %v214
    %v251 = vpack.c.b16 %v219, %v217
    %v252 = vpack.c.b16 %v220, %v218
    %285 = vmatpush.bf16.msra.mxu0 %v235
    %286 = vmatpush.bf16.msra.mxu0 %v233
    %287 = vmatpush.bf16.msra.mxu0 %v231
    %288 = vmatpush.bf16.msra.mxu0 %v229
    %289 = vmatpush.bf16.msra.mxu0 %v227
    %290 = vmatpush.bf16.msra.mxu0 %v225
    %291 = vmatpush.bf16.msra.mxu0 %v223
    %292 = vmatpush.bf16.msra.mxu0 %v221
    %293 = vmatmul.bf16.gmra.mxu0 %v121
    %v294 = vpop.f32.mrf.mxu0
    %v295 = vadd.f32 %v115, %v294
    %v296 = vpop.f32.mrf.mxu0
    %297 = vdwg.mxu0
    %298 = vmatpush.bf16.msra.mxu0 %v251
    %299 = vmatpush.bf16.msra.mxu0 %v249
    %300 = vmatpush.bf16.msra.mxu0 %v247
    %301 = vmatpush.bf16.msra.mxu0 %v245
    %302 = vmatpush.bf16.msra.mxu0 %v243
    %303 = vmatpush.bf16.msra.mxu0 %v241
    %304 = vmatpush.bf16.msra.mxu0 %v239
    %305 = vmatpush.bf16.msra.mxu0 %v237
    %306 = vmatmul.bf16.gmra.mxu0 %v122
    %v307 = vpop.f32.mrf.mxu0
    %v308 = vadd.f32 %v295, %v307
    %v309 = vpop.f32.mrf.mxu0
    %310 = vdwg.mxu0
    %311 = vmatpush.bf16.msra.mxu0 %v236
    %312 = vmatpush.bf16.msra.mxu0 %v234
    %313 = vmatpush.bf16.msra.mxu0 %v232
    %314 = vmatpush.bf16.msra.mxu0 %v230
    %315 = vmatpush.bf16.msra.mxu0 %v228
    %316 = vmatpush.bf16.msra.mxu0 %v226
    %317 = vmatpush.bf16.msra.mxu0 %v224
    %318 = vmatpush.bf16.msra.mxu0 %v222
    %319 = vmatmul.bf16.gmra.mxu0 %v121
    %v320 = vpop.f32.mrf.mxu0
    %v321 = vadd.f32 %v116, %v320
    %v322 = vpop.f32.mrf.mxu0
    %323 = vdwg.mxu0
    %324 = vmatpush.bf16.msra.mxu0 %v252
    %325 = vmatpush.bf16.msra.mxu0 %v250
    %326 = vmatpush.bf16.msra.mxu0 %v248
    %327 = vmatpush.bf16.msra.mxu0 %v246
    %328 = vmatpush.bf16.msra.mxu0 %v244
    %329 = vmatpush.bf16.msra.mxu0 %v242
    %330 = vmatpush.bf16.msra.mxu0 %v240
    %331 = vmatpush.bf16.msra.mxu0 %v238
    %332 = vmatmul.bf16.gmra.mxu0 %v122
    %v333 = vpop.f32.mrf.mxu0
    %v334 = vadd.f32 %v321, %v333
    %v335 = vpop.f32.mrf.mxu0
    %336 = vdwg.mxu0
    %v337 = vld [vmem:[%s3] sm:$0xf]
    %v338 = vunpack.c.l.bf16 %v337
    %340 = vst [vmem:[#allocation1] ss:$2 sm:$0xff] %v338
    %v341 = vld.sshfl [vmem:[#allocation1] sm:$0xff pattern:$0x75316420]
    %v342 = vld.sshfl [vmem:[#allocation1 + $0x8] sm:$0xff pattern:$0x75316420]
    %v345 = vadd.f32 %v308, %v341
    %v346 = vadd.f32 %v334, %v342
    %vm347 = vcmask 1043456
    %v348 = vsel %vm347, %v345, 0.0
    %v349 = vsel %vm347, %v346, 0.0
    %v350 = vadd.f32 %v348, %v349
    %351 = vadd.xlane.f32.xlu0 %v350
    %v352 = vpop.xlane.xlu0 %351
    %v353 = vrcp.pop 256.0
    %v354 = vmul.f32 256.0, %v353
    %v355 = vsub.f32 1.0, %v354
    %v356 = vmul.f32 %v353, %v355
    %v357 = vadd.f32 %v353, %v356
    %vm358 = vweird.f32 %v353
    %v359 = vsel %vm358, %v353, %v357
    %v360 = vmul.f32 %v352, %v359
    %v361 = vsub.f32 %v345, %v360
    %v362 = vsub.f32 %v346, %v360
    %v363 = vmul.f32 %v361, %v361
    %v364 = vmul.f32 %v362, %v362
    %v365 = vsel %vm347, %v363, 0.0
    %v366 = vsel %vm347, %v364, 0.0
    %v367 = vadd.f32 %v365, %v366
    %368 = vadd.xlane.f32.xlu0 %v367
    %v369 = vpop.xlane.xlu0 %368
    %v370 = vmul.f32 %v369, %v359
    %v371 = vadd.f32 %v370, 1e-05
    %v372 = vrsqrt.pop %v371
    %v373 = vmul.f32 %v372, %v371
    %v374 = vmul.f32 %v373, %v372
    %v375 = vmul.f32 0.5, %v374
    %v376 = vsub.f32 1.5, %v375
    %v377 = vmul.f32 %v372, %v376
    %vm378 = vweird.f32 %v371
    %vm379 = vweird.f32 %v372
    %vm380 = vmor %vm378, %vm379
    %v381 = vsel %vm380, %v372, %v377
    %v382 = vmul.f32 %v361, %v381
    %v383 = vmul.f32 %v362, %v381
    %v384 = vld [vmem:[#allocation6] sm:$0x3]
    %v386 = vperm.slane %v384, 0
    %v387 = vperm.slane %v384, 1
    %v390 = vmul.f32 %v382, %v386
    %v391 = vmul.f32 %v383, %v387
    %v392 = vld [vmem:[#allocation7] sm:$0x3]
    %v394 = vperm.slane %v392, 0
    %v395 = vperm.slane %v392, 1
    %v398 = vadd.f32 %v390, %v394
    %v399 = vadd.f32 %v391, %v395
    %v400 = vpack.c.bf16 %v399, %v398
    %v402 = vrot.slane %v400, 2
    %vm403 = vcmask 1041408
    %v406 = vsel %vm403, %v400, %v402
    %408 = vst [vmem:[%s6] sm:$0xf] %v406
    // Predicated region
    $region42: #{forward.35} parent=1 // pred_check
      _
    $region43: #{forward.35} parent=1 // pred_check_branch
      %410 = sbr.rel (0) target = $region45
    $region44: #{forward.35} parent=1 // pred_region
      _
    $region45: #{forward.35} parent=1 // pred_fallthru
      _
    // Predicated region
    $region46: #{forward.35} parent=1 // pred_check
      _
    $region47: #{forward.35} parent=1 // pred_check_branch
      %412 = sbr.rel (0) target = $region49
    $region48: #{forward.35} parent=1 // pred_region
      _
    $region49: #{forward.35} parent=1 // pred_fallthru
      _
    %413 = vsyncpa [#allocation3], 1
    %414 = vsyncpa [#allocation5], 1
    %415 = vsyncpa [#allocation8], 1

// kernel: forward.53
$region0: #{forward.53}
  #allocation0 [shape = 'u32[]', space=smem, size = 0x4, offset = 0x4, fixed_abs, tag = 'smem constant byte address 0x4 - core index']
  #allocation1 [shape = 'u32[72,128]{1,0:T(1,128)}', space=vmem, size = 0x9000, scoped, tag = 'internal scratch']
  %s0 = inlined_call_operand.vmem [shape: bf16[4,256], index: 0, kind: input, shape index: {}]
  %s1 = inlined_call_operand.hbm [shape: bf16[256,128], index: 1, kind: input, shape index: {}]
  %s2 = inlined_call_operand.hbm [shape: f32[1,128], index: 2, kind: input, shape index: {}]
  %s3 = inlined_call_operand.hbm [shape: f32[4,128], index: 3, kind: output, shape index: {}]
  %s4 = sld [smem:[#allocation0]]
  $region30: #{forward.53} parent=0
    _
  %s6 = ssub.s32 1, %s4
  %s7 = scalar_select 0, %s6, %s4
  $region1: #{forward.53} parent=0
    #allocation2 [shape = 'u8[65536]{0}', space=vmem, size = 0x10000, scoped, tag = 'input window, operand 1, single buffered']
    #allocation3 [shape = 's32[1]{0}', space=sflag, size = 0x4, scoped, tag = 'scoped memory for forward.53']
    #allocation4 [shape = 's32[1]{0}', space=sflag, size = 0x4, scoped, tag = 'scoped memory for forward.53']
    #allocation5 [shape = 'u8[512]{0}', space=vmem, size = 0x400, scoped, tag = 'input window, operand 2, single buffered']
    #allocation6 [shape = 's32[1]{0}', space=sflag, size = 0x4, scoped, tag = 'scoped memory for forward.53']
    #allocation7 [shape = 'u8[2048]{0}', space=vmem, size = 0x800, scoped, tag = 'output window, operand 0, single buffered']
    %8 = vsyncpa [#allocation3], 0
    %9 = vsyncpa [#allocation6], 0
    %10 = vsyncpa [#allocation4], 0
    // Predicated region
    $region2: #{forward.53} parent=1 // pred_check
      _
    $region3: #{forward.53} parent=1 // pred_check_branch
      %12 = sbr.rel (0) target = $region5
    $region4: #{forward.53} parent=1 // pred_region
      _
    $region5: #{forward.53} parent=1 // pred_fallthru
      _
    // Predicated region
    $region6: #{forward.53} parent=1 // pred_check
      _
    $region7: #{forward.53} parent=1 // pred_check_branch
      %14 = sbr.rel (0) target = $region9
    $region8: #{forward.53} parent=1 // pred_region
      %16 = vsyncadd [#allocation3], 0
      %s17 = sshll.u32 %s1, 4
      %s18 = int_to_ptr.hbm [resolvable:$true] %s17
      %s19 = sshll.u32 [#allocation2], 4
      %s20 = int_to_ptr.vmem [resolvable:$true] %s19
      %25 = dma.hbm_to_vmem [thread:$0]  %s18, 2048, %s20, [#allocation3], 64, 64, 4
    $region9: #{forward.53} parent=1 // pred_fallthru
      _
    // Predicated region
    $region10: #{forward.53} parent=1 // pred_check
      _
    $region11: #{forward.53} parent=1 // pred_check_branch
      %27 = sbr.rel (0) target = $region13
    $region12: #{forward.53} parent=1 // pred_region
      %29 = vsyncadd [#allocation6], 0
      %s31 = sshll.u32 %s2, 4
      %s32 = int_to_ptr.hbm [resolvable:$true] %s31
      %s33 = sshll.u32 [#allocation5], 4
      %s34 = int_to_ptr.vmem [resolvable:$true] %s33
      %36 = dma.hbm_to_vmem [thread:$0]  %s32, 16, %s34, [#allocation6]
    $region13: #{forward.53} parent=1 // pred_fallthru
      _
    // Predicated region
    $region14: #{forward.53} parent=1 // pred_check
      _
    $region15: #{forward.53} parent=1 // pred_check_branch
      %38 = sbr.rel (0) target = $region17
    $region16: #{forward.53} parent=1 // pred_region
      %40 = dma.done [#allocation3], 2048
    $region17: #{forward.53} parent=1 // pred_fallthru
      _
    // Predicated region
    $region18: #{forward.53} parent=1 // pred_check
      _
    $region19: #{forward.53} parent=1 // pred_check_branch
      %42 = sbr.rel (0) target = $region21
    $region20: #{forward.53} parent=1 // pred_region
      %44 = dma.done [#allocation6], 16
    $region21: #{forward.53} parent=1 // pred_fallthru
      _
    %v45 = vld [vmem:[%s0] sm:$0xf]
    %v46 = vld [vmem:[#allocation2] sm:$0xf]
    %v47 = vld [vmem:[#allocation2 + $0x4] sm:$0xf]
    %v48 = vld [vmem:[#allocation2 + $0x8] sm:$0xf]
    %v49 = vld [vmem:[#allocation2 + $0xc] sm:$0xf]
    %v50 = vld [vmem:[#allocation2 + $0x10] sm:$0xf]
    %v51 = vld [vmem:[#allocation2 + $0x14] sm:$0xf]
    %v52 = vld [vmem:[#allocation2 + $0x18] sm:$0xf]
    %v53 = vld [vmem:[#allocation2 + $0x1c] sm:$0xf]
    %v54 = vld [vmem:[#allocation2 + $0x20] sm:$0xf]
    %v55 = vld [vmem:[#allocation2 + $0x24] sm:$0xf]
    %v56 = vld [vmem:[#allocation2 + $0x28] sm:$0xf]
    %v57 = vld [vmem:[#allocation2 + $0x2c] sm:$0xf]
    %v58 = vld [vmem:[#allocation2 + $0x30] sm:$0xf]
    %v59 = vld [vmem:[#allocation2 + $0x34] sm:$0xf]
    %v60 = vld [vmem:[#allocation2 + $0x38] sm:$0xf]
    %v61 = vld [vmem:[#allocation2 + $0x3c] sm:$0xf]
    %v62 = vld [vmem:[#allocation2 + $0x40] sm:$0xf]
    %v63 = vld [vmem:[#allocation2 + $0x44] sm:$0xf]
    %v64 = vld [vmem:[#allocation2 + $0x48] sm:$0xf]
    %v65 = vld [vmem:[#allocation2 + $0x4c] sm:$0xf]
    %v66 = vld [vmem:[#allocation2 + $0x50] sm:$0xf]
    %v67 = vld [vmem:[#allocation2 + $0x54] sm:$0xf]
    %v68 = vld [vmem:[#allocation2 + $0x58] sm:$0xf]
    %v69 = vld [vmem:[#allocation2 + $0x5c] sm:$0xf]
    %v70 = vld [vmem:[#allocation2 + $0x60] sm:$0xf]
    %v71 = vld [vmem:[#allocation2 + $0x64] sm:$0xf]
    %v72 = vld [vmem:[#allocation2 + $0x68] sm:$0xf]
    %v73 = vld [vmem:[#allocation2 + $0x6c] sm:$0xf]
    %v74 = vld [vmem:[#allocation2 + $0x70] sm:$0xf]
    %v75 = vld [vmem:[#allocation2 + $0x74] sm:$0xf]
    %v76 = vld [vmem:[#allocation2 + $0x78] sm:$0xf]
    %v77 = vld [vmem:[#allocation2 + $0x7c] sm:$0xf]
    %v78 = vld [vmem:[#allocation5] sm:$0x1]
    %v80 = vperm.slane %v78, 0
    %83 = vst [vmem:[#allocation1] ss:$4 sm:$0xff] %v45
    %v84 = vld.sshfl [vmem:[#allocation1] sm:$0xff pattern:$0x73625140]
    %v85 = vld.sshfl [vmem:[#allocation1 + $0x8] sm:$0xff pattern:$0x73625140]
    %v120 = vunpack.c.l.b16 %v46
    %v121 = vunpack.c.l.b16 %v47
    %v122 = vunpack.c.l.b16 %v48
    %v123 = vunpack.c.l.b16 %v49
    %v124 = vunpack.c.l.b16 %v50
    %v125 = vunpack.c.l.b16 %v51
    %v126 = vunpack.c.l.b16 %v52
    %v127 = vunpack.c.l.b16 %v53
    %v128 = vunpack.c.l.b16 %v54
    %v129 = vunpack.c.l.b16 %v55
    %v130 = vunpack.c.l.b16 %v56
    %v131 = vunpack.c.l.b16 %v57
    %v132 = vunpack.c.l.b16 %v58
    %v133 = vunpack.c.l.b16 %v59
    %v134 = vunpack.c.l.b16 %v60
    %v135 = vunpack.c.l.b16 %v61
    %v136 = vunpack.c.l.b16 %v62
    %v137 = vunpack.c.l.b16 %v63
    %v138 = vunpack.c.l.b16 %v64
    %v139 = vunpack.c.l.b16 %v65
    %v140 = vunpack.c.l.b16 %v66
    %v141 = vunpack.c.l.b16 %v67
    %v142 = vunpack.c.l.b16 %v68
    %v143 = vunpack.c.l.b16 %v69
    %v144 = vunpack.c.l.b16 %v70
    %v145 = vunpack.c.l.b16 %v71
    %v146 = vunpack.c.l.b16 %v72
    %v147 = vunpack.c.l.b16 %v73
    %v148 = vunpack.c.l.b16 %v74
    %v149 = vunpack.c.l.b16 %v75
    %v150 = vunpack.c.l.b16 %v76
    %v151 = vunpack.c.l.b16 %v77
    %v152 = vpack.c.b16 %v121, %v120
    %v153 = vpack.c.b16 %v123, %v122
    %v154 = vpack.c.b16 %v125, %v124
    %v155 = vpack.c.b16 %v127, %v126
    %v156 = vpack.c.b16 %v129, %v128
    %v157 = vpack.c.b16 %v131, %v130
    %v158 = vpack.c.b16 %v133, %v132
    %v159 = vpack.c.b16 %v135, %v134
    %v160 = vpack.c.b16 %v137, %v136
    %v161 = vpack.c.b16 %v139, %v138
    %v162 = vpack.c.b16 %v141, %v140
    %v163 = vpack.c.b16 %v143, %v142
    %v164 = vpack.c.b16 %v145, %v144
    %v165 = vpack.c.b16 %v147, %v146
    %v166 = vpack.c.b16 %v149, %v148
    %v167 = vpack.c.b16 %v151, %v150
    %184 = vmatpush.bf16.msra.mxu0 %v159
    %185 = vmatpush.bf16.msra.mxu0 %v158
    %186 = vmatpush.bf16.msra.mxu0 %v157
    %187 = vmatpush.bf16.msra.mxu0 %v156
    %188 = vmatpush.bf16.msra.mxu0 %v155
    %189 = vmatpush.bf16.msra.mxu0 %v154
    %190 = vmatpush.bf16.msra.mxu0 %v153
    %191 = vmatpush.bf16.msra.mxu0 %v152
    %192 = vmatmul.bf16.gmra.mxu0 %v84
    %v193 = vpop.f32.mrf.mxu0
    %v194 = vadd.f32 %v80, %v193
    %v195 = vpop.f32.mrf.mxu0
    %196 = vdwg.mxu0
    %197 = vmatpush.bf16.msra.mxu0 %v167
    %198 = vmatpush.bf16.msra.mxu0 %v166
    %199 = vmatpush.bf16.msra.mxu0 %v165
    %200 = vmatpush.bf16.msra.mxu0 %v164
    %201 = vmatpush.bf16.msra.mxu0 %v163
    %202 = vmatpush.bf16.msra.mxu0 %v162
    %203 = vmatpush.bf16.msra.mxu0 %v161
    %204 = vmatpush.bf16.msra.mxu0 %v160
    %205 = vmatmul.bf16.gmra.mxu0 %v85
    %v206 = vpop.f32.mrf.mxu0
    %v207 = vadd.f32 %v194, %v206
    %v208 = vpop.f32.mrf.mxu0
    %209 = vdwg.mxu0
    %v210 = vxor.u32 %v207, 2147483648
    %v211 = vmul.f32 %v210, 1.442695
    %v212 = vpow.pop %v211
    %v213 = vadd.f32 %v212, 1.0
    %v214 = vrcp.pop %v213
    %v215 = vmul.f32 %v213, %v214
    %v216 = vsub.f32 1.0, %v215
    %v217 = vmul.f32 %v214, %v216
    %v218 = vadd.f32 %v214, %v217
    %vm219 = vweird.f32 %v213
    %vm220 = vweird.f32 %v214
    %vm221 = vmor %vm219, %vm220
    %v222 = vsel %vm221, %v214, %v218
    %v223 = vand.u32 2147483647, %v213
    %vm224 = vcmp.eq.f32.partialorder %v223, 8.507059e+37
    %v225 = vand.u32 %v213, 2147483648
    %v226 = vor.u32 1.1754944e-38, %v225
    %v227 = vsel %vm224, %v226, %v222
    %v228 = vmul.f32 1.0, %v227
    %229 = vst [vmem:[#allocation7] sm:$0xf] %v228
    // Predicated region
    $region22: #{forward.53} parent=1 // pred_check
      _
    $region23: #{forward.53} parent=1 // pred_check_branch
      %231 = sbr.rel (0) target = $region25
    $region24: #{forward.53} parent=1 // pred_region
      %233 = vsyncadd [#allocation4], 0
      %s235 = sshll.u32 [#allocation7], 4
      %s236 = int_to_ptr.vmem [resolvable:$true] %s235
      %s237 = sshll.u32 %s3, 4
      %s238 = int_to_ptr.hbm [resolvable:$true] %s237
      %240 = dma.vmem_to_hbm [thread:$0]  %s236, 64, %s238, [#allocation4]
    $region25: #{forward.53} parent=1 // pred_fallthru
      _
    // Predicated region
    $region26: #{forward.53} parent=1 // pred_check
      _
    $region27: #{forward.53} parent=1 // pred_check_branch
      %242 = sbr.rel (0) target = $region29
    $region28: #{forward.53} parent=1 // pred_region
      %244 = dma.done [#allocation4], 64
    $region29: #{forward.53} parent=1 // pred_fallthru
      _
    %245 = vsyncpa [#allocation3], 1
    %246 = vsyncpa [#allocation6], 1
    %247 = vsyncpa [#allocation4], 1

// kernel: forward.30
$region0: #{forward.30}
  #allocation0 [shape = 'u32[]', space=smem, size = 0x4, offset = 0x4, fixed_abs, tag = 'smem constant byte address 0x4 - core index']
  #allocation1 [shape = 'u32[72,128]{1,0:T(1,128)}', space=vmem, size = 0x9000, scoped, tag = 'internal scratch']
  %s0 = inlined_call_operand.vmem [shape: bf16[4,256], index: 0, kind: input, shape index: {}]
  %s1 = inlined_call_operand.hbm [shape: bf16[256,256], index: 1, kind: input, shape index: {}]
  %s2 = inlined_call_operand.hbm [shape: f32[1,256], index: 2, kind: input, shape index: {}]
  %s3 = inlined_call_operand.vmem [shape: bf16[4,256], index: 3, kind: output, shape index: {}]
  %s4 = sld [smem:[#allocation0]]
  $region30: #{forward.30} parent=0
    _
  %s6 = ssub.s32 1, %s4
  %s7 = scalar_select 0, %s6, %s4
  $region1: #{forward.30} parent=0
    #allocation2 [shape = 'u8[131072]{0}', space=vmem, size = 0x20000, scoped, tag = 'input window, operand 1, single buffered']
    #allocation3 [shape = 's32[1]{0}', space=sflag, size = 0x4, scoped, tag = 'scoped memory for forward.30']
    #allocation4 [shape = 'u8[1024]{0}', space=vmem, size = 0x400, scoped, tag = 'input window, operand 2, single buffered']
    #allocation5 [shape = 's32[1]{0}', space=sflag, size = 0x4, scoped, tag = 'scoped memory for forward.30']
    %8 = vsyncpa [#allocation3], 0
    %9 = vsyncpa [#allocation5], 0
    // Predicated region
    $region2: #{forward.30} parent=1 // pred_check
      _
    $region3: #{forward.30} parent=1 // pred_check_branch
      %11 = sbr.rel (0) target = $region5
    $region4: #{forward.30} parent=1 // pred_region
      _
    $region5: #{forward.30} parent=1 // pred_fallthru
      _
    // Predicated region
    $region6: #{forward.30} parent=1 // pred_check
      _
    $region7: #{forward.30} parent=1 // pred_check_branch
      %13 = sbr.rel (0) target = $region9
    $region8: #{forward.30} parent=1 // pred_region
      %15 = vsyncadd [#allocation3], 0
      %s16 = sshll.u32 %s1, 4
      %s17 = int_to_ptr.hbm [resolvable:$true] %s16
      %s18 = sshll.u32 [#allocation2], 4
      %s19 = int_to_ptr.vmem [resolvable:$true] %s18
      %24 = dma.hbm_to_vmem [thread:$0]  %s17, 4096, %s19, [#allocation3], 128, 128, 8
    $region9: #{forward.30} parent=1 // pred_fallthru
      _
    // Predicated region
    $region10: #{forward.30} parent=1 // pred_check
      _
    $region11: #{forward.30} parent=1 // pred_check_branch
      %26 = sbr.rel (0) target = $region13
    $region12: #{forward.30} parent=1 // pred_region
      %28 = vsyncadd [#allocation5], 0
      %s30 = sshll.u32 %s2, 4
      %s31 = int_to_ptr.hbm [resolvable:$true] %s30
      %s32 = sshll.u32 [#allocation4], 4
      %s33 = int_to_ptr.vmem [resolvable:$true] %s32
      %35 = dma.hbm_to_vmem [thread:$0]  %s31, 32, %s33, [#allocation5]
    $region13: #{forward.30} parent=1 // pred_fallthru
      _
    // Predicated region
    $region14: #{forward.30} parent=1 // pred_check
      _
    $region15: #{forward.30} parent=1 // pred_check_branch
      %37 = sbr.rel (0) target = $region17
    $region16: #{forward.30} parent=1 // pred_region
      %39 = dma.done [#allocation3], 4096
    $region17: #{forward.30} parent=1 // pred_fallthru
      _
    // Predicated region
    $region18: #{forward.30} parent=1 // pred_check
      _
    $region19: #{forward.30} parent=1 // pred_check_branch
      %41 = sbr.rel (0) target = $region21
    $region20: #{forward.30} parent=1 // pred_region
      %43 = dma.done [#allocation5], 32
    $region21: #{forward.30} parent=1 // pred_fallthru
      _
    %v44 = vld [vmem:[%s0] sm:$0xf]
    %v45 = vunpack.c.l.bf16 %v44
    %v46 = vmax.f32 %v45, 0.0
    %v47 = vmul.f32 %v46, 0.999995
    %49 = vst [vmem:[#allocation1] ss:$2 sm:$0xff] %v47
    %v50 = vld.sshfl [vmem:[#allocation1] sm:$0xff pattern:$0x75316420]
    %v51 = vld.sshfl [vmem:[#allocation1 + $0x8] sm:$0xff pattern:$0x75316420]
    %v54 = vpack.c.bf16 %v50, %v50
    %v55 = vpack.c.bf16 %v51, %v51
    %v56 = vld [vmem:[#allocation2] sm:$0xff]
    %v57 = vld [vmem:[#allocation2 + $0x8] sm:$0xff]
    %v58 = vld [vmem:[#allocation2 + $0x10] sm:$0xff]
    %v59 = vld [vmem:[#allocation2 + $0x18] sm:$0xff]
    %v60 = vld [vmem:[#allocation2 + $0x20] sm:$0xff]
    %v61 = vld [vmem:[#allocation2 + $0x28] sm:$0xff]
    %v62 = vld [vmem:[#allocation2 + $0x30] sm:$0xff]
    %v63 = vld [vmem:[#allocation2 + $0x38] sm:$0xff]
    %v64 = vld [vmem:[#allocation2 + $0x40] sm:$0xff]
    %v65 = vld [vmem:[#allocation2 + $0x48] sm:$0xff]
    %v66 = vld [vmem:[#allocation2 + $0x50] sm:$0xff]
    %v67 = vld [vmem:[#allocation2 + $0x58] sm:$0xff]
    %v68 = vld [vmem:[#allocation2 + $0x60] sm:$0xff]
    %v69 = vld [vmem:[#allocation2 + $0x68] sm:$0xff]
    %v70 = vld [vmem:[#allocation2 + $0x70] sm:$0xff]
    %v71 = vld [vmem:[#allocation2 + $0x78] sm:$0xff]
    %v72 = vld [vmem:[#allocation2 + $0x80] sm:$0xff]
    %v73 = vld [vmem:[#allocation2 + $0x88] sm:$0xff]
    %v74 = vld [vmem:[#allocation2 + $0x90] sm:$0xff]
    %v75 = vld [vmem:[#allocation2 + $0x98] sm:$0xff]
    %v76 = vld [vmem:[#allocation2 + $0xa0] sm:$0xff]
    %v77 = vld [vmem:[#allocation2 + $0xa8] sm:$0xff]
    %v78 = vld [vmem:[#allocation2 + $0xb0] sm:$0xff]
    %v79 = vld [vmem:[#allocation2 + $0xb8] sm:$0xff]
    %v80 = vld [vmem:[#allocation2 + $0xc0] sm:$0xff]
    %v81 = vld [vmem:[#allocation2 + $0xc8] sm:$0xff]
    %v82 = vld [vmem:[#allocation2 + $0xd0] sm:$0xff]
    %v83 = vld [vmem:[#allocation2 + $0xd8] sm:$0xff]
    %v84 = vld [vmem:[#allocation2 + $0xe0] sm:$0xff]
    %v85 = vld [vmem:[#allocation2 + $0xe8] sm:$0xff]
    %v86 = vld [vmem:[#allocation2 + $0xf0] sm:$0xff]
    %v87 = vld [vmem:[#allocation2 + $0xf8] sm:$0xff]
    %v88 = vld [vmem:[#allocation4] sm:$0x3]
    %v90 = vperm.slane %v88, 0
    %v91 = vperm.slane %v88, 1
    %v126 = vunpack.c.l.b16 %v56
    %v127 = vunpack.c.h.b16 %v56
    %v128 = vunpack.c.l.b16 %v57
    %v129 = vunpack.c.h.b16 %v57
    %v130 = vunpack.c.l.b16 %v58
    %v131 = vunpack.c.h.b16 %v58
    %v132 = vunpack.c.l.b16 %v59
    %v133 = vunpack.c.h.b16 %v59
    %v134 = vunpack.c.l.b16 %v60
    %v135 = vunpack.c.h.b16 %v60
    %v136 = vunpack.c.l.b16 %v61
    %v137 = vunpack.c.h.b16 %v61
    %v138 = vunpack.c.l.b16 %v62
    %v139 = vunpack.c.h.b16 %v62
    %v140 = vunpack.c.l.b16 %v63
    %v141 = vunpack.c.h.b16 %v63
    %v142 = vunpack.c.l.b16 %v64
    %v143 = vunpack.c.h.b16 %v64
    %v144 = vunpack.c.l.b16 %v65
    %v145 = vunpack.c.h.b16 %v65
    %v146 = vunpack.c.l.b16 %v66
    %v147 = vunpack.c.h.b16 %v66
    %v148 = vunpack.c.l.b16 %v67
    %v149 = vunpack.c.h.b16 %v67
    %v150 = vunpack.c.l.b16 %v68
    %v151 = vunpack.c.h.b16 %v68
    %v152 = vunpack.c.l.b16 %v69
    %v153 = vunpack.c.h.b16 %v69
    %v154 = vunpack.c.l.b16 %v70
    %v155 = vunpack.c.h.b16 %v70
    %v156 = vunpack.c.l.b16 %v71
    %v157 = vunpack.c.h.b16 %v71
    %v158 = vunpack.c.l.b16 %v72
    %v159 = vunpack.c.h.b16 %v72
    %v160 = vunpack.c.l.b16 %v73
    %v161 = vunpack.c.h.b16 %v73
    %v162 = vunpack.c.l.b16 %v74
    %v163 = vunpack.c.h.b16 %v74
    %v164 = vunpack.c.l.b16 %v75
    %v165 = vunpack.c.h.b16 %v75
    %v166 = vunpack.c.l.b16 %v76
    %v167 = vunpack.c.h.b16 %v76
    %v168 = vunpack.c.l.b16 %v77
    %v169 = vunpack.c.h.b16 %v77
    %v170 = vunpack.c.l.b16 %v78
    %v171 = vunpack.c.h.b16 %v78
    %v172 = vunpack.c.l.b16 %v79
    %v173 = vunpack.c.h.b16 %v79
    %v174 = vunpack.c.l.b16 %v80
    %v175 = vunpack.c.h.b16 %v80
    %v176 = vunpack.c.l.b16 %v81
    %v177 = vunpack.c.h.b16 %v81
    %v178 = vunpack.c.l.b16 %v82
    %v179 = vunpack.c.h.b16 %v82
    %v180 = vunpack.c.l.b16 %v83
    %v181 = vunpack.c.h.b16 %v83
    %v182 = vunpack.c.l.b16 %v84
    %v183 = vunpack.c.h.b16 %v84
    %v184 = vunpack.c.l.b16 %v85
    %v185 = vunpack.c.h.b16 %v85
    %v186 = vunpack.c.l.b16 %v86
    %v187 = vunpack.c.h.b16 %v86
    %v188 = vunpack.c.l.b16 %v87
    %v189 = vunpack.c.h.b16 %v87
    %v190 = vpack.c.b16 %v128, %v126
    %v191 = vpack.c.b16 %v129, %v127
    %v192 = vpack.c.b16 %v132, %v130
    %v193 = vpack.c.b16 %v133, %v131
    %v194 = vpack.c.b16 %v136, %v134
    %v195 = vpack.c.b16 %v137, %v135
    %v196 = vpack.c.b16 %v140, %v138
    %v197 = vpack.c.b16 %v141, %v139
    %v198 = vpack.c.b16 %v144, %v142
    %v199 = vpack.c.b16 %v145, %v143
    %v200 = vpack.c.b16 %v148, %v146
    %v201 = vpack.c.b16 %v149, %v147
    %v202 = vpack.c.b16 %v152, %v150
    %v203 = vpack.c.b16 %v153, %v151
    %v204 = vpack.c.b16 %v156, %v154
    %v205 = vpack.c.b16 %v157, %v155
    %v206 = vpack.c.b16 %v160, %v158
    %v207 = vpack.c.b16 %v161, %v159
    %v208 = vpack.c.b16 %v164, %v162
    %v209 = vpack.c.b16 %v165, %v163
    %v210 = vpack.c.b16 %v168, %v166
    %v211 = vpack.c.b16 %v169, %v167
    %v212 = vpack.c.b16 %v172, %v170
    %v213 = vpack.c.b16 %v173, %v171
    %v214 = vpack.c.b16 %v176, %v174
    %v215 = vpack.c.b16 %v177, %v175
    %v216 = vpack.c.b16 %v180, %v178
    %v217 = vpack.c.b16 %v181, %v179
    %v218 = vpack.c.b16 %v184, %v182
    %v219 = vpack.c.b16 %v185, %v183
    %v220 = vpack.c.b16 %v188, %v186
    %v221 = vpack.c.b16 %v189, %v187
    %254 = vmatpush.bf16.msra.mxu0 %v204
    %255 = vmatpush.bf16.msra.mxu0 %v202
    %256 = vmatpush.bf16.msra.mxu0 %v200
    %257 = vmatpush.bf16.msra.mxu0 %v198
    %258 = vmatpush.bf16.msra.mxu0 %v196
    %259 = vmatpush.bf16.msra.mxu0 %v194
    %260 = vmatpush.bf16.msra.mxu0 %v192
    %261 = vmatpush.bf16.msra.mxu0 %v190
    %262 = vmatmul.bf16.gmra.mxu0 %v54
    %v263 = vpop.f32.mrf.mxu0
    %v264 = vadd.f32 %v90, %v263
    %v265 = vpop.f32.mrf.mxu0
    %266 = vdwg.mxu0
    %267 = vmatpush.bf16.msra.mxu0 %v220
    %268 = vmatpush.bf16.msra.mxu0 %v218
    %269 = vmatpush.bf16.msra.mxu0 %v216
    %270 = vmatpush.bf16.msra.mxu0 %v214
    %271 = vmatpush.bf16.msra.mxu0 %v212
    %272 = vmatpush.bf16.msra.mxu0 %v210
    %273 = vmatpush.bf16.msra.mxu0 %v208
    %274 = vmatpush.bf16.msra.mxu0 %v206
    %275 = vmatmul.bf16.gmra.mxu0 %v55
    %v276 = vpop.f32.mrf.mxu0
    %v277 = vadd.f32 %v264, %v276
    %v278 = vpop.f32.mrf.mxu0
    %279 = vdwg.mxu0
    %280 = vmatpush.bf16.msra.mxu0 %v205
    %281 = vmatpush.bf16.msra.mxu0 %v203
    %282 = vmatpush.bf16.msra.mxu0 %v201
    %283 = vmatpush.bf16.msra.mxu0 %v199
    %284 = vmatpush.bf16.msra.mxu0 %v197
    %285 = vmatpush.bf16.msra.mxu0 %v195
    %286 = vmatpush.bf16.msra.mxu0 %v193
    %287 = vmatpush.bf16.msra.mxu0 %v191
    %288 = vmatmul.bf16.gmra.mxu0 %v54
    %v289 = vpop.f32.mrf.mxu0
    %v290 = vadd.f32 %v91, %v289
    %v291 = vpop.f32.mrf.mxu0
    %292 = vdwg.mxu0
    %293 = vmatpush.bf16.msra.mxu0 %v221
    %294 = vmatpush.bf16.msra.mxu0 %v219
    %295 = vmatpush.bf16.msra.mxu0 %v217
    %296 = vmatpush.bf16.msra.mxu0 %v215
    %297 = vmatpush.bf16.msra.mxu0 %v213
    %298 = vmatpush.bf16.msra.mxu0 %v211
    %299 = vmatpush.bf16.msra.mxu0 %v209
    %300 = vmatpush.bf16.msra.mxu0 %v207
    %301 = vmatmul.bf16.gmra.mxu0 %v55
    %v302 = vpop.f32.mrf.mxu0
    %v303 = vadd.f32 %v290, %v302
    %v304 = vpop.f32.mrf.mxu0
    %305 = vdwg.mxu0
    %v306 = vmax.f32 %v277, 0.0
    %v307 = vmax.f32 %v303, 0.0
    %v308 = vmul.f32 %v306, 0.999995
    %v309 = vmul.f32 %v307, 0.999995
    %v310 = vpack.c.bf16 %v309, %v308
    %v312 = vrot.slane %v310, 2
    %vm313 = vcmask 1041408
    %v316 = vsel %vm313, %v310, %v312
    %318 = vst [vmem:[%s3] sm:$0xf] %v316
    // Predicated region
    $region22: #{forward.30} parent=1 // pred_check
      _
    $region23: #{forward.30} parent=1 // pred_check_branch
      %320 = sbr.rel (0) target = $region25
    $region24: #{forward.30} parent=1 // pred_region
      _
    $region25: #{forward.30} parent=1 // pred_fallthru
      _
    // Predicated region
    $region26: #{forward.30} parent=1 // pred_check
      _
    $region27: #{forward.30} parent=1 // pred_check_branch
      %322 = sbr.rel (0) target = $region29
    $region28: #{forward.30} parent=1 // pred_region
      _
    $region29: #{forward.30} parent=1 // pred_fallthru
      _
    %323 = vsyncpa [#allocation3], 1
    %324 = vsyncpa [#allocation5], 1

// kernel: forward.31
$region0: #{forward.31}
  #allocation0 [shape = 'u32[]', space=smem, size = 0x4, offset = 0x4, fixed_abs, tag = 'smem constant byte address 0x4 - core index']
  #allocation1 [shape = 'u32[72,128]{1,0:T(1,128)}', space=vmem, size = 0x9000, scoped, tag = 'internal scratch']
  %s0 = inlined_call_operand.vmem [shape: bf16[4,256], index: 0, kind: input, shape index: {}]
  %s1 = inlined_call_operand.hbm [shape: bf16[256,128], index: 1, kind: input, shape index: {}]
  %s2 = inlined_call_operand.hbm [shape: f32[1,128], index: 2, kind: input, shape index: {}]
  %s3 = inlined_call_operand.hbm [shape: f32[4,128], index: 3, kind: output, shape index: {}]
  %s4 = sld [smem:[#allocation0]]
  $region30: #{forward.31} parent=0
    _
  %s6 = ssub.s32 1, %s4
  %s7 = scalar_select 0, %s6, %s4
  $region1: #{forward.31} parent=0
    #allocation2 [shape = 'u8[65536]{0}', space=vmem, size = 0x10000, scoped, tag = 'input window, operand 1, single buffered']
    #allocation3 [shape = 's32[1]{0}', space=sflag, size = 0x4, scoped, tag = 'scoped memory for forward.31']
    #allocation4 [shape = 's32[1]{0}', space=sflag, size = 0x4, scoped, tag = 'scoped memory for forward.31']
    #allocation5 [shape = 'u8[512]{0}', space=vmem, size = 0x400, scoped, tag = 'input window, operand 2, single buffered']
    #allocation6 [shape = 's32[1]{0}', space=sflag, size = 0x4, scoped, tag = 'scoped memory for forward.31']
    #allocation7 [shape = 'u8[2048]{0}', space=vmem, size = 0x800, scoped, tag = 'output window, operand 0, single buffered']
    %8 = vsyncpa [#allocation3], 0
    %9 = vsyncpa [#allocation6], 0
    %10 = vsyncpa [#allocation4], 0
    // Predicated region
    $region2: #{forward.31} parent=1 // pred_check
      _
    $region3: #{forward.31} parent=1 // pred_check_branch
      %12 = sbr.rel (0) target = $region5
    $region4: #{forward.31} parent=1 // pred_region
      _
    $region5: #{forward.31} parent=1 // pred_fallthru
      _
    // Predicated region
    $region6: #{forward.31} parent=1 // pred_check
      _
    $region7: #{forward.31} parent=1 // pred_check_branch
      %14 = sbr.rel (0) target = $region9
    $region8: #{forward.31} parent=1 // pred_region
      %16 = vsyncadd [#allocation3], 0
      %s17 = sshll.u32 %s1, 4
      %s18 = int_to_ptr.hbm [resolvable:$true] %s17
      %s19 = sshll.u32 [#allocation2], 4
      %s20 = int_to_ptr.vmem [resolvable:$true] %s19
      %25 = dma.hbm_to_vmem [thread:$0]  %s18, 2048, %s20, [#allocation3], 64, 64, 4
    $region9: #{forward.31} parent=1 // pred_fallthru
      _
    // Predicated region
    $region10: #{forward.31} parent=1 // pred_check
      _
    $region11: #{forward.31} parent=1 // pred_check_branch
      %27 = sbr.rel (0) target = $region13
    $region12: #{forward.31} parent=1 // pred_region
      %29 = vsyncadd [#allocation6], 0
      %s31 = sshll.u32 %s2, 4
      %s32 = int_to_ptr.hbm [resolvable:$true] %s31
      %s33 = sshll.u32 [#allocation5], 4
      %s34 = int_to_ptr.vmem [resolvable:$true] %s33
      %36 = dma.hbm_to_vmem [thread:$0]  %s32, 16, %s34, [#allocation6]
    $region13: #{forward.31} parent=1 // pred_fallthru
      _
    // Predicated region
    $region14: #{forward.31} parent=1 // pred_check
      _
    $region15: #{forward.31} parent=1 // pred_check_branch
      %38 = sbr.rel (0) target = $region17
    $region16: #{forward.31} parent=1 // pred_region
      %40 = dma.done [#allocation3], 2048
    $region17: #{forward.31} parent=1 // pred_fallthru
      _
    // Predicated region
    $region18: #{forward.31} parent=1 // pred_check
      _
    $region19: #{forward.31} parent=1 // pred_check_branch
      %42 = sbr.rel (0) target = $region21
    $region20: #{forward.31} parent=1 // pred_region
      %44 = dma.done [#allocation6], 16
    $region21: #{forward.31} parent=1 // pred_fallthru
      _
    %v45 = vld [vmem:[%s0] sm:$0xf]
    %v46 = vld [vmem:[#allocation2] sm:$0xf]
    %v47 = vld [vmem:[#allocation2 + $0x4] sm:$0xf]
    %v48 = vld [vmem:[#allocation2 + $0x8] sm:$0xf]
    %v49 = vld [vmem:[#allocation2 + $0xc] sm:$0xf]
    %v50 = vld [vmem:[#allocation2 + $0x10] sm:$0xf]
    %v51 = vld [vmem:[#allocation2 + $0x14] sm:$0xf]
    %v52 = vld [vmem:[#allocation2 + $0x18] sm:$0xf]
    %v53 = vld [vmem:[#allocation2 + $0x1c] sm:$0xf]
    %v54 = vld [vmem:[#allocation2 + $0x20] sm:$0xf]
    %v55 = vld [vmem:[#allocation2 + $0x24] sm:$0xf]
    %v56 = vld [vmem:[#allocation2 + $0x28] sm:$0xf]
    %v57 = vld [vmem:[#allocation2 + $0x2c] sm:$0xf]
    %v58 = vld [vmem:[#allocation2 + $0x30] sm:$0xf]
    %v59 = vld [vmem:[#allocation2 + $0x34] sm:$0xf]
    %v60 = vld [vmem:[#allocation2 + $0x38] sm:$0xf]
    %v61 = vld [vmem:[#allocation2 + $0x3c] sm:$0xf]
    %v62 = vld [vmem:[#allocation2 + $0x40] sm:$0xf]
    %v63 = vld [vmem:[#allocation2 + $0x44] sm:$0xf]
    %v64 = vld [vmem:[#allocation2 + $0x48] sm:$0xf]
    %v65 = vld [vmem:[#allocation2 + $0x4c] sm:$0xf]
    %v66 = vld [vmem:[#allocation2 + $0x50] sm:$0xf]
    %v67 = vld [vmem:[#allocation2 + $0x54] sm:$0xf]
    %v68 = vld [vmem:[#allocation2 + $0x58] sm:$0xf]
    %v69 = vld [vmem:[#allocation2 + $0x5c] sm:$0xf]
    %v70 = vld [vmem:[#allocation2 + $0x60] sm:$0xf]
    %v71 = vld [vmem:[#allocation2 + $0x64] sm:$0xf]
    %v72 = vld [vmem:[#allocation2 + $0x68] sm:$0xf]
    %v73 = vld [vmem:[#allocation2 + $0x6c] sm:$0xf]
    %v74 = vld [vmem:[#allocation2 + $0x70] sm:$0xf]
    %v75 = vld [vmem:[#allocation2 + $0x74] sm:$0xf]
    %v76 = vld [vmem:[#allocation2 + $0x78] sm:$0xf]
    %v77 = vld [vmem:[#allocation2 + $0x7c] sm:$0xf]
    %v78 = vld [vmem:[#allocation5] sm:$0x1]
    %v80 = vperm.slane %v78, 0
    %83 = vst [vmem:[#allocation1] ss:$4 sm:$0xff] %v45
    %v84 = vld.sshfl [vmem:[#allocation1] sm:$0xff pattern:$0x73625140]
    %v85 = vld.sshfl [vmem:[#allocation1 + $0x8] sm:$0xff pattern:$0x73625140]
    %v120 = vunpack.c.l.b16 %v46
    %v121 = vunpack.c.l.b16 %v47
    %v122 = vunpack.c.l.b16 %v48
    %v123 = vunpack.c.l.b16 %v49
    %v124 = vunpack.c.l.b16 %v50
    %v125 = vunpack.c.l.b16 %v51
    %v126 = vunpack.c.l.b16 %v52
    %v127 = vunpack.c.l.b16 %v53
    %v128 = vunpack.c.l.b16 %v54
    %v129 = vunpack.c.l.b16 %v55
    %v130 = vunpack.c.l.b16 %v56
    %v131 = vunpack.c.l.b16 %v57
    %v132 = vunpack.c.l.b16 %v58
    %v133 = vunpack.c.l.b16 %v59
    %v134 = vunpack.c.l.b16 %v60
    %v135 = vunpack.c.l.b16 %v61
    %v136 = vunpack.c.l.b16 %v62
    %v137 = vunpack.c.l.b16 %v63
    %v138 = vunpack.c.l.b16 %v64
    %v139 = vunpack.c.l.b16 %v65
    %v140 = vunpack.c.l.b16 %v66
    %v141 = vunpack.c.l.b16 %v67
    %v142 = vunpack.c.l.b16 %v68
    %v143 = vunpack.c.l.b16 %v69
    %v144 = vunpack.c.l.b16 %v70
    %v145 = vunpack.c.l.b16 %v71
    %v146 = vunpack.c.l.b16 %v72
    %v147 = vunpack.c.l.b16 %v73
    %v148 = vunpack.c.l.b16 %v74
    %v149 = vunpack.c.l.b16 %v75
    %v150 = vunpack.c.l.b16 %v76
    %v151 = vunpack.c.l.b16 %v77
    %v152 = vpack.c.b16 %v121, %v120
    %v153 = vpack.c.b16 %v123, %v122
    %v154 = vpack.c.b16 %v125, %v124
    %v155 = vpack.c.b16 %v127, %v126
    %v156 = vpack.c.b16 %v129, %v128
    %v157 = vpack.c.b16 %v131, %v130
    %v158 = vpack.c.b16 %v133, %v132
    %v159 = vpack.c.b16 %v135, %v134
    %v160 = vpack.c.b16 %v137, %v136
    %v161 = vpack.c.b16 %v139, %v138
    %v162 = vpack.c.b16 %v141, %v140
    %v163 = vpack.c.b16 %v143, %v142
    %v164 = vpack.c.b16 %v145, %v144
    %v165 = vpack.c.b16 %v147, %v146
    %v166 = vpack.c.b16 %v149, %v148
    %v167 = vpack.c.b16 %v151, %v150
    %184 = vmatpush.bf16.msra.mxu0 %v159
    %185 = vmatpush.bf16.msra.mxu0 %v158
    %186 = vmatpush.bf16.msra.mxu0 %v157
    %187 = vmatpush.bf16.msra.mxu0 %v156
    %188 = vmatpush.bf16.msra.mxu0 %v155
    %189 = vmatpush.bf16.msra.mxu0 %v154
    %190 = vmatpush.bf16.msra.mxu0 %v153
    %191 = vmatpush.bf16.msra.mxu0 %v152
    %192 = vmatmul.bf16.gmra.mxu0 %v84
    %v193 = vpop.f32.mrf.mxu0
    %v194 = vadd.f32 %v80, %v193
    %v195 = vpop.f32.mrf.mxu0
    %196 = vdwg.mxu0
    %197 = vmatpush.bf16.msra.mxu0 %v167
    %198 = vmatpush.bf16.msra.mxu0 %v166
    %199 = vmatpush.bf16.msra.mxu0 %v165
    %200 = vmatpush.bf16.msra.mxu0 %v164
    %201 = vmatpush.bf16.msra.mxu0 %v163
    %202 = vmatpush.bf16.msra.mxu0 %v162
    %203 = vmatpush.bf16.msra.mxu0 %v161
    %204 = vmatpush.bf16.msra.mxu0 %v160
    %205 = vmatmul.bf16.gmra.mxu0 %v85
    %v206 = vpop.f32.mrf.mxu0
    %v207 = vadd.f32 %v194, %v206
    %v208 = vpop.f32.mrf.mxu0
    %209 = vdwg.mxu0
    %210 = vst [vmem:[#allocation7] sm:$0xf] %v207
    // Predicated region
    $region22: #{forward.31} parent=1 // pred_check
      _
    $region23: #{forward.31} parent=1 // pred_check_branch
      %212 = sbr.rel (0) target = $region25
    $region24: #{forward.31} parent=1 // pred_region
      %214 = vsyncadd [#allocation4], 0
      %s216 = sshll.u32 [#allocation7], 4
      %s217 = int_to_ptr.vmem [resolvable:$true] %s216
      %s218 = sshll.u32 %s3, 4
      %s219 = int_to_ptr.hbm [resolvable:$true] %s218
      %221 = dma.vmem_to_hbm [thread:$0]  %s217, 64, %s219, [#allocation4]
    $region25: #{forward.31} parent=1 // pred_fallthru
      _
    // Predicated region
    $region26: #{forward.31} parent=1 // pred_check
      _
    $region27: #{forward.31} parent=1 // pred_check_branch
      %223 = sbr.rel (0) target = $region29
    $region28: #{forward.31} parent=1 // pred_region
      %225 = dma.done [#allocation4], 64
    $region29: #{forward.31} parent=1 // pred_fallthru
      _
    %226 = vsyncpa [#allocation3], 1
    %227 = vsyncpa [#allocation6], 1
    %228 = vsyncpa [#allocation4], 1

// kernel: forward.37
$region0: #{forward.37}
  #allocation0 [shape = 'u32[]', space=smem, size = 0x4, offset = 0x4, fixed_abs, tag = 'smem constant byte address 0x4 - core index']
  #allocation1 [shape = 'u32[72,128]{1,0:T(1,128)}', space=vmem, size = 0x9000, scoped, tag = 'internal scratch']
  %s0 = inlined_call_operand.vmem [shape: bf16[4,512], index: 0, kind: input, shape index: {}]
  %s1 = inlined_call_operand.hbm [shape: bf16[512,256], index: 1, kind: input, shape index: {}]
  %s2 = inlined_call_operand.hbm [shape: f32[1,256], index: 2, kind: input, shape index: {}]
  %s3 = inlined_call_operand.vmem [shape: bf16[4,256], index: 3, kind: input, shape index: {}]
  %s4 = inlined_call_operand.hbm [shape: f32[1,256], index: 4, kind: input, shape index: {}]
  %s5 = inlined_call_operand.hbm [shape: f32[1,256], index: 5, kind: input, shape index: {}]
  %s6 = inlined_call_operand.vmem [shape: bf16[4,256], index: 6, kind: output, shape index: {}]
  %s7 = sld [smem:[#allocation0]]
  $region50: #{forward.37} parent=0
    _
  %s9 = ssub.s32 1, %s7
  %s10 = scalar_select 0, %s9, %s7
  $region1: #{forward.37} parent=0
    #allocation2 [shape = 'u8[262144]{0}', space=vmem, size = 0x40000, scoped, tag = 'input window, operand 1, single buffered']
    #allocation3 [shape = 's32[1]{0}', space=sflag, size = 0x4, scoped, tag = 'scoped memory for forward.37']
    #allocation4 [shape = 'u8[1024]{0}', space=vmem, size = 0x400, scoped, tag = 'input window, operand 2, single buffered']
    #allocation5 [shape = 's32[1]{0}', space=sflag, size = 0x4, scoped, tag = 'scoped memory for forward.37']
    #allocation6 [shape = 'u8[1024]{0}', space=vmem, size = 0x400, scoped, tag = 'input window, operand 4, single buffered']
    #allocation7 [shape = 'u8[1024]{0}', space=vmem, size = 0x400, scoped, tag = 'input window, operand 5, single buffered']
    #allocation8 [shape = 's32[1]{0}', space=sflag, size = 0x4, scoped, tag = 'scoped memory for forward.37']
    %11 = vsyncpa [#allocation3], 0
    %12 = vsyncpa [#allocation5], 0
    %13 = vsyncpa [#allocation8], 0
    // Predicated region
    $region2: #{forward.37} parent=1 // pred_check
      _
    $region3: #{forward.37} parent=1 // pred_check_branch
      %15 = sbr.rel (0) target = $region5
    $region4: #{forward.37} parent=1 // pred_region
      _
    $region5: #{forward.37} parent=1 // pred_fallthru
      _
    // Predicated region
    $region6: #{forward.37} parent=1 // pred_check
      _
    $region7: #{forward.37} parent=1 // pred_check_branch
      %17 = sbr.rel (0) target = $region9
    $region8: #{forward.37} parent=1 // pred_region
      %19 = vsyncadd [#allocation3], 0
      %s20 = sshll.u32 %s1, 4
      %s21 = int_to_ptr.hbm [resolvable:$true] %s20
      %s22 = sshll.u32 [#allocation2], 4
      %s23 = int_to_ptr.vmem [resolvable:$true] %s22
      %28 = dma.hbm_to_vmem [thread:$0]  %s21, 8192, %s23, [#allocation3], 128, 128, 8
    $region9: #{forward.37} parent=1 // pred_fallthru
      _
    // Predicated region
    $region10: #{forward.37} parent=1 // pred_check
      _
    $region11: #{forward.37} parent=1 // pred_check_branch
      %30 = sbr.rel (0) target = $region13
    $region12: #{forward.37} parent=1 // pred_region
      %32 = vsyncadd [#allocation5], 0
      %s34 = sshll.u32 %s2, 4
      %s35 = int_to_ptr.hbm [resolvable:$true] %s34
      %s36 = sshll.u32 [#allocation4], 4
      %s37 = int_to_ptr.vmem [resolvable:$true] %s36
      %39 = dma.hbm_to_vmem [thread:$0]  %s35, 32, %s37, [#allocation5]
    $region13: #{forward.37} parent=1 // pred_fallthru
      _
    // Predicated region
    $region14: #{forward.37} parent=1 // pred_check
      _
    $region15: #{forward.37} parent=1 // pred_check_branch
      %41 = sbr.rel (0) target = $region17
    $region16: #{forward.37} parent=1 // pred_region
      _
    $region17: #{forward.37} parent=1 // pred_fallthru
      _
    // Predicated region
    $region18: #{forward.37} parent=1 // pred_check
      _
    $region19: #{forward.37} parent=1 // pred_check_branch
      %43 = sbr.rel (0) target = $region21
    $region20: #{forward.37} parent=1 // pred_region
      %45 = vsyncadd [#allocation5], 0
      %s47 = sshll.u32 %s4, 4
      %s48 = int_to_ptr.hbm [resolvable:$true] %s47
      %s49 = sshll.u32 [#allocation6], 4
      %s50 = int_to_ptr.vmem [resolvable:$true] %s49
      %52 = dma.hbm_to_vmem [thread:$0]  %s48, 32, %s50, [#allocation5]
    $region21: #{forward.37} parent=1 // pred_fallthru
      _
    // Predicated region
    $region22: #{forward.37} parent=1 // pred_check
      _
    $region23: #{forward.37} parent=1 // pred_check_branch
      %54 = sbr.rel (0) target = $region25
    $region24: #{forward.37} parent=1 // pred_region
      %56 = vsyncadd [#allocation8], 0
      %s58 = sshll.u32 %s5, 4
      %s59 = int_to_ptr.hbm [resolvable:$true] %s58
      %s60 = sshll.u32 [#allocation7], 4
      %s61 = int_to_ptr.vmem [resolvable:$true] %s60
      %63 = dma.hbm_to_vmem [thread:$0]  %s59, 32, %s61, [#allocation8]
    $region25: #{forward.37} parent=1 // pred_fallthru
      _
    // Predicated region
    $region26: #{forward.37} parent=1 // pred_check
      _
    $region27: #{forward.37} parent=1 // pred_check_branch
      %65 = sbr.rel (0) target = $region29
    $region28: #{forward.37} parent=1 // pred_region
      %67 = dma.done [#allocation3], 8192
    $region29: #{forward.37} parent=1 // pred_fallthru
      _
    // Predicated region
    $region30: #{forward.37} parent=1 // pred_check
      _
    $region31: #{forward.37} parent=1 // pred_check_branch
      %69 = sbr.rel (0) target = $region33
    $region32: #{forward.37} parent=1 // pred_region
      %71 = dma.done [#allocation5], 32
    $region33: #{forward.37} parent=1 // pred_fallthru
      _
    // Predicated region
    $region34: #{forward.37} parent=1 // pred_check
      _
    $region35: #{forward.37} parent=1 // pred_check_branch
      %73 = sbr.rel (0) target = $region37
    $region36: #{forward.37} parent=1 // pred_region
      %75 = dma.done [#allocation5], 32
    $region37: #{forward.37} parent=1 // pred_fallthru
      _
    // Predicated region
    $region38: #{forward.37} parent=1 // pred_check
      _
    $region39: #{forward.37} parent=1 // pred_check_branch
      %77 = sbr.rel (0) target = $region41
    $region40: #{forward.37} parent=1 // pred_region
      %79 = dma.done [#allocation8], 32
    $region41: #{forward.37} parent=1 // pred_fallthru
      _
    %v80 = vld [vmem:[%s0] sm:$0xff]
    %v81 = vld [vmem:[#allocation2] sm:$0xff]
    %v82 = vld [vmem:[#allocation2 + $0x8] sm:$0xff]
    %v83 = vld [vmem:[#allocation2 + $0x10] sm:$0xff]
    %v84 = vld [vmem:[#allocation2 + $0x18] sm:$0xff]
    %v85 = vld [vmem:[#allocation2 + $0x20] sm:$0xff]
    %v86 = vld [vmem:[#allocation2 + $0x28] sm:$0xff]
    %v87 = vld [vmem:[#allocation2 + $0x30] sm:$0xff]
    %v88 = vld [vmem:[#allocation2 + $0x38] sm:$0xff]
    %v89 = vld [vmem:[#allocation2 + $0x40] sm:$0xff]
    %v90 = vld [vmem:[#allocation2 + $0x48] sm:$0xff]
    %v91 = vld [vmem:[#allocation2 + $0x50] sm:$0xff]
    %v92 = vld [vmem:[#allocation2 + $0x58] sm:$0xff]
    %v93 = vld [vmem:[#allocation2 + $0x60] sm:$0xff]
    %v94 = vld [vmem:[#allocation2 + $0x68] sm:$0xff]
    %v95 = vld [vmem:[#allocation2 + $0x70] sm:$0xff]
    %v96 = vld [vmem:[#allocation2 + $0x78] sm:$0xff]
    %v97 = vld [vmem:[#allocation2 + $0x80] sm:$0xff]
    %v98 = vld [vmem:[#allocation2 + $0x88] sm:$0xff]
    %v99 = vld [vmem:[#allocation2 + $0x90] sm:$0xff]
    %v100 = vld [vmem:[#allocation2 + $0x98] sm:$0xff]
    %v101 = vld [vmem:[#allocation2 + $0xa0] sm:$0xff]
    %v102 = vld [vmem:[#allocation2 + $0xa8] sm:$0xff]
    %v103 = vld [vmem:[#allocation2 + $0xb0] sm:$0xff]
    %v104 = vld [vmem:[#allocation2 + $0xb8] sm:$0xff]
    %v105 = vld [vmem:[#allocation2 + $0xc0] sm:$0xff]
    %v106 = vld [vmem:[#allocation2 + $0xc8] sm:$0xff]
    %v107 = vld [vmem:[#allocation2 + $0xd0] sm:$0xff]
    %v108 = vld [vmem:[#allocation2 + $0xd8] sm:$0xff]
    %v109 = vld [vmem:[#allocation2 + $0xe0] sm:$0xff]
    %v110 = vld [vmem:[#allocation2 + $0xe8] sm:$0xff]
    %v111 = vld [vmem:[#allocation2 + $0xf0] sm:$0xff]
    %v112 = vld [vmem:[#allocation2 + $0xf8] sm:$0xff]
    %v113 = vld [vmem:[#allocation2 + $0x100] sm:$0xff]
    %v114 = vld [vmem:[#allocation2 + $0x108] sm:$0xff]
    %v115 = vld [vmem:[#allocation2 + $0x110] sm:$0xff]
    %v116 = vld [vmem:[#allocation2 + $0x118] sm:$0xff]
    %v117 = vld [vmem:[#allocation2 + $0x120] sm:$0xff]
    %v118 = vld [vmem:[#allocation2 + $0x128] sm:$0xff]
    %v119 = vld [vmem:[#allocation2 + $0x130] sm:$0xff]
    %v120 = vld [vmem:[#allocation2 + $0x138] sm:$0xff]
    %v121 = vld [vmem:[#allocation2 + $0x140] sm:$0xff]
    %v122 = vld [vmem:[#allocation2 + $0x148] sm:$0xff]
    %v123 = vld [vmem:[#allocation2 + $0x150] sm:$0xff]
    %v124 = vld [vmem:[#allocation2 + $0x158] sm:$0xff]
    %v125 = vld [vmem:[#allocation2 + $0x160] sm:$0xff]
    %v126 = vld [vmem:[#allocation2 + $0x168] sm:$0xff]
    %v127 = vld [vmem:[#allocation2 + $0x170] sm:$0xff]
    %v128 = vld [vmem:[#allocation2 + $0x178] sm:$0xff]
    %v129 = vld [vmem:[#allocation2 + $0x180] sm:$0xff]
    %v130 = vld [vmem:[#allocation2 + $0x188] sm:$0xff]
    %v131 = vld [vmem:[#allocation2 + $0x190] sm:$0xff]
    %v132 = vld [vmem:[#allocation2 + $0x198] sm:$0xff]
    %v133 = vld [vmem:[#allocation2 + $0x1a0] sm:$0xff]
    %v134 = vld [vmem:[#allocation2 + $0x1a8] sm:$0xff]
    %v135 = vld [vmem:[#allocation2 + $0x1b0] sm:$0xff]
    %v136 = vld [vmem:[#allocation2 + $0x1b8] sm:$0xff]
    %v137 = vld [vmem:[#allocation2 + $0x1c0] sm:$0xff]
    %v138 = vld [vmem:[#allocation2 + $0x1c8] sm:$0xff]
    %v139 = vld [vmem:[#allocation2 + $0x1d0] sm:$0xff]
    %v140 = vld [vmem:[#allocation2 + $0x1d8] sm:$0xff]
    %v141 = vld [vmem:[#allocation2 + $0x1e0] sm:$0xff]
    %v142 = vld [vmem:[#allocation2 + $0x1e8] sm:$0xff]
    %v143 = vld [vmem:[#allocation2 + $0x1f0] sm:$0xff]
    %v144 = vld [vmem:[#allocation2 + $0x1f8] sm:$0xff]
    %v145 = vld [vmem:[#allocation4] sm:$0x3]
    %v147 = vperm.slane %v145, 0
    %v148 = vperm.slane %v145, 1
    %152 = vst [vmem:[#allocation1] ss:$4 sm:$0xff] %v80
    %v153 = vld.sshfl [vmem:[#allocation1] sm:$0xff pattern:$0x73625140]
    %v154 = vld.sshfl [vmem:[#allocation1 + $0x8] sm:$0xff pattern:$0x73625140]
    %v155 = vld.sshfl [vmem:[#allocation1 + $0x10] sm:$0xff pattern:$0x73625140]
    %v156 = vld.sshfl [vmem:[#allocation1 + $0x18] sm:$0xff pattern:$0x73625140]
    %v225 = vunpack.c.l.b16 %v81
    %v226 = vunpack.c.h.b16 %v81
    %v227 = vunpack.c.l.b16 %v82
    %v228 = vunpack.c.h.b16 %v82
    %v229 = vunpack.c.l.b16 %v83
    %v230 = vunpack.c.h.b16 %v83
    %v231 = vunpack.c.l.b16 %v84
    %v232 = vunpack.c.h.b16 %v84
    %v233 = vunpack.c.l.b16 %v85
    %v234 = vunpack.c.h.b16 %v85
    %v235 = vunpack.c.l.b16 %v86
    %v236 = vunpack.c.h.b16 %v86
    %v237 = vunpack.c.l.b16 %v87
    %v238 = vunpack.c.h.b16 %v87
    %v239 = vunpack.c.l.b16 %v88
    %v240 = vunpack.c.h.b16 %v88
    %v241 = vunpack.c.l.b16 %v89
    %v242 = vunpack.c.h.b16 %v89
    %v243 = vunpack.c.l.b16 %v90
    %v244 = vunpack.c.h.b16 %v90
    %v245 = vunpack.c.l.b16 %v91
    %v246 = vunpack.c.h.b16 %v91
    %v247 = vunpack.c.l.b16 %v92
    %v248 = vunpack.c.h.b16 %v92
    %v249 = vunpack.c.l.b16 %v93
    %v250 = vunpack.c.h.b16 %v93
    %v251 = vunpack.c.l.b16 %v94
    %v252 = vunpack.c.h.b16 %v94
    %v253 = vunpack.c.l.b16 %v95
    %v254 = vunpack.c.h.b16 %v95
    %v255 = vunpack.c.l.b16 %v96
    %v256 = vunpack.c.h.b16 %v96
    %v257 = vunpack.c.l.b16 %v97
    %v258 = vunpack.c.h.b16 %v97
    %v259 = vunpack.c.l.b16 %v98
    %v260 = vunpack.c.h.b16 %v98
    %v261 = vunpack.c.l.b16 %v99
    %v262 = vunpack.c.h.b16 %v99
    %v263 = vunpack.c.l.b16 %v100
    %v264 = vunpack.c.h.b16 %v100
    %v265 = vunpack.c.l.b16 %v101
    %v266 = vunpack.c.h.b16 %v101
    %v267 = vunpack.c.l.b16 %v102
    %v268 = vunpack.c.h.b16 %v102
    %v269 = vunpack.c.l.b16 %v103
    %v270 = vunpack.c.h.b16 %v103
    %v271 = vunpack.c.l.b16 %v104
    %v272 = vunpack.c.h.b16 %v104
    %v273 = vunpack.c.l.b16 %v105
    %v274 = vunpack.c.h.b16 %v105
    %v275 = vunpack.c.l.b16 %v106
    %v276 = vunpack.c.h.b16 %v106
    %v277 = vunpack.c.l.b16 %v107
    %v278 = vunpack.c.h.b16 %v107
    %v279 = vunpack.c.l.b16 %v108
    %v280 = vunpack.c.h.b16 %v108
    %v281 = vunpack.c.l.b16 %v109
    %v282 = vunpack.c.h.b16 %v109
    %v283 = vunpack.c.l.b16 %v110
    %v284 = vunpack.c.h.b16 %v110
    %v285 = vunpack.c.l.b16 %v111
    %v286 = vunpack.c.h.b16 %v111
    %v287 = vunpack.c.l.b16 %v112
    %v288 = vunpack.c.h.b16 %v112
    %v289 = vunpack.c.l.b16 %v113
    %v290 = vunpack.c.h.b16 %v113
    %v291 = vunpack.c.l.b16 %v114
    %v292 = vunpack.c.h.b16 %v114
    %v293 = vunpack.c.l.b16 %v115
    %v294 = vunpack.c.h.b16 %v115
    %v295 = vunpack.c.l.b16 %v116
    %v296 = vunpack.c.h.b16 %v116
    %v297 = vunpack.c.l.b16 %v117
    %v298 = vunpack.c.h.b16 %v117
    %v299 = vunpack.c.l.b16 %v118
    %v300 = vunpack.c.h.b16 %v118
    %v301 = vunpack.c.l.b16 %v119
    %v302 = vunpack.c.h.b16 %v119
    %v303 = vunpack.c.l.b16 %v120
    %v304 = vunpack.c.h.b16 %v120
    %v305 = vunpack.c.l.b16 %v121
    %v306 = vunpack.c.h.b16 %v121
    %v307 = vunpack.c.l.b16 %v122
    %v308 = vunpack.c.h.b16 %v122
    %v309 = vunpack.c.l.b16 %v123
    %v310 = vunpack.c.h.b16 %v123
    %v311 = vunpack.c.l.b16 %v124
    %v312 = vunpack.c.h.b16 %v124
    %v313 = vunpack.c.l.b16 %v125
    %v314 = vunpack.c.h.b16 %v125
    %v315 = vunpack.c.l.b16 %v126
    %v316 = vunpack.c.h.b16 %v126
    %v317 = vunpack.c.l.b16 %v127
    %v318 = vunpack.c.h.b16 %v127
    %v319 = vunpack.c.l.b16 %v128
    %v320 = vunpack.c.h.b16 %v128
    %v321 = vunpack.c.l.b16 %v129
    %v322 = vunpack.c.h.b16 %v129
    %v323 = vunpack.c.l.b16 %v130
    %v324 = vunpack.c.h.b16 %v130
    %v325 = vunpack.c.l.b16 %v131
    %v326 = vunpack.c.h.b16 %v131
    %v327 = vunpack.c.l.b16 %v132
    %v328 = vunpack.c.h.b16 %v132
    %v329 = vunpack.c.l.b16 %v133
    %v330 = vunpack.c.h.b16 %v133
    %v331 = vunpack.c.l.b16 %v134
    %v332 = vunpack.c.h.b16 %v134
    %v333 = vunpack.c.l.b16 %v135
    %v334 = vunpack.c.h.b16 %v135
    %v335 = vunpack.c.l.b16 %v136
    %v336 = vunpack.c.h.b16 %v136
    %v337 = vunpack.c.l.b16 %v137
    %v338 = vunpack.c.h.b16 %v137
    %v339 = vunpack.c.l.b16 %v138
    %v340 = vunpack.c.h.b16 %v138
    %v341 = vunpack.c.l.b16 %v139
    %v342 = vunpack.c.h.b16 %v139
    %v343 = vunpack.c.l.b16 %v140
    %v344 = vunpack.c.h.b16 %v140
    %v345 = vunpack.c.l.b16 %v141
    %v346 = vunpack.c.h.b16 %v141
    %v347 = vunpack.c.l.b16 %v142
    %v348 = vunpack.c.h.b16 %v142
    %v349 = vunpack.c.l.b16 %v143
    %v350 = vunpack.c.h.b16 %v143
    %v351 = vunpack.c.l.b16 %v144
    %v352 = vunpack.c.h.b16 %v144
    %v353 = vpack.c.b16 %v227, %v225
    %v354 = vpack.c.b16 %v228, %v226
    %v355 = vpack.c.b16 %v231, %v229
    %v356 = vpack.c.b16 %v232, %v230
    %v357 = vpack.c.b16 %v235, %v233
    %v358 = vpack.c.b16 %v236, %v234
    %v359 = vpack.c.b16 %v239, %v237
    %v360 = vpack.c.b16 %v240, %v238
    %v361 = vpack.c.b16 %v243, %v241
    %v362 = vpack.c.b16 %v244, %v242
    %v363 = vpack.c.b16 %v247, %v245
    %v364 = vpack.c.b16 %v248, %v246
    %v365 = vpack.c.b16 %v251, %v249
    %v366 = vpack.c.b16 %v252, %v250
    %v367 = vpack.c.b16 %v255, %v253
    %v368 = vpack.c.b16 %v256, %v254
    %v369 = vpack.c.b16 %v259, %v257
    %v370 = vpack.c.b16 %v260, %v258
    %v371 = vpack.c.b16 %v263, %v261
    %v372 = vpack.c.b16 %v264, %v262
    %v373 = vpack.c.b16 %v267, %v265
    %v374 = vpack.c.b16 %v268, %v266
    %v375 = vpack.c.b16 %v271, %v269
    %v376 = vpack.c.b16 %v272, %v270
    %v377 = vpack.c.b16 %v275, %v273
    %v378 = vpack.c.b16 %v276, %v274
    %v379 = vpack.c.b16 %v279, %v277
    %v380 = vpack.c.b16 %v280, %v278
    %v381 = vpack.c.b16 %v283, %v281
    %v382 = vpack.c.b16 %v284, %v282
    %v383 = vpack.c.b16 %v287, %v285
    %v384 = vpack.c.b16 %v288, %v286
    %v385 = vpack.c.b16 %v291, %v289
    %v386 = vpack.c.b16 %v292, %v290
    %v387 = vpack.c.b16 %v295, %v293
    %v388 = vpack.c.b16 %v296, %v294
    %v389 = vpack.c.b16 %v299, %v297
    %v390 = vpack.c.b16 %v300, %v298
    %v391 = vpack.c.b16 %v303, %v301
    %v392 = vpack.c.b16 %v304, %v302
    %v393 = vpack.c.b16 %v307, %v305
    %v394 = vpack.c.b16 %v308, %v306
    %v395 = vpack.c.b16 %v311, %v309
    %v396 = vpack.c.b16 %v312, %v310
    %v397 = vpack.c.b16 %v315, %v313
    %v398 = vpack.c.b16 %v316, %v314
    %v399 = vpack.c.b16 %v319, %v317
    %v400 = vpack.c.b16 %v320, %v318
    %v401 = vpack.c.b16 %v323, %v321
    %v402 = vpack.c.b16 %v324, %v322
    %v403 = vpack.c.b16 %v327, %v325
    %v404 = vpack.c.b16 %v328, %v326
    %v405 = vpack.c.b16 %v331, %v329
    %v406 = vpack.c.b16 %v332, %v330
    %v407 = vpack.c.b16 %v335, %v333
    %v408 = vpack.c.b16 %v336, %v334
    %v409 = vpack.c.b16 %v339, %v337
    %v410 = vpack.c.b16 %v340, %v338
    %v411 = vpack.c.b16 %v343, %v341
    %v412 = vpack.c.b16 %v344, %v342
    %v413 = vpack.c.b16 %v347, %v345
    %v414 = vpack.c.b16 %v348, %v346
    %v415 = vpack.c.b16 %v351, %v349
    %v416 = vpack.c.b16 %v352, %v350
    %481 = vmatpush.bf16.msra.mxu0 %v367
    %482 = vmatpush.bf16.msra.mxu0 %v365
    %483 = vmatpush.bf16.msra.mxu0 %v363
    %484 = vmatpush.bf16.msra.mxu0 %v361
    %485 = vmatpush.bf16.msra.mxu0 %v359
    %486 = vmatpush.bf16.msra.mxu0 %v357
    %487 = vmatpush.bf16.msra.mxu0 %v355
    %488 = vmatpush.bf16.msra.mxu0 %v353
    %489 = vmatmul.bf16.gmra.mxu0 %v153
    %v490 = vpop.f32.mrf.mxu0
    %v491 = vadd.f32 %v147, %v490
    %v492 = vpop.f32.mrf.mxu0
    %493 = vdwg.mxu0
    %494 = vmatpush.bf16.msra.mxu0 %v383
    %495 = vmatpush.bf16.msra.mxu0 %v381
    %496 = vmatpush.bf16.msra.mxu0 %v379
    %497 = vmatpush.bf16.msra.mxu0 %v377
    %498 = vmatpush.bf16.msra.mxu0 %v375
    %499 = vmatpush.bf16.msra.mxu0 %v373
    %500 = vmatpush.bf16.msra.mxu0 %v371
    %501 = vmatpush.bf16.msra.mxu0 %v369
    %502 = vmatmul.bf16.gmra.mxu0 %v154
    %v503 = vpop.f32.mrf.mxu0
    %v504 = vadd.f32 %v491, %v503
    %v505 = vpop.f32.mrf.mxu0
    %506 = vdwg.mxu0
    %507 = vmatpush.bf16.msra.mxu0 %v399
    %508 = vmatpush.bf16.msra.mxu0 %v397
    %509 = vmatpush.bf16.msra.mxu0 %v395
    %510 = vmatpush.bf16.msra.mxu0 %v393
    %511 = vmatpush.bf16.msra.mxu0 %v391
    %512 = vmatpush.bf16.msra.mxu0 %v389
    %513 = vmatpush.bf16.msra.mxu0 %v387
    %514 = vmatpush.bf16.msra.mxu0 %v385
    %515 = vmatmul.bf16.gmra.mxu0 %v155
    %v516 = vpop.f32.mrf.mxu0
    %v517 = vadd.f32 %v504, %v516
    %v518 = vpop.f32.mrf.mxu0
    %519 = vdwg.mxu0
    %520 = vmatpush.bf16.msra.mxu0 %v415
    %521 = vmatpush.bf16.msra.mxu0 %v413
    %522 = vmatpush.bf16.msra.mxu0 %v411
    %523 = vmatpush.bf16.msra.mxu0 %v409
    %524 = vmatpush.bf16.msra.mxu0 %v407
    %525 = vmatpush.bf16.msra.mxu0 %v405
    %526 = vmatpush.bf16.msra.mxu0 %v403
    %527 = vmatpush.bf16.msra.mxu0 %v401
    %528 = vmatmul.bf16.gmra.mxu0 %v156
    %v529 = vpop.f32.mrf.mxu0
    %v530 = vadd.f32 %v517, %v529
    %v531 = vpop.f32.mrf.mxu0
    %532 = vdwg.mxu0
    %533 = vmatpush.bf16.msra.mxu0 %v368
    %534 = vmatpush.bf16.msra.mxu0 %v366
    %535 = vmatpush.bf16.msra.mxu0 %v364
    %536 = vmatpush.bf16.msra.mxu0 %v362
    %537 = vmatpush.bf16.msra.mxu0 %v360
    %538 = vmatpush.bf16.msra.mxu0 %v358
    %539 = vmatpush.bf16.msra.mxu0 %v356
    %540 = vmatpush.bf16.msra.mxu0 %v354
    %541 = vmatmul.bf16.gmra.mxu0 %v153
    %v542 = vpop.f32.mrf.mxu0
    %v543 = vadd.f32 %v148, %v542
    %v544 = vpop.f32.mrf.mxu0
    %545 = vdwg.mxu0
    %546 = vmatpush.bf16.msra.mxu0 %v384
    %547 = vmatpush.bf16.msra.mxu0 %v382
    %548 = vmatpush.bf16.msra.mxu0 %v380
    %549 = vmatpush.bf16.msra.mxu0 %v378
    %550 = vmatpush.bf16.msra.mxu0 %v376
    %551 = vmatpush.bf16.msra.mxu0 %v374
    %552 = vmatpush.bf16.msra.mxu0 %v372
    %553 = vmatpush.bf16.msra.mxu0 %v370
    %554 = vmatmul.bf16.gmra.mxu0 %v154
    %v555 = vpop.f32.mrf.mxu0
    %v556 = vadd.f32 %v543, %v555
    %v557 = vpop.f32.mrf.mxu0
    %558 = vdwg.mxu0
    %559 = vmatpush.bf16.msra.mxu0 %v400
    %560 = vmatpush.bf16.msra.mxu0 %v398
    %561 = vmatpush.bf16.msra.mxu0 %v396
    %562 = vmatpush.bf16.msra.mxu0 %v394
    %563 = vmatpush.bf16.msra.mxu0 %v392
    %564 = vmatpush.bf16.msra.mxu0 %v390
    %565 = vmatpush.bf16.msra.mxu0 %v388
    %566 = vmatpush.bf16.msra.mxu0 %v386
    %567 = vmatmul.bf16.gmra.mxu0 %v155
    %v568 = vpop.f32.mrf.mxu0
    %v569 = vadd.f32 %v556, %v568
    %v570 = vpop.f32.mrf.mxu0
    %571 = vdwg.mxu0
    %572 = vmatpush.bf16.msra.mxu0 %v416
    %573 = vmatpush.bf16.msra.mxu0 %v414
    %574 = vmatpush.bf16.msra.mxu0 %v412
    %575 = vmatpush.bf16.msra.mxu0 %v410
    %576 = vmatpush.bf16.msra.mxu0 %v408
    %577 = vmatpush.bf16.msra.mxu0 %v406
    %578 = vmatpush.bf16.msra.mxu0 %v404
    %579 = vmatpush.bf16.msra.mxu0 %v402
    %580 = vmatmul.bf16.gmra.mxu0 %v156
    %v581 = vpop.f32.mrf.mxu0
    %v582 = vadd.f32 %v569, %v581
    %v583 = vpop.f32.mrf.mxu0
    %584 = vdwg.mxu0
    %v585 = vld [vmem:[%s3] sm:$0xf]
    %v586 = vunpack.c.l.bf16 %v585
    %588 = vst [vmem:[#allocation1] ss:$2 sm:$0xff] %v586
    %v589 = vld.sshfl [vmem:[#allocation1] sm:$0xff pattern:$0x75316420]
    %v590 = vld.sshfl [vmem:[#allocation1 + $0x8] sm:$0xff pattern:$0x75316420]
    %v593 = vadd.f32 %v530, %v589
    %v594 = vadd.f32 %v582, %v590
    %vm595 = vcmask 1043456
    %v596 = vsel %vm595, %v593, 0.0
    %v597 = vsel %vm595, %v594, 0.0
    %v598 = vadd.f32 %v596, %v597
    %599 = vadd.xlane.f32.xlu0 %v598
    %v600 = vpop.xlane.xlu0 %599
    %v601 = vrcp.pop 256.0
    %v602 = vmul.f32 256.0, %v601
    %v603 = vsub.f32 1.0, %v602
    %v604 = vmul.f32 %v601, %v603
    %v605 = vadd.f32 %v601, %v604
    %vm606 = vweird.f32 %v601
    %v607 = vsel %vm606, %v601, %v605
    %v608 = vmul.f32 %v600, %v607
    %v609 = vsub.f32 %v593, %v608
    %v610 = vsub.f32 %v594, %v608
    %v611 = vmul.f32 %v609, %v609
    %v612 = vmul.f32 %v610, %v610
    %v613 = vsel %vm595, %v611, 0.0
    %v614 = vsel %vm595, %v612, 0.0
    %v615 = vadd.f32 %v613, %v614
    %616 = vadd.xlane.f32.xlu0 %v615
    %v617 = vpop.xlane.xlu0 %616
    %v618 = vmul.f32 %v617, %v607
    %v619 = vadd.f32 %v618, 1e-05
    %v620 = vrsqrt.pop %v619
    %v621 = vmul.f32 %v620, %v619
    %v622 = vmul.f32 %v621, %v620
    %v623 = vmul.f32 0.5, %v622
    %v624 = vsub.f32 1.5, %v623
    %v625 = vmul.f32 %v620, %v624
    %vm626 = vweird.f32 %v619
    %vm627 = vweird.f32 %v620
    %vm628 = vmor %vm626, %vm627
    %v629 = vsel %vm628, %v620, %v625
    %v630 = vmul.f32 %v609, %v629
    %v631 = vmul.f32 %v610, %v629
    %v632 = vld [vmem:[#allocation6] sm:$0x3]
    %v634 = vperm.slane %v632, 0
    %v635 = vperm.slane %v632, 1
    %v638 = vmul.f32 %v630, %v634
    %v639 = vmul.f32 %v631, %v635
    %v640 = vld [vmem:[#allocation7] sm:$0x3]
    %v642 = vperm.slane %v640, 0
    %v643 = vperm.slane %v640, 1
    %v646 = vadd.f32 %v638, %v642
    %v647 = vadd.f32 %v639, %v643
    %v648 = vpack.c.bf16 %v647, %v646
    %v650 = vrot.slane %v648, 2
    %vm651 = vcmask 1041408
    %v654 = vsel %vm651, %v648, %v650
    %656 = vst [vmem:[%s6] sm:$0xf] %v654
    // Predicated region
    $region42: #{forward.37} parent=1 // pred_check
      _
    $region43: #{forward.37} parent=1 // pred_check_branch
      %658 = sbr.rel (0) target = $region45
    $region44: #{forward.37} parent=1 // pred_region
      _
    $region45: #{forward.37} parent=1 // pred_fallthru
      _
    // Predicated region
    $region46: #{forward.37} parent=1 // pred_check
      _
    $region47: #{forward.37} parent=1 // pred_check_branch
      %660 = sbr.rel (0) target = $region49
    $region48: #{forward.37} parent=1 // pred_region
      _
    $region49: #{forward.37} parent=1 // pred_fallthru
      _
    %661 = vsyncpa [#allocation3], 1
    %662 = vsyncpa [#allocation5], 1
    %663 = vsyncpa [#allocation8], 1

</llo_original>
